<compile_context>
chip_gen: v5e
topology: v5e:2x2
jax: 0.10.0
libtpu: 0.0.40
codegen_flags: <defaults>
</compile_context>

<pallas_src>
import functools

import jax
import jax.numpy as jnp
from jax import lax
from jax.experimental import pallas as pl
from jax.experimental.pallas import tpu as pltpu

NN_SIZE = 10


# ----------------------------------------------------------------------------
# tile-size helpers
# ----------------------------------------------------------------------------
def _pick_row_tile(n):
    """Largest multiple-of-8 divisor of n with TM*N <= 256K f32 (VMEM budget)."""
    cap = max(8, min(128, (1 << 18) // max(n, 1)))
    best = None
    t = 8
    while t <= min(cap, n):
        if n % t == 0:
            best = t
        t += 8
    return best if best is not None else n  # full block is always legal


def _pick_lane_tile(nl):
    """Largest multiple-of-128 divisor of nl (<=512), else the full extent."""
    best = None
    t = 128
    while t <= min(512, nl):
        if nl % t == 0:
            best = t
        t += 128
    return best if best is not None else nl


# ----------------------------------------------------------------------------
# Kernel A: fused pairwise distance + kNN selection + neighbourhood moments
# ----------------------------------------------------------------------------
def _knn_moments_kernel(q_ref, k_ref, b_ref, bq_ref, ma_ref, mb_ref, *, nn_size):
    # q_ref : (1, TM, 3)  query rows of cloud A (defines the kNN)
    # k_ref : (1, 3, N)   cloud A transposed (kNN keys + A moments)
    # b_ref : (1, 3, N)   cloud B transposed (B moments, grouped by A's kNN)
    # bq_ref: (1, TM, 3)  cloud B rows aligned with the query rows (shift)
    # ma_ref, mb_ref: (1, TM, 16) packed per-point moment sums
    tm = q_ref.shape[1]
    n = k_ref.shape[2]
    q = q_ref[0]                     # (TM, 3)
    bq = bq_ref[0]                   # (TM, 3)

    # Shifted key coordinates (p - q_r): reused for distances AND A moments.
    dax = k_ref[0, 0:1, :] - q[:, 0:1]          # (TM, N)
    day = k_ref[0, 1:2, :] - q[:, 1:2]
    daz = k_ref[0, 2:3, :] - q[:, 2:3]
    d = dax * dax + day * day + daz * daz        # exact 0 self-distance, VPU only

    colf = lax.broadcasted_iota(jnp.int32, (tm, n), 1).astype(jnp.float32)
    big = jnp.float32(3.0e38)
    selmask = jnp.zeros((tm, n), jnp.float32)

    # Unrolled top-K selection: per iteration pick exactly one column per row
    # (smallest distance, ties broken by smallest index) and knock it out.
    for _ in range(nn_size):
        m = jnp.min(d, axis=-1, keepdims=True)                              # (TM,1)
        idx = jnp.min(jnp.where(d <= m, colf, big), axis=-1, keepdims=True)  # (TM,1)
        hit = colf == idx                                                   # (TM,N)
        selmask = jnp.where(hit, 1.0, selmask)
        d = jnp.where(hit, big, d)

    # Shifted cloud-B coordinates (grouped by cloud A's kNN mask).
    dbx = b_ref[0, 0:1, :] - bq[:, 0:1]
    dby = b_ref[0, 1:2, :] - bq[:, 1:2]
    dbz = b_ref[0, 2:3, :] - bq[:, 2:3]

    def moments(dx, dy, dz):
        mx = selmask * dx
        my = selmask * dy
        mz = selmask * dz
        red = lambda t: jnp.sum(t, axis=-1, keepdims=True)   # (TM, 1)
        return (red(mx), red(my), red(mz),
                red(mx * dx), red(mx * dy), red(mx * dz),
                red(my * dy), red(my * dz), red(mz * dz))

    lane = lax.broadcasted_iota(jnp.int32, (tm, 16), 1)

    def pack(vals):
        out = jnp.zeros((tm, 16), jnp.float32)
        for j, v in enumerate(vals):
            out = jnp.where(lane == j, v, out)
        return out

    ma_ref[0] = pack(moments(dax, day, daz))
    mb_ref[0] = pack(moments(dbx, dby, dbz))


def _knn_moments(a, b, nn_size):
    """kNN of cloud `a`; returns packed moment sums for `a` and for `b`
    (both grouped by `a`'s neighbour indices).  Shapes: (B, N, 16) each."""
    bsz, n, _ = a.shape
    a_t = jnp.transpose(a, (0, 2, 1))            # (B, 3, N) — N on lanes
    b_t = jnp.transpose(b, (0, 2, 1))
    tm = _pick_row_tile(n)
    kern = functools.partial(_knn_moments_kernel, nn_size=nn_size)
    return pl.pallas_call(
        kern,
        out_shape=(jax.ShapeDtypeStruct((bsz, n, 16), jnp.float32),
                   jax.ShapeDtypeStruct((bsz, n, 16), jnp.float32)),
        grid=(bsz, n // tm),
        in_specs=[pl.BlockSpec((1, tm, 3), lambda i, j: (i, j, 0)),
                  pl.BlockSpec((1, 3, n), lambda i, j: (i, 0, 0)),
                  pl.BlockSpec((1, 3, n), lambda i, j: (i, 0, 0)),
                  pl.BlockSpec((1, tm, 3), lambda i, j: (i, j, 0))],
        out_specs=(pl.BlockSpec((1, tm, 16), lambda i, j: (i, j, 0)),
                   pl.BlockSpec((1, tm, 16), lambda i, j: (i, j, 0))),
        compiler_params=pltpu.CompilerParams(
            dimension_semantics=("parallel", "parallel"),
            vmem_limit_bytes=32 * 1024 * 1024),
    )(a, a_t, b_t, b)


# ----------------------------------------------------------------------------
# Kernel B: smallest-eigenvector normal from moments + cosine loss
# (all math on dense (8, TILE) tiles: point index on sublanes AND lanes)
# ----------------------------------------------------------------------------
def _normal_from_moments(m_ref, nn_size):
    inv_k = 1.0 / float(nn_size)
    sx, sy, sz = m_ref[0, 0], m_ref[0, 1], m_ref[0, 2]
    sxx, sxy, sxz = m_ref[0, 3], m_ref[0, 4], m_ref[0, 5]
    syy, syz, szz = m_ref[0, 6], m_ref[0, 7], m_ref[0, 8]

    mx, my, mz = sx * inv_k, sy * inv_k, sz * inv_k
    cxx = sxx * inv_k - mx * mx
    cxy = sxy * inv_k - mx * my
    cxz = sxz * inv_k - mx * mz
    cyy = syy * inv_k - my * my
    cyz = syz * inv_k - my * mz
    czz = szz * inv_k - mz * mz

    # Trace-normalise (eigenvectors unchanged, eigenvalues in [0, 1]).
    tr = cxx + cyy + czz + 1e-30
    itr = 1.0 / tr
    a00, a01, a02 = cxx * itr, cxy * itr, cxz * itr
    a11, a12, a22 = cyy * itr, cyz * itr, czz * itr

    # Characteristic cubic q(l) = l^3 - c2 l^2 + c1 l - c0 (PSD matrix).
    c2 = a00 + a11 + a22
    c1 = (a00 * a11 - a01 * a01) + (a00 * a22 - a02 * a02) + (a11 * a22 - a12 * a12)
    c0 = (a00 * (a11 * a22 - a12 * a12)
          - a01 * (a01 * a22 - a12 * a02)
          + a02 * (a01 * a12 - a11 * a02))

    # Smallest eigenvalue: short, fully unrolled Newton from 0 (monotone),
    # with the division on the EUP slot via approx reciprocal.
    lam = jnp.zeros_like(c2)
    for _ in range(12):
        qv = ((lam - c2) * lam + c1) * lam - c0
        dq = (3.0 * lam - 2.0 * c2) * lam + c1
        dq = jnp.where(jnp.abs(dq) < 1e-20, 1e-20, dq)
        lam = lam - qv * pl.reciprocal(dq, approx=True)

    # Eigenvector = null direction of (A - lam I): best cross product of rows.
    m00, m11, m22 = a00 - lam, a11 - lam, a22 - lam
    r0 = (m00, a01, a02)
    r1 = (a01, m11, a12)
    r2 = (a02, a12, m22)

    def cross(u, v):
        return (u[1] * v[2] - u[2] * v[1],
                u[2] * v[0] - u[0] * v[2],
                u[0] * v[1] - u[1] * v[0])

    cands = [cross(r0, r1), cross(r1, r2), cross(r0, r2)]
    bx, by, bz = cands[0]
    bn = bx * bx + by * by + bz * bz
    for ux, uy, uz in cands[1:]:
        un = ux * ux + uy * uy + uz * uz
        take = un > bn
        bx = jnp.where(take, ux, bx)
        by = jnp.where(take, uy, by)
        bz = jnp.where(take, uz, bz)
        bn = jnp.where(take, un, bn)

    inv = lax.rsqrt(jnp.maximum(bn, 1e-30))
    nx, ny, nz = bx * inv, by * inv, bz * inv
    # TODO(synk): deterministic z>=0 sign convention (SVD sign is arbitrary).
    s = jnp.where(nz < 0.0, -1.0, 1.0)
    return nx * s, ny * s, nz * s


def _eig_loss_kernel(ma_ref, mb_ref, out_ref, *, nn_size):
    gx, gy, gz = _normal_from_moments(ma_ref, nn_size)
    px, py, pz = _normal_from_moments(mb_ref, nn_size)
    eps = jnp.float32(1e-8)
    dotp = gx * px + gy * py + gz * pz
    gn = jnp.maximum(jnp.sqrt(gx * gx + gy * gy + gz * gz), eps)
    pn = jnp.maximum(jnp.sqrt(px * px + py * py + pz * pz), eps)
    out_ref[0] = 1.0 - dotp / (gn * pn)


def _loss_from_moments(mom_a, mom_b, nn_size):
    bsz, n, c = mom_a.shape
    n8 = ((n + 7) // 8) * 8
    if n8 != n:                       # pad to a multiple of 8 (loss on the pad
        pad = ((0, 0), (0, n8 - n), (0, 0))  # is finite and sliced off below)
        mom_a = jnp.pad(mom_a, pad)
        mom_b = jnp.pad(mom_b, pad)
    nl = n8 // 8
    # (B, N, 16) -> (B, 16, 8, N/8): point index on sublanes + lanes (dense).
    ma = jnp.transpose(mom_a, (0, 2, 1)).reshape(bsz, c, 8, nl)
    mb = jnp.transpose(mom_b, (0, 2, 1)).reshape(bsz, c, 8, nl)
    tl = _pick_lane_tile(nl)
    kern = functools.partial(_eig_loss_kernel, nn_size=nn_size)
    loss = pl.pallas_call(
        kern,
        out_shape=jax.ShapeDtypeStruct((bsz, 8, nl), jnp.float32),
        grid=(bsz, nl // tl),
        in_specs=[pl.BlockSpec((1, c, 8, tl), lambda i, j: (i, 0, 0, j)),
                  pl.BlockSpec((1, c, 8, tl), lambda i, j: (i, 0, 0, j))],
        out_specs=pl.BlockSpec((1, 8, tl), lambda i, j: (i, 0, j)),
        compiler_params=pltpu.CompilerParams(
            dimension_semantics=("parallel", "parallel")),
    )(ma, mb)
    return loss.reshape(bsz, n8)[:, :n]           # (B, N)


# ----------------------------------------------------------------------------
# Forward pass
# ----------------------------------------------------------------------------
def normal_loss(gt, pred, idx12=None, nn_size=NN_SIZE, reduction="mean"):
    gt = gt.astype(jnp.float32)
    pred = pred.astype(jnp.float32)

    if idx12 is None:
        # Known correspondence: pred normals use gt's kNN indices.
        mom_gt, mom_pr = _knn_moments(gt, pred, nn_size)
    else:
        pred = jnp.take_along_axis(pred, idx12[:, :, None], axis=1)
        mom_gt, _ = _knn_moments(gt, gt, nn_size)
        mom_pr, _ = _knn_moments(pred, pred, nn_size)

    loss = _loss_from_moments(mom_gt, mom_pr, nn_size)      # (B, N)

    if reduction == "mean":
        # reference calls `loss.mean(loss)` (a bug); intended global mean.
        return loss.mean()
    elif reduction == "max":
        return jnp.max(loss, axis=-1).mean()
    elif reduction == "sum":
        return jnp.sum(loss, axis=-1).mean()
    return loss


if __name__ == "__main__":
    key = jax.random.PRNGKey(0)
    k1, k2 = jax.random.split(key)
    B, N = 2, 256
    gt = jax.random.normal(k1, (B, N, 3), dtype=jnp.float32)
    pred = gt + 0.05 * jax.random.normal(k2, (B, N, 3), dtype=jnp.float32)

    out = jax.jit(normal_loss)(gt, pred)
    jax.block_until_ready(out)
    assert out.shape == () and bool(jnp.isfinite(out))
    print("KERNEL_OK")
</pallas_src>

<mosaic_0001>
module attributes {stable_mosaic.version = 11 : i64} {
  func.func @_knn_moments_kernel(%arg0: i32, %arg1: i32, %arg2: memref<1x128x3xf32, #tpu.memory_space<vmem>>, %arg3: memref<1x3x256xf32, #tpu.memory_space<vmem>>, %arg4: memref<1x3x256xf32, #tpu.memory_space<vmem>>, %arg5: memref<1x128x3xf32, #tpu.memory_space<vmem>>, %arg6: memref<1x128x16xf32, #tpu.memory_space<vmem>>, %arg7: memref<1x128x16xf32, #tpu.memory_space<vmem>>) attributes {dimension_semantics = [#tpu.dimension_semantics<parallel>, #tpu.dimension_semantics<parallel>], iteration_bounds = array<i64: 2, 2>, scalar_prefetch = 0 : i64, scratch_operands = 0 : i64, tpu.core_type = #tpu.core_type<tc>, window_params = [{transform_indices = @transform_0, window_bounds = array<i64: 1, 128, 3>}, {transform_indices = @transform_1, window_bounds = array<i64: 1, 3, 256>}, {transform_indices = @transform_2, window_bounds = array<i64: 1, 3, 256>}, {transform_indices = @transform_3, window_bounds = array<i64: 1, 128, 3>}, {transform_indices = @transform_4, window_bounds = array<i64: 1, 128, 16>}, {transform_indices = @transform_5, window_bounds = array<i64: 1, 128, 16>}]} {
    %c0 = arith.constant 0 : index
    %c0_0 = arith.constant 0 : index
    %c0_1 = arith.constant 0 : index
    %0 = vector.load %arg2[%c0, %c0_0, %c0_1] : memref<1x128x3xf32, #tpu.memory_space<vmem>>, vector<1x128x3xf32>
    %1 = vector.shape_cast %0 : vector<1x128x3xf32> to vector<128x3xf32>
    %c0_2 = arith.constant 0 : index
    %c0_3 = arith.constant 0 : index
    %c0_4 = arith.constant 0 : index
    %2 = vector.load %arg5[%c0_2, %c0_3, %c0_4] : memref<1x128x3xf32, #tpu.memory_space<vmem>>, vector<1x128x3xf32>
    %3 = vector.shape_cast %2 : vector<1x128x3xf32> to vector<128x3xf32>
    %c0_5 = arith.constant 0 : index
    %c0_6 = arith.constant 0 : index
    %c0_7 = arith.constant 0 : index
    %4 = vector.load %arg3[%c0_5, %c0_6, %c0_7] : memref<1x3x256xf32, #tpu.memory_space<vmem>>, vector<1x1x256xf32>
    %5 = vector.shape_cast %4 : vector<1x1x256xf32> to vector<1x256xf32>
    %6 = vector.extract_strided_slice %1 {offsets = [0, 0], sizes = [128, 1], strides = [1, 1]} : vector<128x3xf32> to vector<128x1xf32>
    %7 = vector.broadcast %5 : vector<1x256xf32> to vector<128x256xf32>
    %8 = vector.broadcast %6 : vector<128x1xf32> to vector<128x256xf32>
    %9 = arith.subf %7, %8 : vector<128x256xf32>
    %c0_8 = arith.constant 0 : index
    %c1 = arith.constant 1 : index
    %c0_9 = arith.constant 0 : index
    %10 = vector.load %arg3[%c0_8, %c1, %c0_9] : memref<1x3x256xf32, #tpu.memory_space<vmem>>, vector<1x1x256xf32>
    %11 = vector.shape_cast %10 : vector<1x1x256xf32> to vector<1x256xf32>
    %12 = vector.extract_strided_slice %1 {offsets = [0, 1], sizes = [128, 1], strides = [1, 1]} : vector<128x3xf32> to vector<128x1xf32>
    %13 = vector.broadcast %11 : vector<1x256xf32> to vector<128x256xf32>
    %14 = vector.broadcast %12 : vector<128x1xf32> to vector<128x256xf32>
    %15 = arith.subf %13, %14 : vector<128x256xf32>
    %c0_10 = arith.constant 0 : index
    %c2 = arith.constant 2 : index
    %c0_11 = arith.constant 0 : index
    %16 = vector.load %arg3[%c0_10, %c2, %c0_11] : memref<1x3x256xf32, #tpu.memory_space<vmem>>, vector<1x1x256xf32>
    %17 = vector.shape_cast %16 : vector<1x1x256xf32> to vector<1x256xf32>
    %18 = vector.extract_strided_slice %1 {offsets = [0, 2], sizes = [128, 1], strides = [1, 1]} : vector<128x3xf32> to vector<128x1xf32>
    %19 = vector.broadcast %17 : vector<1x256xf32> to vector<128x256xf32>
    %20 = vector.broadcast %18 : vector<128x1xf32> to vector<128x256xf32>
    %21 = arith.subf %19, %20 : vector<128x256xf32>
    %22 = arith.mulf %9, %9 : vector<128x256xf32>
    %23 = arith.mulf %15, %15 : vector<128x256xf32>
    %24 = arith.addf %22, %23 : vector<128x256xf32>
    %25 = arith.mulf %21, %21 : vector<128x256xf32>
    %26 = arith.addf %24, %25 : vector<128x256xf32>
    %27 = tpu.iota {dimensions = array<i32: 1>} : vector<128x256xi32>
    %28 = arith.sitofp %27 : vector<128x256xi32> to vector<128x256xf32>
    %cst = arith.constant 0.000000e+00 : f32
    %29 = vector.broadcast %cst : f32 to vector<128x256xf32>
    %cst_12 = arith.constant dense<0x7F800000> : vector<128xf32>
    %30 = vector.multi_reduction <minimumf>, %26, %cst_12 [1] : vector<128x256xf32> to vector<128xf32>
    %31 = vector.shape_cast %30 : vector<128xf32> to vector<128x1xf32>
    %32 = vector.broadcast %31 : vector<128x1xf32> to vector<128x256xf32>
    %33 = arith.cmpf ole, %26, %32 : vector<128x256xf32>
    %cst_13 = arith.constant 3.000000e+38 : f32
    %34 = vector.broadcast %cst_13 : f32 to vector<128x256xf32>
    %35 = arith.select %33, %28, %34 : vector<128x256xi1>, vector<128x256xf32>
    %cst_14 = arith.constant dense<0x7F800000> : vector<128xf32>
    %36 = vector.multi_reduction <minimumf>, %35, %cst_14 [1] : vector<128x256xf32> to vector<128xf32>
    %37 = vector.shape_cast %36 : vector<128xf32> to vector<128x1xf32>
    %38 = vector.broadcast %37 : vector<128x1xf32> to vector<128x256xf32>
    %39 = arith.cmpf oeq, %28, %38 : vector<128x256xf32>
    %cst_15 = arith.constant 1.000000e+00 : f32
    %40 = vector.broadcast %cst_15 : f32 to vector<128x256xf32>
    %41 = arith.select %39, %40, %29 : vector<128x256xi1>, vector<128x256xf32>
    %cst_16 = arith.constant 3.000000e+38 : f32
    %42 = vector.broadcast %cst_16 : f32 to vector<128x256xf32>
    %43 = arith.select %39, %42, %26 : vector<128x256xi1>, vector<128x256xf32>
    %cst_17 = arith.constant dense<0x7F800000> : vector<128xf32>
    %44 = vector.multi_reduction <minimumf>, %43, %cst_17 [1] : vector<128x256xf32> to vector<128xf32>
    %45 = vector.shape_cast %44 : vector<128xf32> to vector<128x1xf32>
    %46 = vector.broadcast %45 : vector<128x1xf32> to vector<128x256xf32>
    %47 = arith.cmpf ole, %43, %46 : vector<128x256xf32>
    %cst_18 = arith.constant 3.000000e+38 : f32
    %48 = vector.broadcast %cst_18 : f32 to vector<128x256xf32>
    %49 = arith.select %47, %28, %48 : vector<128x256xi1>, vector<128x256xf32>
    %cst_19 = arith.constant dense<0x7F800000> : vector<128xf32>
    %50 = vector.multi_reduction <minimumf>, %49, %cst_19 [1] : vector<128x256xf32> to vector<128xf32>
    %51 = vector.shape_cast %50 : vector<128xf32> to vector<128x1xf32>
    %52 = vector.broadcast %51 : vector<128x1xf32> to vector<128x256xf32>
    %53 = arith.cmpf oeq, %28, %52 : vector<128x256xf32>
    %cst_20 = arith.constant 1.000000e+00 : f32
    %54 = vector.broadcast %cst_20 : f32 to vector<128x256xf32>
    %55 = arith.select %53, %54, %41 : vector<128x256xi1>, vector<128x256xf32>
    %cst_21 = arith.constant 3.000000e+38 : f32
    %56 = vector.broadcast %cst_21 : f32 to vector<128x256xf32>
    %57 = arith.select %53, %56, %43 : vector<128x256xi1>, vector<128x256xf32>
    %cst_22 = arith.constant dense<0x7F800000> : vector<128xf32>
    %58 = vector.multi_reduction <minimumf>, %57, %cst_22 [1] : vector<128x256xf32> to vector<128xf32>
    %59 = vector.shape_cast %58 : vector<128xf32> to vector<128x1xf32>
    %60 = vector.broadcast %59 : vector<128x1xf32> to vector<128x256xf32>
    %61 = arith.cmpf ole, %57, %60 : vector<128x256xf32>
    %cst_23 = arith.constant 3.000000e+38 : f32
    %62 = vector.broadcast %cst_23 : f32 to vector<128x256xf32>
    %63 = arith.select %61, %28, %62 : vector<128x256xi1>, vector<128x256xf32>
    %cst_24 = arith.constant dense<0x7F800000> : vector<128xf32>
    %64 = vector.multi_reduction <minimumf>, %63, %cst_24 [1] : vector<128x256xf32> to vector<128xf32>
    %65 = vector.shape_cast %64 : vector<128xf32> to vector<128x1xf32>
    %66 = vector.broadcast %65 : vector<128x1xf32> to vector<128x256xf32>
    %67 = arith.cmpf oeq, %28, %66 : vector<128x256xf32>
    %cst_25 = arith.constant 1.000000e+00 : f32
    %68 = vector.broadcast %cst_25 : f32 to vector<128x256xf32>
    %69 = arith.select %67, %68, %55 : vector<128x256xi1>, vector<128x256xf32>
    %cst_26 = arith.constant 3.000000e+38 : f32
    %70 = vector.broadcast %cst_26 : f32 to vector<128x256xf32>
    %71 = arith.select %67, %70, %57 : vector<128x256xi1>, vector<128x256xf32>
    %cst_27 = arith.constant dense<0x7F800000> : vector<128xf32>
    %72 = vector.multi_reduction <minimumf>, %71, %cst_27 [1] : vector<128x256xf32> to vector<128xf32>
    %73 = vector.shape_cast %72 : vector<128xf32> to vector<128x1xf32>
    %74 = vector.broadcast %73 : vector<128x1xf32> to vector<128x256xf32>
    %75 = arith.cmpf ole, %71, %74 : vector<128x256xf32>
    %cst_28 = arith.constant 3.000000e+38 : f32
    %76 = vector.broadcast %cst_28 : f32 to vector<128x256xf32>
    %77 = arith.select %75, %28, %76 : vector<128x256xi1>, vector<128x256xf32>
    %cst_29 = arith.constant dense<0x7F800000> : vector<128xf32>
    %78 = vector.multi_reduction <minimumf>, %77, %cst_29 [1] : vector<128x256xf32> to vector<128xf32>
    %79 = vector.shape_cast %78 : vector<128xf32> to vector<128x1xf32>
    %80 = vector.broadcast %79 : vector<128x1xf32> to vector<128x256xf32>
    %81 = arith.cmpf oeq, %28, %80 : vector<128x256xf32>
    %cst_30 = arith.constant 1.000000e+00 : f32
    %82 = vector.broadcast %cst_30 : f32 to vector<128x256xf32>
    %83 = arith.select %81, %82, %69 : vector<128x256xi1>, vector<128x256xf32>
    %cst_31 = arith.constant 3.000000e+38 : f32
    %84 = vector.broadcast %cst_31 : f32 to vector<128x256xf32>
    %85 = arith.select %81, %84, %71 : vector<128x256xi1>, vector<128x256xf32>
    %cst_32 = arith.constant dense<0x7F800000> : vector<128xf32>
    %86 = vector.multi_reduction <minimumf>, %85, %cst_32 [1] : vector<128x256xf32> to vector<128xf32>
    %87 = vector.shape_cast %86 : vector<128xf32> to vector<128x1xf32>
    %88 = vector.broadcast %87 : vector<128x1xf32> to vector<128x256xf32>
    %89 = arith.cmpf ole, %85, %88 : vector<128x256xf32>
    %cst_33 = arith.constant 3.000000e+38 : f32
    %90 = vector.broadcast %cst_33 : f32 to vector<128x256xf32>
    %91 = arith.select %89, %28, %90 : vector<128x256xi1>, vector<128x256xf32>
    %cst_34 = arith.constant dense<0x7F800000> : vector<128xf32>
    %92 = vector.multi_reduction <minimumf>, %91, %cst_34 [1] : vector<128x256xf32> to vector<128xf32>
    %93 = vector.shape_cast %92 : vector<128xf32> to vector<128x1xf32>
    %94 = vector.broadcast %93 : vector<128x1xf32> to vector<128x256xf32>
    %95 = arith.cmpf oeq, %28, %94 : vector<128x256xf32>
    %cst_35 = arith.constant 1.000000e+00 : f32
    %96 = vector.broadcast %cst_35 : f32 to vector<128x256xf32>
    %97 = arith.select %95, %96, %83 : vector<128x256xi1>, vector<128x256xf32>
    %cst_36 = arith.constant 3.000000e+38 : f32
    %98 = vector.broadcast %cst_36 : f32 to vector<128x256xf32>
    %99 = arith.select %95, %98, %85 : vector<128x256xi1>, vector<128x256xf32>
    %cst_37 = arith.constant dense<0x7F800000> : vector<128xf32>
    %100 = vector.multi_reduction <minimumf>, %99, %cst_37 [1] : vector<128x256xf32> to vector<128xf32>
    %101 = vector.shape_cast %100 : vector<128xf32> to vector<128x1xf32>
    %102 = vector.broadcast %101 : vector<128x1xf32> to vector<128x256xf32>
    %103 = arith.cmpf ole, %99, %102 : vector<128x256xf32>
    %cst_38 = arith.constant 3.000000e+38 : f32
    %104 = vector.broadcast %cst_38 : f32 to vector<128x256xf32>
    %105 = arith.select %103, %28, %104 : vector<128x256xi1>, vector<128x256xf32>
    %cst_39 = arith.constant dense<0x7F800000> : vector<128xf32>
    %106 = vector.multi_reduction <minimumf>, %105, %cst_39 [1] : vector<128x256xf32> to vector<128xf32>
    %107 = vector.shape_cast %106 : vector<128xf32> to vector<128x1xf32>
    %108 = vector.broadcast %107 : vector<128x1xf32> to vector<128x256xf32>
    %109 = arith.cmpf oeq, %28, %108 : vector<128x256xf32>
    %cst_40 = arith.constant 1.000000e+00 : f32
    %110 = vector.broadcast %cst_40 : f32 to vector<128x256xf32>
    %111 = arith.select %109, %110, %97 : vector<128x256xi1>, vector<128x256xf32>
    %cst_41 = arith.constant 3.000000e+38 : f32
    %112 = vector.broadcast %cst_41 : f32 to vector<128x256xf32>
    %113 = arith.select %109, %112, %99 : vector<128x256xi1>, vector<128x256xf32>
    %cst_42 = arith.constant dense<0x7F800000> : vector<128xf32>
    %114 = vector.multi_reduction <minimumf>, %113, %cst_42 [1] : vector<128x256xf32> to vector<128xf32>
    %115 = vector.shape_cast %114 : vector<128xf32> to vector<128x1xf32>
    %116 = vector.broadcast %115 : vector<128x1xf32> to vector<128x256xf32>
    %117 = arith.cmpf ole, %113, %116 : vector<128x256xf32>
    %cst_43 = arith.constant 3.000000e+38 : f32
    %118 = vector.broadcast %cst_43 : f32 to vector<128x256xf32>
    %119 = arith.select %117, %28, %118 : vector<128x256xi1>, vector<128x256xf32>
    %cst_44 = arith.constant dense<0x7F800000> : vector<128xf32>
    %120 = vector.multi_reduction <minimumf>, %119, %cst_44 [1] : vector<128x256xf32> to vector<128xf32>
    %121 = vector.shape_cast %120 : vector<128xf32> to vector<128x1xf32>
    %122 = vector.broadcast %121 : vector<128x1xf32> to vector<128x256xf32>
    %123 = arith.cmpf oeq, %28, %122 : vector<128x256xf32>
    %cst_45 = arith.constant 1.000000e+00 : f32
    %124 = vector.broadcast %cst_45 : f32 to vector<128x256xf32>
    %125 = arith.select %123, %124, %111 : vector<128x256xi1>, vector<128x256xf32>
    %cst_46 = arith.constant 3.000000e+38 : f32
    %126 = vector.broadcast %cst_46 : f32 to vector<128x256xf32>
    %127 = arith.select %123, %126, %113 : vector<128x256xi1>, vector<128x256xf32>
    %cst_47 = arith.constant dense<0x7F800000> : vector<128xf32>
    %128 = vector.multi_reduction <minimumf>, %127, %cst_47 [1] : vector<128x256xf32> to vector<128xf32>
    %129 = vector.shape_cast %128 : vector<128xf32> to vector<128x1xf32>
    %130 = vector.broadcast %129 : vector<128x1xf32> to vector<128x256xf32>
    %131 = arith.cmpf ole, %127, %130 : vector<128x256xf32>
    %cst_48 = arith.constant 3.000000e+38 : f32
    %132 = vector.broadcast %cst_48 : f32 to vector<128x256xf32>
    %133 = arith.select %131, %28, %132 : vector<128x256xi1>, vector<128x256xf32>
    %cst_49 = arith.constant dense<0x7F800000> : vector<128xf32>
    %134 = vector.multi_reduction <minimumf>, %133, %cst_49 [1] : vector<128x256xf32> to vector<128xf32>
    %135 = vector.shape_cast %134 : vector<128xf32> to vector<128x1xf32>
    %136 = vector.broadcast %135 : vector<128x1xf32> to vector<128x256xf32>
    %137 = arith.cmpf oeq, %28, %136 : vector<128x256xf32>
    %cst_50 = arith.constant 1.000000e+00 : f32
    %138 = vector.broadcast %cst_50 : f32 to vector<128x256xf32>
    %139 = arith.select %137, %138, %125 : vector<128x256xi1>, vector<128x256xf32>
    %cst_51 = arith.constant 3.000000e+38 : f32
    %140 = vector.broadcast %cst_51 : f32 to vector<128x256xf32>
    %141 = arith.select %137, %140, %127 : vector<128x256xi1>, vector<128x256xf32>
    %cst_52 = arith.constant dense<0x7F800000> : vector<128xf32>
    %142 = vector.multi_reduction <minimumf>, %141, %cst_52 [1] : vector<128x256xf32> to vector<128xf32>
    %143 = vector.shape_cast %142 : vector<128xf32> to vector<128x1xf32>
    %144 = vector.broadcast %143 : vector<128x1xf32> to vector<128x256xf32>
    %145 = arith.cmpf ole, %141, %144 : vector<128x256xf32>
    %cst_53 = arith.constant 3.000000e+38 : f32
    %146 = vector.broadcast %cst_53 : f32 to vector<128x256xf32>
    %147 = arith.select %145, %28, %146 : vector<128x256xi1>, vector<128x256xf32>
    %cst_54 = arith.constant dense<0x7F800000> : vector<128xf32>
    %148 = vector.multi_reduction <minimumf>, %147, %cst_54 [1] : vector<128x256xf32> to vector<128xf32>
    %149 = vector.shape_cast %148 : vector<128xf32> to vector<128x1xf32>
    %150 = vector.broadcast %149 : vector<128x1xf32> to vector<128x256xf32>
    %151 = arith.cmpf oeq, %28, %150 : vector<128x256xf32>
    %cst_55 = arith.constant 1.000000e+00 : f32
    %152 = vector.broadcast %cst_55 : f32 to vector<128x256xf32>
    %153 = arith.select %151, %152, %139 : vector<128x256xi1>, vector<128x256xf32>
    %cst_56 = arith.constant 3.000000e+38 : f32
    %154 = vector.broadcast %cst_56 : f32 to vector<128x256xf32>
    %155 = arith.select %151, %154, %141 : vector<128x256xi1>, vector<128x256xf32>
    %cst_57 = arith.constant dense<0x7F800000> : vector<128xf32>
    %156 = vector.multi_reduction <minimumf>, %155, %cst_57 [1] : vector<128x256xf32> to vector<128xf32>
    %157 = vector.shape_cast %156 : vector<128xf32> to vector<128x1xf32>
    %158 = vector.broadcast %157 : vector<128x1xf32> to vector<128x256xf32>
    %159 = arith.cmpf ole, %155, %158 : vector<128x256xf32>
    %cst_58 = arith.constant 3.000000e+38 : f32
    %160 = vector.broadcast %cst_58 : f32 to vector<128x256xf32>
    %161 = arith.select %159, %28, %160 : vector<128x256xi1>, vector<128x256xf32>
    %cst_59 = arith.constant dense<0x7F800000> : vector<128xf32>
    %162 = vector.multi_reduction <minimumf>, %161, %cst_59 [1] : vector<128x256xf32> to vector<128xf32>
    %163 = vector.shape_cast %162 : vector<128xf32> to vector<128x1xf32>
    %164 = vector.broadcast %163 : vector<128x1xf32> to vector<128x256xf32>
    %165 = arith.cmpf oeq, %28, %164 : vector<128x256xf32>
    %cst_60 = arith.constant 1.000000e+00 : f32
    %166 = vector.broadcast %cst_60 : f32 to vector<128x256xf32>
    %167 = arith.select %165, %166, %153 : vector<128x256xi1>, vector<128x256xf32>
    %c0_61 = arith.constant 0 : index
    %c0_62 = arith.constant 0 : index
    %c0_63 = arith.constant 0 : index
    %168 = vector.load %arg4[%c0_61, %c0_62, %c0_63] : memref<1x3x256xf32, #tpu.memory_space<vmem>>, vector<1x1x256xf32>
    %169 = vector.shape_cast %168 : vector<1x1x256xf32> to vector<1x256xf32>
    %170 = vector.extract_strided_slice %3 {offsets = [0, 0], sizes = [128, 1], strides = [1, 1]} : vector<128x3xf32> to vector<128x1xf32>
    %171 = vector.broadcast %169 : vector<1x256xf32> to vector<128x256xf32>
    %172 = vector.broadcast %170 : vector<128x1xf32> to vector<128x256xf32>
    %173 = arith.subf %171, %172 : vector<128x256xf32>
    %c0_64 = arith.constant 0 : index
    %c1_65 = arith.constant 1 : index
    %c0_66 = arith.constant 0 : index
    %174 = vector.load %arg4[%c0_64, %c1_65, %c0_66] : memref<1x3x256xf32, #tpu.memory_space<vmem>>, vector<1x1x256xf32>
    %175 = vector.shape_cast %174 : vector<1x1x256xf32> to vector<1x256xf32>
    %176 = vector.extract_strided_slice %3 {offsets = [0, 1], sizes = [128, 1], strides = [1, 1]} : vector<128x3xf32> to vector<128x1xf32>
    %177 = vector.broadcast %175 : vector<1x256xf32> to vector<128x256xf32>
    %178 = vector.broadcast %176 : vector<128x1xf32> to vector<128x256xf32>
    %179 = arith.subf %177, %178 : vector<128x256xf32>
    %c0_67 = arith.constant 0 : index
    %c2_68 = arith.constant 2 : index
    %c0_69 = arith.constant 0 : index
    %180 = vector.load %arg4[%c0_67, %c2_68, %c0_69] : memref<1x3x256xf32, #tpu.memory_space<vmem>>, vector<1x1x256xf32>
    %181 = vector.shape_cast %180 : vector<1x1x256xf32> to vector<1x256xf32>
    %182 = vector.extract_strided_slice %3 {offsets = [0, 2], sizes = [128, 1], strides = [1, 1]} : vector<128x3xf32> to vector<128x1xf32>
    %183 = vector.broadcast %181 : vector<1x256xf32> to vector<128x256xf32>
    %184 = vector.broadcast %182 : vector<128x1xf32> to vector<128x256xf32>
    %185 = arith.subf %183, %184 : vector<128x256xf32>
    %186 = tpu.iota {dimensions = array<i32: 1>} : vector<128x16xi32>
    %187 = arith.mulf %167, %9 : vector<128x256xf32>
    %188 = arith.mulf %167, %15 : vector<128x256xf32>
    %189 = arith.mulf %167, %21 : vector<128x256xf32>
    %cst_70 = arith.constant dense<0.000000e+00> : vector<128xf32>
    %190 = vector.multi_reduction <add>, %187, %cst_70 [1] : vector<128x256xf32> to vector<128xf32>
    %191 = vector.shape_cast %190 : vector<128xf32> to vector<128x1xf32>
    %cst_71 = arith.constant dense<0.000000e+00> : vector<128xf32>
    %192 = vector.multi_reduction <add>, %188, %cst_71 [1] : vector<128x256xf32> to vector<128xf32>
    %193 = vector.shape_cast %192 : vector<128xf32> to vector<128x1xf32>
    %cst_72 = arith.constant dense<0.000000e+00> : vector<128xf32>
    %194 = vector.multi_reduction <add>, %189, %cst_72 [1] : vector<128x256xf32> to vector<128xf32>
    %195 = vector.shape_cast %194 : vector<128xf32> to vector<128x1xf32>
    %196 = arith.mulf %187, %9 : vector<128x256xf32>
    %cst_73 = arith.constant dense<0.000000e+00> : vector<128xf32>
    %197 = vector.multi_reduction <add>, %196, %cst_73 [1] : vector<128x256xf32> to vector<128xf32>
    %198 = vector.shape_cast %197 : vector<128xf32> to vector<128x1xf32>
    %199 = arith.mulf %187, %15 : vector<128x256xf32>
    %cst_74 = arith.constant dense<0.000000e+00> : vector<128xf32>
    %200 = vector.multi_reduction <add>, %199, %cst_74 [1] : vector<128x256xf32> to vector<128xf32>
    %201 = vector.shape_cast %200 : vector<128xf32> to vector<128x1xf32>
    %202 = arith.mulf %187, %21 : vector<128x256xf32>
    %cst_75 = arith.constant dense<0.000000e+00> : vector<128xf32>
    %203 = vector.multi_reduction <add>, %202, %cst_75 [1] : vector<128x256xf32> to vector<128xf32>
    %204 = vector.shape_cast %203 : vector<128xf32> to vector<128x1xf32>
    %205 = arith.mulf %188, %15 : vector<128x256xf32>
    %cst_76 = arith.constant dense<0.000000e+00> : vector<128xf32>
    %206 = vector.multi_reduction <add>, %205, %cst_76 [1] : vector<128x256xf32> to vector<128xf32>
    %207 = vector.shape_cast %206 : vector<128xf32> to vector<128x1xf32>
    %208 = arith.mulf %188, %21 : vector<128x256xf32>
    %cst_77 = arith.constant dense<0.000000e+00> : vector<128xf32>
    %209 = vector.multi_reduction <add>, %208, %cst_77 [1] : vector<128x256xf32> to vector<128xf32>
    %210 = vector.shape_cast %209 : vector<128xf32> to vector<128x1xf32>
    %211 = arith.mulf %189, %21 : vector<128x256xf32>
    %cst_78 = arith.constant dense<0.000000e+00> : vector<128xf32>
    %212 = vector.multi_reduction <add>, %211, %cst_78 [1] : vector<128x256xf32> to vector<128xf32>
    %213 = vector.shape_cast %212 : vector<128xf32> to vector<128x1xf32>
    %cst_79 = arith.constant 0.000000e+00 : f32
    %214 = vector.broadcast %cst_79 : f32 to vector<128x16xf32>
    %c0_i32 = arith.constant 0 : i32
    %215 = vector.broadcast %c0_i32 : i32 to vector<128x16xi32>
    %216 = arith.cmpi eq, %186, %215 : vector<128x16xi32>
    %217 = vector.shape_cast %191 : vector<128x1xf32> to vector<128x1xf32>
    %218 = vector.broadcast %217 : vector<128x1xf32> to vector<128x16xf32>
    %219 = arith.select %216, %218, %214 : vector<128x16xi1>, vector<128x16xf32>
    %c1_i32 = arith.constant 1 : i32
    %220 = vector.broadcast %c1_i32 : i32 to vector<128x16xi32>
    %221 = arith.cmpi eq, %186, %220 : vector<128x16xi32>
    %222 = vector.shape_cast %193 : vector<128x1xf32> to vector<128x1xf32>
    %223 = vector.broadcast %222 : vector<128x1xf32> to vector<128x16xf32>
    %224 = arith.select %221, %223, %219 : vector<128x16xi1>, vector<128x16xf32>
    %c2_i32 = arith.constant 2 : i32
    %225 = vector.broadcast %c2_i32 : i32 to vector<128x16xi32>
    %226 = arith.cmpi eq, %186, %225 : vector<128x16xi32>
    %227 = vector.shape_cast %195 : vector<128x1xf32> to vector<128x1xf32>
    %228 = vector.broadcast %227 : vector<128x1xf32> to vector<128x16xf32>
    %229 = arith.select %226, %228, %224 : vector<128x16xi1>, vector<128x16xf32>
    %c3_i32 = arith.constant 3 : i32
    %230 = vector.broadcast %c3_i32 : i32 to vector<128x16xi32>
    %231 = arith.cmpi eq, %186, %230 : vector<128x16xi32>
    %232 = vector.shape_cast %198 : vector<128x1xf32> to vector<128x1xf32>
    %233 = vector.broadcast %232 : vector<128x1xf32> to vector<128x16xf32>
    %234 = arith.select %231, %233, %229 : vector<128x16xi1>, vector<128x16xf32>
    %c4_i32 = arith.constant 4 : i32
    %235 = vector.broadcast %c4_i32 : i32 to vector<128x16xi32>
    %236 = arith.cmpi eq, %186, %235 : vector<128x16xi32>
    %237 = vector.shape_cast %201 : vector<128x1xf32> to vector<128x1xf32>
    %238 = vector.broadcast %237 : vector<128x1xf32> to vector<128x16xf32>
    %239 = arith.select %236, %238, %234 : vector<128x16xi1>, vector<128x16xf32>
    %c5_i32 = arith.constant 5 : i32
    %240 = vector.broadcast %c5_i32 : i32 to vector<128x16xi32>
    %241 = arith.cmpi eq, %186, %240 : vector<128x16xi32>
    %242 = vector.shape_cast %204 : vector<128x1xf32> to vector<128x1xf32>
    %243 = vector.broadcast %242 : vector<128x1xf32> to vector<128x16xf32>
    %244 = arith.select %241, %243, %239 : vector<128x16xi1>, vector<128x16xf32>
    %c6_i32 = arith.constant 6 : i32
    %245 = vector.broadcast %c6_i32 : i32 to vector<128x16xi32>
    %246 = arith.cmpi eq, %186, %245 : vector<128x16xi32>
    %247 = vector.shape_cast %207 : vector<128x1xf32> to vector<128x1xf32>
    %248 = vector.broadcast %247 : vector<128x1xf32> to vector<128x16xf32>
    %249 = arith.select %246, %248, %244 : vector<128x16xi1>, vector<128x16xf32>
    %c7_i32 = arith.constant 7 : i32
    %250 = vector.broadcast %c7_i32 : i32 to vector<128x16xi32>
    %251 = arith.cmpi eq, %186, %250 : vector<128x16xi32>
    %252 = vector.shape_cast %210 : vector<128x1xf32> to vector<128x1xf32>
    %253 = vector.broadcast %252 : vector<128x1xf32> to vector<128x16xf32>
    %254 = arith.select %251, %253, %249 : vector<128x16xi1>, vector<128x16xf32>
    %c8_i32 = arith.constant 8 : i32
    %255 = vector.broadcast %c8_i32 : i32 to vector<128x16xi32>
    %256 = arith.cmpi eq, %186, %255 : vector<128x16xi32>
    %257 = vector.shape_cast %213 : vector<128x1xf32> to vector<128x1xf32>
    %258 = vector.broadcast %257 : vector<128x1xf32> to vector<128x16xf32>
    %259 = arith.select %256, %258, %254 : vector<128x16xi1>, vector<128x16xf32>
    %c0_80 = arith.constant 0 : index
    %c0_81 = arith.constant 0 : index
    %c0_82 = arith.constant 0 : index
    %260 = vector.load %arg6[%c0_80, %c0_81, %c0_82] : memref<1x128x16xf32, #tpu.memory_space<vmem>>, vector<1x128x16xf32>
    %261 = vector.shape_cast %260 : vector<1x128x16xf32> to vector<128x16xf32>
    %262 = vector.shape_cast %259 : vector<128x16xf32> to vector<1x128x16xf32>
    tpu.vector_store %arg6[%c0_80, %c0_81, %c0_82], %262 {strides = array<i32>} : memref<1x128x16xf32, #tpu.memory_space<vmem>>, vector<1x128x16xf32>,
    %263 = arith.mulf %167, %173 : vector<128x256xf32>
    %264 = arith.mulf %167, %179 : vector<128x256xf32>
    %265 = arith.mulf %167, %185 : vector<128x256xf32>
    %cst_83 = arith.constant dense<0.000000e+00> : vector<128xf32>
    %266 = vector.multi_reduction <add>, %263, %cst_83 [1] : vector<128x256xf32> to vector<128xf32>
    %267 = vector.shape_cast %266 : vector<128xf32> to vector<128x1xf32>
    %cst_84 = arith.constant dense<0.000000e+00> : vector<128xf32>
    %268 = vector.multi_reduction <add>, %264, %cst_84 [1] : vector<128x256xf32> to vector<128xf32>
    %269 = vector.shape_cast %268 : vector<128xf32> to vector<128x1xf32>
    %cst_85 = arith.constant dense<0.000000e+00> : vector<128xf32>
    %270 = vector.multi_reduction <add>, %265, %cst_85 [1] : vector<128x256xf32> to vector<128xf32>
    %271 = vector.shape_cast %270 : vector<128xf32> to vector<128x1xf32>
    %272 = arith.mulf %263, %173 : vector<128x256xf32>
    %cst_86 = arith.constant dense<0.000000e+00> : vector<128xf32>
    %273 = vector.multi_reduction <add>, %272, %cst_86 [1] : vector<128x256xf32> to vector<128xf32>
    %274 = vector.shape_cast %273 : vector<128xf32> to vector<128x1xf32>
    %275 = arith.mulf %263, %179 : vector<128x256xf32>
    %cst_87 = arith.constant dense<0.000000e+00> : vector<128xf32>
    %276 = vector.multi_reduction <add>, %275, %cst_87 [1] : vector<128x256xf32> to vector<128xf32>
    %277 = vector.shape_cast %276 : vector<128xf32> to vector<128x1xf32>
    %278 = arith.mulf %263, %185 : vector<128x256xf32>
    %cst_88 = arith.constant dense<0.000000e+00> : vector<128xf32>
    %279 = vector.multi_reduction <add>, %278, %cst_88 [1] : vector<128x256xf32> to vector<128xf32>
    %280 = vector.shape_cast %279 : vector<128xf32> to vector<128x1xf32>
    %281 = arith.mulf %264, %179 : vector<128x256xf32>
    %cst_89 = arith.constant dense<0.000000e+00> : vector<128xf32>
    %282 = vector.multi_reduction <add>, %281, %cst_89 [1] : vector<128x256xf32> to vector<128xf32>
    %283 = vector.shape_cast %282 : vector<128xf32> to vector<128x1xf32>
    %284 = arith.mulf %264, %185 : vector<128x256xf32>
    %cst_90 = arith.constant dense<0.000000e+00> : vector<128xf32>
    %285 = vector.multi_reduction <add>, %284, %cst_90 [1] : vector<128x256xf32> to vector<128xf32>
    %286 = vector.shape_cast %285 : vector<128xf32> to vector<128x1xf32>
    %287 = arith.mulf %265, %185 : vector<128x256xf32>
    %cst_91 = arith.constant dense<0.000000e+00> : vector<128xf32>
    %288 = vector.multi_reduction <add>, %287, %cst_91 [1] : vector<128x256xf32> to vector<128xf32>
    %289 = vector.shape_cast %288 : vector<128xf32> to vector<128x1xf32>
    %cst_92 = arith.constant 0.000000e+00 : f32
    %290 = vector.broadcast %cst_92 : f32 to vector<128x16xf32>
    %c0_i32_93 = arith.constant 0 : i32
    %291 = vector.broadcast %c0_i32_93 : i32 to vector<128x16xi32>
    %292 = arith.cmpi eq, %186, %291 : vector<128x16xi32>
    %293 = vector.shape_cast %267 : vector<128x1xf32> to vector<128x1xf32>
    %294 = vector.broadcast %293 : vector<128x1xf32> to vector<128x16xf32>
    %295 = arith.select %292, %294, %290 : vector<128x16xi1>, vector<128x16xf32>
    %c1_i32_94 = arith.constant 1 : i32
    %296 = vector.broadcast %c1_i32_94 : i32 to vector<128x16xi32>
    %297 = arith.cmpi eq, %186, %296 : vector<128x16xi32>
    %298 = vector.shape_cast %269 : vector<128x1xf32> to vector<128x1xf32>
    %299 = vector.broadcast %298 : vector<128x1xf32> to vector<128x16xf32>
    %300 = arith.select %297, %299, %295 : vector<128x16xi1>, vector<128x16xf32>
    %c2_i32_95 = arith.constant 2 : i32
    %301 = vector.broadcast %c2_i32_95 : i32 to vector<128x16xi32>
    %302 = arith.cmpi eq, %186, %301 : vector<128x16xi32>
    %303 = vector.shape_cast %271 : vector<128x1xf32> to vector<128x1xf32>
    %304 = vector.broadcast %303 : vector<128x1xf32> to vector<128x16xf32>
    %305 = arith.select %302, %304, %300 : vector<128x16xi1>, vector<128x16xf32>
    %c3_i32_96 = arith.constant 3 : i32
    %306 = vector.broadcast %c3_i32_96 : i32 to vector<128x16xi32>
    %307 = arith.cmpi eq, %186, %306 : vector<128x16xi32>
    %308 = vector.shape_cast %274 : vector<128x1xf32> to vector<128x1xf32>
    %309 = vector.broadcast %308 : vector<128x1xf32> to vector<128x16xf32>
    %310 = arith.select %307, %309, %305 : vector<128x16xi1>, vector<128x16xf32>
    %c4_i32_97 = arith.constant 4 : i32
    %311 = vector.broadcast %c4_i32_97 : i32 to vector<128x16xi32>
    %312 = arith.cmpi eq, %186, %311 : vector<128x16xi32>
    %313 = vector.shape_cast %277 : vector<128x1xf32> to vector<128x1xf32>
    %314 = vector.broadcast %313 : vector<128x1xf32> to vector<128x16xf32>
    %315 = arith.select %312, %314, %310 : vector<128x16xi1>, vector<128x16xf32>
    %c5_i32_98 = arith.constant 5 : i32
    %316 = vector.broadcast %c5_i32_98 : i32 to vector<128x16xi32>
    %317 = arith.cmpi eq, %186, %316 : vector<128x16xi32>
    %318 = vector.shape_cast %280 : vector<128x1xf32> to vector<128x1xf32>
    %319 = vector.broadcast %318 : vector<128x1xf32> to vector<128x16xf32>
    %320 = arith.select %317, %319, %315 : vector<128x16xi1>, vector<128x16xf32>
    %c6_i32_99 = arith.constant 6 : i32
    %321 = vector.broadcast %c6_i32_99 : i32 to vector<128x16xi32>
    %322 = arith.cmpi eq, %186, %321 : vector<128x16xi32>
    %323 = vector.shape_cast %283 : vector<128x1xf32> to vector<128x1xf32>
    %324 = vector.broadcast %323 : vector<128x1xf32> to vector<128x16xf32>
    %325 = arith.select %322, %324, %320 : vector<128x16xi1>, vector<128x16xf32>
    %c7_i32_100 = arith.constant 7 : i32
    %326 = vector.broadcast %c7_i32_100 : i32 to vector<128x16xi32>
    %327 = arith.cmpi eq, %186, %326 : vector<128x16xi32>
    %328 = vector.shape_cast %286 : vector<128x1xf32> to vector<128x1xf32>
    %329 = vector.broadcast %328 : vector<128x1xf32> to vector<128x16xf32>
    %330 = arith.select %327, %329, %325 : vector<128x16xi1>, vector<128x16xf32>
    %c8_i32_101 = arith.constant 8 : i32
    %331 = vector.broadcast %c8_i32_101 : i32 to vector<128x16xi32>
    %332 = arith.cmpi eq, %186, %331 : vector<128x16xi32>
    %333 = vector.shape_cast %289 : vector<128x1xf32> to vector<128x1xf32>
    %334 = vector.broadcast %333 : vector<128x1xf32> to vector<128x16xf32>
    %335 = arith.select %332, %334, %330 : vector<128x16xi1>, vector<128x16xf32>
    %c0_102 = arith.constant 0 : index
    %c0_103 = arith.constant 0 : index
    %c0_104 = arith.constant 0 : index
    %336 = vector.load %arg7[%c0_102, %c0_103, %c0_104] : memref<1x128x16xf32, #tpu.memory_space<vmem>>, vector<1x128x16xf32>
    %337 = vector.shape_cast %336 : vector<1x128x16xf32> to vector<128x16xf32>
    %338 = vector.shape_cast %335 : vector<128x16xf32> to vector<1x128x16xf32>
    tpu.vector_store %arg7[%c0_102, %c0_103, %c0_104], %338 {strides = array<i32>} : memref<1x128x16xf32, #tpu.memory_space<vmem>>, vector<1x128x16xf32>,
    return
  }
  func.func @transform_0(%arg0: i32, %arg1: i32) -> (i32, i32, i32) {
    %c0_i32 = arith.constant 0 : i32
    %c0_i32_0 = arith.constant 0 : i32
    return %arg0, %arg1, %c0_i32 : i32, i32, i32
  }
  func.func @transform_1(%arg0: i32, %arg1: i32) -> (i32, i32, i32) {
    %c0_i32 = arith.constant 0 : i32
    %c0_i32_0 = arith.constant 0 : i32
    %c0_i32_1 = arith.constant 0 : i32
    return %arg0, %c0_i32, %c0_i32_0 : i32, i32, i32
  }
  func.func @transform_2(%arg0: i32, %arg1: i32) -> (i32, i32, i32) {
    %c0_i32 = arith.constant 0 : i32
    %c0_i32_0 = arith.constant 0 : i32
    %c0_i32_1 = arith.constant 0 : i32
    return %arg0, %c0_i32, %c0_i32_0 : i32, i32, i32
  }
  func.func @transform_3(%arg0: i32, %arg1: i32) -> (i32, i32, i32) {
    %c0_i32 = arith.constant 0 : i32
    %c0_i32_0 = arith.constant 0 : i32
    return %arg0, %arg1, %c0_i32 : i32, i32, i32
  }
  func.func @transform_4(%arg0: i32, %arg1: i32) -> (i32, i32, i32) {
    %c0_i32 = arith.constant 0 : i32
    %c0_i32_0 = arith.constant 0 : i32
    return %arg0, %arg1, %c0_i32 : i32, i32, i32
  }
  func.func @transform_5(%arg0: i32, %arg1: i32) -> (i32, i32, i32) {
    %c0_i32 = arith.constant 0 : i32
    %c0_i32_0 = arith.constant 0 : i32
    return %arg0, %arg1, %c0_i32 : i32, i32, i32
  }
}

module attributes {stable_mosaic.version = 11 : i64} {
  func.func @_eig_loss_kernel(%arg0: i32, %arg1: i32, %arg2: memref<1x16x8x32xf32, #tpu.memory_space<vmem>>, %arg3: memref<1x16x8x32xf32, #tpu.memory_space<vmem>>, %arg4: memref<1x8x32xf32, #tpu.memory_space<vmem>>) attributes {dimension_semantics = [#tpu.dimension_semantics<parallel>, #tpu.dimension_semantics<parallel>], iteration_bounds = array<i64: 2, 1>, scalar_prefetch = 0 : i64, scratch_operands = 0 : i64, tpu.core_type = #tpu.core_type<tc>, window_params = [{transform_indices = @transform_0, window_bounds = array<i64: 1, 16, 8, 32>}, {transform_indices = @transform_1, window_bounds = array<i64: 1, 16, 8, 32>}, {transform_indices = @transform_2, window_bounds = array<i64: 1, 8, 32>}]} {
    %c0 = arith.constant 0 : index
    %c0_0 = arith.constant 0 : index
    %c0_1 = arith.constant 0 : index
    %c0_2 = arith.constant 0 : index
    %0 = vector.load %arg2[%c0, %c0_0, %c0_1, %c0_2] : memref<1x16x8x32xf32, #tpu.memory_space<vmem>>, vector<1x1x8x32xf32>
    %1 = vector.shape_cast %0 : vector<1x1x8x32xf32> to vector<8x32xf32>
    %c0_3 = arith.constant 0 : index
    %c1 = arith.constant 1 : index
    %c0_4 = arith.constant 0 : index
    %c0_5 = arith.constant 0 : index
    %2 = vector.load %arg2[%c0_3, %c1, %c0_4, %c0_5] : memref<1x16x8x32xf32, #tpu.memory_space<vmem>>, vector<1x1x8x32xf32>
    %3 = vector.shape_cast %2 : vector<1x1x8x32xf32> to vector<8x32xf32>
    %c0_6 = arith.constant 0 : index
    %c2 = arith.constant 2 : index
    %c0_7 = arith.constant 0 : index
    %c0_8 = arith.constant 0 : index
    %4 = vector.load %arg2[%c0_6, %c2, %c0_7, %c0_8] : memref<1x16x8x32xf32, #tpu.memory_space<vmem>>, vector<1x1x8x32xf32>
    %5 = vector.shape_cast %4 : vector<1x1x8x32xf32> to vector<8x32xf32>
    %c0_9 = arith.constant 0 : index
    %c3 = arith.constant 3 : index
    %c0_10 = arith.constant 0 : index
    %c0_11 = arith.constant 0 : index
    %6 = vector.load %arg2[%c0_9, %c3, %c0_10, %c0_11] : memref<1x16x8x32xf32, #tpu.memory_space<vmem>>, vector<1x1x8x32xf32>
    %7 = vector.shape_cast %6 : vector<1x1x8x32xf32> to vector<8x32xf32>
    %c0_12 = arith.constant 0 : index
    %c4 = arith.constant 4 : index
    %c0_13 = arith.constant 0 : index
    %c0_14 = arith.constant 0 : index
    %8 = vector.load %arg2[%c0_12, %c4, %c0_13, %c0_14] : memref<1x16x8x32xf32, #tpu.memory_space<vmem>>, vector<1x1x8x32xf32>
    %9 = vector.shape_cast %8 : vector<1x1x8x32xf32> to vector<8x32xf32>
    %c0_15 = arith.constant 0 : index
    %c5 = arith.constant 5 : index
    %c0_16 = arith.constant 0 : index
    %c0_17 = arith.constant 0 : index
    %10 = vector.load %arg2[%c0_15, %c5, %c0_16, %c0_17] : memref<1x16x8x32xf32, #tpu.memory_space<vmem>>, vector<1x1x8x32xf32>
    %11 = vector.shape_cast %10 : vector<1x1x8x32xf32> to vector<8x32xf32>
    %c0_18 = arith.constant 0 : index
    %c6 = arith.constant 6 : index
    %c0_19 = arith.constant 0 : index
    %c0_20 = arith.constant 0 : index
    %12 = vector.load %arg2[%c0_18, %c6, %c0_19, %c0_20] : memref<1x16x8x32xf32, #tpu.memory_space<vmem>>, vector<1x1x8x32xf32>
    %13 = vector.shape_cast %12 : vector<1x1x8x32xf32> to vector<8x32xf32>
    %c0_21 = arith.constant 0 : index
    %c7 = arith.constant 7 : index
    %c0_22 = arith.constant 0 : index
    %c0_23 = arith.constant 0 : index
    %14 = vector.load %arg2[%c0_21, %c7, %c0_22, %c0_23] : memref<1x16x8x32xf32, #tpu.memory_space<vmem>>, vector<1x1x8x32xf32>
    %15 = vector.shape_cast %14 : vector<1x1x8x32xf32> to vector<8x32xf32>
    %c0_24 = arith.constant 0 : index
    %c8 = arith.constant 8 : index
    %c0_25 = arith.constant 0 : index
    %c0_26 = arith.constant 0 : index
    %16 = vector.load %arg2[%c0_24, %c8, %c0_25, %c0_26] : memref<1x16x8x32xf32, #tpu.memory_space<vmem>>, vector<1x1x8x32xf32>
    %17 = vector.shape_cast %16 : vector<1x1x8x32xf32> to vector<8x32xf32>
    %cst = arith.constant 1.000000e-01 : f32
    %18 = vector.broadcast %cst : f32 to vector<8x32xf32>
    %19 = arith.mulf %1, %18 : vector<8x32xf32>
    %cst_27 = arith.constant 1.000000e-01 : f32
    %20 = vector.broadcast %cst_27 : f32 to vector<8x32xf32>
    %21 = arith.mulf %3, %20 : vector<8x32xf32>
    %cst_28 = arith.constant 1.000000e-01 : f32
    %22 = vector.broadcast %cst_28 : f32 to vector<8x32xf32>
    %23 = arith.mulf %5, %22 : vector<8x32xf32>
    %cst_29 = arith.constant 1.000000e-01 : f32
    %24 = vector.broadcast %cst_29 : f32 to vector<8x32xf32>
    %25 = arith.mulf %7, %24 : vector<8x32xf32>
    %26 = arith.mulf %19, %19 : vector<8x32xf32>
    %27 = arith.subf %25, %26 : vector<8x32xf32>
    %cst_30 = arith.constant 1.000000e-01 : f32
    %28 = vector.broadcast %cst_30 : f32 to vector<8x32xf32>
    %29 = arith.mulf %9, %28 : vector<8x32xf32>
    %30 = arith.mulf %19, %21 : vector<8x32xf32>
    %31 = arith.subf %29, %30 : vector<8x32xf32>
    %cst_31 = arith.constant 1.000000e-01 : f32
    %32 = vector.broadcast %cst_31 : f32 to vector<8x32xf32>
    %33 = arith.mulf %11, %32 : vector<8x32xf32>
    %34 = arith.mulf %19, %23 : vector<8x32xf32>
    %35 = arith.subf %33, %34 : vector<8x32xf32>
    %cst_32 = arith.constant 1.000000e-01 : f32
    %36 = vector.broadcast %cst_32 : f32 to vector<8x32xf32>
    %37 = arith.mulf %13, %36 : vector<8x32xf32>
    %38 = arith.mulf %21, %21 : vector<8x32xf32>
    %39 = arith.subf %37, %38 : vector<8x32xf32>
    %cst_33 = arith.constant 1.000000e-01 : f32
    %40 = vector.broadcast %cst_33 : f32 to vector<8x32xf32>
    %41 = arith.mulf %15, %40 : vector<8x32xf32>
    %42 = arith.mulf %21, %23 : vector<8x32xf32>
    %43 = arith.subf %41, %42 : vector<8x32xf32>
    %cst_34 = arith.constant 1.000000e-01 : f32
    %44 = vector.broadcast %cst_34 : f32 to vector<8x32xf32>
    %45 = arith.mulf %17, %44 : vector<8x32xf32>
    %46 = arith.mulf %23, %23 : vector<8x32xf32>
    %47 = arith.subf %45, %46 : vector<8x32xf32>
    %48 = arith.addf %27, %39 : vector<8x32xf32>
    %49 = arith.addf %48, %47 : vector<8x32xf32>
    %cst_35 = arith.constant 1.000000e-30 : f32
    %50 = vector.broadcast %cst_35 : f32 to vector<8x32xf32>
    %51 = arith.addf %49, %50 : vector<8x32xf32>
    %cst_36 = arith.constant 1.000000e+00 : f32
    %52 = vector.broadcast %cst_36 : f32 to vector<8x32xf32>
    %53 = arith.divf %52, %51 : vector<8x32xf32>
    %54 = arith.mulf %27, %53 : vector<8x32xf32>
    %55 = arith.mulf %31, %53 : vector<8x32xf32>
    %56 = arith.mulf %35, %53 : vector<8x32xf32>
    %57 = arith.mulf %39, %53 : vector<8x32xf32>
    %58 = arith.mulf %43, %53 : vector<8x32xf32>
    %59 = arith.mulf %47, %53 : vector<8x32xf32>
    %60 = arith.addf %54, %57 : vector<8x32xf32>
    %61 = arith.addf %60, %59 : vector<8x32xf32>
    %62 = arith.mulf %54, %57 : vector<8x32xf32>
    %63 = arith.mulf %55, %55 : vector<8x32xf32>
    %64 = arith.subf %62, %63 : vector<8x32xf32>
    %65 = arith.mulf %54, %59 : vector<8x32xf32>
    %66 = arith.mulf %56, %56 : vector<8x32xf32>
    %67 = arith.subf %65, %66 : vector<8x32xf32>
    %68 = arith.addf %64, %67 : vector<8x32xf32>
    %69 = arith.mulf %57, %59 : vector<8x32xf32>
    %70 = arith.mulf %58, %58 : vector<8x32xf32>
    %71 = arith.subf %69, %70 : vector<8x32xf32>
    %72 = arith.addf %68, %71 : vector<8x32xf32>
    %73 = arith.mulf %57, %59 : vector<8x32xf32>
    %74 = arith.mulf %58, %58 : vector<8x32xf32>
    %75 = arith.subf %73, %74 : vector<8x32xf32>
    %76 = arith.mulf %54, %75 : vector<8x32xf32>
    %77 = arith.mulf %55, %59 : vector<8x32xf32>
    %78 = arith.mulf %58, %56 : vector<8x32xf32>
    %79 = arith.subf %77, %78 : vector<8x32xf32>
    %80 = arith.mulf %55, %79 : vector<8x32xf32>
    %81 = arith.subf %76, %80 : vector<8x32xf32>
    %82 = arith.mulf %55, %58 : vector<8x32xf32>
    %83 = arith.mulf %57, %56 : vector<8x32xf32>
    %84 = arith.subf %82, %83 : vector<8x32xf32>
    %85 = arith.mulf %56, %84 : vector<8x32xf32>
    %86 = arith.addf %81, %85 : vector<8x32xf32>
    %cst_37 = arith.constant 0.000000e+00 : f32
    %87 = vector.broadcast %cst_37 : f32 to vector<8x32xf32>
    %88 = arith.subf %87, %61 : vector<8x32xf32>
    %89 = arith.mulf %88, %87 : vector<8x32xf32>
    %90 = arith.addf %89, %72 : vector<8x32xf32>
    %91 = arith.mulf %90, %87 : vector<8x32xf32>
    %92 = arith.subf %91, %86 : vector<8x32xf32>
    %cst_38 = arith.constant 3.000000e+00 : f32
    %93 = vector.broadcast %cst_38 : f32 to vector<8x32xf32>
    %94 = arith.mulf %93, %87 : vector<8x32xf32>
    %cst_39 = arith.constant 2.000000e+00 : f32
    %95 = vector.broadcast %cst_39 : f32 to vector<8x32xf32>
    %96 = arith.mulf %95, %61 : vector<8x32xf32>
    %97 = arith.subf %94, %96 : vector<8x32xf32>
    %98 = arith.mulf %97, %87 : vector<8x32xf32>
    %99 = arith.addf %98, %72 : vector<8x32xf32>
    %100 = math.absf %99 : vector<8x32xf32>
    %cst_40 = arith.constant 9.99999968E-21 : f32
    %101 = vector.broadcast %cst_40 : f32 to vector<8x32xf32>
    %102 = arith.cmpf olt, %100, %101 : vector<8x32xf32>
    %cst_41 = arith.constant 9.99999968E-21 : f32
    %103 = vector.broadcast %cst_41 : f32 to vector<8x32xf32>
    %104 = arith.select %102, %103, %99 : vector<8x32xi1>, vector<8x32xf32>
    %105 = tpu.reciprocal %104 {approx = true} : vector<8x32xf32> -> vector<8x32xf32>
    %106 = arith.mulf %92, %105 : vector<8x32xf32>
    %107 = arith.subf %87, %106 : vector<8x32xf32>
    %108 = arith.subf %107, %61 : vector<8x32xf32>
    %109 = arith.mulf %108, %107 : vector<8x32xf32>
    %110 = arith.addf %109, %72 : vector<8x32xf32>
    %111 = arith.mulf %110, %107 : vector<8x32xf32>
    %112 = arith.subf %111, %86 : vector<8x32xf32>
    %cst_42 = arith.constant 3.000000e+00 : f32
    %113 = vector.broadcast %cst_42 : f32 to vector<8x32xf32>
    %114 = arith.mulf %113, %107 : vector<8x32xf32>
    %cst_43 = arith.constant 2.000000e+00 : f32
    %115 = vector.broadcast %cst_43 : f32 to vector<8x32xf32>
    %116 = arith.mulf %115, %61 : vector<8x32xf32>
    %117 = arith.subf %114, %116 : vector<8x32xf32>
    %118 = arith.mulf %117, %107 : vector<8x32xf32>
    %119 = arith.addf %118, %72 : vector<8x32xf32>
    %120 = math.absf %119 : vector<8x32xf32>
    %cst_44 = arith.constant 9.99999968E-21 : f32
    %121 = vector.broadcast %cst_44 : f32 to vector<8x32xf32>
    %122 = arith.cmpf olt, %120, %121 : vector<8x32xf32>
    %cst_45 = arith.constant 9.99999968E-21 : f32
    %123 = vector.broadcast %cst_45 : f32 to vector<8x32xf32>
    %124 = arith.select %122, %123, %119 : vector<8x32xi1>, vector<8x32xf32>
    %125 = tpu.reciprocal %124 {approx = true} : vector<8x32xf32> -> vector<8x32xf32>
    %126 = arith.mulf %112, %125 : vector<8x32xf32>
    %127 = arith.subf %107, %126 : vector<8x32xf32>
    %128 = arith.subf %127, %61 : vector<8x32xf32>
    %129 = arith.mulf %128, %127 : vector<8x32xf32>
    %130 = arith.addf %129, %72 : vector<8x32xf32>
    %131 = arith.mulf %130, %127 : vector<8x32xf32>
    %132 = arith.subf %131, %86 : vector<8x32xf32>
    %cst_46 = arith.constant 3.000000e+00 : f32
    %133 = vector.broadcast %cst_46 : f32 to vector<8x32xf32>
    %134 = arith.mulf %133, %127 : vector<8x32xf32>
    %cst_47 = arith.constant 2.000000e+00 : f32
    %135 = vector.broadcast %cst_47 : f32 to vector<8x32xf32>
    %136 = arith.mulf %135, %61 : vector<8x32xf32>
    %137 = arith.subf %134, %136 : vector<8x32xf32>
    %138 = arith.mulf %137, %127 : vector<8x32xf32>
    %139 = arith.addf %138, %72 : vector<8x32xf32>
    %140 = math.absf %139 : vector<8x32xf32>
    %cst_48 = arith.constant 9.99999968E-21 : f32
    %141 = vector.broadcast %cst_48 : f32 to vector<8x32xf32>
    %142 = arith.cmpf olt, %140, %141 : vector<8x32xf32>
    %cst_49 = arith.constant 9.99999968E-21 : f32
    %143 = vector.broadcast %cst_49 : f32 to vector<8x32xf32>
    %144 = arith.select %142, %143, %139 : vector<8x32xi1>, vector<8x32xf32>
    %145 = tpu.reciprocal %144 {approx = true} : vector<8x32xf32> -> vector<8x32xf32>
    %146 = arith.mulf %132, %145 : vector<8x32xf32>
    %147 = arith.subf %127, %146 : vector<8x32xf32>
    %148 = arith.subf %147, %61 : vector<8x32xf32>
    %149 = arith.mulf %148, %147 : vector<8x32xf32>
    %150 = arith.addf %149, %72 : vector<8x32xf32>
    %151 = arith.mulf %150, %147 : vector<8x32xf32>
    %152 = arith.subf %151, %86 : vector<8x32xf32>
    %cst_50 = arith.constant 3.000000e+00 : f32
    %153 = vector.broadcast %cst_50 : f32 to vector<8x32xf32>
    %154 = arith.mulf %153, %147 : vector<8x32xf32>
    %cst_51 = arith.constant 2.000000e+00 : f32
    %155 = vector.broadcast %cst_51 : f32 to vector<8x32xf32>
    %156 = arith.mulf %155, %61 : vector<8x32xf32>
    %157 = arith.subf %154, %156 : vector<8x32xf32>
    %158 = arith.mulf %157, %147 : vector<8x32xf32>
    %159 = arith.addf %158, %72 : vector<8x32xf32>
    %160 = math.absf %159 : vector<8x32xf32>
    %cst_52 = arith.constant 9.99999968E-21 : f32
    %161 = vector.broadcast %cst_52 : f32 to vector<8x32xf32>
    %162 = arith.cmpf olt, %160, %161 : vector<8x32xf32>
    %cst_53 = arith.constant 9.99999968E-21 : f32
    %163 = vector.broadcast %cst_53 : f32 to vector<8x32xf32>
    %164 = arith.select %162, %163, %159 : vector<8x32xi1>, vector<8x32xf32>
    %165 = tpu.reciprocal %164 {approx = true} : vector<8x32xf32> -> vector<8x32xf32>
    %166 = arith.mulf %152, %165 : vector<8x32xf32>
    %167 = arith.subf %147, %166 : vector<8x32xf32>
    %168 = arith.subf %167, %61 : vector<8x32xf32>
    %169 = arith.mulf %168, %167 : vector<8x32xf32>
    %170 = arith.addf %169, %72 : vector<8x32xf32>
    %171 = arith.mulf %170, %167 : vector<8x32xf32>
    %172 = arith.subf %171, %86 : vector<8x32xf32>
    %cst_54 = arith.constant 3.000000e+00 : f32
    %173 = vector.broadcast %cst_54 : f32 to vector<8x32xf32>
    %174 = arith.mulf %173, %167 : vector<8x32xf32>
    %cst_55 = arith.constant 2.000000e+00 : f32
    %175 = vector.broadcast %cst_55 : f32 to vector<8x32xf32>
    %176 = arith.mulf %175, %61 : vector<8x32xf32>
    %177 = arith.subf %174, %176 : vector<8x32xf32>
    %178 = arith.mulf %177, %167 : vector<8x32xf32>
    %179 = arith.addf %178, %72 : vector<8x32xf32>
    %180 = math.absf %179 : vector<8x32xf32>
    %cst_56 = arith.constant 9.99999968E-21 : f32
    %181 = vector.broadcast %cst_56 : f32 to vector<8x32xf32>
    %182 = arith.cmpf olt, %180, %181 : vector<8x32xf32>
    %cst_57 = arith.constant 9.99999968E-21 : f32
    %183 = vector.broadcast %cst_57 : f32 to vector<8x32xf32>
    %184 = arith.select %182, %183, %179 : vector<8x32xi1>, vector<8x32xf32>
    %185 = tpu.reciprocal %184 {approx = true} : vector<8x32xf32> -> vector<8x32xf32>
    %186 = arith.mulf %172, %185 : vector<8x32xf32>
    %187 = arith.subf %167, %186 : vector<8x32xf32>
    %188 = arith.subf %187, %61 : vector<8x32xf32>
    %189 = arith.mulf %188, %187 : vector<8x32xf32>
    %190 = arith.addf %189, %72 : vector<8x32xf32>
    %191 = arith.mulf %190, %187 : vector<8x32xf32>
    %192 = arith.subf %191, %86 : vector<8x32xf32>
    %cst_58 = arith.constant 3.000000e+00 : f32
    %193 = vector.broadcast %cst_58 : f32 to vector<8x32xf32>
    %194 = arith.mulf %193, %187 : vector<8x32xf32>
    %cst_59 = arith.constant 2.000000e+00 : f32
    %195 = vector.broadcast %cst_59 : f32 to vector<8x32xf32>
    %196 = arith.mulf %195, %61 : vector<8x32xf32>
    %197 = arith.subf %194, %196 : vector<8x32xf32>
    %198 = arith.mulf %197, %187 : vector<8x32xf32>
    %199 = arith.addf %198, %72 : vector<8x32xf32>
    %200 = math.absf %199 : vector<8x32xf32>
    %cst_60 = arith.constant 9.99999968E-21 : f32
    %201 = vector.broadcast %cst_60 : f32 to vector<8x32xf32>
    %202 = arith.cmpf olt, %200, %201 : vector<8x32xf32>
    %cst_61 = arith.constant 9.99999968E-21 : f32
    %203 = vector.broadcast %cst_61 : f32 to vector<8x32xf32>
    %204 = arith.select %202, %203, %199 : vector<8x32xi1>, vector<8x32xf32>
    %205 = tpu.reciprocal %204 {approx = true} : vector<8x32xf32> -> vector<8x32xf32>
    %206 = arith.mulf %192, %205 : vector<8x32xf32>
    %207 = arith.subf %187, %206 : vector<8x32xf32>
    %208 = arith.subf %207, %61 : vector<8x32xf32>
    %209 = arith.mulf %208, %207 : vector<8x32xf32>
    %210 = arith.addf %209, %72 : vector<8x32xf32>
    %211 = arith.mulf %210, %207 : vector<8x32xf32>
    %212 = arith.subf %211, %86 : vector<8x32xf32>
    %cst_62 = arith.constant 3.000000e+00 : f32
    %213 = vector.broadcast %cst_62 : f32 to vector<8x32xf32>
    %214 = arith.mulf %213, %207 : vector<8x32xf32>
    %cst_63 = arith.constant 2.000000e+00 : f32
    %215 = vector.broadcast %cst_63 : f32 to vector<8x32xf32>
    %216 = arith.mulf %215, %61 : vector<8x32xf32>
    %217 = arith.subf %214, %216 : vector<8x32xf32>
    %218 = arith.mulf %217, %207 : vector<8x32xf32>
    %219 = arith.addf %218, %72 : vector<8x32xf32>
    %220 = math.absf %219 : vector<8x32xf32>
    %cst_64 = arith.constant 9.99999968E-21 : f32
    %221 = vector.broadcast %cst_64 : f32 to vector<8x32xf32>
    %222 = arith.cmpf olt, %220, %221 : vector<8x32xf32>
    %cst_65 = arith.constant 9.99999968E-21 : f32
    %223 = vector.broadcast %cst_65 : f32 to vector<8x32xf32>
    %224 = arith.select %222, %223, %219 : vector<8x32xi1>, vector<8x32xf32>
    %225 = tpu.reciprocal %224 {approx = true} : vector<8x32xf32> -> vector<8x32xf32>
    %226 = arith.mulf %212, %225 : vector<8x32xf32>
    %227 = arith.subf %207, %226 : vector<8x32xf32>
    %228 = arith.subf %227, %61 : vector<8x32xf32>
    %229 = arith.mulf %228, %227 : vector<8x32xf32>
    %230 = arith.addf %229, %72 : vector<8x32xf32>
    %231 = arith.mulf %230, %227 : vector<8x32xf32>
    %232 = arith.subf %231, %86 : vector<8x32xf32>
    %cst_66 = arith.constant 3.000000e+00 : f32
    %233 = vector.broadcast %cst_66 : f32 to vector<8x32xf32>
    %234 = arith.mulf %233, %227 : vector<8x32xf32>
    %cst_67 = arith.constant 2.000000e+00 : f32
    %235 = vector.broadcast %cst_67 : f32 to vector<8x32xf32>
    %236 = arith.mulf %235, %61 : vector<8x32xf32>
    %237 = arith.subf %234, %236 : vector<8x32xf32>
    %238 = arith.mulf %237, %227 : vector<8x32xf32>
    %239 = arith.addf %238, %72 : vector<8x32xf32>
    %240 = math.absf %239 : vector<8x32xf32>
    %cst_68 = arith.constant 9.99999968E-21 : f32
    %241 = vector.broadcast %cst_68 : f32 to vector<8x32xf32>
    %242 = arith.cmpf olt, %240, %241 : vector<8x32xf32>
    %cst_69 = arith.constant 9.99999968E-21 : f32
    %243 = vector.broadcast %cst_69 : f32 to vector<8x32xf32>
    %244 = arith.select %242, %243, %239 : vector<8x32xi1>, vector<8x32xf32>
    %245 = tpu.reciprocal %244 {approx = true} : vector<8x32xf32> -> vector<8x32xf32>
    %246 = arith.mulf %232, %245 : vector<8x32xf32>
    %247 = arith.subf %227, %246 : vector<8x32xf32>
    %248 = arith.subf %247, %61 : vector<8x32xf32>
    %249 = arith.mulf %248, %247 : vector<8x32xf32>
    %250 = arith.addf %249, %72 : vector<8x32xf32>
    %251 = arith.mulf %250, %247 : vector<8x32xf32>
    %252 = arith.subf %251, %86 : vector<8x32xf32>
    %cst_70 = arith.constant 3.000000e+00 : f32
    %253 = vector.broadcast %cst_70 : f32 to vector<8x32xf32>
    %254 = arith.mulf %253, %247 : vector<8x32xf32>
    %cst_71 = arith.constant 2.000000e+00 : f32
    %255 = vector.broadcast %cst_71 : f32 to vector<8x32xf32>
    %256 = arith.mulf %255, %61 : vector<8x32xf32>
    %257 = arith.subf %254, %256 : vector<8x32xf32>
    %258 = arith.mulf %257, %247 : vector<8x32xf32>
    %259 = arith.addf %258, %72 : vector<8x32xf32>
    %260 = math.absf %259 : vector<8x32xf32>
    %cst_72 = arith.constant 9.99999968E-21 : f32
    %261 = vector.broadcast %cst_72 : f32 to vector<8x32xf32>
    %262 = arith.cmpf olt, %260, %261 : vector<8x32xf32>
    %cst_73 = arith.constant 9.99999968E-21 : f32
    %263 = vector.broadcast %cst_73 : f32 to vector<8x32xf32>
    %264 = arith.select %262, %263, %259 : vector<8x32xi1>, vector<8x32xf32>
    %265 = tpu.reciprocal %264 {approx = true} : vector<8x32xf32> -> vector<8x32xf32>
    %266 = arith.mulf %252, %265 : vector<8x32xf32>
    %267 = arith.subf %247, %266 : vector<8x32xf32>
    %268 = arith.subf %267, %61 : vector<8x32xf32>
    %269 = arith.mulf %268, %267 : vector<8x32xf32>
    %270 = arith.addf %269, %72 : vector<8x32xf32>
    %271 = arith.mulf %270, %267 : vector<8x32xf32>
    %272 = arith.subf %271, %86 : vector<8x32xf32>
    %cst_74 = arith.constant 3.000000e+00 : f32
    %273 = vector.broadcast %cst_74 : f32 to vector<8x32xf32>
    %274 = arith.mulf %273, %267 : vector<8x32xf32>
    %cst_75 = arith.constant 2.000000e+00 : f32
    %275 = vector.broadcast %cst_75 : f32 to vector<8x32xf32>
    %276 = arith.mulf %275, %61 : vector<8x32xf32>
    %277 = arith.subf %274, %276 : vector<8x32xf32>
    %278 = arith.mulf %277, %267 : vector<8x32xf32>
    %279 = arith.addf %278, %72 : vector<8x32xf32>
    %280 = math.absf %279 : vector<8x32xf32>
    %cst_76 = arith.constant 9.99999968E-21 : f32
    %281 = vector.broadcast %cst_76 : f32 to vector<8x32xf32>
    %282 = arith.cmpf olt, %280, %281 : vector<8x32xf32>
    %cst_77 = arith.constant 9.99999968E-21 : f32
    %283 = vector.broadcast %cst_77 : f32 to vector<8x32xf32>
    %284 = arith.select %282, %283, %279 : vector<8x32xi1>, vector<8x32xf32>
    %285 = tpu.reciprocal %284 {approx = true} : vector<8x32xf32> -> vector<8x32xf32>
    %286 = arith.mulf %272, %285 : vector<8x32xf32>
    %287 = arith.subf %267, %286 : vector<8x32xf32>
    %288 = arith.subf %287, %61 : vector<8x32xf32>
    %289 = arith.mulf %288, %287 : vector<8x32xf32>
    %290 = arith.addf %289, %72 : vector<8x32xf32>
    %291 = arith.mulf %290, %287 : vector<8x32xf32>
    %292 = arith.subf %291, %86 : vector<8x32xf32>
    %cst_78 = arith.constant 3.000000e+00 : f32
    %293 = vector.broadcast %cst_78 : f32 to vector<8x32xf32>
    %294 = arith.mulf %293, %287 : vector<8x32xf32>
    %cst_79 = arith.constant 2.000000e+00 : f32
    %295 = vector.broadcast %cst_79 : f32 to vector<8x32xf32>
    %296 = arith.mulf %295, %61 : vector<8x32xf32>
    %297 = arith.subf %294, %296 : vector<8x32xf32>
    %298 = arith.mulf %297, %287 : vector<8x32xf32>
    %299 = arith.addf %298, %72 : vector<8x32xf32>
    %300 = math.absf %299 : vector<8x32xf32>
    %cst_80 = arith.constant 9.99999968E-21 : f32
    %301 = vector.broadcast %cst_80 : f32 to vector<8x32xf32>
    %302 = arith.cmpf olt, %300, %301 : vector<8x32xf32>
    %cst_81 = arith.constant 9.99999968E-21 : f32
    %303 = vector.broadcast %cst_81 : f32 to vector<8x32xf32>
    %304 = arith.select %302, %303, %299 : vector<8x32xi1>, vector<8x32xf32>
    %305 = tpu.reciprocal %304 {approx = true} : vector<8x32xf32> -> vector<8x32xf32>
    %306 = arith.mulf %292, %305 : vector<8x32xf32>
    %307 = arith.subf %287, %306 : vector<8x32xf32>
    %308 = arith.subf %307, %61 : vector<8x32xf32>
    %309 = arith.mulf %308, %307 : vector<8x32xf32>
    %310 = arith.addf %309, %72 : vector<8x32xf32>
    %311 = arith.mulf %310, %307 : vector<8x32xf32>
    %312 = arith.subf %311, %86 : vector<8x32xf32>
    %cst_82 = arith.constant 3.000000e+00 : f32
    %313 = vector.broadcast %cst_82 : f32 to vector<8x32xf32>
    %314 = arith.mulf %313, %307 : vector<8x32xf32>
    %cst_83 = arith.constant 2.000000e+00 : f32
    %315 = vector.broadcast %cst_83 : f32 to vector<8x32xf32>
    %316 = arith.mulf %315, %61 : vector<8x32xf32>
    %317 = arith.subf %314, %316 : vector<8x32xf32>
    %318 = arith.mulf %317, %307 : vector<8x32xf32>
    %319 = arith.addf %318, %72 : vector<8x32xf32>
    %320 = math.absf %319 : vector<8x32xf32>
    %cst_84 = arith.constant 9.99999968E-21 : f32
    %321 = vector.broadcast %cst_84 : f32 to vector<8x32xf32>
    %322 = arith.cmpf olt, %320, %321 : vector<8x32xf32>
    %cst_85 = arith.constant 9.99999968E-21 : f32
    %323 = vector.broadcast %cst_85 : f32 to vector<8x32xf32>
    %324 = arith.select %322, %323, %319 : vector<8x32xi1>, vector<8x32xf32>
    %325 = tpu.reciprocal %324 {approx = true} : vector<8x32xf32> -> vector<8x32xf32>
    %326 = arith.mulf %312, %325 : vector<8x32xf32>
    %327 = arith.subf %307, %326 : vector<8x32xf32>
    %328 = arith.subf %54, %327 : vector<8x32xf32>
    %329 = arith.subf %57, %327 : vector<8x32xf32>
    %330 = arith.subf %59, %327 : vector<8x32xf32>
    %331 = arith.mulf %55, %58 : vector<8x32xf32>
    %332 = arith.mulf %56, %329 : vector<8x32xf32>
    %333 = arith.subf %331, %332 : vector<8x32xf32>
    %334 = arith.mulf %56, %55 : vector<8x32xf32>
    %335 = arith.mulf %328, %58 : vector<8x32xf32>
    %336 = arith.subf %334, %335 : vector<8x32xf32>
    %337 = arith.mulf %328, %329 : vector<8x32xf32>
    %338 = arith.mulf %55, %55 : vector<8x32xf32>
    %339 = arith.subf %337, %338 : vector<8x32xf32>
    %340 = arith.mulf %329, %330 : vector<8x32xf32>
    %341 = arith.mulf %58, %58 : vector<8x32xf32>
    %342 = arith.subf %340, %341 : vector<8x32xf32>
    %343 = arith.mulf %58, %56 : vector<8x32xf32>
    %344 = arith.mulf %55, %330 : vector<8x32xf32>
    %345 = arith.subf %343, %344 : vector<8x32xf32>
    %346 = arith.mulf %55, %58 : vector<8x32xf32>
    %347 = arith.mulf %329, %56 : vector<8x32xf32>
    %348 = arith.subf %346, %347 : vector<8x32xf32>
    %349 = arith.mulf %55, %330 : vector<8x32xf32>
    %350 = arith.mulf %56, %58 : vector<8x32xf32>
    %351 = arith.subf %349, %350 : vector<8x32xf32>
    %352 = arith.mulf %56, %56 : vector<8x32xf32>
    %353 = arith.mulf %328, %330 : vector<8x32xf32>
    %354 = arith.subf %352, %353 : vector<8x32xf32>
    %355 = arith.mulf %328, %58 : vector<8x32xf32>
    %356 = arith.mulf %55, %56 : vector<8x32xf32>
    %357 = arith.subf %355, %356 : vector<8x32xf32>
    %358 = arith.mulf %333, %333 : vector<8x32xf32>
    %359 = arith.mulf %336, %336 : vector<8x32xf32>
    %360 = arith.addf %358, %359 : vector<8x32xf32>
    %361 = arith.mulf %339, %339 : vector<8x32xf32>
    %362 = arith.addf %360, %361 : vector<8x32xf32>
    %363 = arith.mulf %342, %342 : vector<8x32xf32>
    %364 = arith.mulf %345, %345 : vector<8x32xf32>
    %365 = arith.addf %363, %364 : vector<8x32xf32>
    %366 = arith.mulf %348, %348 : vector<8x32xf32>
    %367 = arith.addf %365, %366 : vector<8x32xf32>
    %368 = arith.cmpf ogt, %367, %362 : vector<8x32xf32>
    %369 = arith.select %368, %342, %333 : vector<8x32xi1>, vector<8x32xf32>
    %370 = arith.select %368, %345, %336 : vector<8x32xi1>, vector<8x32xf32>
    %371 = arith.select %368, %348, %339 : vector<8x32xi1>, vector<8x32xf32>
    %372 = arith.select %368, %367, %362 : vector<8x32xi1>, vector<8x32xf32>
    %373 = arith.mulf %351, %351 : vector<8x32xf32>
    %374 = arith.mulf %354, %354 : vector<8x32xf32>
    %375 = arith.addf %373, %374 : vector<8x32xf32>
    %376 = arith.mulf %357, %357 : vector<8x32xf32>
    %377 = arith.addf %375, %376 : vector<8x32xf32>
    %378 = arith.cmpf ogt, %377, %372 : vector<8x32xf32>
    %379 = arith.select %378, %351, %369 : vector<8x32xi1>, vector<8x32xf32>
    %380 = arith.select %378, %354, %370 : vector<8x32xi1>, vector<8x32xf32>
    %381 = arith.select %378, %357, %371 : vector<8x32xi1>, vector<8x32xf32>
    %382 = arith.select %378, %377, %372 : vector<8x32xi1>, vector<8x32xf32>
    %cst_86 = arith.constant 1.000000e-30 : f32
    %383 = vector.broadcast %cst_86 : f32 to vector<8x32xf32>
    %384 = arith.maximumf %382, %383 : vector<8x32xf32>
    %385 = math.rsqrt %384 : vector<8x32xf32>
    %386 = arith.mulf %379, %385 : vector<8x32xf32>
    %387 = arith.mulf %380, %385 : vector<8x32xf32>
    %388 = arith.mulf %381, %385 : vector<8x32xf32>
    %cst_87 = arith.constant 0.000000e+00 : f32
    %389 = vector.broadcast %cst_87 : f32 to vector<8x32xf32>
    %390 = arith.cmpf olt, %388, %389 : vector<8x32xf32>
    %cst_88 = arith.constant -1.000000e+00 : f32
    %cst_89 = arith.constant 1.000000e+00 : f32
    %391 = vector.broadcast %cst_88 : f32 to vector<8x32xf32>
    %392 = vector.broadcast %cst_89 : f32 to vector<8x32xf32>
    %393 = arith.select %390, %391, %392 : vector<8x32xi1>, vector<8x32xf32>
    %394 = arith.mulf %386, %393 : vector<8x32xf32>
    %395 = arith.mulf %387, %393 : vector<8x32xf32>
    %396 = arith.mulf %388, %393 : vector<8x32xf32>
    %c0_90 = arith.constant 0 : index
    %c0_91 = arith.constant 0 : index
    %c0_92 = arith.constant 0 : index
    %c0_93 = arith.constant 0 : index
    %397 = vector.load %arg3[%c0_90, %c0_91, %c0_92, %c0_93] : memref<1x16x8x32xf32, #tpu.memory_space<vmem>>, vector<1x1x8x32xf32>
    %398 = vector.shape_cast %397 : vector<1x1x8x32xf32> to vector<8x32xf32>
    %c0_94 = arith.constant 0 : index
    %c1_95 = arith.constant 1 : index
    %c0_96 = arith.constant 0 : index
    %c0_97 = arith.constant 0 : index
    %399 = vector.load %arg3[%c0_94, %c1_95, %c0_96, %c0_97] : memref<1x16x8x32xf32, #tpu.memory_space<vmem>>, vector<1x1x8x32xf32>
    %400 = vector.shape_cast %399 : vector<1x1x8x32xf32> to vector<8x32xf32>
    %c0_98 = arith.constant 0 : index
    %c2_99 = arith.constant 2 : index
    %c0_100 = arith.constant 0 : index
    %c0_101 = arith.constant 0 : index
    %401 = vector.load %arg3[%c0_98, %c2_99, %c0_100, %c0_101] : memref<1x16x8x32xf32, #tpu.memory_space<vmem>>, vector<1x1x8x32xf32>
    %402 = vector.shape_cast %401 : vector<1x1x8x32xf32> to vector<8x32xf32>
    %c0_102 = arith.constant 0 : index
    %c3_103 = arith.constant 3 : index
    %c0_104 = arith.constant 0 : index
    %c0_105 = arith.constant 0 : index
    %403 = vector.load %arg3[%c0_102, %c3_103, %c0_104, %c0_105] : memref<1x16x8x32xf32, #tpu.memory_space<vmem>>, vector<1x1x8x32xf32>
    %404 = vector.shape_cast %403 : vector<1x1x8x32xf32> to vector<8x32xf32>
    %c0_106 = arith.constant 0 : index
    %c4_107 = arith.constant 4 : index
    %c0_108 = arith.constant 0 : index
    %c0_109 = arith.constant 0 : index
    %405 = vector.load %arg3[%c0_106, %c4_107, %c0_108, %c0_109] : memref<1x16x8x32xf32, #tpu.memory_space<vmem>>, vector<1x1x8x32xf32>
    %406 = vector.shape_cast %405 : vector<1x1x8x32xf32> to vector<8x32xf32>
    %c0_110 = arith.constant 0 : index
    %c5_111 = arith.constant 5 : index
    %c0_112 = arith.constant 0 : index
    %c0_113 = arith.constant 0 : index
    %407 = vector.load %arg3[%c0_110, %c5_111, %c0_112, %c0_113] : memref<1x16x8x32xf32, #tpu.memory_space<vmem>>, vector<1x1x8x32xf32>
    %408 = vector.shape_cast %407 : vector<1x1x8x32xf32> to vector<8x32xf32>
    %c0_114 = arith.constant 0 : index
    %c6_115 = arith.constant 6 : index
    %c0_116 = arith.constant 0 : index
    %c0_117 = arith.constant 0 : index
    %409 = vector.load %arg3[%c0_114, %c6_115, %c0_116, %c0_117] : memref<1x16x8x32xf32, #tpu.memory_space<vmem>>, vector<1x1x8x32xf32>
    %410 = vector.shape_cast %409 : vector<1x1x8x32xf32> to vector<8x32xf32>
    %c0_118 = arith.constant 0 : index
    %c7_119 = arith.constant 7 : index
    %c0_120 = arith.constant 0 : index
    %c0_121 = arith.constant 0 : index
    %411 = vector.load %arg3[%c0_118, %c7_119, %c0_120, %c0_121] : memref<1x16x8x32xf32, #tpu.memory_space<vmem>>, vector<1x1x8x32xf32>
    %412 = vector.shape_cast %411 : vector<1x1x8x32xf32> to vector<8x32xf32>
    %c0_122 = arith.constant 0 : index
    %c8_123 = arith.constant 8 : index
    %c0_124 = arith.constant 0 : index
    %c0_125 = arith.constant 0 : index
    %413 = vector.load %arg3[%c0_122, %c8_123, %c0_124, %c0_125] : memref<1x16x8x32xf32, #tpu.memory_space<vmem>>, vector<1x1x8x32xf32>
    %414 = vector.shape_cast %413 : vector<1x1x8x32xf32> to vector<8x32xf32>
    %cst_126 = arith.constant 1.000000e-01 : f32
    %415 = vector.broadcast %cst_126 : f32 to vector<8x32xf32>
    %416 = arith.mulf %398, %415 : vector<8x32xf32>
    %cst_127 = arith.constant 1.000000e-01 : f32
    %417 = vector.broadcast %cst_127 : f32 to vector<8x32xf32>
    %418 = arith.mulf %400, %417 : vector<8x32xf32>
    %cst_128 = arith.constant 1.000000e-01 : f32
    %419 = vector.broadcast %cst_128 : f32 to vector<8x32xf32>
    %420 = arith.mulf %402, %419 : vector<8x32xf32>
    %cst_129 = arith.constant 1.000000e-01 : f32
    %421 = vector.broadcast %cst_129 : f32 to vector<8x32xf32>
    %422 = arith.mulf %404, %421 : vector<8x32xf32>
    %423 = arith.mulf %416, %416 : vector<8x32xf32>
    %424 = arith.subf %422, %423 : vector<8x32xf32>
    %cst_130 = arith.constant 1.000000e-01 : f32
    %425 = vector.broadcast %cst_130 : f32 to vector<8x32xf32>
    %426 = arith.mulf %406, %425 : vector<8x32xf32>
    %427 = arith.mulf %416, %418 : vector<8x32xf32>
    %428 = arith.subf %426, %427 : vector<8x32xf32>
    %cst_131 = arith.constant 1.000000e-01 : f32
    %429 = vector.broadcast %cst_131 : f32 to vector<8x32xf32>
    %430 = arith.mulf %408, %429 : vector<8x32xf32>
    %431 = arith.mulf %416, %420 : vector<8x32xf32>
    %432 = arith.subf %430, %431 : vector<8x32xf32>
    %cst_132 = arith.constant 1.000000e-01 : f32
    %433 = vector.broadcast %cst_132 : f32 to vector<8x32xf32>
    %434 = arith.mulf %410, %433 : vector<8x32xf32>
    %435 = arith.mulf %418, %418 : vector<8x32xf32>
    %436 = arith.subf %434, %435 : vector<8x32xf32>
    %cst_133 = arith.constant 1.000000e-01 : f32
    %437 = vector.broadcast %cst_133 : f32 to vector<8x32xf32>
    %438 = arith.mulf %412, %437 : vector<8x32xf32>
    %439 = arith.mulf %418, %420 : vector<8x32xf32>
    %440 = arith.subf %438, %439 : vector<8x32xf32>
    %cst_134 = arith.constant 1.000000e-01 : f32
    %441 = vector.broadcast %cst_134 : f32 to vector<8x32xf32>
    %442 = arith.mulf %414, %441 : vector<8x32xf32>
    %443 = arith.mulf %420, %420 : vector<8x32xf32>
    %444 = arith.subf %442, %443 : vector<8x32xf32>
    %445 = arith.addf %424, %436 : vector<8x32xf32>
    %446 = arith.addf %445, %444 : vector<8x32xf32>
    %cst_135 = arith.constant 1.000000e-30 : f32
    %447 = vector.broadcast %cst_135 : f32 to vector<8x32xf32>
    %448 = arith.addf %446, %447 : vector<8x32xf32>
    %cst_136 = arith.constant 1.000000e+00 : f32
    %449 = vector.broadcast %cst_136 : f32 to vector<8x32xf32>
    %450 = arith.divf %449, %448 : vector<8x32xf32>
    %451 = arith.mulf %424, %450 : vector<8x32xf32>
    %452 = arith.mulf %428, %450 : vector<8x32xf32>
    %453 = arith.mulf %432, %450 : vector<8x32xf32>
    %454 = arith.mulf %436, %450 : vector<8x32xf32>
    %455 = arith.mulf %440, %450 : vector<8x32xf32>
    %456 = arith.mulf %444, %450 : vector<8x32xf32>
    %457 = arith.addf %451, %454 : vector<8x32xf32>
    %458 = arith.addf %457, %456 : vector<8x32xf32>
    %459 = arith.mulf %451, %454 : vector<8x32xf32>
    %460 = arith.mulf %452, %452 : vector<8x32xf32>
    %461 = arith.subf %459, %460 : vector<8x32xf32>
    %462 = arith.mulf %451, %456 : vector<8x32xf32>
    %463 = arith.mulf %453, %453 : vector<8x32xf32>
    %464 = arith.subf %462, %463 : vector<8x32xf32>
    %465 = arith.addf %461, %464 : vector<8x32xf32>
    %466 = arith.mulf %454, %456 : vector<8x32xf32>
    %467 = arith.mulf %455, %455 : vector<8x32xf32>
    %468 = arith.subf %466, %467 : vector<8x32xf32>
    %469 = arith.addf %465, %468 : vector<8x32xf32>
    %470 = arith.mulf %454, %456 : vector<8x32xf32>
    %471 = arith.mulf %455, %455 : vector<8x32xf32>
    %472 = arith.subf %470, %471 : vector<8x32xf32>
    %473 = arith.mulf %451, %472 : vector<8x32xf32>
    %474 = arith.mulf %452, %456 : vector<8x32xf32>
    %475 = arith.mulf %455, %453 : vector<8x32xf32>
    %476 = arith.subf %474, %475 : vector<8x32xf32>
    %477 = arith.mulf %452, %476 : vector<8x32xf32>
    %478 = arith.subf %473, %477 : vector<8x32xf32>
    %479 = arith.mulf %452, %455 : vector<8x32xf32>
    %480 = arith.mulf %454, %453 : vector<8x32xf32>
    %481 = arith.subf %479, %480 : vector<8x32xf32>
    %482 = arith.mulf %453, %481 : vector<8x32xf32>
    %483 = arith.addf %478, %482 : vector<8x32xf32>
    %cst_137 = arith.constant 0.000000e+00 : f32
    %484 = vector.broadcast %cst_137 : f32 to vector<8x32xf32>
    %485 = arith.subf %484, %458 : vector<8x32xf32>
    %486 = arith.mulf %485, %484 : vector<8x32xf32>
    %487 = arith.addf %486, %469 : vector<8x32xf32>
    %488 = arith.mulf %487, %484 : vector<8x32xf32>
    %489 = arith.subf %488, %483 : vector<8x32xf32>
    %cst_138 = arith.constant 3.000000e+00 : f32
    %490 = vector.broadcast %cst_138 : f32 to vector<8x32xf32>
    %491 = arith.mulf %490, %484 : vector<8x32xf32>
    %cst_139 = arith.constant 2.000000e+00 : f32
    %492 = vector.broadcast %cst_139 : f32 to vector<8x32xf32>
    %493 = arith.mulf %492, %458 : vector<8x32xf32>
    %494 = arith.subf %491, %493 : vector<8x32xf32>
    %495 = arith.mulf %494, %484 : vector<8x32xf32>
    %496 = arith.addf %495, %469 : vector<8x32xf32>
    %497 = math.absf %496 : vector<8x32xf32>
    %cst_140 = arith.constant 9.99999968E-21 : f32
    %498 = vector.broadcast %cst_140 : f32 to vector<8x32xf32>
    %499 = arith.cmpf olt, %497, %498 : vector<8x32xf32>
    %cst_141 = arith.constant 9.99999968E-21 : f32
    %500 = vector.broadcast %cst_141 : f32 to vector<8x32xf32>
    %501 = arith.select %499, %500, %496 : vector<8x32xi1>, vector<8x32xf32>
    %502 = tpu.reciprocal %501 {approx = true} : vector<8x32xf32> -> vector<8x32xf32>
    %503 = arith.mulf %489, %502 : vector<8x32xf32>
    %504 = arith.subf %484, %503 : vector<8x32xf32>
    %505 = arith.subf %504, %458 : vector<8x32xf32>
    %506 = arith.mulf %505, %504 : vector<8x32xf32>
    %507 = arith.addf %506, %469 : vector<8x32xf32>
    %508 = arith.mulf %507, %504 : vector<8x32xf32>
    %509 = arith.subf %508, %483 : vector<8x32xf32>
    %cst_142 = arith.constant 3.000000e+00 : f32
    %510 = vector.broadcast %cst_142 : f32 to vector<8x32xf32>
    %511 = arith.mulf %510, %504 : vector<8x32xf32>
    %cst_143 = arith.constant 2.000000e+00 : f32
    %512 = vector.broadcast %cst_143 : f32 to vector<8x32xf32>
    %513 = arith.mulf %512, %458 : vector<8x32xf32>
    %514 = arith.subf %511, %513 : vector<8x32xf32>
    %515 = arith.mulf %514, %504 : vector<8x32xf32>
    %516 = arith.addf %515, %469 : vector<8x32xf32>
    %517 = math.absf %516 : vector<8x32xf32>
    %cst_144 = arith.constant 9.99999968E-21 : f32
    %518 = vector.broadcast %cst_144 : f32 to vector<8x32xf32>
    %519 = arith.cmpf olt, %517, %518 : vector<8x32xf32>
    %cst_145 = arith.constant 9.99999968E-21 : f32
    %520 = vector.broadcast %cst_145 : f32 to vector<8x32xf32>
    %521 = arith.select %519, %520, %516 : vector<8x32xi1>, vector<8x32xf32>
    %522 = tpu.reciprocal %521 {approx = true} : vector<8x32xf32> -> vector<8x32xf32>
    %523 = arith.mulf %509, %522 : vector<8x32xf32>
    %524 = arith.subf %504, %523 : vector<8x32xf32>
    %525 = arith.subf %524, %458 : vector<8x32xf32>
    %526 = arith.mulf %525, %524 : vector<8x32xf32>
    %527 = arith.addf %526, %469 : vector<8x32xf32>
    %528 = arith.mulf %527, %524 : vector<8x32xf32>
    %529 = arith.subf %528, %483 : vector<8x32xf32>
    %cst_146 = arith.constant 3.000000e+00 : f32
    %530 = vector.broadcast %cst_146 : f32 to vector<8x32xf32>
    %531 = arith.mulf %530, %524 : vector<8x32xf32>
    %cst_147 = arith.constant 2.000000e+00 : f32
    %532 = vector.broadcast %cst_147 : f32 to vector<8x32xf32>
    %533 = arith.mulf %532, %458 : vector<8x32xf32>
    %534 = arith.subf %531, %533 : vector<8x32xf32>
    %535 = arith.mulf %534, %524 : vector<8x32xf32>
    %536 = arith.addf %535, %469 : vector<8x32xf32>
    %537 = math.absf %536 : vector<8x32xf32>
    %cst_148 = arith.constant 9.99999968E-21 : f32
    %538 = vector.broadcast %cst_148 : f32 to vector<8x32xf32>
    %539 = arith.cmpf olt, %537, %538 : vector<8x32xf32>
    %cst_149 = arith.constant 9.99999968E-21 : f32
    %540 = vector.broadcast %cst_149 : f32 to vector<8x32xf32>
    %541 = arith.select %539, %540, %536 : vector<8x32xi1>, vector<8x32xf32>
    %542 = tpu.reciprocal %541 {approx = true} : vector<8x32xf32> -> vector<8x32xf32>
    %543 = arith.mulf %529, %542 : vector<8x32xf32>
    %544 = arith.subf %524, %543 : vector<8x32xf32>
    %545 = arith.subf %544, %458 : vector<8x32xf32>
    %546 = arith.mulf %545, %544 : vector<8x32xf32>
    %547 = arith.addf %546, %469 : vector<8x32xf32>
    %548 = arith.mulf %547, %544 : vector<8x32xf32>
    %549 = arith.subf %548, %483 : vector<8x32xf32>
    %cst_150 = arith.constant 3.000000e+00 : f32
    %550 = vector.broadcast %cst_150 : f32 to vector<8x32xf32>
    %551 = arith.mulf %550, %544 : vector<8x32xf32>
    %cst_151 = arith.constant 2.000000e+00 : f32
    %552 = vector.broadcast %cst_151 : f32 to vector<8x32xf32>
    %553 = arith.mulf %552, %458 : vector<8x32xf32>
    %554 = arith.subf %551, %553 : vector<8x32xf32>
    %555 = arith.mulf %554, %544 : vector<8x32xf32>
    %556 = arith.addf %555, %469 : vector<8x32xf32>
    %557 = math.absf %556 : vector<8x32xf32>
    %cst_152 = arith.constant 9.99999968E-21 : f32
    %558 = vector.broadcast %cst_152 : f32 to vector<8x32xf32>
    %559 = arith.cmpf olt, %557, %558 : vector<8x32xf32>
    %cst_153 = arith.constant 9.99999968E-21 : f32
    %560 = vector.broadcast %cst_153 : f32 to vector<8x32xf32>
    %561 = arith.select %559, %560, %556 : vector<8x32xi1>, vector<8x32xf32>
    %562 = tpu.reciprocal %561 {approx = true} : vector<8x32xf32> -> vector<8x32xf32>
    %563 = arith.mulf %549, %562 : vector<8x32xf32>
    %564 = arith.subf %544, %563 : vector<8x32xf32>
    %565 = arith.subf %564, %458 : vector<8x32xf32>
    %566 = arith.mulf %565, %564 : vector<8x32xf32>
    %567 = arith.addf %566, %469 : vector<8x32xf32>
    %568 = arith.mulf %567, %564 : vector<8x32xf32>
    %569 = arith.subf %568, %483 : vector<8x32xf32>
    %cst_154 = arith.constant 3.000000e+00 : f32
    %570 = vector.broadcast %cst_154 : f32 to vector<8x32xf32>
    %571 = arith.mulf %570, %564 : vector<8x32xf32>
    %cst_155 = arith.constant 2.000000e+00 : f32
    %572 = vector.broadcast %cst_155 : f32 to vector<8x32xf32>
    %573 = arith.mulf %572, %458 : vector<8x32xf32>
    %574 = arith.subf %571, %573 : vector<8x32xf32>
    %575 = arith.mulf %574, %564 : vector<8x32xf32>
    %576 = arith.addf %575, %469 : vector<8x32xf32>
    %577 = math.absf %576 : vector<8x32xf32>
    %cst_156 = arith.constant 9.99999968E-21 : f32
    %578 = vector.broadcast %cst_156 : f32 to vector<8x32xf32>
    %579 = arith.cmpf olt, %577, %578 : vector<8x32xf32>
    %cst_157 = arith.constant 9.99999968E-21 : f32
    %580 = vector.broadcast %cst_157 : f32 to vector<8x32xf32>
    %581 = arith.select %579, %580, %576 : vector<8x32xi1>, vector<8x32xf32>
    %582 = tpu.reciprocal %581 {approx = true} : vector<8x32xf32> -> vector<8x32xf32>
    %583 = arith.mulf %569, %582 : vector<8x32xf32>
    %584 = arith.subf %564, %583 : vector<8x32xf32>
    %585 = arith.subf %584, %458 : vector<8x32xf32>
    %586 = arith.mulf %585, %584 : vector<8x32xf32>
    %587 = arith.addf %586, %469 : vector<8x32xf32>
    %588 = arith.mulf %587, %584 : vector<8x32xf32>
    %589 = arith.subf %588, %483 : vector<8x32xf32>
    %cst_158 = arith.constant 3.000000e+00 : f32
    %590 = vector.broadcast %cst_158 : f32 to vector<8x32xf32>
    %591 = arith.mulf %590, %584 : vector<8x32xf32>
    %cst_159 = arith.constant 2.000000e+00 : f32
    %592 = vector.broadcast %cst_159 : f32 to vector<8x32xf32>
    %593 = arith.mulf %592, %458 : vector<8x32xf32>
    %594 = arith.subf %591, %593 : vector<8x32xf32>
    %595 = arith.mulf %594, %584 : vector<8x32xf32>
    %596 = arith.addf %595, %469 : vector<8x32xf32>
    %597 = math.absf %596 : vector<8x32xf32>
    %cst_160 = arith.constant 9.99999968E-21 : f32
    %598 = vector.broadcast %cst_160 : f32 to vector<8x32xf32>
    %599 = arith.cmpf olt, %597, %598 : vector<8x32xf32>
    %cst_161 = arith.constant 9.99999968E-21 : f32
    %600 = vector.broadcast %cst_161 : f32 to vector<8x32xf32>
    %601 = arith.select %599, %600, %596 : vector<8x32xi1>, vector<8x32xf32>
    %602 = tpu.reciprocal %601 {approx = true} : vector<8x32xf32> -> vector<8x32xf32>
    %603 = arith.mulf %589, %602 : vector<8x32xf32>
    %604 = arith.subf %584, %603 : vector<8x32xf32>
    %605 = arith.subf %604, %458 : vector<8x32xf32>
    %606 = arith.mulf %605, %604 : vector<8x32xf32>
    %607 = arith.addf %606, %469 : vector<8x32xf32>
    %608 = arith.mulf %607, %604 : vector<8x32xf32>
    %609 = arith.subf %608, %483 : vector<8x32xf32>
    %cst_162 = arith.constant 3.000000e+00 : f32
    %610 = vector.broadcast %cst_162 : f32 to vector<8x32xf32>
    %611 = arith.mulf %610, %604 : vector<8x32xf32>
    %cst_163 = arith.constant 2.000000e+00 : f32
    %612 = vector.broadcast %cst_163 : f32 to vector<8x32xf32>
    %613 = arith.mulf %612, %458 : vector<8x32xf32>
    %614 = arith.subf %611, %613 : vector<8x32xf32>
    %615 = arith.mulf %614, %604 : vector<8x32xf32>
    %616 = arith.addf %615, %469 : vector<8x32xf32>
    %617 = math.absf %616 : vector<8x32xf32>
    %cst_164 = arith.constant 9.99999968E-21 : f32
    %618 = vector.broadcast %cst_164 : f32 to vector<8x32xf32>
    %619 = arith.cmpf olt, %617, %618 : vector<8x32xf32>
    %cst_165 = arith.constant 9.99999968E-21 : f32
    %620 = vector.broadcast %cst_165 : f32 to vector<8x32xf32>
    %621 = arith.select %619, %620, %616 : vector<8x32xi1>, vector<8x32xf32>
    %622 = tpu.reciprocal %621 {approx = true} : vector<8x32xf32> -> vector<8x32xf32>
    %623 = arith.mulf %609, %622 : vector<8x32xf32>
    %624 = arith.subf %604, %623 : vector<8x32xf32>
    %625 = arith.subf %624, %458 : vector<8x32xf32>
    %626 = arith.mulf %625, %624 : vector<8x32xf32>
    %627 = arith.addf %626, %469 : vector<8x32xf32>
    %628 = arith.mulf %627, %624 : vector<8x32xf32>
    %629 = arith.subf %628, %483 : vector<8x32xf32>
    %cst_166 = arith.constant 3.000000e+00 : f32
    %630 = vector.broadcast %cst_166 : f32 to vector<8x32xf32>
    %631 = arith.mulf %630, %624 : vector<8x32xf32>
    %cst_167 = arith.constant 2.000000e+00 : f32
    %632 = vector.broadcast %cst_167 : f32 to vector<8x32xf32>
    %633 = arith.mulf %632, %458 : vector<8x32xf32>
    %634 = arith.subf %631, %633 : vector<8x32xf32>
    %635 = arith.mulf %634, %624 : vector<8x32xf32>
    %636 = arith.addf %635, %469 : vector<8x32xf32>
    %637 = math.absf %636 : vector<8x32xf32>
    %cst_168 = arith.constant 9.99999968E-21 : f32
    %638 = vector.broadcast %cst_168 : f32 to vector<8x32xf32>
    %639 = arith.cmpf olt, %637, %638 : vector<8x32xf32>
    %cst_169 = arith.constant 9.99999968E-21 : f32
    %640 = vector.broadcast %cst_169 : f32 to vector<8x32xf32>
    %641 = arith.select %639, %640, %636 : vector<8x32xi1>, vector<8x32xf32>
    %642 = tpu.reciprocal %641 {approx = true} : vector<8x32xf32> -> vector<8x32xf32>
    %643 = arith.mulf %629, %642 : vector<8x32xf32>
    %644 = arith.subf %624, %643 : vector<8x32xf32>
    %645 = arith.subf %644, %458 : vector<8x32xf32>
    %646 = arith.mulf %645, %644 : vector<8x32xf32>
    %647 = arith.addf %646, %469 : vector<8x32xf32>
    %648 = arith.mulf %647, %644 : vector<8x32xf32>
    %649 = arith.subf %648, %483 : vector<8x32xf32>
    %cst_170 = arith.constant 3.000000e+00 : f32
    %650 = vector.broadcast %cst_170 : f32 to vector<8x32xf32>
    %651 = arith.mulf %650, %644 : vector<8x32xf32>
    %cst_171 = arith.constant 2.000000e+00 : f32
    %652 = vector.broadcast %cst_171 : f32 to vector<8x32xf32>
    %653 = arith.mulf %652, %458 : vector<8x32xf32>
    %654 = arith.subf %651, %653 : vector<8x32xf32>
    %655 = arith.mulf %654, %644 : vector<8x32xf32>
    %656 = arith.addf %655, %469 : vector<8x32xf32>
    %657 = math.absf %656 : vector<8x32xf32>
    %cst_172 = arith.constant 9.99999968E-21 : f32
    %658 = vector.broadcast %cst_172 : f32 to vector<8x32xf32>
    %659 = arith.cmpf olt, %657, %658 : vector<8x32xf32>
    %cst_173 = arith.constant 9.99999968E-21 : f32
    %660 = vector.broadcast %cst_173 : f32 to vector<8x32xf32>
    %661 = arith.select %659, %660, %656 : vector<8x32xi1>, vector<8x32xf32>
    %662 = tpu.reciprocal %661 {approx = true} : vector<8x32xf32> -> vector<8x32xf32>
    %663 = arith.mulf %649, %662 : vector<8x32xf32>
    %664 = arith.subf %644, %663 : vector<8x32xf32>
    %665 = arith.subf %664, %458 : vector<8x32xf32>
    %666 = arith.mulf %665, %664 : vector<8x32xf32>
    %667 = arith.addf %666, %469 : vector<8x32xf32>
    %668 = arith.mulf %667, %664 : vector<8x32xf32>
    %669 = arith.subf %668, %483 : vector<8x32xf32>
    %cst_174 = arith.constant 3.000000e+00 : f32
    %670 = vector.broadcast %cst_174 : f32 to vector<8x32xf32>
    %671 = arith.mulf %670, %664 : vector<8x32xf32>
    %cst_175 = arith.constant 2.000000e+00 : f32
    %672 = vector.broadcast %cst_175 : f32 to vector<8x32xf32>
    %673 = arith.mulf %672, %458 : vector<8x32xf32>
    %674 = arith.subf %671, %673 : vector<8x32xf32>
    %675 = arith.mulf %674, %664 : vector<8x32xf32>
    %676 = arith.addf %675, %469 : vector<8x32xf32>
    %677 = math.absf %676 : vector<8x32xf32>
    %cst_176 = arith.constant 9.99999968E-21 : f32
    %678 = vector.broadcast %cst_176 : f32 to vector<8x32xf32>
    %679 = arith.cmpf olt, %677, %678 : vector<8x32xf32>
    %cst_177 = arith.constant 9.99999968E-21 : f32
    %680 = vector.broadcast %cst_177 : f32 to vector<8x32xf32>
    %681 = arith.select %679, %680, %676 : vector<8x32xi1>, vector<8x32xf32>
    %682 = tpu.reciprocal %681 {approx = true} : vector<8x32xf32> -> vector<8x32xf32>
    %683 = arith.mulf %669, %682 : vector<8x32xf32>
    %684 = arith.subf %664, %683 : vector<8x32xf32>
    %685 = arith.subf %684, %458 : vector<8x32xf32>
    %686 = arith.mulf %685, %684 : vector<8x32xf32>
    %687 = arith.addf %686, %469 : vector<8x32xf32>
    %688 = arith.mulf %687, %684 : vector<8x32xf32>
    %689 = arith.subf %688, %483 : vector<8x32xf32>
    %cst_178 = arith.constant 3.000000e+00 : f32
    %690 = vector.broadcast %cst_178 : f32 to vector<8x32xf32>
    %691 = arith.mulf %690, %684 : vector<8x32xf32>
    %cst_179 = arith.constant 2.000000e+00 : f32
    %692 = vector.broadcast %cst_179 : f32 to vector<8x32xf32>
    %693 = arith.mulf %692, %458 : vector<8x32xf32>
    %694 = arith.subf %691, %693 : vector<8x32xf32>
    %695 = arith.mulf %694, %684 : vector<8x32xf32>
    %696 = arith.addf %695, %469 : vector<8x32xf32>
    %697 = math.absf %696 : vector<8x32xf32>
    %cst_180 = arith.constant 9.99999968E-21 : f32
    %698 = vector.broadcast %cst_180 : f32 to vector<8x32xf32>
    %699 = arith.cmpf olt, %697, %698 : vector<8x32xf32>
    %cst_181 = arith.constant 9.99999968E-21 : f32
    %700 = vector.broadcast %cst_181 : f32 to vector<8x32xf32>
    %701 = arith.select %699, %700, %696 : vector<8x32xi1>, vector<8x32xf32>
    %702 = tpu.reciprocal %701 {approx = true} : vector<8x32xf32> -> vector<8x32xf32>
    %703 = arith.mulf %689, %702 : vector<8x32xf32>
    %704 = arith.subf %684, %703 : vector<8x32xf32>
    %705 = arith.subf %704, %458 : vector<8x32xf32>
    %706 = arith.mulf %705, %704 : vector<8x32xf32>
    %707 = arith.addf %706, %469 : vector<8x32xf32>
    %708 = arith.mulf %707, %704 : vector<8x32xf32>
    %709 = arith.subf %708, %483 : vector<8x32xf32>
    %cst_182 = arith.constant 3.000000e+00 : f32
    %710 = vector.broadcast %cst_182 : f32 to vector<8x32xf32>
    %711 = arith.mulf %710, %704 : vector<8x32xf32>
    %cst_183 = arith.constant 2.000000e+00 : f32
    %712 = vector.broadcast %cst_183 : f32 to vector<8x32xf32>
    %713 = arith.mulf %712, %458 : vector<8x32xf32>
    %714 = arith.subf %711, %713 : vector<8x32xf32>
    %715 = arith.mulf %714, %704 : vector<8x32xf32>
    %716 = arith.addf %715, %469 : vector<8x32xf32>
    %717 = math.absf %716 : vector<8x32xf32>
    %cst_184 = arith.constant 9.99999968E-21 : f32
    %718 = vector.broadcast %cst_184 : f32 to vector<8x32xf32>
    %719 = arith.cmpf olt, %717, %718 : vector<8x32xf32>
    %cst_185 = arith.constant 9.99999968E-21 : f32
    %720 = vector.broadcast %cst_185 : f32 to vector<8x32xf32>
    %721 = arith.select %719, %720, %716 : vector<8x32xi1>, vector<8x32xf32>
    %722 = tpu.reciprocal %721 {approx = true} : vector<8x32xf32> -> vector<8x32xf32>
    %723 = arith.mulf %709, %722 : vector<8x32xf32>
    %724 = arith.subf %704, %723 : vector<8x32xf32>
    %725 = arith.subf %451, %724 : vector<8x32xf32>
    %726 = arith.subf %454, %724 : vector<8x32xf32>
    %727 = arith.subf %456, %724 : vector<8x32xf32>
    %728 = arith.mulf %452, %455 : vector<8x32xf32>
    %729 = arith.mulf %453, %726 : vector<8x32xf32>
    %730 = arith.subf %728, %729 : vector<8x32xf32>
    %731 = arith.mulf %453, %452 : vector<8x32xf32>
    %732 = arith.mulf %725, %455 : vector<8x32xf32>
    %733 = arith.subf %731, %732 : vector<8x32xf32>
    %734 = arith.mulf %725, %726 : vector<8x32xf32>
    %735 = arith.mulf %452, %452 : vector<8x32xf32>
    %736 = arith.subf %734, %735 : vector<8x32xf32>
    %737 = arith.mulf %726, %727 : vector<8x32xf32>
    %738 = arith.mulf %455, %455 : vector<8x32xf32>
    %739 = arith.subf %737, %738 : vector<8x32xf32>
    %740 = arith.mulf %455, %453 : vector<8x32xf32>
    %741 = arith.mulf %452, %727 : vector<8x32xf32>
    %742 = arith.subf %740, %741 : vector<8x32xf32>
    %743 = arith.mulf %452, %455 : vector<8x32xf32>
    %744 = arith.mulf %726, %453 : vector<8x32xf32>
    %745 = arith.subf %743, %744 : vector<8x32xf32>
    %746 = arith.mulf %452, %727 : vector<8x32xf32>
    %747 = arith.mulf %453, %455 : vector<8x32xf32>
    %748 = arith.subf %746, %747 : vector<8x32xf32>
    %749 = arith.mulf %453, %453 : vector<8x32xf32>
    %750 = arith.mulf %725, %727 : vector<8x32xf32>
    %751 = arith.subf %749, %750 : vector<8x32xf32>
    %752 = arith.mulf %725, %455 : vector<8x32xf32>
    %753 = arith.mulf %452, %453 : vector<8x32xf32>
    %754 = arith.subf %752, %753 : vector<8x32xf32>
    %755 = arith.mulf %730, %730 : vector<8x32xf32>
    %756 = arith.mulf %733, %733 : vector<8x32xf32>
    %757 = arith.addf %755, %756 : vector<8x32xf32>
    %758 = arith.mulf %736, %736 : vector<8x32xf32>
    %759 = arith.addf %757, %758 : vector<8x32xf32>
    %760 = arith.mulf %739, %739 : vector<8x32xf32>
    %761 = arith.mulf %742, %742 : vector<8x32xf32>
    %762 = arith.addf %760, %761 : vector<8x32xf32>
    %763 = arith.mulf %745, %745 : vector<8x32xf32>
    %764 = arith.addf %762, %763 : vector<8x32xf32>
    %765 = arith.cmpf ogt, %764, %759 : vector<8x32xf32>
    %766 = arith.select %765, %739, %730 : vector<8x32xi1>, vector<8x32xf32>
    %767 = arith.select %765, %742, %733 : vector<8x32xi1>, vector<8x32xf32>
    %768 = arith.select %765, %745, %736 : vector<8x32xi1>, vector<8x32xf32>
    %769 = arith.select %765, %764, %759 : vector<8x32xi1>, vector<8x32xf32>
    %770 = arith.mulf %748, %748 : vector<8x32xf32>
    %771 = arith.mulf %751, %751 : vector<8x32xf32>
    %772 = arith.addf %770, %771 : vector<8x32xf32>
    %773 = arith.mulf %754, %754 : vector<8x32xf32>
    %774 = arith.addf %772, %773 : vector<8x32xf32>
    %775 = arith.cmpf ogt, %774, %769 : vector<8x32xf32>
    %776 = arith.select %775, %748, %766 : vector<8x32xi1>, vector<8x32xf32>
    %777 = arith.select %775, %751, %767 : vector<8x32xi1>, vector<8x32xf32>
    %778 = arith.select %775, %754, %768 : vector<8x32xi1>, vector<8x32xf32>
    %779 = arith.select %775, %774, %769 : vector<8x32xi1>, vector<8x32xf32>
    %cst_186 = arith.constant 1.000000e-30 : f32
    %780 = vector.broadcast %cst_186 : f32 to vector<8x32xf32>
    %781 = arith.maximumf %779, %780 : vector<8x32xf32>
    %782 = math.rsqrt %781 : vector<8x32xf32>
    %783 = arith.mulf %776, %782 : vector<8x32xf32>
    %784 = arith.mulf %777, %782 : vector<8x32xf32>
    %785 = arith.mulf %778, %782 : vector<8x32xf32>
    %cst_187 = arith.constant 0.000000e+00 : f32
    %786 = vector.broadcast %cst_187 : f32 to vector<8x32xf32>
    %787 = arith.cmpf olt, %785, %786 : vector<8x32xf32>
    %cst_188 = arith.constant -1.000000e+00 : f32
    %cst_189 = arith.constant 1.000000e+00 : f32
    %788 = vector.broadcast %cst_188 : f32 to vector<8x32xf32>
    %789 = vector.broadcast %cst_189 : f32 to vector<8x32xf32>
    %790 = arith.select %787, %788, %789 : vector<8x32xi1>, vector<8x32xf32>
    %791 = arith.mulf %783, %790 : vector<8x32xf32>
    %792 = arith.mulf %784, %790 : vector<8x32xf32>
    %793 = arith.mulf %785, %790 : vector<8x32xf32>
    %794 = arith.mulf %394, %791 : vector<8x32xf32>
    %795 = arith.mulf %395, %792 : vector<8x32xf32>
    %796 = arith.addf %794, %795 : vector<8x32xf32>
    %797 = arith.mulf %396, %793 : vector<8x32xf32>
    %798 = arith.addf %796, %797 : vector<8x32xf32>
    %799 = arith.mulf %394, %394 : vector<8x32xf32>
    %800 = arith.mulf %395, %395 : vector<8x32xf32>
    %801 = arith.addf %799, %800 : vector<8x32xf32>
    %802 = arith.mulf %396, %396 : vector<8x32xf32>
    %803 = arith.addf %801, %802 : vector<8x32xf32>
    %804 = math.sqrt %803 : vector<8x32xf32>
    %cst_190 = arith.constant 9.99999993E-9 : f32
    %805 = vector.broadcast %cst_190 : f32 to vector<8x32xf32>
    %806 = arith.maximumf %804, %805 : vector<8x32xf32>
    %807 = arith.mulf %791, %791 : vector<8x32xf32>
    %808 = arith.mulf %792, %792 : vector<8x32xf32>
    %809 = arith.addf %807, %808 : vector<8x32xf32>
    %810 = arith.mulf %793, %793 : vector<8x32xf32>
    %811 = arith.addf %809, %810 : vector<8x32xf32>
    %812 = math.sqrt %811 : vector<8x32xf32>
    %cst_191 = arith.constant 9.99999993E-9 : f32
    %813 = vector.broadcast %cst_191 : f32 to vector<8x32xf32>
    %814 = arith.maximumf %812, %813 : vector<8x32xf32>
    %815 = arith.mulf %806, %814 : vector<8x32xf32>
    %816 = arith.divf %798, %815 : vector<8x32xf32>
    %cst_192 = arith.constant 1.000000e+00 : f32
    %817 = vector.broadcast %cst_192 : f32 to vector<8x32xf32>
    %818 = arith.subf %817, %816 : vector<8x32xf32>
    %c0_193 = arith.constant 0 : index
    %c0_194 = arith.constant 0 : index
    %c0_195 = arith.constant 0 : index
    %819 = vector.load %arg4[%c0_193, %c0_194, %c0_195] : memref<1x8x32xf32, #tpu.memory_space<vmem>>, vector<1x8x32xf32>
    %820 = vector.shape_cast %819 : vector<1x8x32xf32> to vector<8x32xf32>
    %821 = vector.shape_cast %818 : vector<8x32xf32> to vector<1x8x32xf32>
    tpu.vector_store %arg4[%c0_193, %c0_194, %c0_195], %821 {strides = array<i32>} : memref<1x8x32xf32, #tpu.memory_space<vmem>>, vector<1x8x32xf32>,
    return
  }
  func.func @transform_0(%arg0: i32, %arg1: i32) -> (i32, i32, i32, i32) {
    %c0_i32 = arith.constant 0 : i32
    %c0_i32_0 = arith.constant 0 : i32
    %c0_i32_1 = arith.constant 0 : i32
    return %arg0, %c0_i32, %c0_i32_0, %arg1 : i32, i32, i32, i32
  }
  func.func @transform_1(%arg0: i32, %arg1: i32) -> (i32, i32, i32, i32) {
    %c0_i32 = arith.constant 0 : i32
    %c0_i32_0 = arith.constant 0 : i32
    %c0_i32_1 = arith.constant 0 : i32
    return %arg0, %c0_i32, %c0_i32_0, %arg1 : i32, i32, i32, i32
  }
  func.func @transform_2(%arg0: i32, %arg1: i32) -> (i32, i32, i32) {
    %c0_i32 = arith.constant 0 : i32
    %c0_i32_0 = arith.constant 0 : i32
    return %arg0, %c0_i32, %arg1 : i32, i32, i32
  }
}

</mosaic_0001>

<llo_original>
// kernel: normal_loss.3
$region0: #{normal_loss.3}
  #allocation0 [shape = 'u32[]', space=smem, size = 0x4, offset = 0x4, fixed_abs, tag = 'smem constant byte address 0x4 - core index']
  #allocation1 [shape = 'u32[72,128]{1,0:T(1,128)}', space=vmem, size = 0x9000, scoped, tag = 'internal scratch']
  %s0 = inlined_call_operand.vmem [shape: f32[2,16,8,32], index: 0, kind: input, shape index: {}]
  %s1 = inlined_call_operand.vmem [shape: f32[2,16,8,32], index: 1, kind: input, shape index: {}]
  %s2 = inlined_call_operand.vmem [shape: f32[2,8,32], index: 2, kind: output, shape index: {}]
  %s3 = sld [smem:[#allocation0]]
  $region41: #{normal_loss.3} parent=0
    _
  %s5 = ssub.s32 1, %s3
  %s6 = scalar_select 0, %s5, %s3
  loop: start=0, step=1, limit=4
  $region2: #{normal_loss.3} parent=0 // loop_pre_header
    _
  $region3: #{normal_loss.3} parent=0 // loop_header
    %s8 = sphi 0, %s12
    %p9 = scmp.ge.s32.totalorder %s8, 4
    %s15 = sphi 0, %s27
    %s16 = sphi 0, %s23
    %s17 = sphi 0, %s15
    %s18 = sphi 0, %s16
    %s19 = sphi 0, %s17
    %s20 = sphi 0, %s18
    %s32 = sphi 0, %s34
    %s35 = sphi 0, %s32
    %s36 = sphi 0, %s35
    %s52 = sphi 0, %s36
    %s60 = sphi 0, %s62
    %s63 = sphi 0, %s60
    %s64 = sphi 0, %s63
    %s80 = sphi 0, %s64
    %s88 = sphi 0, %s90
    %s91 = sphi 0, %s88
    %s92 = sphi 0, %s91
    %s108 = sphi 0, %s92
  $region4: #{normal_loss.3} parent=0 // loop_header_branch
    %11 = sbr.rel (%p9) target = $region8
  $region5: #{normal_loss.3} parent=0 // loop_body
    %s13 = ssub.s32 %s8, 1
    %s14 = ssub.s32 %s8, 2
    %s21 = sadd.s32 1, %s16
    %p22 = scmp.ge.s32.totalorder %s21, 1
    %s23 = scalar_select %p22, 0, %s21
    %s24 = sadd.s32 1, %s15
    %s25 = scalar_select %p22, %s24, %s15
    %p26 = scmp.ge.s32.totalorder %s25, 2
    %s27 = scalar_select %p26, 0, %s25
    %s28 = ssub.s32 %s15, %s27
    %s29 = ssub.s32 %s16, %s23
    %s30 = sor.u32 %s28, %s29
    %p31 = scmp.eq.s32.totalorder %s30, 0
    %s33 = sadd.s32 %s32, 1
    %s34 = scalar_select %p31, %s32, %s33
    %p37 = pneg %p31
    %p38 = scmp.eq.s32.totalorder %s8, 1
    %p39 = por %p37, %p38
    %p40 = scmp.ne.s32.totalorder %s32, %s35
    %p41 = scmp.eq.s32.totalorder %s8, 0
    %p42 = por %p40, %p41
    %p43 = scmp.ne.s32.totalorder %s32, %s35
    %p44 = scmp.eq.s32.totalorder %s13, 1
    %p45 = por %p43, %p44
    %p46 = scmp.ne.s32.totalorder %s35, %s36
    %p47 = scmp.eq.s32.totalorder %s13, 0
    %p48 = por %p46, %p47
    %p49 = scmp.ne.s32.totalorder %s35, %s36
    %p50 = scmp.eq.s32.totalorder %s14, 1
    %p51 = por %p49, %p50
    %p53 = scmp.ne.s32.totalorder %s36, %s52
    %p54 = scmp.eq.s32.totalorder %s14, 0
    %p55 = por %p53, %p54
    %s56 = ssub.s32 %s15, %s27
    %s57 = ssub.s32 %s16, %s23
    %s58 = sor.u32 %s56, %s57
    %p59 = scmp.eq.s32.totalorder %s58, 0
    %s61 = sadd.s32 %s60, 1
    %s62 = scalar_select %p59, %s60, %s61
    %p65 = pneg %p59
    %p66 = scmp.eq.s32.totalorder %s8, 1
    %p67 = por %p65, %p66
    %p68 = scmp.ne.s32.totalorder %s60, %s63
    %p69 = scmp.eq.s32.totalorder %s8, 0
    %p70 = por %p68, %p69
    %p71 = scmp.ne.s32.totalorder %s60, %s63
    %p72 = scmp.eq.s32.totalorder %s13, 1
    %p73 = por %p71, %p72
    %p74 = scmp.ne.s32.totalorder %s63, %s64
    %p75 = scmp.eq.s32.totalorder %s13, 0
    %p76 = por %p74, %p75
    %p77 = scmp.ne.s32.totalorder %s63, %s64
    %p78 = scmp.eq.s32.totalorder %s14, 1
    %p79 = por %p77, %p78
    %p81 = scmp.ne.s32.totalorder %s64, %s80
    %p82 = scmp.eq.s32.totalorder %s14, 0
    %p83 = por %p81, %p82
    %s84 = ssub.s32 %s15, %s27
    %s85 = ssub.s32 %s16, %s23
    %s86 = sor.u32 %s84, %s85
    %p87 = scmp.eq.s32.totalorder %s86, 0
    %s89 = sadd.s32 %s88, 1
    %s90 = scalar_select %p87, %s88, %s89
    %p93 = pneg %p87
    %p94 = scmp.eq.s32.totalorder %s8, 1
    %p95 = por %p93, %p94
    %p96 = scmp.ne.s32.totalorder %s88, %s91
    %p97 = scmp.eq.s32.totalorder %s8, 0
    %p98 = por %p96, %p97
    %p99 = scmp.ne.s32.totalorder %s88, %s91
    %p100 = scmp.eq.s32.totalorder %s13, 1
    %p101 = por %p99, %p100
    %p102 = scmp.ne.s32.totalorder %s91, %s92
    %p103 = scmp.eq.s32.totalorder %s13, 0
    %p104 = por %p102, %p103
    %p105 = scmp.ne.s32.totalorder %s91, %s92
    %p106 = scmp.eq.s32.totalorder %s14, 1
    %p107 = por %p105, %p106
    %p109 = scmp.ne.s32.totalorder %s92, %s108
    %p110 = scmp.eq.s32.totalorder %s14, 0
    %p111 = por %p109, %p110
    %p112 = scmp.le.s32.totalorder 1, %s8
    %p113 = scmp.lt.s32.totalorder %s8, 3
    %p114 = pnand %p112, %p113
    %p115 = pneg %p114
    // Predicated region
    $region9: #{normal_loss.3} parent=5 // pred_check
      _
    $region10: #{normal_loss.3} parent=5 // pred_check_branch
      %117 = sbr.rel (%p114) target = $region12
    $region11: #{normal_loss.3} parent=5 // pred_region
      %s118 = ssub.s32 %s8, 1
    $region12: #{normal_loss.3} parent=5 // pred_fallthru
      _
    %p119 = scmp.lt.s32.totalorder %s8, 2
    // Predicated region
    $region13: #{normal_loss.3} parent=5 // pred_check
      %p120 = pneg %p119
    $region14: #{normal_loss.3} parent=5 // pred_check_branch
      %122 = sbr.rel (%p120) target = $region16
    $region15: #{normal_loss.3} parent=5 // pred_region
      // Predicated region
      $region17: #{normal_loss.3} parent=15 // pred_check
        %p123 = pneg %p42
      $region18: #{normal_loss.3} parent=15 // pred_check_branch
        %125 = sbr.rel (%p123) target = $region20
      $region19: #{normal_loss.3} parent=15 // pred_region
        %p126 = scmp.lt.s32.totalorder %s15, 1
        %s127 = scalar_select %p126, %s15, 1
        %p128 = scmp.lt.s32.totalorder %s16, 0
        %s129 = scalar_select %p128, %s16, 0
        %s130 = smul.addr %s127, 16
        %s131 = sadd.s32 %s129, %s130
        %s132 = smul.addr %s131, 8
        %s133 = scalar_lea.vmem %s0, %s132
      $region20: #{normal_loss.3} parent=15 // pred_fallthru
        _
      // Predicated region
      $region21: #{normal_loss.3} parent=15 // pred_check
        %p134 = pneg %p70
      $region22: #{normal_loss.3} parent=15 // pred_check_branch
        %136 = sbr.rel (%p134) target = $region24
      $region23: #{normal_loss.3} parent=15 // pred_region
        %p137 = scmp.lt.s32.totalorder %s15, 1
        %s138 = scalar_select %p137, %s15, 1
        %p139 = scmp.lt.s32.totalorder %s16, 0
        %s140 = scalar_select %p139, %s16, 0
        %s141 = smul.addr %s138, 16
        %s142 = sadd.s32 %s140, %s141
        %s143 = smul.addr %s142, 8
        %s144 = scalar_lea.vmem %s1, %s143
      $region24: #{normal_loss.3} parent=15 // pred_fallthru
        _
    $region16: #{normal_loss.3} parent=5 // pred_fallthru
      _
    %p145 = scmp.le.s32.totalorder 1, %s8
    %p146 = scmp.lt.s32.totalorder %s8, 3
    %p147 = pnand %p145, %p146
    %p148 = pneg %p147
    // Predicated region
    $region25: #{normal_loss.3} parent=5 // pred_check
      _
    $region26: #{normal_loss.3} parent=5 // pred_check_branch
      %150 = sbr.rel (%p147) target = $region28
    $region27: #{normal_loss.3} parent=5 // pred_region
      %s151 = ssub.s32 %s8, 1
      %p152 = scmp.lt.s32.totalorder %s17, 1
      %s153 = scalar_select %p152, %s17, 1
      %p154 = scmp.lt.s32.totalorder %s18, 0
      %s155 = scalar_select %p154, %s18, 0
      %s156 = smul.addr %s153, 16
      %s157 = sadd.s32 %s155, %s156
      %s158 = smul.addr %s157, 8
      %s159 = scalar_lea.vmem %s0, %s158
      %p160 = pneg %p48
      %p161 = pneg %p45
      %p162 = scmp.lt.s32.totalorder %s17, 1
      %s163 = scalar_select %p162, %s17, 1
      %p164 = scmp.lt.s32.totalorder %s18, 0
      %s165 = scalar_select %p164, %s18, 0
      %s166 = smul.addr %s163, 16
      %s167 = sadd.s32 %s165, %s166
      %s168 = smul.addr %s167, 8
      %s169 = scalar_lea.vmem %s1, %s168
      %p170 = pneg %p76
      %p171 = pneg %p73
      %p172 = pneg %p104
      %p173 = pneg %p101
      %p174 = scmp.lt.s32.totalorder %s17, 1
      %s175 = scalar_select %p174, %s17, 1
      %p176 = scmp.lt.s32.totalorder %s18, 0
      %s177 = scalar_select %p176, %s18, 0
      %s178 = sadd.s32 %s177, %s175
      %s179 = smul.addr %s178, 8
      %s180 = scalar_lea.vmem %s2, %s179
      %p181 = scmp.lt.s32.totalorder %s17, 1
      %s182 = scalar_select %p181, %s17, 1
      %p183 = scmp.lt.s32.totalorder %s18, 0
      %s184 = scalar_select %p183, %s18, 0
      %s185 = smul.addr %s182, 16
      %s186 = sadd.s32 %s184, %s185
      %s187 = smul.addr %s186, 8
      %s188 = scalar_lea.vmem %s0, %s187
      %p189 = scmp.lt.s32.totalorder %s17, 1
      %s190 = scalar_select %p189, %s17, 1
      %p191 = scmp.lt.s32.totalorder %s18, 0
      %s192 = scalar_select %p191, %s18, 0
      %s193 = smul.addr %s190, 16
      %s194 = sadd.s32 %s192, %s193
      %s195 = smul.addr %s194, 8
      %s196 = scalar_lea.vmem %s1, %s195
      %p197 = scmp.lt.s32.totalorder %s17, 1
      %s198 = scalar_select %p197, %s17, 1
      %p199 = scmp.lt.s32.totalorder %s18, 0
      %s200 = scalar_select %p199, %s18, 0
      %s201 = sadd.s32 %s200, %s198
      %s202 = smul.addr %s201, 8
      %s203 = scalar_lea.vmem %s2, %s202
      %v204 = vld [vmem:[%s188] sm:$0xff]
      %s205 = scalar_lea.vmem %s188, 8
      %v206 = vld [vmem:[%s205] sm:$0xff]
      %s207 = scalar_lea.vmem %s188, 16
      %v208 = vld [vmem:[%s207] sm:$0xff]
      %s209 = scalar_lea.vmem %s188, 24
      %v210 = vld [vmem:[%s209] sm:$0xff]
      %s211 = scalar_lea.vmem %s188, 32
      %v212 = vld [vmem:[%s211] sm:$0xff]
      %s213 = scalar_lea.vmem %s188, 40
      %v214 = vld [vmem:[%s213] sm:$0xff]
      %s215 = scalar_lea.vmem %s188, 48
      %v216 = vld [vmem:[%s215] sm:$0xff]
      %s217 = scalar_lea.vmem %s188, 56
      %v218 = vld [vmem:[%s217] sm:$0xff]
      %s219 = scalar_lea.vmem %s188, 64
      %v220 = vld [vmem:[%s219] sm:$0xff]
      %v221 = vmul.f32 %v204, 0.1
      %v222 = vmul.f32 %v206, 0.1
      %v223 = vmul.f32 %v208, 0.1
      %v224 = vmul.f32 %v210, 0.1
      %v225 = vmul.f32 %v221, %v221
      %v226 = vsub.f32 %v224, %v225
      %v227 = vmul.f32 %v212, 0.1
      %v228 = vmul.f32 %v221, %v222
      %v229 = vsub.f32 %v227, %v228
      %v230 = vmul.f32 %v214, 0.1
      %v231 = vmul.f32 %v221, %v223
      %v232 = vsub.f32 %v230, %v231
      %v233 = vmul.f32 %v216, 0.1
      %v234 = vmul.f32 %v222, %v222
      %v235 = vsub.f32 %v233, %v234
      %v236 = vmul.f32 %v218, 0.1
      %v237 = vmul.f32 %v222, %v223
      %v238 = vsub.f32 %v236, %v237
      %v239 = vmul.f32 %v220, 0.1
      %v240 = vmul.f32 %v223, %v223
      %v241 = vsub.f32 %v239, %v240
      %v242 = vadd.f32 %v226, %v235
      %v243 = vadd.f32 %v242, %v241
      %v244 = vadd.f32 %v243, 1e-30
      %v245 = vrcp.pop %v244
      %v246 = vmul.f32 %v244, %v245
      %v247 = vsub.f32 1.0, %v246
      %v248 = vmul.f32 %v245, %v247
      %v249 = vadd.f32 %v245, %v248
      %vm250 = vweird.f32 %v244
      %vm251 = vweird.f32 %v245
      %vm252 = vmor %vm250, %vm251
      %v253 = vsel %vm252, %v245, %v249
      %v254 = vand.u32 2147483647, %v244
      %vm255 = vcmp.eq.f32.partialorder %v254, 8.507059e+37
      %v256 = vand.u32 %v244, 2147483648
      %v257 = vor.u32 1.1754944e-38, %v256
      %v258 = vsel %vm255, %v257, %v253
      %v259 = vmul.f32 1.0, %v258
      %v260 = vmul.f32 %v226, %v259
      %v261 = vmul.f32 %v229, %v259
      %v262 = vmul.f32 %v232, %v259
      %v263 = vmul.f32 %v235, %v259
      %v264 = vmul.f32 %v238, %v259
      %v265 = vmul.f32 %v241, %v259
      %v266 = vadd.f32 %v260, %v263
      %v267 = vadd.f32 %v266, %v265
      %v268 = vmul.f32 %v260, %v263
      %v269 = vmul.f32 %v261, %v261
      %v270 = vsub.f32 %v268, %v269
      %v271 = vmul.f32 %v260, %v265
      %v272 = vmul.f32 %v262, %v262
      %v273 = vsub.f32 %v271, %v272
      %v274 = vadd.f32 %v270, %v273
      %v275 = vmul.f32 %v263, %v265
      %v276 = vmul.f32 %v264, %v264
      %v277 = vsub.f32 %v275, %v276
      %v278 = vadd.f32 %v274, %v277
      %v279 = vmul.f32 %v260, %v277
      %v280 = vmul.f32 %v261, %v265
      %v281 = vmul.f32 %v264, %v262
      %v282 = vsub.f32 %v280, %v281
      %v283 = vmul.f32 %v261, %v282
      %v284 = vsub.f32 %v279, %v283
      %v285 = vmul.f32 %v261, %v264
      %v286 = vmul.f32 %v263, %v262
      %v287 = vsub.f32 %v285, %v286
      %v288 = vmul.f32 %v262, %v287
      %v289 = vadd.f32 %v284, %v288
      %v290 = vsub.f32 0.0, %v267
      %v291 = vmul.f32 %v290, 0.0
      %v292 = vadd.f32 %v291, %v278
      %v293 = vmul.f32 %v292, 0.0
      %v294 = vsub.f32 %v293, %v289
      %v295 = vmul.f32 %v267, 2.0
      %v296 = vsub.f32 0.0, %v295
      %v297 = vmul.f32 %v296, 0.0
      %v298 = vadd.f32 %v297, %v278
      %v299 = vand.u32 2147483647, %v298
      %vm300 = vcmp.lt.f32.partialorder %v299, 1e-20
      %v301 = vsel %vm300, 1e-20, %v298
      %v302 = vrcp.pop %v301
      %v303 = vmul.f32 %v294, %v302
      %v304 = vsub.f32 0.0, %v303
      %v305 = vsub.f32 %v304, %v267
      %v306 = vmul.f32 %v305, %v304
      %v307 = vadd.f32 %v306, %v278
      %v308 = vmul.f32 %v307, %v304
      %v309 = vsub.f32 %v308, %v289
      %v310 = vmul.f32 %v304, 3.0
      %v311 = vsub.f32 %v310, %v295
      %v312 = vmul.f32 %v311, %v304
      %v313 = vadd.f32 %v312, %v278
      %v314 = vand.u32 2147483647, %v313
      %vm315 = vcmp.lt.f32.partialorder %v314, 1e-20
      %v316 = vsel %vm315, 1e-20, %v313
      %v317 = vrcp.pop %v316
      %v318 = vmul.f32 %v309, %v317
      %v319 = vsub.f32 %v304, %v318
      %v320 = vsub.f32 %v319, %v267
      %v321 = vmul.f32 %v320, %v319
      %v322 = vadd.f32 %v321, %v278
      %v323 = vmul.f32 %v322, %v319
      %v324 = vsub.f32 %v323, %v289
      %v325 = vmul.f32 %v319, 3.0
      %v326 = vsub.f32 %v325, %v295
      %v327 = vmul.f32 %v326, %v319
      %v328 = vadd.f32 %v327, %v278
      %v329 = vand.u32 2147483647, %v328
      %vm330 = vcmp.lt.f32.partialorder %v329, 1e-20
      %v331 = vsel %vm330, 1e-20, %v328
      %v332 = vrcp.pop %v331
      %v333 = vmul.f32 %v324, %v332
      %v334 = vsub.f32 %v319, %v333
      %v335 = vsub.f32 %v334, %v267
      %v336 = vmul.f32 %v335, %v334
      %v337 = vadd.f32 %v336, %v278
      %v338 = vmul.f32 %v337, %v334
      %v339 = vsub.f32 %v338, %v289
      %v340 = vmul.f32 %v334, 3.0
      %v341 = vsub.f32 %v340, %v295
      %v342 = vmul.f32 %v341, %v334
      %v343 = vadd.f32 %v342, %v278
      %v344 = vand.u32 2147483647, %v343
      %vm345 = vcmp.lt.f32.partialorder %v344, 1e-20
      %v346 = vsel %vm345, 1e-20, %v343
      %v347 = vrcp.pop %v346
      %v348 = vmul.f32 %v339, %v347
      %v349 = vsub.f32 %v334, %v348
      %v350 = vsub.f32 %v349, %v267
      %v351 = vmul.f32 %v350, %v349
      %v352 = vadd.f32 %v351, %v278
      %v353 = vmul.f32 %v352, %v349
      %v354 = vsub.f32 %v353, %v289
      %v355 = vmul.f32 %v349, 3.0
      %v356 = vsub.f32 %v355, %v295
      %v357 = vmul.f32 %v356, %v349
      %v358 = vadd.f32 %v357, %v278
      %v359 = vand.u32 2147483647, %v358
      %vm360 = vcmp.lt.f32.partialorder %v359, 1e-20
      %v361 = vsel %vm360, 1e-20, %v358
      %v362 = vrcp.pop %v361
      %v363 = vmul.f32 %v354, %v362
      %v364 = vsub.f32 %v349, %v363
      %v365 = vsub.f32 %v364, %v267
      %v366 = vmul.f32 %v365, %v364
      %v367 = vadd.f32 %v366, %v278
      %v368 = vmul.f32 %v367, %v364
      %v369 = vsub.f32 %v368, %v289
      %v370 = vmul.f32 %v364, 3.0
      %v371 = vsub.f32 %v370, %v295
      %v372 = vmul.f32 %v371, %v364
      %v373 = vadd.f32 %v372, %v278
      %v374 = vand.u32 2147483647, %v373
      %vm375 = vcmp.lt.f32.partialorder %v374, 1e-20
      %v376 = vsel %vm375, 1e-20, %v373
      %v377 = vrcp.pop %v376
      %v378 = vmul.f32 %v369, %v377
      %v379 = vsub.f32 %v364, %v378
      %v380 = vsub.f32 %v379, %v267
      %v381 = vmul.f32 %v380, %v379
      %v382 = vadd.f32 %v381, %v278
      %v383 = vmul.f32 %v382, %v379
      %v384 = vsub.f32 %v383, %v289
      %v385 = vmul.f32 %v379, 3.0
      %v386 = vsub.f32 %v385, %v295
      %v387 = vmul.f32 %v386, %v379
      %v388 = vadd.f32 %v387, %v278
      %v389 = vand.u32 2147483647, %v388
      %vm390 = vcmp.lt.f32.partialorder %v389, 1e-20
      %v391 = vsel %vm390, 1e-20, %v388
      %v392 = vrcp.pop %v391
      %v393 = vmul.f32 %v384, %v392
      %v394 = vsub.f32 %v379, %v393
      %v395 = vsub.f32 %v394, %v267
      %v396 = vmul.f32 %v395, %v394
      %v397 = vadd.f32 %v396, %v278
      %v398 = vmul.f32 %v397, %v394
      %v399 = vsub.f32 %v398, %v289
      %v400 = vmul.f32 %v394, 3.0
      %v401 = vsub.f32 %v400, %v295
      %v402 = vmul.f32 %v401, %v394
      %v403 = vadd.f32 %v402, %v278
      %v404 = vand.u32 2147483647, %v403
      %vm405 = vcmp.lt.f32.partialorder %v404, 1e-20
      %v406 = vsel %vm405, 1e-20, %v403
      %v407 = vrcp.pop %v406
      %v408 = vmul.f32 %v399, %v407
      %v409 = vsub.f32 %v394, %v408
      %v410 = vsub.f32 %v409, %v267
      %v411 = vmul.f32 %v410, %v409
      %v412 = vadd.f32 %v411, %v278
      %v413 = vmul.f32 %v412, %v409
      %v414 = vsub.f32 %v413, %v289
      %v415 = vmul.f32 %v409, 3.0
      %v416 = vsub.f32 %v415, %v295
      %v417 = vmul.f32 %v416, %v409
      %v418 = vadd.f32 %v417, %v278
      %v419 = vand.u32 2147483647, %v418
      %vm420 = vcmp.lt.f32.partialorder %v419, 1e-20
      %v421 = vsel %vm420, 1e-20, %v418
      %v422 = vrcp.pop %v421
      %v423 = vmul.f32 %v414, %v422
      %v424 = vsub.f32 %v409, %v423
      %v425 = vsub.f32 %v424, %v267
      %v426 = vmul.f32 %v425, %v424
      %v427 = vadd.f32 %v426, %v278
      %v428 = vmul.f32 %v427, %v424
      %v429 = vsub.f32 %v428, %v289
      %v430 = vmul.f32 %v424, 3.0
      %v431 = vsub.f32 %v430, %v295
      %v432 = vmul.f32 %v431, %v424
      %v433 = vadd.f32 %v432, %v278
      %v434 = vand.u32 2147483647, %v433
      %vm435 = vcmp.lt.f32.partialorder %v434, 1e-20
      %v436 = vsel %vm435, 1e-20, %v433
      %v437 = vrcp.pop %v436
      %v438 = vmul.f32 %v429, %v437
      %v439 = vsub.f32 %v424, %v438
      %v440 = vsub.f32 %v439, %v267
      %v441 = vmul.f32 %v440, %v439
      %v442 = vadd.f32 %v441, %v278
      %v443 = vmul.f32 %v442, %v439
      %v444 = vsub.f32 %v443, %v289
      %v445 = vmul.f32 %v439, 3.0
      %v446 = vsub.f32 %v445, %v295
      %v447 = vmul.f32 %v446, %v439
      %v448 = vadd.f32 %v447, %v278
      %v449 = vand.u32 2147483647, %v448
      %vm450 = vcmp.lt.f32.partialorder %v449, 1e-20
      %v451 = vsel %vm450, 1e-20, %v448
      %v452 = vrcp.pop %v451
      %v453 = vmul.f32 %v444, %v452
      %v454 = vsub.f32 %v439, %v453
      %v455 = vsub.f32 %v454, %v267
      %v456 = vmul.f32 %v455, %v454
      %v457 = vadd.f32 %v456, %v278
      %v458 = vmul.f32 %v457, %v454
      %v459 = vsub.f32 %v458, %v289
      %v460 = vmul.f32 %v454, 3.0
      %v461 = vsub.f32 %v460, %v295
      %v462 = vmul.f32 %v461, %v454
      %v463 = vadd.f32 %v462, %v278
      %v464 = vand.u32 2147483647, %v463
      %vm465 = vcmp.lt.f32.partialorder %v464, 1e-20
      %v466 = vsel %vm465, 1e-20, %v463
      %v467 = vrcp.pop %v466
      %v468 = vmul.f32 %v459, %v467
      %v469 = vsub.f32 %v454, %v468
      %v470 = vsub.f32 %v260, %v469
      %v471 = vsub.f32 %v263, %v469
      %v472 = vsub.f32 %v265, %v469
      %v473 = vmul.f32 %v262, %v471
      %v474 = vsub.f32 %v285, %v473
      %v475 = vmul.f32 %v262, %v261
      %v476 = vmul.f32 %v470, %v264
      %v477 = vsub.f32 %v475, %v476
      %v478 = vmul.f32 %v470, %v471
      %v479 = vsub.f32 %v478, %v269
      %v480 = vmul.f32 %v471, %v472
      %v481 = vsub.f32 %v480, %v276
      %v482 = vmul.f32 %v261, %v472
      %v483 = vsub.f32 %v281, %v482
      %v484 = vsub.f32 %v482, %v281
      %v485 = vmul.f32 %v470, %v472
      %v486 = vsub.f32 %v272, %v485
      %v487 = vsub.f32 %v476, %v475
      %v488 = vmul.f32 %v474, %v474
      %v489 = vmul.f32 %v477, %v477
      %v490 = vadd.f32 %v488, %v489
      %v491 = vmul.f32 %v479, %v479
      %v492 = vadd.f32 %v490, %v491
      %v493 = vmul.f32 %v481, %v481
      %v494 = vmul.f32 %v483, %v483
      %v495 = vadd.f32 %v493, %v494
      %v496 = vadd.f32 %v495, %v488
      %vm497 = vcmp.gt.f32.partialorder %v496, %v492
      %v498 = vsel %vm497, %v481, %v474
      %v499 = vsel %vm497, %v483, %v477
      %v500 = vsel %vm497, %v474, %v479
      %v501 = vsel %vm497, %v496, %v492
      %v502 = vmul.f32 %v484, %v484
      %v503 = vmul.f32 %v486, %v486
      %v504 = vadd.f32 %v502, %v503
      %v505 = vmul.f32 %v487, %v487
      %v506 = vadd.f32 %v504, %v505
      %vm507 = vcmp.gt.f32.partialorder %v506, %v501
      %v508 = vsel %vm507, %v484, %v498
      %v509 = vsel %vm507, %v486, %v499
      %v510 = vsel %vm507, %v487, %v500
      %v511 = vsel %vm507, %v506, %v501
      %v512 = vmax.f32 %v511, 1e-30
      %v513 = vrsqrt.pop %v512
      %v514 = vmul.f32 %v513, %v512
      %v515 = vmul.f32 %v514, %v513
      %v516 = vmul.f32 0.5, %v515
      %v517 = vsub.f32 1.5, %v516
      %v518 = vmul.f32 %v513, %v517
      %vm519 = vweird.f32 %v512
      %vm520 = vweird.f32 %v513
      %vm521 = vmor %vm519, %vm520
      %v522 = vsel %vm521, %v513, %v518
      %v523 = vmul.f32 %v508, %v522
      %v524 = vmul.f32 %v509, %v522
      %v525 = vmul.f32 %v510, %v522
      %vm526 = vcmp.lt.f32.partialorder %v525, 0.0
      %v527 = vsel %vm526, -1.0, 1.0
      %v528 = vmul.f32 %v523, %v527
      %v529 = vmul.f32 %v524, %v527
      %v530 = vmul.f32 %v525, %v527
      %v531 = vld [vmem:[%s196] sm:$0xff]
      %s532 = scalar_lea.vmem %s196, 8
      %v533 = vld [vmem:[%s532] sm:$0xff]
      %s534 = scalar_lea.vmem %s196, 16
      %v535 = vld [vmem:[%s534] sm:$0xff]
      %s536 = scalar_lea.vmem %s196, 24
      %v537 = vld [vmem:[%s536] sm:$0xff]
      %s538 = scalar_lea.vmem %s196, 32
      %v539 = vld [vmem:[%s538] sm:$0xff]
      %s540 = scalar_lea.vmem %s196, 40
      %v541 = vld [vmem:[%s540] sm:$0xff]
      %s542 = scalar_lea.vmem %s196, 48
      %v543 = vld [vmem:[%s542] sm:$0xff]
      %s544 = scalar_lea.vmem %s196, 56
      %v545 = vld [vmem:[%s544] sm:$0xff]
      %s546 = scalar_lea.vmem %s196, 64
      %v547 = vld [vmem:[%s546] sm:$0xff]
      %v548 = vmul.f32 %v531, 0.1
      %v549 = vmul.f32 %v533, 0.1
      %v550 = vmul.f32 %v535, 0.1
      %v551 = vmul.f32 %v537, 0.1
      %v552 = vmul.f32 %v548, %v548
      %v553 = vsub.f32 %v551, %v552
      %v554 = vmul.f32 %v539, 0.1
      %v555 = vmul.f32 %v548, %v549
      %v556 = vsub.f32 %v554, %v555
      %v557 = vmul.f32 %v541, 0.1
      %v558 = vmul.f32 %v548, %v550
      %v559 = vsub.f32 %v557, %v558
      %v560 = vmul.f32 %v543, 0.1
      %v561 = vmul.f32 %v549, %v549
      %v562 = vsub.f32 %v560, %v561
      %v563 = vmul.f32 %v545, 0.1
      %v564 = vmul.f32 %v549, %v550
      %v565 = vsub.f32 %v563, %v564
      %v566 = vmul.f32 %v547, 0.1
      %v567 = vmul.f32 %v550, %v550
      %v568 = vsub.f32 %v566, %v567
      %v569 = vadd.f32 %v553, %v562
      %v570 = vadd.f32 %v569, %v568
      %v571 = vadd.f32 %v570, 1e-30
      %v572 = vrcp.pop %v571
      %v573 = vmul.f32 %v571, %v572
      %v574 = vsub.f32 1.0, %v573
      %v575 = vmul.f32 %v572, %v574
      %v576 = vadd.f32 %v572, %v575
      %vm577 = vweird.f32 %v571
      %vm578 = vweird.f32 %v572
      %vm579 = vmor %vm577, %vm578
      %v580 = vsel %vm579, %v572, %v576
      %v581 = vand.u32 2147483647, %v571
      %vm582 = vcmp.eq.f32.partialorder %v581, 8.507059e+37
      %v583 = vand.u32 %v571, 2147483648
      %v584 = vor.u32 1.1754944e-38, %v583
      %v585 = vsel %vm582, %v584, %v580
      %v586 = vmul.f32 1.0, %v585
      %v587 = vmul.f32 %v553, %v586
      %v588 = vmul.f32 %v556, %v586
      %v589 = vmul.f32 %v559, %v586
      %v590 = vmul.f32 %v562, %v586
      %v591 = vmul.f32 %v565, %v586
      %v592 = vmul.f32 %v568, %v586
      %v593 = vadd.f32 %v587, %v590
      %v594 = vadd.f32 %v593, %v592
      %v595 = vmul.f32 %v587, %v590
      %v596 = vmul.f32 %v588, %v588
      %v597 = vsub.f32 %v595, %v596
      %v598 = vmul.f32 %v587, %v592
      %v599 = vmul.f32 %v589, %v589
      %v600 = vsub.f32 %v598, %v599
      %v601 = vadd.f32 %v597, %v600
      %v602 = vmul.f32 %v590, %v592
      %v603 = vmul.f32 %v591, %v591
      %v604 = vsub.f32 %v602, %v603
      %v605 = vadd.f32 %v601, %v604
      %v606 = vmul.f32 %v587, %v604
      %v607 = vmul.f32 %v588, %v592
      %v608 = vmul.f32 %v591, %v589
      %v609 = vsub.f32 %v607, %v608
      %v610 = vmul.f32 %v588, %v609
      %v611 = vsub.f32 %v606, %v610
      %v612 = vmul.f32 %v588, %v591
      %v613 = vmul.f32 %v590, %v589
      %v614 = vsub.f32 %v612, %v613
      %v615 = vmul.f32 %v589, %v614
      %v616 = vadd.f32 %v611, %v615
      %v617 = vsub.f32 0.0, %v594
      %v618 = vmul.f32 %v617, 0.0
      %v619 = vadd.f32 %v618, %v605
      %v620 = vmul.f32 %v619, 0.0
      %v621 = vsub.f32 %v620, %v616
      %v622 = vmul.f32 %v594, 2.0
      %v623 = vsub.f32 0.0, %v622
      %v624 = vmul.f32 %v623, 0.0
      %v625 = vadd.f32 %v624, %v605
      %v626 = vand.u32 2147483647, %v625
      %vm627 = vcmp.lt.f32.partialorder %v626, 1e-20
      %v628 = vsel %vm627, 1e-20, %v625
      %v629 = vrcp.pop %v628
      %v630 = vmul.f32 %v621, %v629
      %v631 = vsub.f32 0.0, %v630
      %v632 = vsub.f32 %v631, %v594
      %v633 = vmul.f32 %v632, %v631
      %v634 = vadd.f32 %v633, %v605
      %v635 = vmul.f32 %v634, %v631
      %v636 = vsub.f32 %v635, %v616
      %v637 = vmul.f32 %v631, 3.0
      %v638 = vsub.f32 %v637, %v622
      %v639 = vmul.f32 %v638, %v631
      %v640 = vadd.f32 %v639, %v605
      %v641 = vand.u32 2147483647, %v640
      %vm642 = vcmp.lt.f32.partialorder %v641, 1e-20
      %v643 = vsel %vm642, 1e-20, %v640
      %v644 = vrcp.pop %v643
      %v645 = vmul.f32 %v636, %v644
      %v646 = vsub.f32 %v631, %v645
      %v647 = vsub.f32 %v646, %v594
      %v648 = vmul.f32 %v647, %v646
      %v649 = vadd.f32 %v648, %v605
      %v650 = vmul.f32 %v649, %v646
      %v651 = vsub.f32 %v650, %v616
      %v652 = vmul.f32 %v646, 3.0
      %v653 = vsub.f32 %v652, %v622
      %v654 = vmul.f32 %v653, %v646
      %v655 = vadd.f32 %v654, %v605
      %v656 = vand.u32 2147483647, %v655
      %vm657 = vcmp.lt.f32.partialorder %v656, 1e-20
      %v658 = vsel %vm657, 1e-20, %v655
      %v659 = vrcp.pop %v658
      %v660 = vmul.f32 %v651, %v659
      %v661 = vsub.f32 %v646, %v660
      %v662 = vsub.f32 %v661, %v594
      %v663 = vmul.f32 %v662, %v661
      %v664 = vadd.f32 %v663, %v605
      %v665 = vmul.f32 %v664, %v661
      %v666 = vsub.f32 %v665, %v616
      %v667 = vmul.f32 %v661, 3.0
      %v668 = vsub.f32 %v667, %v622
      %v669 = vmul.f32 %v668, %v661
      %v670 = vadd.f32 %v669, %v605
      %v671 = vand.u32 2147483647, %v670
      %vm672 = vcmp.lt.f32.partialorder %v671, 1e-20
      %v673 = vsel %vm672, 1e-20, %v670
      %v674 = vrcp.pop %v673
      %v675 = vmul.f32 %v666, %v674
      %v676 = vsub.f32 %v661, %v675
      %v677 = vsub.f32 %v676, %v594
      %v678 = vmul.f32 %v677, %v676
      %v679 = vadd.f32 %v678, %v605
      %v680 = vmul.f32 %v679, %v676
      %v681 = vsub.f32 %v680, %v616
      %v682 = vmul.f32 %v676, 3.0
      %v683 = vsub.f32 %v682, %v622
      %v684 = vmul.f32 %v683, %v676
      %v685 = vadd.f32 %v684, %v605
      %v686 = vand.u32 2147483647, %v685
      %vm687 = vcmp.lt.f32.partialorder %v686, 1e-20
      %v688 = vsel %vm687, 1e-20, %v685
      %v689 = vrcp.pop %v688
      %v690 = vmul.f32 %v681, %v689
      %v691 = vsub.f32 %v676, %v690
      %v692 = vsub.f32 %v691, %v594
      %v693 = vmul.f32 %v692, %v691
      %v694 = vadd.f32 %v693, %v605
      %v695 = vmul.f32 %v694, %v691
      %v696 = vsub.f32 %v695, %v616
      %v697 = vmul.f32 %v691, 3.0
      %v698 = vsub.f32 %v697, %v622
      %v699 = vmul.f32 %v698, %v691
      %v700 = vadd.f32 %v699, %v605
      %v701 = vand.u32 2147483647, %v700
      %vm702 = vcmp.lt.f32.partialorder %v701, 1e-20
      %v703 = vsel %vm702, 1e-20, %v700
      %v704 = vrcp.pop %v703
      %v705 = vmul.f32 %v696, %v704
      %v706 = vsub.f32 %v691, %v705
      %v707 = vsub.f32 %v706, %v594
      %v708 = vmul.f32 %v707, %v706
      %v709 = vadd.f32 %v708, %v605
      %v710 = vmul.f32 %v709, %v706
      %v711 = vsub.f32 %v710, %v616
      %v712 = vmul.f32 %v706, 3.0
      %v713 = vsub.f32 %v712, %v622
      %v714 = vmul.f32 %v713, %v706
      %v715 = vadd.f32 %v714, %v605
      %v716 = vand.u32 2147483647, %v715
      %vm717 = vcmp.lt.f32.partialorder %v716, 1e-20
      %v718 = vsel %vm717, 1e-20, %v715
      %v719 = vrcp.pop %v718
      %v720 = vmul.f32 %v711, %v719
      %v721 = vsub.f32 %v706, %v720
      %v722 = vsub.f32 %v721, %v594
      %v723 = vmul.f32 %v722, %v721
      %v724 = vadd.f32 %v723, %v605
      %v725 = vmul.f32 %v724, %v721
      %v726 = vsub.f32 %v725, %v616
      %v727 = vmul.f32 %v721, 3.0
      %v728 = vsub.f32 %v727, %v622
      %v729 = vmul.f32 %v728, %v721
      %v730 = vadd.f32 %v729, %v605
      %v731 = vand.u32 2147483647, %v730
      %vm732 = vcmp.lt.f32.partialorder %v731, 1e-20
      %v733 = vsel %vm732, 1e-20, %v730
      %v734 = vrcp.pop %v733
      %v735 = vmul.f32 %v726, %v734
      %v736 = vsub.f32 %v721, %v735
      %v737 = vsub.f32 %v736, %v594
      %v738 = vmul.f32 %v737, %v736
      %v739 = vadd.f32 %v738, %v605
      %v740 = vmul.f32 %v739, %v736
      %v741 = vsub.f32 %v740, %v616
      %v742 = vmul.f32 %v736, 3.0
      %v743 = vsub.f32 %v742, %v622
      %v744 = vmul.f32 %v743, %v736
      %v745 = vadd.f32 %v744, %v605
      %v746 = vand.u32 2147483647, %v745
      %vm747 = vcmp.lt.f32.partialorder %v746, 1e-20
      %v748 = vsel %vm747, 1e-20, %v745
      %v749 = vrcp.pop %v748
      %v750 = vmul.f32 %v741, %v749
      %v751 = vsub.f32 %v736, %v750
      %v752 = vsub.f32 %v751, %v594
      %v753 = vmul.f32 %v752, %v751
      %v754 = vadd.f32 %v753, %v605
      %v755 = vmul.f32 %v754, %v751
      %v756 = vsub.f32 %v755, %v616
      %v757 = vmul.f32 %v751, 3.0
      %v758 = vsub.f32 %v757, %v622
      %v759 = vmul.f32 %v758, %v751
      %v760 = vadd.f32 %v759, %v605
      %v761 = vand.u32 2147483647, %v760
      %vm762 = vcmp.lt.f32.partialorder %v761, 1e-20
      %v763 = vsel %vm762, 1e-20, %v760
      %v764 = vrcp.pop %v763
      %v765 = vmul.f32 %v756, %v764
      %v766 = vsub.f32 %v751, %v765
      %v767 = vsub.f32 %v766, %v594
      %v768 = vmul.f32 %v767, %v766
      %v769 = vadd.f32 %v768, %v605
      %v770 = vmul.f32 %v769, %v766
      %v771 = vsub.f32 %v770, %v616
      %v772 = vmul.f32 %v766, 3.0
      %v773 = vsub.f32 %v772, %v622
      %v774 = vmul.f32 %v773, %v766
      %v775 = vadd.f32 %v774, %v605
      %v776 = vand.u32 2147483647, %v775
      %vm777 = vcmp.lt.f32.partialorder %v776, 1e-20
      %v778 = vsel %vm777, 1e-20, %v775
      %v779 = vrcp.pop %v778
      %v780 = vmul.f32 %v771, %v779
      %v781 = vsub.f32 %v766, %v780
      %v782 = vsub.f32 %v781, %v594
      %v783 = vmul.f32 %v782, %v781
      %v784 = vadd.f32 %v783, %v605
      %v785 = vmul.f32 %v784, %v781
      %v786 = vsub.f32 %v785, %v616
      %v787 = vmul.f32 %v781, 3.0
      %v788 = vsub.f32 %v787, %v622
      %v789 = vmul.f32 %v788, %v781
      %v790 = vadd.f32 %v789, %v605
      %v791 = vand.u32 2147483647, %v790
      %vm792 = vcmp.lt.f32.partialorder %v791, 1e-20
      %v793 = vsel %vm792, 1e-20, %v790
      %v794 = vrcp.pop %v793
      %v795 = vmul.f32 %v786, %v794
      %v796 = vsub.f32 %v781, %v795
      %v797 = vsub.f32 %v587, %v796
      %v798 = vsub.f32 %v590, %v796
      %v799 = vsub.f32 %v592, %v796
      %v800 = vmul.f32 %v589, %v798
      %v801 = vsub.f32 %v612, %v800
      %v802 = vmul.f32 %v589, %v588
      %v803 = vmul.f32 %v797, %v591
      %v804 = vsub.f32 %v802, %v803
      %v805 = vmul.f32 %v797, %v798
      %v806 = vsub.f32 %v805, %v596
      %v807 = vmul.f32 %v798, %v799
      %v808 = vsub.f32 %v807, %v603
      %v809 = vmul.f32 %v588, %v799
      %v810 = vsub.f32 %v608, %v809
      %v811 = vsub.f32 %v809, %v608
      %v812 = vmul.f32 %v797, %v799
      %v813 = vsub.f32 %v599, %v812
      %v814 = vsub.f32 %v803, %v802
      %v815 = vmul.f32 %v801, %v801
      %v816 = vmul.f32 %v804, %v804
      %v817 = vadd.f32 %v815, %v816
      %v818 = vmul.f32 %v806, %v806
      %v819 = vadd.f32 %v817, %v818
      %v820 = vmul.f32 %v808, %v808
      %v821 = vmul.f32 %v810, %v810
      %v822 = vadd.f32 %v820, %v821
      %v823 = vadd.f32 %v822, %v815
      %vm824 = vcmp.gt.f32.partialorder %v823, %v819
      %v825 = vsel %vm824, %v808, %v801
      %v826 = vsel %vm824, %v810, %v804
      %v827 = vsel %vm824, %v801, %v806
      %v828 = vsel %vm824, %v823, %v819
      %v829 = vmul.f32 %v811, %v811
      %v830 = vmul.f32 %v813, %v813
      %v831 = vadd.f32 %v829, %v830
      %v832 = vmul.f32 %v814, %v814
      %v833 = vadd.f32 %v831, %v832
      %vm834 = vcmp.gt.f32.partialorder %v833, %v828
      %v835 = vsel %vm834, %v811, %v825
      %v836 = vsel %vm834, %v813, %v826
      %v837 = vsel %vm834, %v814, %v827
      %v838 = vsel %vm834, %v833, %v828
      %v839 = vmax.f32 %v838, 1e-30
      %v840 = vrsqrt.pop %v839
      %v841 = vmul.f32 %v840, %v839
      %v842 = vmul.f32 %v841, %v840
      %v843 = vmul.f32 0.5, %v842
      %v844 = vsub.f32 1.5, %v843
      %v845 = vmul.f32 %v840, %v844
      %vm846 = vweird.f32 %v839
      %vm847 = vweird.f32 %v840
      %vm848 = vmor %vm846, %vm847
      %v849 = vsel %vm848, %v840, %v845
      %v850 = vmul.f32 %v835, %v849
      %v851 = vmul.f32 %v836, %v849
      %v852 = vmul.f32 %v837, %v849
      %vm853 = vcmp.lt.f32.partialorder %v852, 0.0
      %v854 = vsel %vm853, -1.0, 1.0
      %v855 = vmul.f32 %v850, %v854
      %v856 = vmul.f32 %v851, %v854
      %v857 = vmul.f32 %v852, %v854
      %v858 = vmul.f32 %v528, %v855
      %v859 = vmul.f32 %v529, %v856
      %v860 = vadd.f32 %v858, %v859
      %v861 = vmul.f32 %v530, %v857
      %v862 = vadd.f32 %v860, %v861
      %v863 = vmul.f32 %v528, %v528
      %v864 = vmul.f32 %v529, %v529
      %v865 = vadd.f32 %v863, %v864
      %v866 = vmul.f32 %v530, %v530
      %v867 = vadd.f32 %v865, %v866
      %v868 = vrsqrt.pop %v867
      %v869 = vmul.f32 %v868, %v867
      %v870 = vmul.f32 %v869, %v868
      %v871 = vmul.f32 0.5, %v870
      %v872 = vsub.f32 1.5, %v871
      %v873 = vmul.f32 %v868, %v872
      %v874 = vmul.f32 %v867, %v873
      %vm875 = vcmp.eq.f32.partialorder %v867, inf
      %v876 = vsel %vm875, %v867, %v874
      %vm877 = vcmp.eq.f32.partialorder %v867, 0.0
      %v878 = vand.u32 %v867, 2147483648
      %v879 = vsel %vm877, %v878, %v876
      %v880 = vmax.f32 %v879, 1e-08
      %v881 = vmul.f32 %v855, %v855
      %v882 = vmul.f32 %v856, %v856
      %v883 = vadd.f32 %v881, %v882
      %v884 = vmul.f32 %v857, %v857
      %v885 = vadd.f32 %v883, %v884
      %v886 = vrsqrt.pop %v885
      %v887 = vmul.f32 %v886, %v885
      %v888 = vmul.f32 %v887, %v886
      %v889 = vmul.f32 0.5, %v888
      %v890 = vsub.f32 1.5, %v889
      %v891 = vmul.f32 %v886, %v890
      %v892 = vmul.f32 %v885, %v891
      %vm893 = vcmp.eq.f32.partialorder %v885, inf
      %v894 = vsel %vm893, %v885, %v892
      %vm895 = vcmp.eq.f32.partialorder %v885, 0.0
      %v896 = vand.u32 %v885, 2147483648
      %v897 = vsel %vm895, %v896, %v894
      %v898 = vmax.f32 %v897, 1e-08
      %v899 = vmul.f32 %v880, %v898
      %v900 = vrcp.pop %v899
      %v901 = vmul.f32 %v899, %v900
      %v902 = vsub.f32 1.0, %v901
      %v903 = vmul.f32 %v900, %v902
      %v904 = vadd.f32 %v900, %v903
      %vm905 = vweird.f32 %v899
      %vm906 = vweird.f32 %v900
      %vm907 = vmor %vm905, %vm906
      %v908 = vsel %vm907, %v900, %v904
      %v909 = vand.u32 2147483647, %v899
      %vm910 = vcmp.eq.f32.partialorder %v909, 8.507059e+37
      %v911 = vand.u32 %v899, 2147483648
      %v912 = vor.u32 1.1754944e-38, %v911
      %v913 = vsel %vm910, %v912, %v908
      %v914 = vmul.f32 %v862, %v913
      %v915 = vsub.f32 1.0, %v914
      %vm916 = vcmask 261120
      %917 = vst.msk [vmem:[%s203] sm:$0xff] %vm916, %v915
      %p918 = scmp.lt.s32.totalorder %s17, 1
      %s919 = scalar_select %p918, %s17, 1
      %p920 = scmp.lt.s32.totalorder %s18, 0
      %s921 = scalar_select %p920, %s18, 0
      %s922 = sadd.s32 %s921, %s919
      %s923 = smul.addr %s922, 8
      %s924 = scalar_lea.vmem %s2, %s923
      // Predicated region
      $region29: #{normal_loss.3} parent=27 // pred_check
        %p925 = pneg %p101
      $region30: #{normal_loss.3} parent=27 // pred_check_branch
        %927 = sbr.rel (%p925) target = $region32
      $region31: #{normal_loss.3} parent=27 // pred_region
        _
      $region32: #{normal_loss.3} parent=27 // pred_fallthru
        _
    $region28: #{normal_loss.3} parent=5 // pred_fallthru
      _
    %p928 = scmp.le.s32.totalorder 2, %s8
    // Predicated region
    $region33: #{normal_loss.3} parent=5 // pred_check
      %p929 = pneg %p928
    $region34: #{normal_loss.3} parent=5 // pred_check_branch
      %931 = sbr.rel (%p929) target = $region36
    $region35: #{normal_loss.3} parent=5 // pred_region
      %s932 = ssub.s32 %s8, 2
      // Predicated region
      $region37: #{normal_loss.3} parent=35 // pred_check
        %p933 = pneg %p107
      $region38: #{normal_loss.3} parent=35 // pred_check_branch
        %935 = sbr.rel (%p933) target = $region40
      $region39: #{normal_loss.3} parent=35 // pred_region
        %p936 = scmp.lt.s32.totalorder %s19, 1
        %s937 = scalar_select %p936, %s19, 1
        %p938 = scmp.lt.s32.totalorder %s20, 0
        %s939 = scalar_select %p938, %s20, 0
        %s940 = sadd.s32 %s939, %s937
        %s941 = smul.addr %s940, 8
        %s942 = scalar_lea.vmem %s2, %s941
      $region40: #{normal_loss.3} parent=35 // pred_fallthru
        _
    $region36: #{normal_loss.3} parent=5 // pred_fallthru
      _
  $region6: #{normal_loss.3} parent=0 // loop_footer
    %s12 = sadd.s32 1, %s8
  $region7: #{normal_loss.3} parent=0 // loop_footer_branch
    %7 = sbr.rel target = $region3
  $region8: #{normal_loss.3} parent=0 // loop_exit
    _

// kernel: normal_loss.2
$region0: #{normal_loss.2}
  #allocation0 [shape = 'u32[]', space=smem, size = 0x4, offset = 0x4, fixed_abs, tag = 'smem constant byte address 0x4 - core index']
  #allocation1 [shape = 'u32[72,128]{1,0:T(1,128)}', space=vmem, size = 0x9000, scoped, tag = 'internal scratch']
  %s0 = inlined_call_operand.vmem [shape: f32[2,256,3], index: 0, kind: input, shape index: {}]
  %s1 = inlined_call_operand.vmem [shape: f32[2,3,256], index: 1, kind: input, shape index: {}]
  %s2 = inlined_call_operand.vmem [shape: f32[2,3,256], index: 2, kind: input, shape index: {}]
  %s3 = inlined_call_operand.vmem [shape: f32[2,256,3], index: 3, kind: input, shape index: {}]
  %s4 = inlined_call_operand.vmem [shape: f32[2,256,16], index: 4, kind: output, shape index: {0}]
  %s5 = inlined_call_operand.vmem [shape: f32[2,256,16], index: 5, kind: output, shape index: {1}]
  %6 = xla_tuple %s4, %s5
  %s7 = sld [smem:[#allocation0]]
  $region57: #{normal_loss.2} parent=0
    _
  %s9 = ssub.s32 1, %s7
  %s10 = scalar_select 0, %s9, %s7
  loop: start=0, step=1, limit=6
  $region2: #{normal_loss.2} parent=0 // loop_pre_header
    _
  $region3: #{normal_loss.2} parent=0 // loop_header
    %s12 = sphi 0, %s16
    %p13 = scmp.ge.s32.totalorder %s12, 6
    %s19 = sphi 0, %s31
    %s20 = sphi 0, %s27
    %s21 = sphi 0, %s19
    %s22 = sphi 0, %s20
    %s23 = sphi 0, %s21
    %s24 = sphi 0, %s22
    %s36 = sphi 0, %s38
    %s39 = sphi 0, %s36
    %s40 = sphi 0, %s39
    %s56 = sphi 0, %s40
    %s62 = sphi 0, %s64
    %s65 = sphi 0, %s62
    %s66 = sphi 0, %s65
    %s82 = sphi 0, %s66
    %s88 = sphi 0, %s90
    %s91 = sphi 0, %s88
    %s92 = sphi 0, %s91
    %s108 = sphi 0, %s92
    %s116 = sphi 0, %s118
    %s119 = sphi 0, %s116
    %s120 = sphi 0, %s119
    %s136 = sphi 0, %s120
    %s144 = sphi 0, %s146
    %s147 = sphi 0, %s144
    %s148 = sphi 0, %s147
    %s164 = sphi 0, %s148
    %s172 = sphi 0, %s174
    %s175 = sphi 0, %s172
    %s176 = sphi 0, %s175
    %s192 = sphi 0, %s176
  $region4: #{normal_loss.2} parent=0 // loop_header_branch
    %15 = sbr.rel (%p13) target = $region8
  $region5: #{normal_loss.2} parent=0 // loop_body
    %s17 = ssub.s32 %s12, 1
    %s18 = ssub.s32 %s12, 2
    %s25 = sadd.s32 1, %s20
    %p26 = scmp.ge.s32.totalorder %s25, 2
    %s27 = scalar_select %p26, 0, %s25
    %s28 = sadd.s32 1, %s19
    %s29 = scalar_select %p26, %s28, %s19
    %p30 = scmp.ge.s32.totalorder %s29, 2
    %s31 = scalar_select %p30, 0, %s29
    %s32 = ssub.s32 %s19, %s31
    %s33 = ssub.s32 %s20, %s27
    %s34 = sor.u32 %s32, %s33
    %p35 = scmp.eq.s32.totalorder %s34, 0
    %s37 = sadd.s32 %s36, 1
    %s38 = scalar_select %p35, %s36, %s37
    %p41 = pneg %p35
    %p42 = scmp.eq.s32.totalorder %s12, 3
    %p43 = por %p41, %p42
    %p44 = scmp.ne.s32.totalorder %s36, %s39
    %p45 = scmp.eq.s32.totalorder %s12, 0
    %p46 = por %p44, %p45
    %p47 = scmp.ne.s32.totalorder %s36, %s39
    %p48 = scmp.eq.s32.totalorder %s17, 3
    %p49 = por %p47, %p48
    %p50 = scmp.ne.s32.totalorder %s39, %s40
    %p51 = scmp.eq.s32.totalorder %s17, 0
    %p52 = por %p50, %p51
    %p53 = scmp.ne.s32.totalorder %s39, %s40
    %p54 = scmp.eq.s32.totalorder %s18, 3
    %p55 = por %p53, %p54
    %p57 = scmp.ne.s32.totalorder %s40, %s56
    %p58 = scmp.eq.s32.totalorder %s18, 0
    %p59 = por %p57, %p58
    %s60 = ssub.s32 %s19, %s31
    %p61 = scmp.eq.s32.totalorder %s60, 0
    %s63 = sadd.s32 %s62, 1
    %s64 = scalar_select %p61, %s62, %s63
    %p67 = pneg %p61
    %p68 = scmp.eq.s32.totalorder %s12, 3
    %p69 = por %p67, %p68
    %p70 = scmp.ne.s32.totalorder %s62, %s65
    %p71 = scmp.eq.s32.totalorder %s12, 0
    %p72 = por %p70, %p71
    %p73 = scmp.ne.s32.totalorder %s62, %s65
    %p74 = scmp.eq.s32.totalorder %s17, 3
    %p75 = por %p73, %p74
    %p76 = scmp.ne.s32.totalorder %s65, %s66
    %p77 = scmp.eq.s32.totalorder %s17, 0
    %p78 = por %p76, %p77
    %p79 = scmp.ne.s32.totalorder %s65, %s66
    %p80 = scmp.eq.s32.totalorder %s18, 3
    %p81 = por %p79, %p80
    %p83 = scmp.ne.s32.totalorder %s66, %s82
    %p84 = scmp.eq.s32.totalorder %s18, 0
    %p85 = por %p83, %p84
    %s86 = ssub.s32 %s19, %s31
    %p87 = scmp.eq.s32.totalorder %s86, 0
    %s89 = sadd.s32 %s88, 1
    %s90 = scalar_select %p87, %s88, %s89
    %p93 = pneg %p87
    %p94 = scmp.eq.s32.totalorder %s12, 3
    %p95 = por %p93, %p94
    %p96 = scmp.ne.s32.totalorder %s88, %s91
    %p97 = scmp.eq.s32.totalorder %s12, 0
    %p98 = por %p96, %p97
    %p99 = scmp.ne.s32.totalorder %s88, %s91
    %p100 = scmp.eq.s32.totalorder %s17, 3
    %p101 = por %p99, %p100
    %p102 = scmp.ne.s32.totalorder %s91, %s92
    %p103 = scmp.eq.s32.totalorder %s17, 0
    %p104 = por %p102, %p103
    %p105 = scmp.ne.s32.totalorder %s91, %s92
    %p106 = scmp.eq.s32.totalorder %s18, 3
    %p107 = por %p105, %p106
    %p109 = scmp.ne.s32.totalorder %s92, %s108
    %p110 = scmp.eq.s32.totalorder %s18, 0
    %p111 = por %p109, %p110
    %s112 = ssub.s32 %s19, %s31
    %s113 = ssub.s32 %s20, %s27
    %s114 = sor.u32 %s112, %s113
    %p115 = scmp.eq.s32.totalorder %s114, 0
    %s117 = sadd.s32 %s116, 1
    %s118 = scalar_select %p115, %s116, %s117
    %p121 = pneg %p115
    %p122 = scmp.eq.s32.totalorder %s12, 3
    %p123 = por %p121, %p122
    %p124 = scmp.ne.s32.totalorder %s116, %s119
    %p125 = scmp.eq.s32.totalorder %s12, 0
    %p126 = por %p124, %p125
    %p127 = scmp.ne.s32.totalorder %s116, %s119
    %p128 = scmp.eq.s32.totalorder %s17, 3
    %p129 = por %p127, %p128
    %p130 = scmp.ne.s32.totalorder %s119, %s120
    %p131 = scmp.eq.s32.totalorder %s17, 0
    %p132 = por %p130, %p131
    %p133 = scmp.ne.s32.totalorder %s119, %s120
    %p134 = scmp.eq.s32.totalorder %s18, 3
    %p135 = por %p133, %p134
    %p137 = scmp.ne.s32.totalorder %s120, %s136
    %p138 = scmp.eq.s32.totalorder %s18, 0
    %p139 = por %p137, %p138
    %s140 = ssub.s32 %s19, %s31
    %s141 = ssub.s32 %s20, %s27
    %s142 = sor.u32 %s140, %s141
    %p143 = scmp.eq.s32.totalorder %s142, 0
    %s145 = sadd.s32 %s144, 1
    %s146 = scalar_select %p143, %s144, %s145
    %p149 = pneg %p143
    %p150 = scmp.eq.s32.totalorder %s12, 3
    %p151 = por %p149, %p150
    %p152 = scmp.ne.s32.totalorder %s144, %s147
    %p153 = scmp.eq.s32.totalorder %s12, 0
    %p154 = por %p152, %p153
    %p155 = scmp.ne.s32.totalorder %s144, %s147
    %p156 = scmp.eq.s32.totalorder %s17, 3
    %p157 = por %p155, %p156
    %p158 = scmp.ne.s32.totalorder %s147, %s148
    %p159 = scmp.eq.s32.totalorder %s17, 0
    %p160 = por %p158, %p159
    %p161 = scmp.ne.s32.totalorder %s147, %s148
    %p162 = scmp.eq.s32.totalorder %s18, 3
    %p163 = por %p161, %p162
    %p165 = scmp.ne.s32.totalorder %s148, %s164
    %p166 = scmp.eq.s32.totalorder %s18, 0
    %p167 = por %p165, %p166
    %s168 = ssub.s32 %s19, %s31
    %s169 = ssub.s32 %s20, %s27
    %s170 = sor.u32 %s168, %s169
    %p171 = scmp.eq.s32.totalorder %s170, 0
    %s173 = sadd.s32 %s172, 1
    %s174 = scalar_select %p171, %s172, %s173
    %p177 = pneg %p171
    %p178 = scmp.eq.s32.totalorder %s12, 3
    %p179 = por %p177, %p178
    %p180 = scmp.ne.s32.totalorder %s172, %s175
    %p181 = scmp.eq.s32.totalorder %s12, 0
    %p182 = por %p180, %p181
    %p183 = scmp.ne.s32.totalorder %s172, %s175
    %p184 = scmp.eq.s32.totalorder %s17, 3
    %p185 = por %p183, %p184
    %p186 = scmp.ne.s32.totalorder %s175, %s176
    %p187 = scmp.eq.s32.totalorder %s17, 0
    %p188 = por %p186, %p187
    %p189 = scmp.ne.s32.totalorder %s175, %s176
    %p190 = scmp.eq.s32.totalorder %s18, 3
    %p191 = por %p189, %p190
    %p193 = scmp.ne.s32.totalorder %s176, %s192
    %p194 = scmp.eq.s32.totalorder %s18, 0
    %p195 = por %p193, %p194
    %p196 = scmp.le.s32.totalorder 1, %s12
    %p197 = scmp.lt.s32.totalorder %s12, 5
    %p198 = pnand %p196, %p197
    %p199 = pneg %p198
    // Predicated region
    $region9: #{normal_loss.2} parent=5 // pred_check
      _
    $region10: #{normal_loss.2} parent=5 // pred_check_branch
      %201 = sbr.rel (%p198) target = $region12
    $region11: #{normal_loss.2} parent=5 // pred_region
      %s202 = ssub.s32 %s12, 1
    $region12: #{normal_loss.2} parent=5 // pred_fallthru
      _
    %p203 = scmp.lt.s32.totalorder %s12, 4
    // Predicated region
    $region13: #{normal_loss.2} parent=5 // pred_check
      %p204 = pneg %p203
    $region14: #{normal_loss.2} parent=5 // pred_check_branch
      %206 = sbr.rel (%p204) target = $region16
    $region15: #{normal_loss.2} parent=5 // pred_region
      // Predicated region
      $region17: #{normal_loss.2} parent=15 // pred_check
        %p207 = pneg %p46
      $region18: #{normal_loss.2} parent=15 // pred_check_branch
        %209 = sbr.rel (%p207) target = $region20
      $region19: #{normal_loss.2} parent=15 // pred_region
        %s210 = smul.u32 16, %s20
        %p211 = scmp.lt.s32.totalorder %s19, 1
        %s212 = scalar_select %p211, %s19, 1
        %p213 = scmp.lt.s32.totalorder %s210, 31
        %s214 = scalar_select %p213, %s210, 31
        %s215 = smul.addr %s212, 32
        %s216 = sadd.s32 %s214, %s215
        %s217 = smul.addr %s216, 8
        %s218 = scalar_lea.vmem %s0, %s217
        %s219 = smul.u32 16, %s20
      $region20: #{normal_loss.2} parent=15 // pred_fallthru
        _
      // Predicated region
      $region21: #{normal_loss.2} parent=15 // pred_check
        %p220 = pneg %p72
      $region22: #{normal_loss.2} parent=15 // pred_check_branch
        %222 = sbr.rel (%p220) target = $region24
      $region23: #{normal_loss.2} parent=15 // pred_region
        %p223 = scmp.lt.s32.totalorder %s19, 1
        %s224 = scalar_select %p223, %s19, 1
        %s225 = smul.addr %s224, 2
        %s226 = smul.addr %s225, 4
        %s227 = scalar_lea.vmem %s1, %s226
      $region24: #{normal_loss.2} parent=15 // pred_fallthru
        _
      // Predicated region
      $region25: #{normal_loss.2} parent=15 // pred_check
        %p228 = pneg %p98
      $region26: #{normal_loss.2} parent=15 // pred_check_branch
        %230 = sbr.rel (%p228) target = $region28
      $region27: #{normal_loss.2} parent=15 // pred_region
        %p231 = scmp.lt.s32.totalorder %s19, 1
        %s232 = scalar_select %p231, %s19, 1
        %s233 = smul.addr %s232, 2
        %s234 = smul.addr %s233, 4
        %s235 = scalar_lea.vmem %s2, %s234
      $region28: #{normal_loss.2} parent=15 // pred_fallthru
        _
      // Predicated region
      $region29: #{normal_loss.2} parent=15 // pred_check
        %p236 = pneg %p126
      $region30: #{normal_loss.2} parent=15 // pred_check_branch
        %238 = sbr.rel (%p236) target = $region32
      $region31: #{normal_loss.2} parent=15 // pred_region
        %s239 = smul.u32 16, %s20
        %p240 = scmp.lt.s32.totalorder %s19, 1
        %s241 = scalar_select %p240, %s19, 1
        %p242 = scmp.lt.s32.totalorder %s239, 31
        %s243 = scalar_select %p242, %s239, 31
        %s244 = smul.addr %s241, 32
        %s245 = sadd.s32 %s243, %s244
        %s246 = smul.addr %s245, 8
        %s247 = scalar_lea.vmem %s3, %s246
        %s248 = smul.u32 16, %s20
      $region32: #{normal_loss.2} parent=15 // pred_fallthru
        _
    $region16: #{normal_loss.2} parent=5 // pred_fallthru
      _
    %p249 = scmp.le.s32.totalorder 1, %s12
    %p250 = scmp.lt.s32.totalorder %s12, 5
    %p251 = pnand %p249, %p250
    %p252 = pneg %p251
    // Predicated region
    $region33: #{normal_loss.2} parent=5 // pred_check
      _
    $region34: #{normal_loss.2} parent=5 // pred_check_branch
      %254 = sbr.rel (%p251) target = $region36
    $region35: #{normal_loss.2} parent=5 // pred_region
      %s255 = ssub.s32 %s12, 1
      %s256 = smul.u32 16, %s22
      %p257 = scmp.lt.s32.totalorder %s21, 1
      %s258 = scalar_select %p257, %s21, 1
      %p259 = scmp.lt.s32.totalorder %s256, 31
      %s260 = scalar_select %p259, %s256, 31
      %s261 = smul.addr %s258, 32
      %s262 = sadd.s32 %s260, %s261
      %s263 = smul.addr %s262, 8
      %s264 = scalar_lea.vmem %s0, %s263
      %p265 = pneg %p52
      %p266 = pneg %p49
      %p267 = scmp.lt.s32.totalorder %s21, 1
      %s268 = scalar_select %p267, %s21, 1
      %s269 = smul.addr %s268, 2
      %s270 = smul.addr %s269, 4
      %s271 = scalar_lea.vmem %s1, %s270
      %p272 = pneg %p78
      %p273 = pneg %p75
      %p274 = scmp.lt.s32.totalorder %s21, 1
      %s275 = scalar_select %p274, %s21, 1
      %s276 = smul.addr %s275, 2
      %s277 = smul.addr %s276, 4
      %s278 = scalar_lea.vmem %s2, %s277
      %p279 = pneg %p104
      %p280 = pneg %p101
      %s281 = smul.u32 16, %s22
      %p282 = scmp.lt.s32.totalorder %s21, 1
      %s283 = scalar_select %p282, %s21, 1
      %p284 = scmp.lt.s32.totalorder %s281, 31
      %s285 = scalar_select %p284, %s281, 31
      %s286 = smul.addr %s283, 32
      %s287 = sadd.s32 %s285, %s286
      %s288 = smul.addr %s287, 8
      %s289 = scalar_lea.vmem %s3, %s288
      %p290 = pneg %p132
      %p291 = pneg %p129
      %p292 = pneg %p160
      %p293 = pneg %p157
      %s294 = smul.u32 16, %s22
      %p295 = scmp.lt.s32.totalorder %s21, 1
      %s296 = scalar_select %p295, %s21, 1
      %p297 = scmp.lt.s32.totalorder %s294, 31
      %s298 = scalar_select %p297, %s294, 31
      %s299 = smul.addr %s296, 32
      %s300 = sadd.s32 %s298, %s299
      %s301 = smul.addr %s300, 8
      %s302 = scalar_lea.vmem %s4, %s301
      %p303 = pneg %p188
      %p304 = pneg %p185
      %s305 = smul.u32 16, %s22
      %p306 = scmp.lt.s32.totalorder %s21, 1
      %s307 = scalar_select %p306, %s21, 1
      %p308 = scmp.lt.s32.totalorder %s305, 31
      %s309 = scalar_select %p308, %s305, 31
      %s310 = smul.addr %s307, 32
      %s311 = sadd.s32 %s309, %s310
      %s312 = smul.addr %s311, 8
      %s313 = scalar_lea.vmem %s5, %s312
      %s314 = smul.u32 16, %s22
      %p315 = scmp.lt.s32.totalorder %s21, 1
      %s316 = scalar_select %p315, %s21, 1
      %p317 = scmp.lt.s32.totalorder %s314, 31
      %s318 = scalar_select %p317, %s314, 31
      %s319 = smul.addr %s316, 32
      %s320 = sadd.s32 %s318, %s319
      %s321 = smul.addr %s320, 8
      %s322 = scalar_lea.vmem %s0, %s321
      %s323 = smul.u32 16, %s22
      %p324 = scmp.lt.s32.totalorder %s21, 1
      %s325 = scalar_select %p324, %s21, 1
      %s326 = smul.addr %s325, 2
      %s327 = smul.addr %s326, 4
      %s328 = scalar_lea.vmem %s1, %s327
      %p329 = scmp.lt.s32.totalorder %s21, 1
      %s330 = scalar_select %p329, %s21, 1
      %s331 = smul.addr %s330, 2
      %s332 = smul.addr %s331, 4
      %s333 = scalar_lea.vmem %s2, %s332
      %s334 = smul.u32 16, %s22
      %p335 = scmp.lt.s32.totalorder %s21, 1
      %s336 = scalar_select %p335, %s21, 1
      %p337 = scmp.lt.s32.totalorder %s334, 31
      %s338 = scalar_select %p337, %s334, 31
      %s339 = smul.addr %s336, 32
      %s340 = sadd.s32 %s338, %s339
      %s341 = smul.addr %s340, 8
      %s342 = scalar_lea.vmem %s3, %s341
      %s343 = smul.u32 16, %s22
      %s344 = smul.u32 16, %s22
      %p345 = scmp.lt.s32.totalorder %s21, 1
      %s346 = scalar_select %p345, %s21, 1
      %p347 = scmp.lt.s32.totalorder %s344, 31
      %s348 = scalar_select %p347, %s344, 31
      %s349 = smul.addr %s346, 32
      %s350 = sadd.s32 %s348, %s349
      %s351 = smul.addr %s350, 8
      %s352 = scalar_lea.vmem %s4, %s351
      %s353 = smul.u32 16, %s22
      %s354 = smul.u32 16, %s22
      %p355 = scmp.lt.s32.totalorder %s21, 1
      %s356 = scalar_select %p355, %s21, 1
      %p357 = scmp.lt.s32.totalorder %s354, 31
      %s358 = scalar_select %p357, %s354, 31
      %s359 = smul.addr %s356, 32
      %s360 = sadd.s32 %s358, %s359
      %s361 = smul.addr %s360, 8
      %s362 = scalar_lea.vmem %s5, %s361
      %s363 = smul.u32 16, %s22
      %v364 = vld [vmem:[%s322] sm:$0xff]
      %v365 = vld [vmem:[%s322 + $0x8] sm:$0xff]
      %v366 = vld [vmem:[%s322 + $0x10] sm:$0xff]
      %v367 = vld [vmem:[%s322 + $0x18] sm:$0xff]
      %v368 = vld [vmem:[%s322 + $0x20] sm:$0xff]
      %v369 = vld [vmem:[%s322 + $0x28] sm:$0xff]
      %v370 = vld [vmem:[%s322 + $0x30] sm:$0xff]
      %v371 = vld [vmem:[%s322 + $0x38] sm:$0xff]
      %v372 = vld [vmem:[%s322 + $0x40] sm:$0xff]
      %v373 = vld [vmem:[%s322 + $0x48] sm:$0xff]
      %v374 = vld [vmem:[%s322 + $0x50] sm:$0xff]
      %v375 = vld [vmem:[%s322 + $0x58] sm:$0xff]
      %v376 = vld [vmem:[%s322 + $0x60] sm:$0xff]
      %v377 = vld [vmem:[%s322 + $0x68] sm:$0xff]
      %v378 = vld [vmem:[%s322 + $0x70] sm:$0xff]
      %v379 = vld [vmem:[%s322 + $0x78] sm:$0xff]
      %v380 = vld [vmem:[%s342] sm:$0xff]
      %v381 = vld [vmem:[%s342 + $0x8] sm:$0xff]
      %v382 = vld [vmem:[%s342 + $0x10] sm:$0xff]
      %v383 = vld [vmem:[%s342 + $0x18] sm:$0xff]
      %v384 = vld [vmem:[%s342 + $0x20] sm:$0xff]
      %v385 = vld [vmem:[%s342 + $0x28] sm:$0xff]
      %v386 = vld [vmem:[%s342 + $0x30] sm:$0xff]
      %v387 = vld [vmem:[%s342 + $0x38] sm:$0xff]
      %v388 = vld [vmem:[%s342 + $0x40] sm:$0xff]
      %v389 = vld [vmem:[%s342 + $0x48] sm:$0xff]
      %v390 = vld [vmem:[%s342 + $0x50] sm:$0xff]
      %v391 = vld [vmem:[%s342 + $0x58] sm:$0xff]
      %v392 = vld [vmem:[%s342 + $0x60] sm:$0xff]
      %v393 = vld [vmem:[%s342 + $0x68] sm:$0xff]
      %v394 = vld [vmem:[%s342 + $0x70] sm:$0xff]
      %v395 = vld [vmem:[%s342 + $0x78] sm:$0xff]
      %v396 = vld [vmem:[%s328] ss:$4 sm:$0x3]
      %v398 = vperm.slane %v396, 0
      %v399 = vperm.slane %v396, 1
      %403 = vset.pattern.permute.xlu0 0
      %404 = vperm.xlu0 %403, %v364
      %v405 = vpop.permute.xlu0 %404
      %408 = vset.pattern.permute.xlu0 0
      %409 = vperm.xlu0 %408, %v365
      %v410 = vpop.permute.xlu0 %409
      %413 = vset.pattern.permute.xlu0 0
      %414 = vperm.xlu0 %413, %v366
      %v415 = vpop.permute.xlu0 %414
      %418 = vset.pattern.permute.xlu0 0
      %419 = vperm.xlu0 %418, %v367
      %v420 = vpop.permute.xlu0 %419
      %423 = vset.pattern.permute.xlu0 0
      %424 = vperm.xlu0 %423, %v368
      %v425 = vpop.permute.xlu0 %424
      %428 = vset.pattern.permute.xlu0 0
      %429 = vperm.xlu0 %428, %v369
      %v430 = vpop.permute.xlu0 %429
      %433 = vset.pattern.permute.xlu0 0
      %434 = vperm.xlu0 %433, %v370
      %v435 = vpop.permute.xlu0 %434
      %438 = vset.pattern.permute.xlu0 0
      %439 = vperm.xlu0 %438, %v371
      %v440 = vpop.permute.xlu0 %439
      %443 = vset.pattern.permute.xlu0 0
      %444 = vperm.xlu0 %443, %v372
      %v445 = vpop.permute.xlu0 %444
      %448 = vset.pattern.permute.xlu0 0
      %449 = vperm.xlu0 %448, %v373
      %v450 = vpop.permute.xlu0 %449
      %453 = vset.pattern.permute.xlu0 0
      %454 = vperm.xlu0 %453, %v374
      %v455 = vpop.permute.xlu0 %454
      %458 = vset.pattern.permute.xlu0 0
      %459 = vperm.xlu0 %458, %v375
      %v460 = vpop.permute.xlu0 %459
      %463 = vset.pattern.permute.xlu0 0
      %464 = vperm.xlu0 %463, %v376
      %v465 = vpop.permute.xlu0 %464
      %468 = vset.pattern.permute.xlu0 0
      %469 = vperm.xlu0 %468, %v377
      %v470 = vpop.permute.xlu0 %469
      %473 = vset.pattern.permute.xlu0 0
      %474 = vperm.xlu0 %473, %v378
      %v475 = vpop.permute.xlu0 %474
      %478 = vset.pattern.permute.xlu0 0
      %479 = vperm.xlu0 %478, %v379
      %v480 = vpop.permute.xlu0 %479
      %v482 = vsub.f32 %v398, %v405
      %v483 = vsub.f32 %v399, %v405
      %v484 = vsub.f32 %v398, %v410
      %v485 = vsub.f32 %v399, %v410
      %v486 = vsub.f32 %v398, %v415
      %v487 = vsub.f32 %v399, %v415
      %v488 = vsub.f32 %v398, %v420
      %v489 = vsub.f32 %v399, %v420
      %v490 = vsub.f32 %v398, %v425
      %v491 = vsub.f32 %v399, %v425
      %v492 = vsub.f32 %v398, %v430
      %v493 = vsub.f32 %v399, %v430
      %v494 = vsub.f32 %v398, %v435
      %v495 = vsub.f32 %v399, %v435
      %v496 = vsub.f32 %v398, %v440
      %v497 = vsub.f32 %v399, %v440
      %v498 = vsub.f32 %v398, %v445
      %v499 = vsub.f32 %v399, %v445
      %v500 = vsub.f32 %v398, %v450
      %v501 = vsub.f32 %v399, %v450
      %v502 = vsub.f32 %v398, %v455
      %v503 = vsub.f32 %v399, %v455
      %v504 = vsub.f32 %v398, %v460
      %v505 = vsub.f32 %v399, %v460
      %v506 = vsub.f32 %v398, %v465
      %v507 = vsub.f32 %v399, %v465
      %v508 = vsub.f32 %v398, %v470
      %v509 = vsub.f32 %v399, %v470
      %v510 = vsub.f32 %v398, %v475
      %v511 = vsub.f32 %v399, %v475
      %v512 = vsub.f32 %v398, %v480
      %v513 = vsub.f32 %v399, %v480
      %s514 = scalar_lea.vmem %s328, 1
      %v515 = vld [vmem:[%s514] ss:$4 sm:$0x3]
      %v517 = vperm.slane %v515, 0
      %v518 = vperm.slane %v515, 1
      %521 = vset.pattern.permute.xlu0 1
      %522 = vperm.xlu0 %521, %v364
      %v523 = vpop.permute.xlu0 %522
      %525 = vset.pattern.permute.xlu0 1
      %526 = vperm.xlu0 %525, %v365
      %v527 = vpop.permute.xlu0 %526
      %529 = vset.pattern.permute.xlu0 1
      %530 = vperm.xlu0 %529, %v366
      %v531 = vpop.permute.xlu0 %530
      %533 = vset.pattern.permute.xlu0 1
      %534 = vperm.xlu0 %533, %v367
      %v535 = vpop.permute.xlu0 %534
      %537 = vset.pattern.permute.xlu0 1
      %538 = vperm.xlu0 %537, %v368
      %v539 = vpop.permute.xlu0 %538
      %541 = vset.pattern.permute.xlu0 1
      %542 = vperm.xlu0 %541, %v369
      %v543 = vpop.permute.xlu0 %542
      %545 = vset.pattern.permute.xlu0 1
      %546 = vperm.xlu0 %545, %v370
      %v547 = vpop.permute.xlu0 %546
      %549 = vset.pattern.permute.xlu0 1
      %550 = vperm.xlu0 %549, %v371
      %v551 = vpop.permute.xlu0 %550
      %553 = vset.pattern.permute.xlu0 1
      %554 = vperm.xlu0 %553, %v372
      %v555 = vpop.permute.xlu0 %554
      %557 = vset.pattern.permute.xlu0 1
      %558 = vperm.xlu0 %557, %v373
      %v559 = vpop.permute.xlu0 %558
      %561 = vset.pattern.permute.xlu0 1
      %562 = vperm.xlu0 %561, %v374
      %v563 = vpop.permute.xlu0 %562
      %565 = vset.pattern.permute.xlu0 1
      %566 = vperm.xlu0 %565, %v375
      %v567 = vpop.permute.xlu0 %566
      %569 = vset.pattern.permute.xlu0 1
      %570 = vperm.xlu0 %569, %v376
      %v571 = vpop.permute.xlu0 %570
      %573 = vset.pattern.permute.xlu0 1
      %574 = vperm.xlu0 %573, %v377
      %v575 = vpop.permute.xlu0 %574
      %577 = vset.pattern.permute.xlu0 1
      %578 = vperm.xlu0 %577, %v378
      %v579 = vpop.permute.xlu0 %578
      %581 = vset.pattern.permute.xlu0 1
      %582 = vperm.xlu0 %581, %v379
      %v583 = vpop.permute.xlu0 %582
      %v585 = vsub.f32 %v517, %v523
      %v586 = vsub.f32 %v518, %v523
      %v587 = vsub.f32 %v517, %v527
      %v588 = vsub.f32 %v518, %v527
      %v589 = vsub.f32 %v517, %v531
      %v590 = vsub.f32 %v518, %v531
      %v591 = vsub.f32 %v517, %v535
      %v592 = vsub.f32 %v518, %v535
      %v593 = vsub.f32 %v517, %v539
      %v594 = vsub.f32 %v518, %v539
      %v595 = vsub.f32 %v517, %v543
      %v596 = vsub.f32 %v518, %v543
      %v597 = vsub.f32 %v517, %v547
      %v598 = vsub.f32 %v518, %v547
      %v599 = vsub.f32 %v517, %v551
      %v600 = vsub.f32 %v518, %v551
      %v601 = vsub.f32 %v517, %v555
      %v602 = vsub.f32 %v518, %v555
      %v603 = vsub.f32 %v517, %v559
      %v604 = vsub.f32 %v518, %v559
      %v605 = vsub.f32 %v517, %v563
      %v606 = vsub.f32 %v518, %v563
      %v607 = vsub.f32 %v517, %v567
      %v608 = vsub.f32 %v518, %v567
      %v609 = vsub.f32 %v517, %v571
      %v610 = vsub.f32 %v518, %v571
      %v611 = vsub.f32 %v517, %v575
      %v612 = vsub.f32 %v518, %v575
      %v613 = vsub.f32 %v517, %v579
      %v614 = vsub.f32 %v518, %v579
      %v615 = vsub.f32 %v517, %v583
      %v616 = vsub.f32 %v518, %v583
      %s617 = scalar_lea.vmem %s328, 2
      %v618 = vld [vmem:[%s617] ss:$4 sm:$0x3]
      %v620 = vperm.slane %v618, 0
      %v621 = vperm.slane %v618, 1
      %624 = vset.pattern.permute.xlu0 2
      %625 = vperm.xlu0 %624, %v364
      %v626 = vpop.permute.xlu0 %625
      %628 = vset.pattern.permute.xlu0 2
      %629 = vperm.xlu0 %628, %v365
      %v630 = vpop.permute.xlu0 %629
      %632 = vset.pattern.permute.xlu0 2
      %633 = vperm.xlu0 %632, %v366
      %v634 = vpop.permute.xlu0 %633
      %636 = vset.pattern.permute.xlu0 2
      %637 = vperm.xlu0 %636, %v367
      %v638 = vpop.permute.xlu0 %637
      %640 = vset.pattern.permute.xlu0 2
      %641 = vperm.xlu0 %640, %v368
      %v642 = vpop.permute.xlu0 %641
      %644 = vset.pattern.permute.xlu0 2
      %645 = vperm.xlu0 %644, %v369
      %v646 = vpop.permute.xlu0 %645
      %648 = vset.pattern.permute.xlu0 2
      %649 = vperm.xlu0 %648, %v370
      %v650 = vpop.permute.xlu0 %649
      %652 = vset.pattern.permute.xlu0 2
      %653 = vperm.xlu0 %652, %v371
      %v654 = vpop.permute.xlu0 %653
      %656 = vset.pattern.permute.xlu0 2
      %657 = vperm.xlu0 %656, %v372
      %v658 = vpop.permute.xlu0 %657
      %660 = vset.pattern.permute.xlu0 2
      %661 = vperm.xlu0 %660, %v373
      %v662 = vpop.permute.xlu0 %661
      %664 = vset.pattern.permute.xlu0 2
      %665 = vperm.xlu0 %664, %v374
      %v666 = vpop.permute.xlu0 %665
      %668 = vset.pattern.permute.xlu0 2
      %669 = vperm.xlu0 %668, %v375
      %v670 = vpop.permute.xlu0 %669
      %672 = vset.pattern.permute.xlu0 2
      %673 = vperm.xlu0 %672, %v376
      %v674 = vpop.permute.xlu0 %673
      %676 = vset.pattern.permute.xlu0 2
      %677 = vperm.xlu0 %676, %v377
      %v678 = vpop.permute.xlu0 %677
      %680 = vset.pattern.permute.xlu0 2
      %681 = vperm.xlu0 %680, %v378
      %v682 = vpop.permute.xlu0 %681
      %684 = vset.pattern.permute.xlu0 2
      %685 = vperm.xlu0 %684, %v379
      %v686 = vpop.permute.xlu0 %685
      %v688 = vsub.f32 %v620, %v626
      %v689 = vsub.f32 %v621, %v626
      %v690 = vsub.f32 %v620, %v630
      %v691 = vsub.f32 %v621, %v630
      %v692 = vsub.f32 %v620, %v634
      %v693 = vsub.f32 %v621, %v634
      %v694 = vsub.f32 %v620, %v638
      %v695 = vsub.f32 %v621, %v638
      %v696 = vsub.f32 %v620, %v642
      %v697 = vsub.f32 %v621, %v642
      %v698 = vsub.f32 %v620, %v646
      %v699 = vsub.f32 %v621, %v646
      %v700 = vsub.f32 %v620, %v650
      %v701 = vsub.f32 %v621, %v650
      %v702 = vsub.f32 %v620, %v654
      %v703 = vsub.f32 %v621, %v654
      %v704 = vsub.f32 %v620, %v658
      %v705 = vsub.f32 %v621, %v658
      %v706 = vsub.f32 %v620, %v662
      %v707 = vsub.f32 %v621, %v662
      %v708 = vsub.f32 %v620, %v666
      %v709 = vsub.f32 %v621, %v666
      %v710 = vsub.f32 %v620, %v670
      %v711 = vsub.f32 %v621, %v670
      %v712 = vsub.f32 %v620, %v674
      %v713 = vsub.f32 %v621, %v674
      %v714 = vsub.f32 %v620, %v678
      %v715 = vsub.f32 %v621, %v678
      %v716 = vsub.f32 %v620, %v682
      %v717 = vsub.f32 %v621, %v682
      %v718 = vsub.f32 %v620, %v686
      %v719 = vsub.f32 %v621, %v686
      %v720 = vmul.f32 %v482, %v482
      %v721 = vmul.f32 %v483, %v483
      %v722 = vmul.f32 %v484, %v484
      %v723 = vmul.f32 %v485, %v485
      %v724 = vmul.f32 %v486, %v486
      %v725 = vmul.f32 %v487, %v487
      %v726 = vmul.f32 %v488, %v488
      %v727 = vmul.f32 %v489, %v489
      %v728 = vmul.f32 %v490, %v490
      %v729 = vmul.f32 %v491, %v491
      %v730 = vmul.f32 %v492, %v492
      %v731 = vmul.f32 %v493, %v493
      %v732 = vmul.f32 %v494, %v494
      %v733 = vmul.f32 %v495, %v495
      %v734 = vmul.f32 %v496, %v496
      %v735 = vmul.f32 %v497, %v497
      %v736 = vmul.f32 %v498, %v498
      %v737 = vmul.f32 %v499, %v499
      %v738 = vmul.f32 %v500, %v500
      %v739 = vmul.f32 %v501, %v501
      %v740 = vmul.f32 %v502, %v502
      %v741 = vmul.f32 %v503, %v503
      %v742 = vmul.f32 %v504, %v504
      %v743 = vmul.f32 %v505, %v505
      %v744 = vmul.f32 %v506, %v506
      %v745 = vmul.f32 %v507, %v507
      %v746 = vmul.f32 %v508, %v508
      %v747 = vmul.f32 %v509, %v509
      %v748 = vmul.f32 %v510, %v510
      %v749 = vmul.f32 %v511, %v511
      %v750 = vmul.f32 %v512, %v512
      %v751 = vmul.f32 %v513, %v513
      %v752 = vmul.f32 %v585, %v585
      %v753 = vmul.f32 %v586, %v586
      %v754 = vmul.f32 %v587, %v587
      %v755 = vmul.f32 %v588, %v588
      %v756 = vmul.f32 %v589, %v589
      %v757 = vmul.f32 %v590, %v590
      %v758 = vmul.f32 %v591, %v591
      %v759 = vmul.f32 %v592, %v592
      %v760 = vmul.f32 %v593, %v593
      %v761 = vmul.f32 %v594, %v594
      %v762 = vmul.f32 %v595, %v595
      %v763 = vmul.f32 %v596, %v596
      %v764 = vmul.f32 %v597, %v597
      %v765 = vmul.f32 %v598, %v598
      %v766 = vmul.f32 %v599, %v599
      %v767 = vmul.f32 %v600, %v600
      %v768 = vmul.f32 %v601, %v601
      %v769 = vmul.f32 %v602, %v602
      %v770 = vmul.f32 %v603, %v603
      %v771 = vmul.f32 %v604, %v604
      %v772 = vmul.f32 %v605, %v605
      %v773 = vmul.f32 %v606, %v606
      %v774 = vmul.f32 %v607, %v607
      %v775 = vmul.f32 %v608, %v608
      %v776 = vmul.f32 %v609, %v609
      %v777 = vmul.f32 %v610, %v610
      %v778 = vmul.f32 %v611, %v611
      %v779 = vmul.f32 %v612, %v612
      %v780 = vmul.f32 %v613, %v613
      %v781 = vmul.f32 %v614, %v614
      %v782 = vmul.f32 %v615, %v615
      %v783 = vmul.f32 %v616, %v616
      %v784 = vadd.f32 %v720, %v752
      %v785 = vadd.f32 %v721, %v753
      %v786 = vadd.f32 %v722, %v754
      %v787 = vadd.f32 %v723, %v755
      %v788 = vadd.f32 %v724, %v756
      %v789 = vadd.f32 %v725, %v757
      %v790 = vadd.f32 %v726, %v758
      %v791 = vadd.f32 %v727, %v759
      %v792 = vadd.f32 %v728, %v760
      %v793 = vadd.f32 %v729, %v761
      %v794 = vadd.f32 %v730, %v762
      %v795 = vadd.f32 %v731, %v763
      %v796 = vadd.f32 %v732, %v764
      %v797 = vadd.f32 %v733, %v765
      %v798 = vadd.f32 %v734, %v766
      %v799 = vadd.f32 %v735, %v767
      %v800 = vadd.f32 %v736, %v768
      %v801 = vadd.f32 %v737, %v769
      %v802 = vadd.f32 %v738, %v770
      %v803 = vadd.f32 %v739, %v771
      %v804 = vadd.f32 %v740, %v772
      %v805 = vadd.f32 %v741, %v773
      %v806 = vadd.f32 %v742, %v774
      %v807 = vadd.f32 %v743, %v775
      %v808 = vadd.f32 %v744, %v776
      %v809 = vadd.f32 %v745, %v777
      %v810 = vadd.f32 %v746, %v778
      %v811 = vadd.f32 %v747, %v779
      %v812 = vadd.f32 %v748, %v780
      %v813 = vadd.f32 %v749, %v781
      %v814 = vadd.f32 %v750, %v782
      %v815 = vadd.f32 %v751, %v783
      %v816 = vmul.f32 %v688, %v688
      %v817 = vmul.f32 %v689, %v689
      %v818 = vmul.f32 %v690, %v690
      %v819 = vmul.f32 %v691, %v691
      %v820 = vmul.f32 %v692, %v692
      %v821 = vmul.f32 %v693, %v693
      %v822 = vmul.f32 %v694, %v694
      %v823 = vmul.f32 %v695, %v695
      %v824 = vmul.f32 %v696, %v696
      %v825 = vmul.f32 %v697, %v697
      %v826 = vmul.f32 %v698, %v698
      %v827 = vmul.f32 %v699, %v699
      %v828 = vmul.f32 %v700, %v700
      %v829 = vmul.f32 %v701, %v701
      %v830 = vmul.f32 %v702, %v702
      %v831 = vmul.f32 %v703, %v703
      %v832 = vmul.f32 %v704, %v704
      %v833 = vmul.f32 %v705, %v705
      %v834 = vmul.f32 %v706, %v706
      %v835 = vmul.f32 %v707, %v707
      %v836 = vmul.f32 %v708, %v708
      %v837 = vmul.f32 %v709, %v709
      %v838 = vmul.f32 %v710, %v710
      %v839 = vmul.f32 %v711, %v711
      %v840 = vmul.f32 %v712, %v712
      %v841 = vmul.f32 %v713, %v713
      %v842 = vmul.f32 %v714, %v714
      %v843 = vmul.f32 %v715, %v715
      %v844 = vmul.f32 %v716, %v716
      %v845 = vmul.f32 %v717, %v717
      %v846 = vmul.f32 %v718, %v718
      %v847 = vmul.f32 %v719, %v719
      %v848 = vadd.f32 %v784, %v816
      %v849 = vadd.f32 %v785, %v817
      %v850 = vadd.f32 %v786, %v818
      %v851 = vadd.f32 %v787, %v819
      %v852 = vadd.f32 %v788, %v820
      %v853 = vadd.f32 %v789, %v821
      %v854 = vadd.f32 %v790, %v822
      %v855 = vadd.f32 %v791, %v823
      %v856 = vadd.f32 %v792, %v824
      %v857 = vadd.f32 %v793, %v825
      %v858 = vadd.f32 %v794, %v826
      %v859 = vadd.f32 %v795, %v827
      %v860 = vadd.f32 %v796, %v828
      %v861 = vadd.f32 %v797, %v829
      %v862 = vadd.f32 %v798, %v830
      %v863 = vadd.f32 %v799, %v831
      %v864 = vadd.f32 %v800, %v832
      %v865 = vadd.f32 %v801, %v833
      %v866 = vadd.f32 %v802, %v834
      %v867 = vadd.f32 %v803, %v835
      %v868 = vadd.f32 %v804, %v836
      %v869 = vadd.f32 %v805, %v837
      %v870 = vadd.f32 %v806, %v838
      %v871 = vadd.f32 %v807, %v839
      %v872 = vadd.f32 %v808, %v840
      %v873 = vadd.f32 %v809, %v841
      %v874 = vadd.f32 %v810, %v842
      %v875 = vadd.f32 %v811, %v843
      %v876 = vadd.f32 %v812, %v844
      %v877 = vadd.f32 %v813, %v845
      %v878 = vadd.f32 %v814, %v846
      %v879 = vadd.f32 %v815, %v847
      %v880 = vlaneseq
      %v881 = vand.u32 %v880, 127
      %v882 = vadd.s32 %v881, 128
      %v883 = vcvt.s32.f32 %v881
      %v884 = vcvt.s32.f32 %v882
      %v885 = vmin.f32 %v848, %v849
      %886 = vmin.xlane.f32.xlu0 %v885
      %v887 = vpop.xlane.xlu0 %886
      %v888 = vmin.f32 %v850, %v851
      %889 = vmin.xlane.f32.xlu0 %v888
      %v890 = vpop.xlane.xlu0 %889
      %v891 = vmin.f32 %v852, %v853
      %892 = vmin.xlane.f32.xlu0 %v891
      %v893 = vpop.xlane.xlu0 %892
      %v894 = vmin.f32 %v854, %v855
      %895 = vmin.xlane.f32.xlu0 %v894
      %v896 = vpop.xlane.xlu0 %895
      %v897 = vmin.f32 %v856, %v857
      %898 = vmin.xlane.f32.xlu0 %v897
      %v899 = vpop.xlane.xlu0 %898
      %v900 = vmin.f32 %v858, %v859
      %901 = vmin.xlane.f32.xlu0 %v900
      %v902 = vpop.xlane.xlu0 %901
      %v903 = vmin.f32 %v860, %v861
      %904 = vmin.xlane.f32.xlu0 %v903
      %v905 = vpop.xlane.xlu0 %904
      %v906 = vmin.f32 %v862, %v863
      %907 = vmin.xlane.f32.xlu0 %v906
      %v908 = vpop.xlane.xlu0 %907
      %v909 = vmin.f32 %v864, %v865
      %910 = vmin.xlane.f32.xlu0 %v909
      %v911 = vpop.xlane.xlu0 %910
      %v912 = vmin.f32 %v866, %v867
      %913 = vmin.xlane.f32.xlu0 %v912
      %v914 = vpop.xlane.xlu0 %913
      %v915 = vmin.f32 %v868, %v869
      %916 = vmin.xlane.f32.xlu0 %v915
      %v917 = vpop.xlane.xlu0 %916
      %v918 = vmin.f32 %v870, %v871
      %919 = vmin.xlane.f32.xlu0 %v918
      %v920 = vpop.xlane.xlu0 %919
      %v921 = vmin.f32 %v872, %v873
      %922 = vmin.xlane.f32.xlu0 %v921
      %v923 = vpop.xlane.xlu0 %922
      %v924 = vmin.f32 %v874, %v875
      %925 = vmin.xlane.f32.xlu0 %v924
      %v926 = vpop.xlane.xlu0 %925
      %v927 = vmin.f32 %v876, %v877
      %928 = vmin.xlane.f32.xlu0 %v927
      %v929 = vpop.xlane.xlu0 %928
      %v930 = vmin.f32 %v878, %v879
      %931 = vmin.xlane.f32.xlu0 %v930
      %v932 = vpop.xlane.xlu0 %931
      %vm933 = vcmp.le.f32.partialorder %v848, %v887
      %vm934 = vcmp.le.f32.partialorder %v849, %v887
      %vm935 = vcmp.le.f32.partialorder %v850, %v890
      %vm936 = vcmp.le.f32.partialorder %v851, %v890
      %vm937 = vcmp.le.f32.partialorder %v852, %v893
      %vm938 = vcmp.le.f32.partialorder %v853, %v893
      %vm939 = vcmp.le.f32.partialorder %v854, %v896
      %vm940 = vcmp.le.f32.partialorder %v855, %v896
      %vm941 = vcmp.le.f32.partialorder %v856, %v899
      %vm942 = vcmp.le.f32.partialorder %v857, %v899
      %vm943 = vcmp.le.f32.partialorder %v858, %v902
      %vm944 = vcmp.le.f32.partialorder %v859, %v902
      %vm945 = vcmp.le.f32.partialorder %v860, %v905
      %vm946 = vcmp.le.f32.partialorder %v861, %v905
      %vm947 = vcmp.le.f32.partialorder %v862, %v908
      %vm948 = vcmp.le.f32.partialorder %v863, %v908
      %vm949 = vcmp.le.f32.partialorder %v864, %v911
      %vm950 = vcmp.le.f32.partialorder %v865, %v911
      %vm951 = vcmp.le.f32.partialorder %v866, %v914
      %vm952 = vcmp.le.f32.partialorder %v867, %v914
      %vm953 = vcmp.le.f32.partialorder %v868, %v917
      %vm954 = vcmp.le.f32.partialorder %v869, %v917
      %vm955 = vcmp.le.f32.partialorder %v870, %v920
      %vm956 = vcmp.le.f32.partialorder %v871, %v920
      %vm957 = vcmp.le.f32.partialorder %v872, %v923
      %vm958 = vcmp.le.f32.partialorder %v873, %v923
      %vm959 = vcmp.le.f32.partialorder %v874, %v926
      %vm960 = vcmp.le.f32.partialorder %v875, %v926
      %vm961 = vcmp.le.f32.partialorder %v876, %v929
      %vm962 = vcmp.le.f32.partialorder %v877, %v929
      %vm963 = vcmp.le.f32.partialorder %v878, %v932
      %vm964 = vcmp.le.f32.partialorder %v879, %v932
      %v965 = vsel %vm933, %v883, 3e+38
      %v966 = vsel %vm934, %v884, 3e+38
      %v967 = vsel %vm935, %v883, 3e+38
      %v968 = vsel %vm936, %v884, 3e+38
      %v969 = vsel %vm937, %v883, 3e+38
      %v970 = vsel %vm938, %v884, 3e+38
      %v971 = vsel %vm939, %v883, 3e+38
      %v972 = vsel %vm940, %v884, 3e+38
      %v973 = vsel %vm941, %v883, 3e+38
      %v974 = vsel %vm942, %v884, 3e+38
      %v975 = vsel %vm943, %v883, 3e+38
      %v976 = vsel %vm944, %v884, 3e+38
      %v977 = vsel %vm945, %v883, 3e+38
      %v978 = vsel %vm946, %v884, 3e+38
      %v979 = vsel %vm947, %v883, 3e+38
      %v980 = vsel %vm948, %v884, 3e+38
      %v981 = vsel %vm949, %v883, 3e+38
      %v982 = vsel %vm950, %v884, 3e+38
      %v983 = vsel %vm951, %v883, 3e+38
      %v984 = vsel %vm952, %v884, 3e+38
      %v985 = vsel %vm953, %v883, 3e+38
      %v986 = vsel %vm954, %v884, 3e+38
      %v987 = vsel %vm955, %v883, 3e+38
      %v988 = vsel %vm956, %v884, 3e+38
      %v989 = vsel %vm957, %v883, 3e+38
      %v990 = vsel %vm958, %v884, 3e+38
      %v991 = vsel %vm959, %v883, 3e+38
      %v992 = vsel %vm960, %v884, 3e+38
      %v993 = vsel %vm961, %v883, 3e+38
      %v994 = vsel %vm962, %v884, 3e+38
      %v995 = vsel %vm963, %v883, 3e+38
      %v996 = vsel %vm964, %v884, 3e+38
      %v997 = vmin.f32 %v965, %v966
      %998 = vmin.xlane.f32.xlu0 %v997
      %v999 = vpop.xlane.xlu0 %998
      %v1000 = vmin.f32 %v967, %v968
      %1001 = vmin.xlane.f32.xlu0 %v1000
      %v1002 = vpop.xlane.xlu0 %1001
      %v1003 = vmin.f32 %v969, %v970
      %1004 = vmin.xlane.f32.xlu0 %v1003
      %v1005 = vpop.xlane.xlu0 %1004
      %v1006 = vmin.f32 %v971, %v972
      %1007 = vmin.xlane.f32.xlu0 %v1006
      %v1008 = vpop.xlane.xlu0 %1007
      %v1009 = vmin.f32 %v973, %v974
      %1010 = vmin.xlane.f32.xlu0 %v1009
      %v1011 = vpop.xlane.xlu0 %1010
      %v1012 = vmin.f32 %v975, %v976
      %1013 = vmin.xlane.f32.xlu0 %v1012
      %v1014 = vpop.xlane.xlu0 %1013
      %v1015 = vmin.f32 %v977, %v978
      %1016 = vmin.xlane.f32.xlu0 %v1015
      %v1017 = vpop.xlane.xlu0 %1016
      %v1018 = vmin.f32 %v979, %v980
      %1019 = vmin.xlane.f32.xlu0 %v1018
      %v1020 = vpop.xlane.xlu0 %1019
      %v1021 = vmin.f32 %v981, %v982
      %1022 = vmin.xlane.f32.xlu0 %v1021
      %v1023 = vpop.xlane.xlu0 %1022
      %v1024 = vmin.f32 %v983, %v984
      %1025 = vmin.xlane.f32.xlu0 %v1024
      %v1026 = vpop.xlane.xlu0 %1025
      %v1027 = vmin.f32 %v985, %v986
      %1028 = vmin.xlane.f32.xlu0 %v1027
      %v1029 = vpop.xlane.xlu0 %1028
      %v1030 = vmin.f32 %v987, %v988
      %1031 = vmin.xlane.f32.xlu0 %v1030
      %v1032 = vpop.xlane.xlu0 %1031
      %v1033 = vmin.f32 %v989, %v990
      %1034 = vmin.xlane.f32.xlu0 %v1033
      %v1035 = vpop.xlane.xlu0 %1034
      %v1036 = vmin.f32 %v991, %v992
      %1037 = vmin.xlane.f32.xlu0 %v1036
      %v1038 = vpop.xlane.xlu0 %1037
      %v1039 = vmin.f32 %v993, %v994
      %1040 = vmin.xlane.f32.xlu0 %v1039
      %v1041 = vpop.xlane.xlu0 %1040
      %v1042 = vmin.f32 %v995, %v996
      %1043 = vmin.xlane.f32.xlu0 %v1042
      %v1044 = vpop.xlane.xlu0 %1043
      %vm1045 = vcmp.eq.f32.partialorder %v883, %v999
      %vm1046 = vcmp.eq.f32.partialorder %v884, %v999
      %vm1047 = vcmp.eq.f32.partialorder %v883, %v1002
      %vm1048 = vcmp.eq.f32.partialorder %v884, %v1002
      %vm1049 = vcmp.eq.f32.partialorder %v883, %v1005
      %vm1050 = vcmp.eq.f32.partialorder %v884, %v1005
      %vm1051 = vcmp.eq.f32.partialorder %v883, %v1008
      %vm1052 = vcmp.eq.f32.partialorder %v884, %v1008
      %vm1053 = vcmp.eq.f32.partialorder %v883, %v1011
      %vm1054 = vcmp.eq.f32.partialorder %v884, %v1011
      %vm1055 = vcmp.eq.f32.partialorder %v883, %v1014
      %vm1056 = vcmp.eq.f32.partialorder %v884, %v1014
      %vm1057 = vcmp.eq.f32.partialorder %v883, %v1017
      %vm1058 = vcmp.eq.f32.partialorder %v884, %v1017
      %vm1059 = vcmp.eq.f32.partialorder %v883, %v1020
      %vm1060 = vcmp.eq.f32.partialorder %v884, %v1020
      %vm1061 = vcmp.eq.f32.partialorder %v883, %v1023
      %vm1062 = vcmp.eq.f32.partialorder %v884, %v1023
      %vm1063 = vcmp.eq.f32.partialorder %v883, %v1026
      %vm1064 = vcmp.eq.f32.partialorder %v884, %v1026
      %vm1065 = vcmp.eq.f32.partialorder %v883, %v1029
      %vm1066 = vcmp.eq.f32.partialorder %v884, %v1029
      %vm1067 = vcmp.eq.f32.partialorder %v883, %v1032
      %vm1068 = vcmp.eq.f32.partialorder %v884, %v1032
      %vm1069 = vcmp.eq.f32.partialorder %v883, %v1035
      %vm1070 = vcmp.eq.f32.partialorder %v884, %v1035
      %vm1071 = vcmp.eq.f32.partialorder %v883, %v1038
      %vm1072 = vcmp.eq.f32.partialorder %v884, %v1038
      %vm1073 = vcmp.eq.f32.partialorder %v883, %v1041
      %vm1074 = vcmp.eq.f32.partialorder %v884, %v1041
      %vm1075 = vcmp.eq.f32.partialorder %v883, %v1044
      %vm1076 = vcmp.eq.f32.partialorder %v884, %v1044
      %v1077 = vsel %vm1045, 1.0, 0.0
      %v1078 = vsel %vm1046, 1.0, 0.0
      %v1079 = vsel %vm1047, 1.0, 0.0
      %v1080 = vsel %vm1048, 1.0, 0.0
      %v1081 = vsel %vm1049, 1.0, 0.0
      %v1082 = vsel %vm1050, 1.0, 0.0
      %v1083 = vsel %vm1051, 1.0, 0.0
      %v1084 = vsel %vm1052, 1.0, 0.0
      %v1085 = vsel %vm1053, 1.0, 0.0
      %v1086 = vsel %vm1054, 1.0, 0.0
      %v1087 = vsel %vm1055, 1.0, 0.0
      %v1088 = vsel %vm1056, 1.0, 0.0
      %v1089 = vsel %vm1057, 1.0, 0.0
      %v1090 = vsel %vm1058, 1.0, 0.0
      %v1091 = vsel %vm1059, 1.0, 0.0
      %v1092 = vsel %vm1060, 1.0, 0.0
      %v1093 = vsel %vm1061, 1.0, 0.0
      %v1094 = vsel %vm1062, 1.0, 0.0
      %v1095 = vsel %vm1063, 1.0, 0.0
      %v1096 = vsel %vm1064, 1.0, 0.0
      %v1097 = vsel %vm1065, 1.0, 0.0
      %v1098 = vsel %vm1066, 1.0, 0.0
      %v1099 = vsel %vm1067, 1.0, 0.0
      %v1100 = vsel %vm1068, 1.0, 0.0
      %v1101 = vsel %vm1069, 1.0, 0.0
      %v1102 = vsel %vm1070, 1.0, 0.0
      %v1103 = vsel %vm1071, 1.0, 0.0
      %v1104 = vsel %vm1072, 1.0, 0.0
      %v1105 = vsel %vm1073, 1.0, 0.0
      %v1106 = vsel %vm1074, 1.0, 0.0
      %v1107 = vsel %vm1075, 1.0, 0.0
      %v1108 = vsel %vm1076, 1.0, 0.0
      %v1109 = vsel %vm1045, 3e+38, %v848
      %v1110 = vsel %vm1046, 3e+38, %v849
      %v1111 = vsel %vm1047, 3e+38, %v850
      %v1112 = vsel %vm1048, 3e+38, %v851
      %v1113 = vsel %vm1049, 3e+38, %v852
      %v1114 = vsel %vm1050, 3e+38, %v853
      %v1115 = vsel %vm1051, 3e+38, %v854
      %v1116 = vsel %vm1052, 3e+38, %v855
      %v1117 = vsel %vm1053, 3e+38, %v856
      %v1118 = vsel %vm1054, 3e+38, %v857
      %v1119 = vsel %vm1055, 3e+38, %v858
      %v1120 = vsel %vm1056, 3e+38, %v859
      %v1121 = vsel %vm1057, 3e+38, %v860
      %v1122 = vsel %vm1058, 3e+38, %v861
      %v1123 = vsel %vm1059, 3e+38, %v862
      %v1124 = vsel %vm1060, 3e+38, %v863
      %v1125 = vsel %vm1061, 3e+38, %v864
      %v1126 = vsel %vm1062, 3e+38, %v865
      %v1127 = vsel %vm1063, 3e+38, %v866
      %v1128 = vsel %vm1064, 3e+38, %v867
      %v1129 = vsel %vm1065, 3e+38, %v868
      %v1130 = vsel %vm1066, 3e+38, %v869
      %v1131 = vsel %vm1067, 3e+38, %v870
      %v1132 = vsel %vm1068, 3e+38, %v871
      %v1133 = vsel %vm1069, 3e+38, %v872
      %v1134 = vsel %vm1070, 3e+38, %v873
      %v1135 = vsel %vm1071, 3e+38, %v874
      %v1136 = vsel %vm1072, 3e+38, %v875
      %v1137 = vsel %vm1073, 3e+38, %v876
      %v1138 = vsel %vm1074, 3e+38, %v877
      %v1139 = vsel %vm1075, 3e+38, %v878
      %v1140 = vsel %vm1076, 3e+38, %v879
      %v1141 = vmin.f32 %v1109, %v1110
      %1142 = vmin.xlane.f32.xlu0 %v1141
      %v1143 = vpop.xlane.xlu0 %1142
      %v1144 = vmin.f32 %v1111, %v1112
      %1145 = vmin.xlane.f32.xlu0 %v1144
      %v1146 = vpop.xlane.xlu0 %1145
      %v1147 = vmin.f32 %v1113, %v1114
      %1148 = vmin.xlane.f32.xlu0 %v1147
      %v1149 = vpop.xlane.xlu0 %1148
      %v1150 = vmin.f32 %v1115, %v1116
      %1151 = vmin.xlane.f32.xlu0 %v1150
      %v1152 = vpop.xlane.xlu0 %1151
      %v1153 = vmin.f32 %v1117, %v1118
      %1154 = vmin.xlane.f32.xlu0 %v1153
      %v1155 = vpop.xlane.xlu0 %1154
      %v1156 = vmin.f32 %v1119, %v1120
      %1157 = vmin.xlane.f32.xlu0 %v1156
      %v1158 = vpop.xlane.xlu0 %1157
      %v1159 = vmin.f32 %v1121, %v1122
      %1160 = vmin.xlane.f32.xlu0 %v1159
      %v1161 = vpop.xlane.xlu0 %1160
      %v1162 = vmin.f32 %v1123, %v1124
      %1163 = vmin.xlane.f32.xlu0 %v1162
      %v1164 = vpop.xlane.xlu0 %1163
      %v1165 = vmin.f32 %v1125, %v1126
      %1166 = vmin.xlane.f32.xlu0 %v1165
      %v1167 = vpop.xlane.xlu0 %1166
      %v1168 = vmin.f32 %v1127, %v1128
      %1169 = vmin.xlane.f32.xlu0 %v1168
      %v1170 = vpop.xlane.xlu0 %1169
      %v1171 = vmin.f32 %v1129, %v1130
      %1172 = vmin.xlane.f32.xlu0 %v1171
      %v1173 = vpop.xlane.xlu0 %1172
      %v1174 = vmin.f32 %v1131, %v1132
      %1175 = vmin.xlane.f32.xlu0 %v1174
      %v1176 = vpop.xlane.xlu0 %1175
      %v1177 = vmin.f32 %v1133, %v1134
      %1178 = vmin.xlane.f32.xlu0 %v1177
      %v1179 = vpop.xlane.xlu0 %1178
      %v1180 = vmin.f32 %v1135, %v1136
      %1181 = vmin.xlane.f32.xlu0 %v1180
      %v1182 = vpop.xlane.xlu0 %1181
      %v1183 = vmin.f32 %v1137, %v1138
      %1184 = vmin.xlane.f32.xlu0 %v1183
      %v1185 = vpop.xlane.xlu0 %1184
      %v1186 = vmin.f32 %v1139, %v1140
      %1187 = vmin.xlane.f32.xlu0 %v1186
      %v1188 = vpop.xlane.xlu0 %1187
      %vm1189 = vcmp.le.f32.partialorder %v1109, %v1143
      %vm1190 = vcmp.le.f32.partialorder %v1110, %v1143
      %vm1191 = vcmp.le.f32.partialorder %v1111, %v1146
      %vm1192 = vcmp.le.f32.partialorder %v1112, %v1146
      %vm1193 = vcmp.le.f32.partialorder %v1113, %v1149
      %vm1194 = vcmp.le.f32.partialorder %v1114, %v1149
      %vm1195 = vcmp.le.f32.partialorder %v1115, %v1152
      %vm1196 = vcmp.le.f32.partialorder %v1116, %v1152
      %vm1197 = vcmp.le.f32.partialorder %v1117, %v1155
      %vm1198 = vcmp.le.f32.partialorder %v1118, %v1155
      %vm1199 = vcmp.le.f32.partialorder %v1119, %v1158
      %vm1200 = vcmp.le.f32.partialorder %v1120, %v1158
      %vm1201 = vcmp.le.f32.partialorder %v1121, %v1161
      %vm1202 = vcmp.le.f32.partialorder %v1122, %v1161
      %vm1203 = vcmp.le.f32.partialorder %v1123, %v1164
      %vm1204 = vcmp.le.f32.partialorder %v1124, %v1164
      %vm1205 = vcmp.le.f32.partialorder %v1125, %v1167
      %vm1206 = vcmp.le.f32.partialorder %v1126, %v1167
      %vm1207 = vcmp.le.f32.partialorder %v1127, %v1170
      %vm1208 = vcmp.le.f32.partialorder %v1128, %v1170
      %vm1209 = vcmp.le.f32.partialorder %v1129, %v1173
      %vm1210 = vcmp.le.f32.partialorder %v1130, %v1173
      %vm1211 = vcmp.le.f32.partialorder %v1131, %v1176
      %vm1212 = vcmp.le.f32.partialorder %v1132, %v1176
      %vm1213 = vcmp.le.f32.partialorder %v1133, %v1179
      %vm1214 = vcmp.le.f32.partialorder %v1134, %v1179
      %vm1215 = vcmp.le.f32.partialorder %v1135, %v1182
      %vm1216 = vcmp.le.f32.partialorder %v1136, %v1182
      %vm1217 = vcmp.le.f32.partialorder %v1137, %v1185
      %vm1218 = vcmp.le.f32.partialorder %v1138, %v1185
      %vm1219 = vcmp.le.f32.partialorder %v1139, %v1188
      %vm1220 = vcmp.le.f32.partialorder %v1140, %v1188
      %v1221 = vsel %vm1189, %v883, 3e+38
      %v1222 = vsel %vm1190, %v884, 3e+38
      %v1223 = vsel %vm1191, %v883, 3e+38
      %v1224 = vsel %vm1192, %v884, 3e+38
      %v1225 = vsel %vm1193, %v883, 3e+38
      %v1226 = vsel %vm1194, %v884, 3e+38
      %v1227 = vsel %vm1195, %v883, 3e+38
      %v1228 = vsel %vm1196, %v884, 3e+38
      %v1229 = vsel %vm1197, %v883, 3e+38
      %v1230 = vsel %vm1198, %v884, 3e+38
      %v1231 = vsel %vm1199, %v883, 3e+38
      %v1232 = vsel %vm1200, %v884, 3e+38
      %v1233 = vsel %vm1201, %v883, 3e+38
      %v1234 = vsel %vm1202, %v884, 3e+38
      %v1235 = vsel %vm1203, %v883, 3e+38
      %v1236 = vsel %vm1204, %v884, 3e+38
      %v1237 = vsel %vm1205, %v883, 3e+38
      %v1238 = vsel %vm1206, %v884, 3e+38
      %v1239 = vsel %vm1207, %v883, 3e+38
      %v1240 = vsel %vm1208, %v884, 3e+38
      %v1241 = vsel %vm1209, %v883, 3e+38
      %v1242 = vsel %vm1210, %v884, 3e+38
      %v1243 = vsel %vm1211, %v883, 3e+38
      %v1244 = vsel %vm1212, %v884, 3e+38
      %v1245 = vsel %vm1213, %v883, 3e+38
      %v1246 = vsel %vm1214, %v884, 3e+38
      %v1247 = vsel %vm1215, %v883, 3e+38
      %v1248 = vsel %vm1216, %v884, 3e+38
      %v1249 = vsel %vm1217, %v883, 3e+38
      %v1250 = vsel %vm1218, %v884, 3e+38
      %v1251 = vsel %vm1219, %v883, 3e+38
      %v1252 = vsel %vm1220, %v884, 3e+38
      %v1253 = vmin.f32 %v1221, %v1222
      %1254 = vmin.xlane.f32.xlu0 %v1253
      %v1255 = vpop.xlane.xlu0 %1254
      %v1256 = vmin.f32 %v1223, %v1224
      %1257 = vmin.xlane.f32.xlu0 %v1256
      %v1258 = vpop.xlane.xlu0 %1257
      %v1259 = vmin.f32 %v1225, %v1226
      %1260 = vmin.xlane.f32.xlu0 %v1259
      %v1261 = vpop.xlane.xlu0 %1260
      %v1262 = vmin.f32 %v1227, %v1228
      %1263 = vmin.xlane.f32.xlu0 %v1262
      %v1264 = vpop.xlane.xlu0 %1263
      %v1265 = vmin.f32 %v1229, %v1230
      %1266 = vmin.xlane.f32.xlu0 %v1265
      %v1267 = vpop.xlane.xlu0 %1266
      %v1268 = vmin.f32 %v1231, %v1232
      %1269 = vmin.xlane.f32.xlu0 %v1268
      %v1270 = vpop.xlane.xlu0 %1269
      %v1271 = vmin.f32 %v1233, %v1234
      %1272 = vmin.xlane.f32.xlu0 %v1271
      %v1273 = vpop.xlane.xlu0 %1272
      %v1274 = vmin.f32 %v1235, %v1236
      %1275 = vmin.xlane.f32.xlu0 %v1274
      %v1276 = vpop.xlane.xlu0 %1275
      %v1277 = vmin.f32 %v1237, %v1238
      %1278 = vmin.xlane.f32.xlu0 %v1277
      %v1279 = vpop.xlane.xlu0 %1278
      %v1280 = vmin.f32 %v1239, %v1240
      %1281 = vmin.xlane.f32.xlu0 %v1280
      %v1282 = vpop.xlane.xlu0 %1281
      %v1283 = vmin.f32 %v1241, %v1242
      %1284 = vmin.xlane.f32.xlu0 %v1283
      %v1285 = vpop.xlane.xlu0 %1284
      %v1286 = vmin.f32 %v1243, %v1244
      %1287 = vmin.xlane.f32.xlu0 %v1286
      %v1288 = vpop.xlane.xlu0 %1287
      %v1289 = vmin.f32 %v1245, %v1246
      %1290 = vmin.xlane.f32.xlu0 %v1289
      %v1291 = vpop.xlane.xlu0 %1290
      %v1292 = vmin.f32 %v1247, %v1248
      %1293 = vmin.xlane.f32.xlu0 %v1292
      %v1294 = vpop.xlane.xlu0 %1293
      %v1295 = vmin.f32 %v1249, %v1250
      %1296 = vmin.xlane.f32.xlu0 %v1295
      %v1297 = vpop.xlane.xlu0 %1296
      %v1298 = vmin.f32 %v1251, %v1252
      %1299 = vmin.xlane.f32.xlu0 %v1298
      %v1300 = vpop.xlane.xlu0 %1299
      %vm1301 = vcmp.eq.f32.partialorder %v883, %v1255
      %vm1302 = vcmp.eq.f32.partialorder %v884, %v1255
      %vm1303 = vcmp.eq.f32.partialorder %v883, %v1258
      %vm1304 = vcmp.eq.f32.partialorder %v884, %v1258
      %vm1305 = vcmp.eq.f32.partialorder %v883, %v1261
      %vm1306 = vcmp.eq.f32.partialorder %v884, %v1261
      %vm1307 = vcmp.eq.f32.partialorder %v883, %v1264
      %vm1308 = vcmp.eq.f32.partialorder %v884, %v1264
      %vm1309 = vcmp.eq.f32.partialorder %v883, %v1267
      %vm1310 = vcmp.eq.f32.partialorder %v884, %v1267
      %vm1311 = vcmp.eq.f32.partialorder %v883, %v1270
      %vm1312 = vcmp.eq.f32.partialorder %v884, %v1270
      %vm1313 = vcmp.eq.f32.partialorder %v883, %v1273
      %vm1314 = vcmp.eq.f32.partialorder %v884, %v1273
      %vm1315 = vcmp.eq.f32.partialorder %v883, %v1276
      %vm1316 = vcmp.eq.f32.partialorder %v884, %v1276
      %vm1317 = vcmp.eq.f32.partialorder %v883, %v1279
      %vm1318 = vcmp.eq.f32.partialorder %v884, %v1279
      %vm1319 = vcmp.eq.f32.partialorder %v883, %v1282
      %vm1320 = vcmp.eq.f32.partialorder %v884, %v1282
      %vm1321 = vcmp.eq.f32.partialorder %v883, %v1285
      %vm1322 = vcmp.eq.f32.partialorder %v884, %v1285
      %vm1323 = vcmp.eq.f32.partialorder %v883, %v1288
      %vm1324 = vcmp.eq.f32.partialorder %v884, %v1288
      %vm1325 = vcmp.eq.f32.partialorder %v883, %v1291
      %vm1326 = vcmp.eq.f32.partialorder %v884, %v1291
      %vm1327 = vcmp.eq.f32.partialorder %v883, %v1294
      %vm1328 = vcmp.eq.f32.partialorder %v884, %v1294
      %vm1329 = vcmp.eq.f32.partialorder %v883, %v1297
      %vm1330 = vcmp.eq.f32.partialorder %v884, %v1297
      %vm1331 = vcmp.eq.f32.partialorder %v883, %v1300
      %vm1332 = vcmp.eq.f32.partialorder %v884, %v1300
      %v1333 = vsel %vm1301, 1.0, %v1077
      %v1334 = vsel %vm1302, 1.0, %v1078
      %v1335 = vsel %vm1303, 1.0, %v1079
      %v1336 = vsel %vm1304, 1.0, %v1080
      %v1337 = vsel %vm1305, 1.0, %v1081
      %v1338 = vsel %vm1306, 1.0, %v1082
      %v1339 = vsel %vm1307, 1.0, %v1083
      %v1340 = vsel %vm1308, 1.0, %v1084
      %v1341 = vsel %vm1309, 1.0, %v1085
      %v1342 = vsel %vm1310, 1.0, %v1086
      %v1343 = vsel %vm1311, 1.0, %v1087
      %v1344 = vsel %vm1312, 1.0, %v1088
      %v1345 = vsel %vm1313, 1.0, %v1089
      %v1346 = vsel %vm1314, 1.0, %v1090
      %v1347 = vsel %vm1315, 1.0, %v1091
      %v1348 = vsel %vm1316, 1.0, %v1092
      %v1349 = vsel %vm1317, 1.0, %v1093
      %v1350 = vsel %vm1318, 1.0, %v1094
      %v1351 = vsel %vm1319, 1.0, %v1095
      %v1352 = vsel %vm1320, 1.0, %v1096
      %v1353 = vsel %vm1321, 1.0, %v1097
      %v1354 = vsel %vm1322, 1.0, %v1098
      %v1355 = vsel %vm1323, 1.0, %v1099
      %v1356 = vsel %vm1324, 1.0, %v1100
      %v1357 = vsel %vm1325, 1.0, %v1101
      %v1358 = vsel %vm1326, 1.0, %v1102
      %v1359 = vsel %vm1327, 1.0, %v1103
      %v1360 = vsel %vm1328, 1.0, %v1104
      %v1361 = vsel %vm1329, 1.0, %v1105
      %v1362 = vsel %vm1330, 1.0, %v1106
      %v1363 = vsel %vm1331, 1.0, %v1107
      %v1364 = vsel %vm1332, 1.0, %v1108
      %v1365 = vsel %vm1301, 3e+38, %v1109
      %v1366 = vsel %vm1302, 3e+38, %v1110
      %v1367 = vsel %vm1303, 3e+38, %v1111
      %v1368 = vsel %vm1304, 3e+38, %v1112
      %v1369 = vsel %vm1305, 3e+38, %v1113
      %v1370 = vsel %vm1306, 3e+38, %v1114
      %v1371 = vsel %vm1307, 3e+38, %v1115
      %v1372 = vsel %vm1308, 3e+38, %v1116
      %v1373 = vsel %vm1309, 3e+38, %v1117
      %v1374 = vsel %vm1310, 3e+38, %v1118
      %v1375 = vsel %vm1311, 3e+38, %v1119
      %v1376 = vsel %vm1312, 3e+38, %v1120
      %v1377 = vsel %vm1313, 3e+38, %v1121
      %v1378 = vsel %vm1314, 3e+38, %v1122
      %v1379 = vsel %vm1315, 3e+38, %v1123
      %v1380 = vsel %vm1316, 3e+38, %v1124
      %v1381 = vsel %vm1317, 3e+38, %v1125
      %v1382 = vsel %vm1318, 3e+38, %v1126
      %v1383 = vsel %vm1319, 3e+38, %v1127
      %v1384 = vsel %vm1320, 3e+38, %v1128
      %v1385 = vsel %vm1321, 3e+38, %v1129
      %v1386 = vsel %vm1322, 3e+38, %v1130
      %v1387 = vsel %vm1323, 3e+38, %v1131
      %v1388 = vsel %vm1324, 3e+38, %v1132
      %v1389 = vsel %vm1325, 3e+38, %v1133
      %v1390 = vsel %vm1326, 3e+38, %v1134
      %v1391 = vsel %vm1327, 3e+38, %v1135
      %v1392 = vsel %vm1328, 3e+38, %v1136
      %v1393 = vsel %vm1329, 3e+38, %v1137
      %v1394 = vsel %vm1330, 3e+38, %v1138
      %v1395 = vsel %vm1331, 3e+38, %v1139
      %v1396 = vsel %vm1332, 3e+38, %v1140
      %v1397 = vmin.f32 %v1365, %v1366
      %1398 = vmin.xlane.f32.xlu0 %v1397
      %v1399 = vpop.xlane.xlu0 %1398
      %v1400 = vmin.f32 %v1367, %v1368
      %1401 = vmin.xlane.f32.xlu0 %v1400
      %v1402 = vpop.xlane.xlu0 %1401
      %v1403 = vmin.f32 %v1369, %v1370
      %1404 = vmin.xlane.f32.xlu0 %v1403
      %v1405 = vpop.xlane.xlu0 %1404
      %v1406 = vmin.f32 %v1371, %v1372
      %1407 = vmin.xlane.f32.xlu0 %v1406
      %v1408 = vpop.xlane.xlu0 %1407
      %v1409 = vmin.f32 %v1373, %v1374
      %1410 = vmin.xlane.f32.xlu0 %v1409
      %v1411 = vpop.xlane.xlu0 %1410
      %v1412 = vmin.f32 %v1375, %v1376
      %1413 = vmin.xlane.f32.xlu0 %v1412
      %v1414 = vpop.xlane.xlu0 %1413
      %v1415 = vmin.f32 %v1377, %v1378
      %1416 = vmin.xlane.f32.xlu0 %v1415
      %v1417 = vpop.xlane.xlu0 %1416
      %v1418 = vmin.f32 %v1379, %v1380
      %1419 = vmin.xlane.f32.xlu0 %v1418
      %v1420 = vpop.xlane.xlu0 %1419
      %v1421 = vmin.f32 %v1381, %v1382
      %1422 = vmin.xlane.f32.xlu0 %v1421
      %v1423 = vpop.xlane.xlu0 %1422
      %v1424 = vmin.f32 %v1383, %v1384
      %1425 = vmin.xlane.f32.xlu0 %v1424
      %v1426 = vpop.xlane.xlu0 %1425
      %v1427 = vmin.f32 %v1385, %v1386
      %1428 = vmin.xlane.f32.xlu0 %v1427
      %v1429 = vpop.xlane.xlu0 %1428
      %v1430 = vmin.f32 %v1387, %v1388
      %1431 = vmin.xlane.f32.xlu0 %v1430
      %v1432 = vpop.xlane.xlu0 %1431
      %v1433 = vmin.f32 %v1389, %v1390
      %1434 = vmin.xlane.f32.xlu0 %v1433
      %v1435 = vpop.xlane.xlu0 %1434
      %v1436 = vmin.f32 %v1391, %v1392
      %1437 = vmin.xlane.f32.xlu0 %v1436
      %v1438 = vpop.xlane.xlu0 %1437
      %v1439 = vmin.f32 %v1393, %v1394
      %1440 = vmin.xlane.f32.xlu0 %v1439
      %v1441 = vpop.xlane.xlu0 %1440
      %v1442 = vmin.f32 %v1395, %v1396
      %1443 = vmin.xlane.f32.xlu0 %v1442
      %v1444 = vpop.xlane.xlu0 %1443
      %vm1445 = vcmp.le.f32.partialorder %v1365, %v1399
      %vm1446 = vcmp.le.f32.partialorder %v1366, %v1399
      %vm1447 = vcmp.le.f32.partialorder %v1367, %v1402
      %vm1448 = vcmp.le.f32.partialorder %v1368, %v1402
      %vm1449 = vcmp.le.f32.partialorder %v1369, %v1405
      %vm1450 = vcmp.le.f32.partialorder %v1370, %v1405
      %vm1451 = vcmp.le.f32.partialorder %v1371, %v1408
      %vm1452 = vcmp.le.f32.partialorder %v1372, %v1408
      %vm1453 = vcmp.le.f32.partialorder %v1373, %v1411
      %vm1454 = vcmp.le.f32.partialorder %v1374, %v1411
      %vm1455 = vcmp.le.f32.partialorder %v1375, %v1414
      %vm1456 = vcmp.le.f32.partialorder %v1376, %v1414
      %vm1457 = vcmp.le.f32.partialorder %v1377, %v1417
      %vm1458 = vcmp.le.f32.partialorder %v1378, %v1417
      %vm1459 = vcmp.le.f32.partialorder %v1379, %v1420
      %vm1460 = vcmp.le.f32.partialorder %v1380, %v1420
      %vm1461 = vcmp.le.f32.partialorder %v1381, %v1423
      %vm1462 = vcmp.le.f32.partialorder %v1382, %v1423
      %vm1463 = vcmp.le.f32.partialorder %v1383, %v1426
      %vm1464 = vcmp.le.f32.partialorder %v1384, %v1426
      %vm1465 = vcmp.le.f32.partialorder %v1385, %v1429
      %vm1466 = vcmp.le.f32.partialorder %v1386, %v1429
      %vm1467 = vcmp.le.f32.partialorder %v1387, %v1432
      %vm1468 = vcmp.le.f32.partialorder %v1388, %v1432
      %vm1469 = vcmp.le.f32.partialorder %v1389, %v1435
      %vm1470 = vcmp.le.f32.partialorder %v1390, %v1435
      %vm1471 = vcmp.le.f32.partialorder %v1391, %v1438
      %vm1472 = vcmp.le.f32.partialorder %v1392, %v1438
      %vm1473 = vcmp.le.f32.partialorder %v1393, %v1441
      %vm1474 = vcmp.le.f32.partialorder %v1394, %v1441
      %vm1475 = vcmp.le.f32.partialorder %v1395, %v1444
      %vm1476 = vcmp.le.f32.partialorder %v1396, %v1444
      %v1477 = vsel %vm1445, %v883, 3e+38
      %v1478 = vsel %vm1446, %v884, 3e+38
      %v1479 = vsel %vm1447, %v883, 3e+38
      %v1480 = vsel %vm1448, %v884, 3e+38
      %v1481 = vsel %vm1449, %v883, 3e+38
      %v1482 = vsel %vm1450, %v884, 3e+38
      %v1483 = vsel %vm1451, %v883, 3e+38
      %v1484 = vsel %vm1452, %v884, 3e+38
      %v1485 = vsel %vm1453, %v883, 3e+38
      %v1486 = vsel %vm1454, %v884, 3e+38
      %v1487 = vsel %vm1455, %v883, 3e+38
      %v1488 = vsel %vm1456, %v884, 3e+38
      %v1489 = vsel %vm1457, %v883, 3e+38
      %v1490 = vsel %vm1458, %v884, 3e+38
      %v1491 = vsel %vm1459, %v883, 3e+38
      %v1492 = vsel %vm1460, %v884, 3e+38
      %v1493 = vsel %vm1461, %v883, 3e+38
      %v1494 = vsel %vm1462, %v884, 3e+38
      %v1495 = vsel %vm1463, %v883, 3e+38
      %v1496 = vsel %vm1464, %v884, 3e+38
      %v1497 = vsel %vm1465, %v883, 3e+38
      %v1498 = vsel %vm1466, %v884, 3e+38
      %v1499 = vsel %vm1467, %v883, 3e+38
      %v1500 = vsel %vm1468, %v884, 3e+38
      %v1501 = vsel %vm1469, %v883, 3e+38
      %v1502 = vsel %vm1470, %v884, 3e+38
      %v1503 = vsel %vm1471, %v883, 3e+38
      %v1504 = vsel %vm1472, %v884, 3e+38
      %v1505 = vsel %vm1473, %v883, 3e+38
      %v1506 = vsel %vm1474, %v884, 3e+38
      %v1507 = vsel %vm1475, %v883, 3e+38
      %v1508 = vsel %vm1476, %v884, 3e+38
      %v1509 = vmin.f32 %v1477, %v1478
      %1510 = vmin.xlane.f32.xlu0 %v1509
      %v1511 = vpop.xlane.xlu0 %1510
      %v1512 = vmin.f32 %v1479, %v1480
      %1513 = vmin.xlane.f32.xlu0 %v1512
      %v1514 = vpop.xlane.xlu0 %1513
      %v1515 = vmin.f32 %v1481, %v1482
      %1516 = vmin.xlane.f32.xlu0 %v1515
      %v1517 = vpop.xlane.xlu0 %1516
      %v1518 = vmin.f32 %v1483, %v1484
      %1519 = vmin.xlane.f32.xlu0 %v1518
      %v1520 = vpop.xlane.xlu0 %1519
      %v1521 = vmin.f32 %v1485, %v1486
      %1522 = vmin.xlane.f32.xlu0 %v1521
      %v1523 = vpop.xlane.xlu0 %1522
      %v1524 = vmin.f32 %v1487, %v1488
      %1525 = vmin.xlane.f32.xlu0 %v1524
      %v1526 = vpop.xlane.xlu0 %1525
      %v1527 = vmin.f32 %v1489, %v1490
      %1528 = vmin.xlane.f32.xlu0 %v1527
      %v1529 = vpop.xlane.xlu0 %1528
      %v1530 = vmin.f32 %v1491, %v1492
      %1531 = vmin.xlane.f32.xlu0 %v1530
      %v1532 = vpop.xlane.xlu0 %1531
      %v1533 = vmin.f32 %v1493, %v1494
      %1534 = vmin.xlane.f32.xlu0 %v1533
      %v1535 = vpop.xlane.xlu0 %1534
      %v1536 = vmin.f32 %v1495, %v1496
      %1537 = vmin.xlane.f32.xlu0 %v1536
      %v1538 = vpop.xlane.xlu0 %1537
      %v1539 = vmin.f32 %v1497, %v1498
      %1540 = vmin.xlane.f32.xlu0 %v1539
      %v1541 = vpop.xlane.xlu0 %1540
      %v1542 = vmin.f32 %v1499, %v1500
      %1543 = vmin.xlane.f32.xlu0 %v1542
      %v1544 = vpop.xlane.xlu0 %1543
      %v1545 = vmin.f32 %v1501, %v1502
      %1546 = vmin.xlane.f32.xlu0 %v1545
      %v1547 = vpop.xlane.xlu0 %1546
      %v1548 = vmin.f32 %v1503, %v1504
      %1549 = vmin.xlane.f32.xlu0 %v1548
      %v1550 = vpop.xlane.xlu0 %1549
      %v1551 = vmin.f32 %v1505, %v1506
      %1552 = vmin.xlane.f32.xlu0 %v1551
      %v1553 = vpop.xlane.xlu0 %1552
      %v1554 = vmin.f32 %v1507, %v1508
      %1555 = vmin.xlane.f32.xlu0 %v1554
      %v1556 = vpop.xlane.xlu0 %1555
      %vm1557 = vcmp.eq.f32.partialorder %v883, %v1511
      %vm1558 = vcmp.eq.f32.partialorder %v884, %v1511
      %vm1559 = vcmp.eq.f32.partialorder %v883, %v1514
      %vm1560 = vcmp.eq.f32.partialorder %v884, %v1514
      %vm1561 = vcmp.eq.f32.partialorder %v883, %v1517
      %vm1562 = vcmp.eq.f32.partialorder %v884, %v1517
      %vm1563 = vcmp.eq.f32.partialorder %v883, %v1520
      %vm1564 = vcmp.eq.f32.partialorder %v884, %v1520
      %vm1565 = vcmp.eq.f32.partialorder %v883, %v1523
      %vm1566 = vcmp.eq.f32.partialorder %v884, %v1523
      %vm1567 = vcmp.eq.f32.partialorder %v883, %v1526
      %vm1568 = vcmp.eq.f32.partialorder %v884, %v1526
      %vm1569 = vcmp.eq.f32.partialorder %v883, %v1529
      %vm1570 = vcmp.eq.f32.partialorder %v884, %v1529
      %vm1571 = vcmp.eq.f32.partialorder %v883, %v1532
      %vm1572 = vcmp.eq.f32.partialorder %v884, %v1532
      %vm1573 = vcmp.eq.f32.partialorder %v883, %v1535
      %vm1574 = vcmp.eq.f32.partialorder %v884, %v1535
      %vm1575 = vcmp.eq.f32.partialorder %v883, %v1538
      %vm1576 = vcmp.eq.f32.partialorder %v884, %v1538
      %vm1577 = vcmp.eq.f32.partialorder %v883, %v1541
      %vm1578 = vcmp.eq.f32.partialorder %v884, %v1541
      %vm1579 = vcmp.eq.f32.partialorder %v883, %v1544
      %vm1580 = vcmp.eq.f32.partialorder %v884, %v1544
      %vm1581 = vcmp.eq.f32.partialorder %v883, %v1547
      %vm1582 = vcmp.eq.f32.partialorder %v884, %v1547
      %vm1583 = vcmp.eq.f32.partialorder %v883, %v1550
      %vm1584 = vcmp.eq.f32.partialorder %v884, %v1550
      %vm1585 = vcmp.eq.f32.partialorder %v883, %v1553
      %vm1586 = vcmp.eq.f32.partialorder %v884, %v1553
      %vm1587 = vcmp.eq.f32.partialorder %v883, %v1556
      %vm1588 = vcmp.eq.f32.partialorder %v884, %v1556
      %v1589 = vsel %vm1557, 1.0, %v1333
      %v1590 = vsel %vm1558, 1.0, %v1334
      %v1591 = vsel %vm1559, 1.0, %v1335
      %v1592 = vsel %vm1560, 1.0, %v1336
      %v1593 = vsel %vm1561, 1.0, %v1337
      %v1594 = vsel %vm1562, 1.0, %v1338
      %v1595 = vsel %vm1563, 1.0, %v1339
      %v1596 = vsel %vm1564, 1.0, %v1340
      %v1597 = vsel %vm1565, 1.0, %v1341
      %v1598 = vsel %vm1566, 1.0, %v1342
      %v1599 = vsel %vm1567, 1.0, %v1343
      %v1600 = vsel %vm1568, 1.0, %v1344
      %v1601 = vsel %vm1569, 1.0, %v1345
      %v1602 = vsel %vm1570, 1.0, %v1346
      %v1603 = vsel %vm1571, 1.0, %v1347
      %v1604 = vsel %vm1572, 1.0, %v1348
      %v1605 = vsel %vm1573, 1.0, %v1349
      %v1606 = vsel %vm1574, 1.0, %v1350
      %v1607 = vsel %vm1575, 1.0, %v1351
      %v1608 = vsel %vm1576, 1.0, %v1352
      %v1609 = vsel %vm1577, 1.0, %v1353
      %v1610 = vsel %vm1578, 1.0, %v1354
      %v1611 = vsel %vm1579, 1.0, %v1355
      %v1612 = vsel %vm1580, 1.0, %v1356
      %v1613 = vsel %vm1581, 1.0, %v1357
      %v1614 = vsel %vm1582, 1.0, %v1358
      %v1615 = vsel %vm1583, 1.0, %v1359
      %v1616 = vsel %vm1584, 1.0, %v1360
      %v1617 = vsel %vm1585, 1.0, %v1361
      %v1618 = vsel %vm1586, 1.0, %v1362
      %v1619 = vsel %vm1587, 1.0, %v1363
      %v1620 = vsel %vm1588, 1.0, %v1364
      %v1621 = vsel %vm1557, 3e+38, %v1365
      %v1622 = vsel %vm1558, 3e+38, %v1366
      %v1623 = vsel %vm1559, 3e+38, %v1367
      %v1624 = vsel %vm1560, 3e+38, %v1368
      %v1625 = vsel %vm1561, 3e+38, %v1369
      %v1626 = vsel %vm1562, 3e+38, %v1370
      %v1627 = vsel %vm1563, 3e+38, %v1371
      %v1628 = vsel %vm1564, 3e+38, %v1372
      %v1629 = vsel %vm1565, 3e+38, %v1373
      %v1630 = vsel %vm1566, 3e+38, %v1374
      %v1631 = vsel %vm1567, 3e+38, %v1375
      %v1632 = vsel %vm1568, 3e+38, %v1376
      %v1633 = vsel %vm1569, 3e+38, %v1377
      %v1634 = vsel %vm1570, 3e+38, %v1378
      %v1635 = vsel %vm1571, 3e+38, %v1379
      %v1636 = vsel %vm1572, 3e+38, %v1380
      %v1637 = vsel %vm1573, 3e+38, %v1381
      %v1638 = vsel %vm1574, 3e+38, %v1382
      %v1639 = vsel %vm1575, 3e+38, %v1383
      %v1640 = vsel %vm1576, 3e+38, %v1384
      %v1641 = vsel %vm1577, 3e+38, %v1385
      %v1642 = vsel %vm1578, 3e+38, %v1386
      %v1643 = vsel %vm1579, 3e+38, %v1387
      %v1644 = vsel %vm1580, 3e+38, %v1388
      %v1645 = vsel %vm1581, 3e+38, %v1389
      %v1646 = vsel %vm1582, 3e+38, %v1390
      %v1647 = vsel %vm1583, 3e+38, %v1391
      %v1648 = vsel %vm1584, 3e+38, %v1392
      %v1649 = vsel %vm1585, 3e+38, %v1393
      %v1650 = vsel %vm1586, 3e+38, %v1394
      %v1651 = vsel %vm1587, 3e+38, %v1395
      %v1652 = vsel %vm1588, 3e+38, %v1396
      %v1653 = vmin.f32 %v1621, %v1622
      %1654 = vmin.xlane.f32.xlu0 %v1653
      %v1655 = vpop.xlane.xlu0 %1654
      %v1656 = vmin.f32 %v1623, %v1624
      %1657 = vmin.xlane.f32.xlu0 %v1656
      %v1658 = vpop.xlane.xlu0 %1657
      %v1659 = vmin.f32 %v1625, %v1626
      %1660 = vmin.xlane.f32.xlu0 %v1659
      %v1661 = vpop.xlane.xlu0 %1660
      %v1662 = vmin.f32 %v1627, %v1628
      %1663 = vmin.xlane.f32.xlu0 %v1662
      %v1664 = vpop.xlane.xlu0 %1663
      %v1665 = vmin.f32 %v1629, %v1630
      %1666 = vmin.xlane.f32.xlu0 %v1665
      %v1667 = vpop.xlane.xlu0 %1666
      %v1668 = vmin.f32 %v1631, %v1632
      %1669 = vmin.xlane.f32.xlu0 %v1668
      %v1670 = vpop.xlane.xlu0 %1669
      %v1671 = vmin.f32 %v1633, %v1634
      %1672 = vmin.xlane.f32.xlu0 %v1671
      %v1673 = vpop.xlane.xlu0 %1672
      %v1674 = vmin.f32 %v1635, %v1636
      %1675 = vmin.xlane.f32.xlu0 %v1674
      %v1676 = vpop.xlane.xlu0 %1675
      %v1677 = vmin.f32 %v1637, %v1638
      %1678 = vmin.xlane.f32.xlu0 %v1677
      %v1679 = vpop.xlane.xlu0 %1678
      %v1680 = vmin.f32 %v1639, %v1640
      %1681 = vmin.xlane.f32.xlu0 %v1680
      %v1682 = vpop.xlane.xlu0 %1681
      %v1683 = vmin.f32 %v1641, %v1642
      %1684 = vmin.xlane.f32.xlu0 %v1683
      %v1685 = vpop.xlane.xlu0 %1684
      %v1686 = vmin.f32 %v1643, %v1644
      %1687 = vmin.xlane.f32.xlu0 %v1686
      %v1688 = vpop.xlane.xlu0 %1687
      %v1689 = vmin.f32 %v1645, %v1646
      %1690 = vmin.xlane.f32.xlu0 %v1689
      %v1691 = vpop.xlane.xlu0 %1690
      %v1692 = vmin.f32 %v1647, %v1648
      %1693 = vmin.xlane.f32.xlu0 %v1692
      %v1694 = vpop.xlane.xlu0 %1693
      %v1695 = vmin.f32 %v1649, %v1650
      %1696 = vmin.xlane.f32.xlu0 %v1695
      %v1697 = vpop.xlane.xlu0 %1696
      %v1698 = vmin.f32 %v1651, %v1652
      %1699 = vmin.xlane.f32.xlu0 %v1698
      %v1700 = vpop.xlane.xlu0 %1699
      %vm1701 = vcmp.le.f32.partialorder %v1621, %v1655
      %vm1702 = vcmp.le.f32.partialorder %v1622, %v1655
      %vm1703 = vcmp.le.f32.partialorder %v1623, %v1658
      %vm1704 = vcmp.le.f32.partialorder %v1624, %v1658
      %vm1705 = vcmp.le.f32.partialorder %v1625, %v1661
      %vm1706 = vcmp.le.f32.partialorder %v1626, %v1661
      %vm1707 = vcmp.le.f32.partialorder %v1627, %v1664
      %vm1708 = vcmp.le.f32.partialorder %v1628, %v1664
      %vm1709 = vcmp.le.f32.partialorder %v1629, %v1667
      %vm1710 = vcmp.le.f32.partialorder %v1630, %v1667
      %vm1711 = vcmp.le.f32.partialorder %v1631, %v1670
      %vm1712 = vcmp.le.f32.partialorder %v1632, %v1670
      %vm1713 = vcmp.le.f32.partialorder %v1633, %v1673
      %vm1714 = vcmp.le.f32.partialorder %v1634, %v1673
      %vm1715 = vcmp.le.f32.partialorder %v1635, %v1676
      %vm1716 = vcmp.le.f32.partialorder %v1636, %v1676
      %vm1717 = vcmp.le.f32.partialorder %v1637, %v1679
      %vm1718 = vcmp.le.f32.partialorder %v1638, %v1679
      %vm1719 = vcmp.le.f32.partialorder %v1639, %v1682
      %vm1720 = vcmp.le.f32.partialorder %v1640, %v1682
      %vm1721 = vcmp.le.f32.partialorder %v1641, %v1685
      %vm1722 = vcmp.le.f32.partialorder %v1642, %v1685
      %vm1723 = vcmp.le.f32.partialorder %v1643, %v1688
      %vm1724 = vcmp.le.f32.partialorder %v1644, %v1688
      %vm1725 = vcmp.le.f32.partialorder %v1645, %v1691
      %vm1726 = vcmp.le.f32.partialorder %v1646, %v1691
      %vm1727 = vcmp.le.f32.partialorder %v1647, %v1694
      %vm1728 = vcmp.le.f32.partialorder %v1648, %v1694
      %vm1729 = vcmp.le.f32.partialorder %v1649, %v1697
      %vm1730 = vcmp.le.f32.partialorder %v1650, %v1697
      %vm1731 = vcmp.le.f32.partialorder %v1651, %v1700
      %vm1732 = vcmp.le.f32.partialorder %v1652, %v1700
      %v1733 = vsel %vm1701, %v883, 3e+38
      %v1734 = vsel %vm1702, %v884, 3e+38
      %v1735 = vsel %vm1703, %v883, 3e+38
      %v1736 = vsel %vm1704, %v884, 3e+38
      %v1737 = vsel %vm1705, %v883, 3e+38
      %v1738 = vsel %vm1706, %v884, 3e+38
      %v1739 = vsel %vm1707, %v883, 3e+38
      %v1740 = vsel %vm1708, %v884, 3e+38
      %v1741 = vsel %vm1709, %v883, 3e+38
      %v1742 = vsel %vm1710, %v884, 3e+38
      %v1743 = vsel %vm1711, %v883, 3e+38
      %v1744 = vsel %vm1712, %v884, 3e+38
      %v1745 = vsel %vm1713, %v883, 3e+38
      %v1746 = vsel %vm1714, %v884, 3e+38
      %v1747 = vsel %vm1715, %v883, 3e+38
      %v1748 = vsel %vm1716, %v884, 3e+38
      %v1749 = vsel %vm1717, %v883, 3e+38
      %v1750 = vsel %vm1718, %v884, 3e+38
      %v1751 = vsel %vm1719, %v883, 3e+38
      %v1752 = vsel %vm1720, %v884, 3e+38
      %v1753 = vsel %vm1721, %v883, 3e+38
      %v1754 = vsel %vm1722, %v884, 3e+38
      %v1755 = vsel %vm1723, %v883, 3e+38
      %v1756 = vsel %vm1724, %v884, 3e+38
      %v1757 = vsel %vm1725, %v883, 3e+38
      %v1758 = vsel %vm1726, %v884, 3e+38
      %v1759 = vsel %vm1727, %v883, 3e+38
      %v1760 = vsel %vm1728, %v884, 3e+38
      %v1761 = vsel %vm1729, %v883, 3e+38
      %v1762 = vsel %vm1730, %v884, 3e+38
      %v1763 = vsel %vm1731, %v883, 3e+38
      %v1764 = vsel %vm1732, %v884, 3e+38
      %v1765 = vmin.f32 %v1733, %v1734
      %1766 = vmin.xlane.f32.xlu0 %v1765
      %v1767 = vpop.xlane.xlu0 %1766
      %v1768 = vmin.f32 %v1735, %v1736
      %1769 = vmin.xlane.f32.xlu0 %v1768
      %v1770 = vpop.xlane.xlu0 %1769
      %v1771 = vmin.f32 %v1737, %v1738
      %1772 = vmin.xlane.f32.xlu0 %v1771
      %v1773 = vpop.xlane.xlu0 %1772
      %v1774 = vmin.f32 %v1739, %v1740
      %1775 = vmin.xlane.f32.xlu0 %v1774
      %v1776 = vpop.xlane.xlu0 %1775
      %v1777 = vmin.f32 %v1741, %v1742
      %1778 = vmin.xlane.f32.xlu0 %v1777
      %v1779 = vpop.xlane.xlu0 %1778
      %v1780 = vmin.f32 %v1743, %v1744
      %1781 = vmin.xlane.f32.xlu0 %v1780
      %v1782 = vpop.xlane.xlu0 %1781
      %v1783 = vmin.f32 %v1745, %v1746
      %1784 = vmin.xlane.f32.xlu0 %v1783
      %v1785 = vpop.xlane.xlu0 %1784
      %v1786 = vmin.f32 %v1747, %v1748
      %1787 = vmin.xlane.f32.xlu0 %v1786
      %v1788 = vpop.xlane.xlu0 %1787
      %v1789 = vmin.f32 %v1749, %v1750
      %1790 = vmin.xlane.f32.xlu0 %v1789
      %v1791 = vpop.xlane.xlu0 %1790
      %v1792 = vmin.f32 %v1751, %v1752
      %1793 = vmin.xlane.f32.xlu0 %v1792
      %v1794 = vpop.xlane.xlu0 %1793
      %v1795 = vmin.f32 %v1753, %v1754
      %1796 = vmin.xlane.f32.xlu0 %v1795
      %v1797 = vpop.xlane.xlu0 %1796
      %v1798 = vmin.f32 %v1755, %v1756
      %1799 = vmin.xlane.f32.xlu0 %v1798
      %v1800 = vpop.xlane.xlu0 %1799
      %v1801 = vmin.f32 %v1757, %v1758
      %1802 = vmin.xlane.f32.xlu0 %v1801
      %v1803 = vpop.xlane.xlu0 %1802
      %v1804 = vmin.f32 %v1759, %v1760
      %1805 = vmin.xlane.f32.xlu0 %v1804
      %v1806 = vpop.xlane.xlu0 %1805
      %v1807 = vmin.f32 %v1761, %v1762
      %1808 = vmin.xlane.f32.xlu0 %v1807
      %v1809 = vpop.xlane.xlu0 %1808
      %v1810 = vmin.f32 %v1763, %v1764
      %1811 = vmin.xlane.f32.xlu0 %v1810
      %v1812 = vpop.xlane.xlu0 %1811
      %vm1813 = vcmp.eq.f32.partialorder %v883, %v1767
      %vm1814 = vcmp.eq.f32.partialorder %v884, %v1767
      %vm1815 = vcmp.eq.f32.partialorder %v883, %v1770
      %vm1816 = vcmp.eq.f32.partialorder %v884, %v1770
      %vm1817 = vcmp.eq.f32.partialorder %v883, %v1773
      %vm1818 = vcmp.eq.f32.partialorder %v884, %v1773
      %vm1819 = vcmp.eq.f32.partialorder %v883, %v1776
      %vm1820 = vcmp.eq.f32.partialorder %v884, %v1776
      %vm1821 = vcmp.eq.f32.partialorder %v883, %v1779
      %vm1822 = vcmp.eq.f32.partialorder %v884, %v1779
      %vm1823 = vcmp.eq.f32.partialorder %v883, %v1782
      %vm1824 = vcmp.eq.f32.partialorder %v884, %v1782
      %vm1825 = vcmp.eq.f32.partialorder %v883, %v1785
      %vm1826 = vcmp.eq.f32.partialorder %v884, %v1785
      %vm1827 = vcmp.eq.f32.partialorder %v883, %v1788
      %vm1828 = vcmp.eq.f32.partialorder %v884, %v1788
      %vm1829 = vcmp.eq.f32.partialorder %v883, %v1791
      %vm1830 = vcmp.eq.f32.partialorder %v884, %v1791
      %vm1831 = vcmp.eq.f32.partialorder %v883, %v1794
      %vm1832 = vcmp.eq.f32.partialorder %v884, %v1794
      %vm1833 = vcmp.eq.f32.partialorder %v883, %v1797
      %vm1834 = vcmp.eq.f32.partialorder %v884, %v1797
      %vm1835 = vcmp.eq.f32.partialorder %v883, %v1800
      %vm1836 = vcmp.eq.f32.partialorder %v884, %v1800
      %vm1837 = vcmp.eq.f32.partialorder %v883, %v1803
      %vm1838 = vcmp.eq.f32.partialorder %v884, %v1803
      %vm1839 = vcmp.eq.f32.partialorder %v883, %v1806
      %vm1840 = vcmp.eq.f32.partialorder %v884, %v1806
      %vm1841 = vcmp.eq.f32.partialorder %v883, %v1809
      %vm1842 = vcmp.eq.f32.partialorder %v884, %v1809
      %vm1843 = vcmp.eq.f32.partialorder %v883, %v1812
      %vm1844 = vcmp.eq.f32.partialorder %v884, %v1812
      %v1845 = vsel %vm1813, 1.0, %v1589
      %v1846 = vsel %vm1814, 1.0, %v1590
      %v1847 = vsel %vm1815, 1.0, %v1591
      %v1848 = vsel %vm1816, 1.0, %v1592
      %v1849 = vsel %vm1817, 1.0, %v1593
      %v1850 = vsel %vm1818, 1.0, %v1594
      %v1851 = vsel %vm1819, 1.0, %v1595
      %v1852 = vsel %vm1820, 1.0, %v1596
      %v1853 = vsel %vm1821, 1.0, %v1597
      %v1854 = vsel %vm1822, 1.0, %v1598
      %v1855 = vsel %vm1823, 1.0, %v1599
      %v1856 = vsel %vm1824, 1.0, %v1600
      %v1857 = vsel %vm1825, 1.0, %v1601
      %v1858 = vsel %vm1826, 1.0, %v1602
      %v1859 = vsel %vm1827, 1.0, %v1603
      %v1860 = vsel %vm1828, 1.0, %v1604
      %v1861 = vsel %vm1829, 1.0, %v1605
      %v1862 = vsel %vm1830, 1.0, %v1606
      %v1863 = vsel %vm1831, 1.0, %v1607
      %v1864 = vsel %vm1832, 1.0, %v1608
      %v1865 = vsel %vm1833, 1.0, %v1609
      %v1866 = vsel %vm1834, 1.0, %v1610
      %v1867 = vsel %vm1835, 1.0, %v1611
      %v1868 = vsel %vm1836, 1.0, %v1612
      %v1869 = vsel %vm1837, 1.0, %v1613
      %v1870 = vsel %vm1838, 1.0, %v1614
      %v1871 = vsel %vm1839, 1.0, %v1615
      %v1872 = vsel %vm1840, 1.0, %v1616
      %v1873 = vsel %vm1841, 1.0, %v1617
      %v1874 = vsel %vm1842, 1.0, %v1618
      %v1875 = vsel %vm1843, 1.0, %v1619
      %v1876 = vsel %vm1844, 1.0, %v1620
      %v1877 = vsel %vm1813, 3e+38, %v1621
      %v1878 = vsel %vm1814, 3e+38, %v1622
      %v1879 = vsel %vm1815, 3e+38, %v1623
      %v1880 = vsel %vm1816, 3e+38, %v1624
      %v1881 = vsel %vm1817, 3e+38, %v1625
      %v1882 = vsel %vm1818, 3e+38, %v1626
      %v1883 = vsel %vm1819, 3e+38, %v1627
      %v1884 = vsel %vm1820, 3e+38, %v1628
      %v1885 = vsel %vm1821, 3e+38, %v1629
      %v1886 = vsel %vm1822, 3e+38, %v1630
      %v1887 = vsel %vm1823, 3e+38, %v1631
      %v1888 = vsel %vm1824, 3e+38, %v1632
      %v1889 = vsel %vm1825, 3e+38, %v1633
      %v1890 = vsel %vm1826, 3e+38, %v1634
      %v1891 = vsel %vm1827, 3e+38, %v1635
      %v1892 = vsel %vm1828, 3e+38, %v1636
      %v1893 = vsel %vm1829, 3e+38, %v1637
      %v1894 = vsel %vm1830, 3e+38, %v1638
      %v1895 = vsel %vm1831, 3e+38, %v1639
      %v1896 = vsel %vm1832, 3e+38, %v1640
      %v1897 = vsel %vm1833, 3e+38, %v1641
      %v1898 = vsel %vm1834, 3e+38, %v1642
      %v1899 = vsel %vm1835, 3e+38, %v1643
      %v1900 = vsel %vm1836, 3e+38, %v1644
      %v1901 = vsel %vm1837, 3e+38, %v1645
      %v1902 = vsel %vm1838, 3e+38, %v1646
      %v1903 = vsel %vm1839, 3e+38, %v1647
      %v1904 = vsel %vm1840, 3e+38, %v1648
      %v1905 = vsel %vm1841, 3e+38, %v1649
      %v1906 = vsel %vm1842, 3e+38, %v1650
      %v1907 = vsel %vm1843, 3e+38, %v1651
      %v1908 = vsel %vm1844, 3e+38, %v1652
      %v1909 = vmin.f32 %v1877, %v1878
      %1910 = vmin.xlane.f32.xlu0 %v1909
      %v1911 = vpop.xlane.xlu0 %1910
      %v1912 = vmin.f32 %v1879, %v1880
      %1913 = vmin.xlane.f32.xlu0 %v1912
      %v1914 = vpop.xlane.xlu0 %1913
      %v1915 = vmin.f32 %v1881, %v1882
      %1916 = vmin.xlane.f32.xlu0 %v1915
      %v1917 = vpop.xlane.xlu0 %1916
      %v1918 = vmin.f32 %v1883, %v1884
      %1919 = vmin.xlane.f32.xlu0 %v1918
      %v1920 = vpop.xlane.xlu0 %1919
      %v1921 = vmin.f32 %v1885, %v1886
      %1922 = vmin.xlane.f32.xlu0 %v1921
      %v1923 = vpop.xlane.xlu0 %1922
      %v1924 = vmin.f32 %v1887, %v1888
      %1925 = vmin.xlane.f32.xlu0 %v1924
      %v1926 = vpop.xlane.xlu0 %1925
      %v1927 = vmin.f32 %v1889, %v1890
      %1928 = vmin.xlane.f32.xlu0 %v1927
      %v1929 = vpop.xlane.xlu0 %1928
      %v1930 = vmin.f32 %v1891, %v1892
      %1931 = vmin.xlane.f32.xlu0 %v1930
      %v1932 = vpop.xlane.xlu0 %1931
      %v1933 = vmin.f32 %v1893, %v1894
      %1934 = vmin.xlane.f32.xlu0 %v1933
      %v1935 = vpop.xlane.xlu0 %1934
      %v1936 = vmin.f32 %v1895, %v1896
      %1937 = vmin.xlane.f32.xlu0 %v1936
      %v1938 = vpop.xlane.xlu0 %1937
      %v1939 = vmin.f32 %v1897, %v1898
      %1940 = vmin.xlane.f32.xlu0 %v1939
      %v1941 = vpop.xlane.xlu0 %1940
      %v1942 = vmin.f32 %v1899, %v1900
      %1943 = vmin.xlane.f32.xlu0 %v1942
      %v1944 = vpop.xlane.xlu0 %1943
      %v1945 = vmin.f32 %v1901, %v1902
      %1946 = vmin.xlane.f32.xlu0 %v1945
      %v1947 = vpop.xlane.xlu0 %1946
      %v1948 = vmin.f32 %v1903, %v1904
      %1949 = vmin.xlane.f32.xlu0 %v1948
      %v1950 = vpop.xlane.xlu0 %1949
      %v1951 = vmin.f32 %v1905, %v1906
      %1952 = vmin.xlane.f32.xlu0 %v1951
      %v1953 = vpop.xlane.xlu0 %1952
      %v1954 = vmin.f32 %v1907, %v1908
      %1955 = vmin.xlane.f32.xlu0 %v1954
      %v1956 = vpop.xlane.xlu0 %1955
      %vm1957 = vcmp.le.f32.partialorder %v1877, %v1911
      %vm1958 = vcmp.le.f32.partialorder %v1878, %v1911
      %vm1959 = vcmp.le.f32.partialorder %v1879, %v1914
      %vm1960 = vcmp.le.f32.partialorder %v1880, %v1914
      %vm1961 = vcmp.le.f32.partialorder %v1881, %v1917
      %vm1962 = vcmp.le.f32.partialorder %v1882, %v1917
      %vm1963 = vcmp.le.f32.partialorder %v1883, %v1920
      %vm1964 = vcmp.le.f32.partialorder %v1884, %v1920
      %vm1965 = vcmp.le.f32.partialorder %v1885, %v1923
      %vm1966 = vcmp.le.f32.partialorder %v1886, %v1923
      %vm1967 = vcmp.le.f32.partialorder %v1887, %v1926
      %vm1968 = vcmp.le.f32.partialorder %v1888, %v1926
      %vm1969 = vcmp.le.f32.partialorder %v1889, %v1929
      %vm1970 = vcmp.le.f32.partialorder %v1890, %v1929
      %vm1971 = vcmp.le.f32.partialorder %v1891, %v1932
      %vm1972 = vcmp.le.f32.partialorder %v1892, %v1932
      %vm1973 = vcmp.le.f32.partialorder %v1893, %v1935
      %vm1974 = vcmp.le.f32.partialorder %v1894, %v1935
      %vm1975 = vcmp.le.f32.partialorder %v1895, %v1938
      %vm1976 = vcmp.le.f32.partialorder %v1896, %v1938
      %vm1977 = vcmp.le.f32.partialorder %v1897, %v1941
      %vm1978 = vcmp.le.f32.partialorder %v1898, %v1941
      %vm1979 = vcmp.le.f32.partialorder %v1899, %v1944
      %vm1980 = vcmp.le.f32.partialorder %v1900, %v1944
      %vm1981 = vcmp.le.f32.partialorder %v1901, %v1947
      %vm1982 = vcmp.le.f32.partialorder %v1902, %v1947
      %vm1983 = vcmp.le.f32.partialorder %v1903, %v1950
      %vm1984 = vcmp.le.f32.partialorder %v1904, %v1950
      %vm1985 = vcmp.le.f32.partialorder %v1905, %v1953
      %vm1986 = vcmp.le.f32.partialorder %v1906, %v1953
      %vm1987 = vcmp.le.f32.partialorder %v1907, %v1956
      %vm1988 = vcmp.le.f32.partialorder %v1908, %v1956
      %v1989 = vsel %vm1957, %v883, 3e+38
      %v1990 = vsel %vm1958, %v884, 3e+38
      %v1991 = vsel %vm1959, %v883, 3e+38
      %v1992 = vsel %vm1960, %v884, 3e+38
      %v1993 = vsel %vm1961, %v883, 3e+38
      %v1994 = vsel %vm1962, %v884, 3e+38
      %v1995 = vsel %vm1963, %v883, 3e+38
      %v1996 = vsel %vm1964, %v884, 3e+38
      %v1997 = vsel %vm1965, %v883, 3e+38
      %v1998 = vsel %vm1966, %v884, 3e+38
      %v1999 = vsel %vm1967, %v883, 3e+38
      %v2000 = vsel %vm1968, %v884, 3e+38
      %v2001 = vsel %vm1969, %v883, 3e+38
      %v2002 = vsel %vm1970, %v884, 3e+38
      %v2003 = vsel %vm1971, %v883, 3e+38
      %v2004 = vsel %vm1972, %v884, 3e+38
      %v2005 = vsel %vm1973, %v883, 3e+38
      %v2006 = vsel %vm1974, %v884, 3e+38
      %v2007 = vsel %vm1975, %v883, 3e+38
      %v2008 = vsel %vm1976, %v884, 3e+38
      %v2009 = vsel %vm1977, %v883, 3e+38
      %v2010 = vsel %vm1978, %v884, 3e+38
      %v2011 = vsel %vm1979, %v883, 3e+38
      %v2012 = vsel %vm1980, %v884, 3e+38
      %v2013 = vsel %vm1981, %v883, 3e+38
      %v2014 = vsel %vm1982, %v884, 3e+38
      %v2015 = vsel %vm1983, %v883, 3e+38
      %v2016 = vsel %vm1984, %v884, 3e+38
      %v2017 = vsel %vm1985, %v883, 3e+38
      %v2018 = vsel %vm1986, %v884, 3e+38
      %v2019 = vsel %vm1987, %v883, 3e+38
      %v2020 = vsel %vm1988, %v884, 3e+38
      %v2021 = vmin.f32 %v1989, %v1990
      %2022 = vmin.xlane.f32.xlu0 %v2021
      %v2023 = vpop.xlane.xlu0 %2022
      %v2024 = vmin.f32 %v1991, %v1992
      %2025 = vmin.xlane.f32.xlu0 %v2024
      %v2026 = vpop.xlane.xlu0 %2025
      %v2027 = vmin.f32 %v1993, %v1994
      %2028 = vmin.xlane.f32.xlu0 %v2027
      %v2029 = vpop.xlane.xlu0 %2028
      %v2030 = vmin.f32 %v1995, %v1996
      %2031 = vmin.xlane.f32.xlu0 %v2030
      %v2032 = vpop.xlane.xlu0 %2031
      %v2033 = vmin.f32 %v1997, %v1998
      %2034 = vmin.xlane.f32.xlu0 %v2033
      %v2035 = vpop.xlane.xlu0 %2034
      %v2036 = vmin.f32 %v1999, %v2000
      %2037 = vmin.xlane.f32.xlu0 %v2036
      %v2038 = vpop.xlane.xlu0 %2037
      %v2039 = vmin.f32 %v2001, %v2002
      %2040 = vmin.xlane.f32.xlu0 %v2039
      %v2041 = vpop.xlane.xlu0 %2040
      %v2042 = vmin.f32 %v2003, %v2004
      %2043 = vmin.xlane.f32.xlu0 %v2042
      %v2044 = vpop.xlane.xlu0 %2043
      %v2045 = vmin.f32 %v2005, %v2006
      %2046 = vmin.xlane.f32.xlu0 %v2045
      %v2047 = vpop.xlane.xlu0 %2046
      %v2048 = vmin.f32 %v2007, %v2008
      %2049 = vmin.xlane.f32.xlu0 %v2048
      %v2050 = vpop.xlane.xlu0 %2049
      %v2051 = vmin.f32 %v2009, %v2010
      %2052 = vmin.xlane.f32.xlu0 %v2051
      %v2053 = vpop.xlane.xlu0 %2052
      %v2054 = vmin.f32 %v2011, %v2012
      %2055 = vmin.xlane.f32.xlu0 %v2054
      %v2056 = vpop.xlane.xlu0 %2055
      %v2057 = vmin.f32 %v2013, %v2014
      %2058 = vmin.xlane.f32.xlu0 %v2057
      %v2059 = vpop.xlane.xlu0 %2058
      %v2060 = vmin.f32 %v2015, %v2016
      %2061 = vmin.xlane.f32.xlu0 %v2060
      %v2062 = vpop.xlane.xlu0 %2061
      %v2063 = vmin.f32 %v2017, %v2018
      %2064 = vmin.xlane.f32.xlu0 %v2063
      %v2065 = vpop.xlane.xlu0 %2064
      %v2066 = vmin.f32 %v2019, %v2020
      %2067 = vmin.xlane.f32.xlu0 %v2066
      %v2068 = vpop.xlane.xlu0 %2067
      %vm2069 = vcmp.eq.f32.partialorder %v883, %v2023
      %vm2070 = vcmp.eq.f32.partialorder %v884, %v2023
      %vm2071 = vcmp.eq.f32.partialorder %v883, %v2026
      %vm2072 = vcmp.eq.f32.partialorder %v884, %v2026
      %vm2073 = vcmp.eq.f32.partialorder %v883, %v2029
      %vm2074 = vcmp.eq.f32.partialorder %v884, %v2029
      %vm2075 = vcmp.eq.f32.partialorder %v883, %v2032
      %vm2076 = vcmp.eq.f32.partialorder %v884, %v2032
      %vm2077 = vcmp.eq.f32.partialorder %v883, %v2035
      %vm2078 = vcmp.eq.f32.partialorder %v884, %v2035
      %vm2079 = vcmp.eq.f32.partialorder %v883, %v2038
      %vm2080 = vcmp.eq.f32.partialorder %v884, %v2038
      %vm2081 = vcmp.eq.f32.partialorder %v883, %v2041
      %vm2082 = vcmp.eq.f32.partialorder %v884, %v2041
      %vm2083 = vcmp.eq.f32.partialorder %v883, %v2044
      %vm2084 = vcmp.eq.f32.partialorder %v884, %v2044
      %vm2085 = vcmp.eq.f32.partialorder %v883, %v2047
      %vm2086 = vcmp.eq.f32.partialorder %v884, %v2047
      %vm2087 = vcmp.eq.f32.partialorder %v883, %v2050
      %vm2088 = vcmp.eq.f32.partialorder %v884, %v2050
      %vm2089 = vcmp.eq.f32.partialorder %v883, %v2053
      %vm2090 = vcmp.eq.f32.partialorder %v884, %v2053
      %vm2091 = vcmp.eq.f32.partialorder %v883, %v2056
      %vm2092 = vcmp.eq.f32.partialorder %v884, %v2056
      %vm2093 = vcmp.eq.f32.partialorder %v883, %v2059
      %vm2094 = vcmp.eq.f32.partialorder %v884, %v2059
      %vm2095 = vcmp.eq.f32.partialorder %v883, %v2062
      %vm2096 = vcmp.eq.f32.partialorder %v884, %v2062
      %vm2097 = vcmp.eq.f32.partialorder %v883, %v2065
      %vm2098 = vcmp.eq.f32.partialorder %v884, %v2065
      %vm2099 = vcmp.eq.f32.partialorder %v883, %v2068
      %vm2100 = vcmp.eq.f32.partialorder %v884, %v2068
      %v2101 = vsel %vm2069, 1.0, %v1845
      %v2102 = vsel %vm2070, 1.0, %v1846
      %v2103 = vsel %vm2071, 1.0, %v1847
      %v2104 = vsel %vm2072, 1.0, %v1848
      %v2105 = vsel %vm2073, 1.0, %v1849
      %v2106 = vsel %vm2074, 1.0, %v1850
      %v2107 = vsel %vm2075, 1.0, %v1851
      %v2108 = vsel %vm2076, 1.0, %v1852
      %v2109 = vsel %vm2077, 1.0, %v1853
      %v2110 = vsel %vm2078, 1.0, %v1854
      %v2111 = vsel %vm2079, 1.0, %v1855
      %v2112 = vsel %vm2080, 1.0, %v1856
      %v2113 = vsel %vm2081, 1.0, %v1857
      %v2114 = vsel %vm2082, 1.0, %v1858
      %v2115 = vsel %vm2083, 1.0, %v1859
      %v2116 = vsel %vm2084, 1.0, %v1860
      %v2117 = vsel %vm2085, 1.0, %v1861
      %v2118 = vsel %vm2086, 1.0, %v1862
      %v2119 = vsel %vm2087, 1.0, %v1863
      %v2120 = vsel %vm2088, 1.0, %v1864
      %v2121 = vsel %vm2089, 1.0, %v1865
      %v2122 = vsel %vm2090, 1.0, %v1866
      %v2123 = vsel %vm2091, 1.0, %v1867
      %v2124 = vsel %vm2092, 1.0, %v1868
      %v2125 = vsel %vm2093, 1.0, %v1869
      %v2126 = vsel %vm2094, 1.0, %v1870
      %v2127 = vsel %vm2095, 1.0, %v1871
      %v2128 = vsel %vm2096, 1.0, %v1872
      %v2129 = vsel %vm2097, 1.0, %v1873
      %v2130 = vsel %vm2098, 1.0, %v1874
      %v2131 = vsel %vm2099, 1.0, %v1875
      %v2132 = vsel %vm2100, 1.0, %v1876
      %v2133 = vsel %vm2069, 3e+38, %v1877
      %v2134 = vsel %vm2070, 3e+38, %v1878
      %v2135 = vsel %vm2071, 3e+38, %v1879
      %v2136 = vsel %vm2072, 3e+38, %v1880
      %v2137 = vsel %vm2073, 3e+38, %v1881
      %v2138 = vsel %vm2074, 3e+38, %v1882
      %v2139 = vsel %vm2075, 3e+38, %v1883
      %v2140 = vsel %vm2076, 3e+38, %v1884
      %v2141 = vsel %vm2077, 3e+38, %v1885
      %v2142 = vsel %vm2078, 3e+38, %v1886
      %v2143 = vsel %vm2079, 3e+38, %v1887
      %v2144 = vsel %vm2080, 3e+38, %v1888
      %v2145 = vsel %vm2081, 3e+38, %v1889
      %v2146 = vsel %vm2082, 3e+38, %v1890
      %v2147 = vsel %vm2083, 3e+38, %v1891
      %v2148 = vsel %vm2084, 3e+38, %v1892
      %v2149 = vsel %vm2085, 3e+38, %v1893
      %v2150 = vsel %vm2086, 3e+38, %v1894
      %v2151 = vsel %vm2087, 3e+38, %v1895
      %v2152 = vsel %vm2088, 3e+38, %v1896
      %v2153 = vsel %vm2089, 3e+38, %v1897
      %v2154 = vsel %vm2090, 3e+38, %v1898
      %v2155 = vsel %vm2091, 3e+38, %v1899
      %v2156 = vsel %vm2092, 3e+38, %v1900
      %v2157 = vsel %vm2093, 3e+38, %v1901
      %v2158 = vsel %vm2094, 3e+38, %v1902
      %v2159 = vsel %vm2095, 3e+38, %v1903
      %v2160 = vsel %vm2096, 3e+38, %v1904
      %v2161 = vsel %vm2097, 3e+38, %v1905
      %v2162 = vsel %vm2098, 3e+38, %v1906
      %v2163 = vsel %vm2099, 3e+38, %v1907
      %v2164 = vsel %vm2100, 3e+38, %v1908
      %v2165 = vmin.f32 %v2133, %v2134
      %2166 = vmin.xlane.f32.xlu0 %v2165
      %v2167 = vpop.xlane.xlu0 %2166
      %v2168 = vmin.f32 %v2135, %v2136
      %2169 = vmin.xlane.f32.xlu0 %v2168
      %v2170 = vpop.xlane.xlu0 %2169
      %v2171 = vmin.f32 %v2137, %v2138
      %2172 = vmin.xlane.f32.xlu0 %v2171
      %v2173 = vpop.xlane.xlu0 %2172
      %v2174 = vmin.f32 %v2139, %v2140
      %2175 = vmin.xlane.f32.xlu0 %v2174
      %v2176 = vpop.xlane.xlu0 %2175
      %v2177 = vmin.f32 %v2141, %v2142
      %2178 = vmin.xlane.f32.xlu0 %v2177
      %v2179 = vpop.xlane.xlu0 %2178
      %v2180 = vmin.f32 %v2143, %v2144
      %2181 = vmin.xlane.f32.xlu0 %v2180
      %v2182 = vpop.xlane.xlu0 %2181
      %v2183 = vmin.f32 %v2145, %v2146
      %2184 = vmin.xlane.f32.xlu0 %v2183
      %v2185 = vpop.xlane.xlu0 %2184
      %v2186 = vmin.f32 %v2147, %v2148
      %2187 = vmin.xlane.f32.xlu0 %v2186
      %v2188 = vpop.xlane.xlu0 %2187
      %v2189 = vmin.f32 %v2149, %v2150
      %2190 = vmin.xlane.f32.xlu0 %v2189
      %v2191 = vpop.xlane.xlu0 %2190
      %v2192 = vmin.f32 %v2151, %v2152
      %2193 = vmin.xlane.f32.xlu0 %v2192
      %v2194 = vpop.xlane.xlu0 %2193
      %v2195 = vmin.f32 %v2153, %v2154
      %2196 = vmin.xlane.f32.xlu0 %v2195
      %v2197 = vpop.xlane.xlu0 %2196
      %v2198 = vmin.f32 %v2155, %v2156
      %2199 = vmin.xlane.f32.xlu0 %v2198
      %v2200 = vpop.xlane.xlu0 %2199
      %v2201 = vmin.f32 %v2157, %v2158
      %2202 = vmin.xlane.f32.xlu0 %v2201
      %v2203 = vpop.xlane.xlu0 %2202
      %v2204 = vmin.f32 %v2159, %v2160
      %2205 = vmin.xlane.f32.xlu0 %v2204
      %v2206 = vpop.xlane.xlu0 %2205
      %v2207 = vmin.f32 %v2161, %v2162
      %2208 = vmin.xlane.f32.xlu0 %v2207
      %v2209 = vpop.xlane.xlu0 %2208
      %v2210 = vmin.f32 %v2163, %v2164
      %2211 = vmin.xlane.f32.xlu0 %v2210
      %v2212 = vpop.xlane.xlu0 %2211
      %vm2213 = vcmp.le.f32.partialorder %v2133, %v2167
      %vm2214 = vcmp.le.f32.partialorder %v2134, %v2167
      %vm2215 = vcmp.le.f32.partialorder %v2135, %v2170
      %vm2216 = vcmp.le.f32.partialorder %v2136, %v2170
      %vm2217 = vcmp.le.f32.partialorder %v2137, %v2173
      %vm2218 = vcmp.le.f32.partialorder %v2138, %v2173
      %vm2219 = vcmp.le.f32.partialorder %v2139, %v2176
      %vm2220 = vcmp.le.f32.partialorder %v2140, %v2176
      %vm2221 = vcmp.le.f32.partialorder %v2141, %v2179
      %vm2222 = vcmp.le.f32.partialorder %v2142, %v2179
      %vm2223 = vcmp.le.f32.partialorder %v2143, %v2182
      %vm2224 = vcmp.le.f32.partialorder %v2144, %v2182
      %vm2225 = vcmp.le.f32.partialorder %v2145, %v2185
      %vm2226 = vcmp.le.f32.partialorder %v2146, %v2185
      %vm2227 = vcmp.le.f32.partialorder %v2147, %v2188
      %vm2228 = vcmp.le.f32.partialorder %v2148, %v2188
      %vm2229 = vcmp.le.f32.partialorder %v2149, %v2191
      %vm2230 = vcmp.le.f32.partialorder %v2150, %v2191
      %vm2231 = vcmp.le.f32.partialorder %v2151, %v2194
      %vm2232 = vcmp.le.f32.partialorder %v2152, %v2194
      %vm2233 = vcmp.le.f32.partialorder %v2153, %v2197
      %vm2234 = vcmp.le.f32.partialorder %v2154, %v2197
      %vm2235 = vcmp.le.f32.partialorder %v2155, %v2200
      %vm2236 = vcmp.le.f32.partialorder %v2156, %v2200
      %vm2237 = vcmp.le.f32.partialorder %v2157, %v2203
      %vm2238 = vcmp.le.f32.partialorder %v2158, %v2203
      %vm2239 = vcmp.le.f32.partialorder %v2159, %v2206
      %vm2240 = vcmp.le.f32.partialorder %v2160, %v2206
      %vm2241 = vcmp.le.f32.partialorder %v2161, %v2209
      %vm2242 = vcmp.le.f32.partialorder %v2162, %v2209
      %vm2243 = vcmp.le.f32.partialorder %v2163, %v2212
      %vm2244 = vcmp.le.f32.partialorder %v2164, %v2212
      %v2245 = vsel %vm2213, %v883, 3e+38
      %v2246 = vsel %vm2214, %v884, 3e+38
      %v2247 = vsel %vm2215, %v883, 3e+38
      %v2248 = vsel %vm2216, %v884, 3e+38
      %v2249 = vsel %vm2217, %v883, 3e+38
      %v2250 = vsel %vm2218, %v884, 3e+38
      %v2251 = vsel %vm2219, %v883, 3e+38
      %v2252 = vsel %vm2220, %v884, 3e+38
      %v2253 = vsel %vm2221, %v883, 3e+38
      %v2254 = vsel %vm2222, %v884, 3e+38
      %v2255 = vsel %vm2223, %v883, 3e+38
      %v2256 = vsel %vm2224, %v884, 3e+38
      %v2257 = vsel %vm2225, %v883, 3e+38
      %v2258 = vsel %vm2226, %v884, 3e+38
      %v2259 = vsel %vm2227, %v883, 3e+38
      %v2260 = vsel %vm2228, %v884, 3e+38
      %v2261 = vsel %vm2229, %v883, 3e+38
      %v2262 = vsel %vm2230, %v884, 3e+38
      %v2263 = vsel %vm2231, %v883, 3e+38
      %v2264 = vsel %vm2232, %v884, 3e+38
      %v2265 = vsel %vm2233, %v883, 3e+38
      %v2266 = vsel %vm2234, %v884, 3e+38
      %v2267 = vsel %vm2235, %v883, 3e+38
      %v2268 = vsel %vm2236, %v884, 3e+38
      %v2269 = vsel %vm2237, %v883, 3e+38
      %v2270 = vsel %vm2238, %v884, 3e+38
      %v2271 = vsel %vm2239, %v883, 3e+38
      %v2272 = vsel %vm2240, %v884, 3e+38
      %v2273 = vsel %vm2241, %v883, 3e+38
      %v2274 = vsel %vm2242, %v884, 3e+38
      %v2275 = vsel %vm2243, %v883, 3e+38
      %v2276 = vsel %vm2244, %v884, 3e+38
      %v2277 = vmin.f32 %v2245, %v2246
      %2278 = vmin.xlane.f32.xlu0 %v2277
      %v2279 = vpop.xlane.xlu0 %2278
      %v2280 = vmin.f32 %v2247, %v2248
      %2281 = vmin.xlane.f32.xlu0 %v2280
      %v2282 = vpop.xlane.xlu0 %2281
      %v2283 = vmin.f32 %v2249, %v2250
      %2284 = vmin.xlane.f32.xlu0 %v2283
      %v2285 = vpop.xlane.xlu0 %2284
      %v2286 = vmin.f32 %v2251, %v2252
      %2287 = vmin.xlane.f32.xlu0 %v2286
      %v2288 = vpop.xlane.xlu0 %2287
      %v2289 = vmin.f32 %v2253, %v2254
      %2290 = vmin.xlane.f32.xlu0 %v2289
      %v2291 = vpop.xlane.xlu0 %2290
      %v2292 = vmin.f32 %v2255, %v2256
      %2293 = vmin.xlane.f32.xlu0 %v2292
      %v2294 = vpop.xlane.xlu0 %2293
      %v2295 = vmin.f32 %v2257, %v2258
      %2296 = vmin.xlane.f32.xlu0 %v2295
      %v2297 = vpop.xlane.xlu0 %2296
      %v2298 = vmin.f32 %v2259, %v2260
      %2299 = vmin.xlane.f32.xlu0 %v2298
      %v2300 = vpop.xlane.xlu0 %2299
      %v2301 = vmin.f32 %v2261, %v2262
      %2302 = vmin.xlane.f32.xlu0 %v2301
      %v2303 = vpop.xlane.xlu0 %2302
      %v2304 = vmin.f32 %v2263, %v2264
      %2305 = vmin.xlane.f32.xlu0 %v2304
      %v2306 = vpop.xlane.xlu0 %2305
      %v2307 = vmin.f32 %v2265, %v2266
      %2308 = vmin.xlane.f32.xlu0 %v2307
      %v2309 = vpop.xlane.xlu0 %2308
      %v2310 = vmin.f32 %v2267, %v2268
      %2311 = vmin.xlane.f32.xlu0 %v2310
      %v2312 = vpop.xlane.xlu0 %2311
      %v2313 = vmin.f32 %v2269, %v2270
      %2314 = vmin.xlane.f32.xlu0 %v2313
      %v2315 = vpop.xlane.xlu0 %2314
      %v2316 = vmin.f32 %v2271, %v2272
      %2317 = vmin.xlane.f32.xlu0 %v2316
      %v2318 = vpop.xlane.xlu0 %2317
      %v2319 = vmin.f32 %v2273, %v2274
      %2320 = vmin.xlane.f32.xlu0 %v2319
      %v2321 = vpop.xlane.xlu0 %2320
      %v2322 = vmin.f32 %v2275, %v2276
      %2323 = vmin.xlane.f32.xlu0 %v2322
      %v2324 = vpop.xlane.xlu0 %2323
      %vm2325 = vcmp.eq.f32.partialorder %v883, %v2279
      %vm2326 = vcmp.eq.f32.partialorder %v884, %v2279
      %vm2327 = vcmp.eq.f32.partialorder %v883, %v2282
      %vm2328 = vcmp.eq.f32.partialorder %v884, %v2282
      %vm2329 = vcmp.eq.f32.partialorder %v883, %v2285
      %vm2330 = vcmp.eq.f32.partialorder %v884, %v2285
      %vm2331 = vcmp.eq.f32.partialorder %v883, %v2288
      %vm2332 = vcmp.eq.f32.partialorder %v884, %v2288
      %vm2333 = vcmp.eq.f32.partialorder %v883, %v2291
      %vm2334 = vcmp.eq.f32.partialorder %v884, %v2291
      %vm2335 = vcmp.eq.f32.partialorder %v883, %v2294
      %vm2336 = vcmp.eq.f32.partialorder %v884, %v2294
      %vm2337 = vcmp.eq.f32.partialorder %v883, %v2297
      %vm2338 = vcmp.eq.f32.partialorder %v884, %v2297
      %vm2339 = vcmp.eq.f32.partialorder %v883, %v2300
      %vm2340 = vcmp.eq.f32.partialorder %v884, %v2300
      %vm2341 = vcmp.eq.f32.partialorder %v883, %v2303
      %vm2342 = vcmp.eq.f32.partialorder %v884, %v2303
      %vm2343 = vcmp.eq.f32.partialorder %v883, %v2306
      %vm2344 = vcmp.eq.f32.partialorder %v884, %v2306
      %vm2345 = vcmp.eq.f32.partialorder %v883, %v2309
      %vm2346 = vcmp.eq.f32.partialorder %v884, %v2309
      %vm2347 = vcmp.eq.f32.partialorder %v883, %v2312
      %vm2348 = vcmp.eq.f32.partialorder %v884, %v2312
      %vm2349 = vcmp.eq.f32.partialorder %v883, %v2315
      %vm2350 = vcmp.eq.f32.partialorder %v884, %v2315
      %vm2351 = vcmp.eq.f32.partialorder %v883, %v2318
      %vm2352 = vcmp.eq.f32.partialorder %v884, %v2318
      %vm2353 = vcmp.eq.f32.partialorder %v883, %v2321
      %vm2354 = vcmp.eq.f32.partialorder %v884, %v2321
      %vm2355 = vcmp.eq.f32.partialorder %v883, %v2324
      %vm2356 = vcmp.eq.f32.partialorder %v884, %v2324
      %v2357 = vsel %vm2325, 1.0, %v2101
      %v2358 = vsel %vm2326, 1.0, %v2102
      %v2359 = vsel %vm2327, 1.0, %v2103
      %v2360 = vsel %vm2328, 1.0, %v2104
      %v2361 = vsel %vm2329, 1.0, %v2105
      %v2362 = vsel %vm2330, 1.0, %v2106
      %v2363 = vsel %vm2331, 1.0, %v2107
      %v2364 = vsel %vm2332, 1.0, %v2108
      %v2365 = vsel %vm2333, 1.0, %v2109
      %v2366 = vsel %vm2334, 1.0, %v2110
      %v2367 = vsel %vm2335, 1.0, %v2111
      %v2368 = vsel %vm2336, 1.0, %v2112
      %v2369 = vsel %vm2337, 1.0, %v2113
      %v2370 = vsel %vm2338, 1.0, %v2114
      %v2371 = vsel %vm2339, 1.0, %v2115
      %v2372 = vsel %vm2340, 1.0, %v2116
      %v2373 = vsel %vm2341, 1.0, %v2117
      %v2374 = vsel %vm2342, 1.0, %v2118
      %v2375 = vsel %vm2343, 1.0, %v2119
      %v2376 = vsel %vm2344, 1.0, %v2120
      %v2377 = vsel %vm2345, 1.0, %v2121
      %v2378 = vsel %vm2346, 1.0, %v2122
      %v2379 = vsel %vm2347, 1.0, %v2123
      %v2380 = vsel %vm2348, 1.0, %v2124
      %v2381 = vsel %vm2349, 1.0, %v2125
      %v2382 = vsel %vm2350, 1.0, %v2126
      %v2383 = vsel %vm2351, 1.0, %v2127
      %v2384 = vsel %vm2352, 1.0, %v2128
      %v2385 = vsel %vm2353, 1.0, %v2129
      %v2386 = vsel %vm2354, 1.0, %v2130
      %v2387 = vsel %vm2355, 1.0, %v2131
      %v2388 = vsel %vm2356, 1.0, %v2132
      %v2389 = vsel %vm2325, 3e+38, %v2133
      %v2390 = vsel %vm2326, 3e+38, %v2134
      %v2391 = vsel %vm2327, 3e+38, %v2135
      %v2392 = vsel %vm2328, 3e+38, %v2136
      %v2393 = vsel %vm2329, 3e+38, %v2137
      %v2394 = vsel %vm2330, 3e+38, %v2138
      %v2395 = vsel %vm2331, 3e+38, %v2139
      %v2396 = vsel %vm2332, 3e+38, %v2140
      %v2397 = vsel %vm2333, 3e+38, %v2141
      %v2398 = vsel %vm2334, 3e+38, %v2142
      %v2399 = vsel %vm2335, 3e+38, %v2143
      %v2400 = vsel %vm2336, 3e+38, %v2144
      %v2401 = vsel %vm2337, 3e+38, %v2145
      %v2402 = vsel %vm2338, 3e+38, %v2146
      %v2403 = vsel %vm2339, 3e+38, %v2147
      %v2404 = vsel %vm2340, 3e+38, %v2148
      %v2405 = vsel %vm2341, 3e+38, %v2149
      %v2406 = vsel %vm2342, 3e+38, %v2150
      %v2407 = vsel %vm2343, 3e+38, %v2151
      %v2408 = vsel %vm2344, 3e+38, %v2152
      %v2409 = vsel %vm2345, 3e+38, %v2153
      %v2410 = vsel %vm2346, 3e+38, %v2154
      %v2411 = vsel %vm2347, 3e+38, %v2155
      %v2412 = vsel %vm2348, 3e+38, %v2156
      %v2413 = vsel %vm2349, 3e+38, %v2157
      %v2414 = vsel %vm2350, 3e+38, %v2158
      %v2415 = vsel %vm2351, 3e+38, %v2159
      %v2416 = vsel %vm2352, 3e+38, %v2160
      %v2417 = vsel %vm2353, 3e+38, %v2161
      %v2418 = vsel %vm2354, 3e+38, %v2162
      %v2419 = vsel %vm2355, 3e+38, %v2163
      %v2420 = vsel %vm2356, 3e+38, %v2164
      %v2421 = vmin.f32 %v2389, %v2390
      %2422 = vmin.xlane.f32.xlu0 %v2421
      %v2423 = vpop.xlane.xlu0 %2422
      %v2424 = vmin.f32 %v2391, %v2392
      %2425 = vmin.xlane.f32.xlu0 %v2424
      %v2426 = vpop.xlane.xlu0 %2425
      %v2427 = vmin.f32 %v2393, %v2394
      %2428 = vmin.xlane.f32.xlu0 %v2427
      %v2429 = vpop.xlane.xlu0 %2428
      %v2430 = vmin.f32 %v2395, %v2396
      %2431 = vmin.xlane.f32.xlu0 %v2430
      %v2432 = vpop.xlane.xlu0 %2431
      %v2433 = vmin.f32 %v2397, %v2398
      %2434 = vmin.xlane.f32.xlu0 %v2433
      %v2435 = vpop.xlane.xlu0 %2434
      %v2436 = vmin.f32 %v2399, %v2400
      %2437 = vmin.xlane.f32.xlu0 %v2436
      %v2438 = vpop.xlane.xlu0 %2437
      %v2439 = vmin.f32 %v2401, %v2402
      %2440 = vmin.xlane.f32.xlu0 %v2439
      %v2441 = vpop.xlane.xlu0 %2440
      %v2442 = vmin.f32 %v2403, %v2404
      %2443 = vmin.xlane.f32.xlu0 %v2442
      %v2444 = vpop.xlane.xlu0 %2443
      %v2445 = vmin.f32 %v2405, %v2406
      %2446 = vmin.xlane.f32.xlu0 %v2445
      %v2447 = vpop.xlane.xlu0 %2446
      %v2448 = vmin.f32 %v2407, %v2408
      %2449 = vmin.xlane.f32.xlu0 %v2448
      %v2450 = vpop.xlane.xlu0 %2449
      %v2451 = vmin.f32 %v2409, %v2410
      %2452 = vmin.xlane.f32.xlu0 %v2451
      %v2453 = vpop.xlane.xlu0 %2452
      %v2454 = vmin.f32 %v2411, %v2412
      %2455 = vmin.xlane.f32.xlu0 %v2454
      %v2456 = vpop.xlane.xlu0 %2455
      %v2457 = vmin.f32 %v2413, %v2414
      %2458 = vmin.xlane.f32.xlu0 %v2457
      %v2459 = vpop.xlane.xlu0 %2458
      %v2460 = vmin.f32 %v2415, %v2416
      %2461 = vmin.xlane.f32.xlu0 %v2460
      %v2462 = vpop.xlane.xlu0 %2461
      %v2463 = vmin.f32 %v2417, %v2418
      %2464 = vmin.xlane.f32.xlu0 %v2463
      %v2465 = vpop.xlane.xlu0 %2464
      %v2466 = vmin.f32 %v2419, %v2420
      %2467 = vmin.xlane.f32.xlu0 %v2466
      %v2468 = vpop.xlane.xlu0 %2467
      %vm2469 = vcmp.le.f32.partialorder %v2389, %v2423
      %vm2470 = vcmp.le.f32.partialorder %v2390, %v2423
      %vm2471 = vcmp.le.f32.partialorder %v2391, %v2426
      %vm2472 = vcmp.le.f32.partialorder %v2392, %v2426
      %vm2473 = vcmp.le.f32.partialorder %v2393, %v2429
      %vm2474 = vcmp.le.f32.partialorder %v2394, %v2429
      %vm2475 = vcmp.le.f32.partialorder %v2395, %v2432
      %vm2476 = vcmp.le.f32.partialorder %v2396, %v2432
      %vm2477 = vcmp.le.f32.partialorder %v2397, %v2435
      %vm2478 = vcmp.le.f32.partialorder %v2398, %v2435
      %vm2479 = vcmp.le.f32.partialorder %v2399, %v2438
      %vm2480 = vcmp.le.f32.partialorder %v2400, %v2438
      %vm2481 = vcmp.le.f32.partialorder %v2401, %v2441
      %vm2482 = vcmp.le.f32.partialorder %v2402, %v2441
      %vm2483 = vcmp.le.f32.partialorder %v2403, %v2444
      %vm2484 = vcmp.le.f32.partialorder %v2404, %v2444
      %vm2485 = vcmp.le.f32.partialorder %v2405, %v2447
      %vm2486 = vcmp.le.f32.partialorder %v2406, %v2447
      %vm2487 = vcmp.le.f32.partialorder %v2407, %v2450
      %vm2488 = vcmp.le.f32.partialorder %v2408, %v2450
      %vm2489 = vcmp.le.f32.partialorder %v2409, %v2453
      %vm2490 = vcmp.le.f32.partialorder %v2410, %v2453
      %vm2491 = vcmp.le.f32.partialorder %v2411, %v2456
      %vm2492 = vcmp.le.f32.partialorder %v2412, %v2456
      %vm2493 = vcmp.le.f32.partialorder %v2413, %v2459
      %vm2494 = vcmp.le.f32.partialorder %v2414, %v2459
      %vm2495 = vcmp.le.f32.partialorder %v2415, %v2462
      %vm2496 = vcmp.le.f32.partialorder %v2416, %v2462
      %vm2497 = vcmp.le.f32.partialorder %v2417, %v2465
      %vm2498 = vcmp.le.f32.partialorder %v2418, %v2465
      %vm2499 = vcmp.le.f32.partialorder %v2419, %v2468
      %vm2500 = vcmp.le.f32.partialorder %v2420, %v2468
      %v2501 = vsel %vm2469, %v883, 3e+38
      %v2502 = vsel %vm2470, %v884, 3e+38
      %v2503 = vsel %vm2471, %v883, 3e+38
      %v2504 = vsel %vm2472, %v884, 3e+38
      %v2505 = vsel %vm2473, %v883, 3e+38
      %v2506 = vsel %vm2474, %v884, 3e+38
      %v2507 = vsel %vm2475, %v883, 3e+38
      %v2508 = vsel %vm2476, %v884, 3e+38
      %v2509 = vsel %vm2477, %v883, 3e+38
      %v2510 = vsel %vm2478, %v884, 3e+38
      %v2511 = vsel %vm2479, %v883, 3e+38
      %v2512 = vsel %vm2480, %v884, 3e+38
      %v2513 = vsel %vm2481, %v883, 3e+38
      %v2514 = vsel %vm2482, %v884, 3e+38
      %v2515 = vsel %vm2483, %v883, 3e+38
      %v2516 = vsel %vm2484, %v884, 3e+38
      %v2517 = vsel %vm2485, %v883, 3e+38
      %v2518 = vsel %vm2486, %v884, 3e+38
      %v2519 = vsel %vm2487, %v883, 3e+38
      %v2520 = vsel %vm2488, %v884, 3e+38
      %v2521 = vsel %vm2489, %v883, 3e+38
      %v2522 = vsel %vm2490, %v884, 3e+38
      %v2523 = vsel %vm2491, %v883, 3e+38
      %v2524 = vsel %vm2492, %v884, 3e+38
      %v2525 = vsel %vm2493, %v883, 3e+38
      %v2526 = vsel %vm2494, %v884, 3e+38
      %v2527 = vsel %vm2495, %v883, 3e+38
      %v2528 = vsel %vm2496, %v884, 3e+38
      %v2529 = vsel %vm2497, %v883, 3e+38
      %v2530 = vsel %vm2498, %v884, 3e+38
      %v2531 = vsel %vm2499, %v883, 3e+38
      %v2532 = vsel %vm2500, %v884, 3e+38
      %v2533 = vmin.f32 %v2501, %v2502
      %2534 = vmin.xlane.f32.xlu0 %v2533
      %v2535 = vpop.xlane.xlu0 %2534
      %v2536 = vmin.f32 %v2503, %v2504
      %2537 = vmin.xlane.f32.xlu0 %v2536
      %v2538 = vpop.xlane.xlu0 %2537
      %v2539 = vmin.f32 %v2505, %v2506
      %2540 = vmin.xlane.f32.xlu0 %v2539
      %v2541 = vpop.xlane.xlu0 %2540
      %v2542 = vmin.f32 %v2507, %v2508
      %2543 = vmin.xlane.f32.xlu0 %v2542
      %v2544 = vpop.xlane.xlu0 %2543
      %v2545 = vmin.f32 %v2509, %v2510
      %2546 = vmin.xlane.f32.xlu0 %v2545
      %v2547 = vpop.xlane.xlu0 %2546
      %v2548 = vmin.f32 %v2511, %v2512
      %2549 = vmin.xlane.f32.xlu0 %v2548
      %v2550 = vpop.xlane.xlu0 %2549
      %v2551 = vmin.f32 %v2513, %v2514
      %2552 = vmin.xlane.f32.xlu0 %v2551
      %v2553 = vpop.xlane.xlu0 %2552
      %v2554 = vmin.f32 %v2515, %v2516
      %2555 = vmin.xlane.f32.xlu0 %v2554
      %v2556 = vpop.xlane.xlu0 %2555
      %v2557 = vmin.f32 %v2517, %v2518
      %2558 = vmin.xlane.f32.xlu0 %v2557
      %v2559 = vpop.xlane.xlu0 %2558
      %v2560 = vmin.f32 %v2519, %v2520
      %2561 = vmin.xlane.f32.xlu0 %v2560
      %v2562 = vpop.xlane.xlu0 %2561
      %v2563 = vmin.f32 %v2521, %v2522
      %2564 = vmin.xlane.f32.xlu0 %v2563
      %v2565 = vpop.xlane.xlu0 %2564
      %v2566 = vmin.f32 %v2523, %v2524
      %2567 = vmin.xlane.f32.xlu0 %v2566
      %v2568 = vpop.xlane.xlu0 %2567
      %v2569 = vmin.f32 %v2525, %v2526
      %2570 = vmin.xlane.f32.xlu0 %v2569
      %v2571 = vpop.xlane.xlu0 %2570
      %v2572 = vmin.f32 %v2527, %v2528
      %2573 = vmin.xlane.f32.xlu0 %v2572
      %v2574 = vpop.xlane.xlu0 %2573
      %v2575 = vmin.f32 %v2529, %v2530
      %2576 = vmin.xlane.f32.xlu0 %v2575
      %v2577 = vpop.xlane.xlu0 %2576
      %v2578 = vmin.f32 %v2531, %v2532
      %2579 = vmin.xlane.f32.xlu0 %v2578
      %v2580 = vpop.xlane.xlu0 %2579
      %vm2581 = vcmp.eq.f32.partialorder %v883, %v2535
      %vm2582 = vcmp.eq.f32.partialorder %v884, %v2535
      %vm2583 = vcmp.eq.f32.partialorder %v883, %v2538
      %vm2584 = vcmp.eq.f32.partialorder %v884, %v2538
      %vm2585 = vcmp.eq.f32.partialorder %v883, %v2541
      %vm2586 = vcmp.eq.f32.partialorder %v884, %v2541
      %vm2587 = vcmp.eq.f32.partialorder %v883, %v2544
      %vm2588 = vcmp.eq.f32.partialorder %v884, %v2544
      %vm2589 = vcmp.eq.f32.partialorder %v883, %v2547
      %vm2590 = vcmp.eq.f32.partialorder %v884, %v2547
      %vm2591 = vcmp.eq.f32.partialorder %v883, %v2550
      %vm2592 = vcmp.eq.f32.partialorder %v884, %v2550
      %vm2593 = vcmp.eq.f32.partialorder %v883, %v2553
      %vm2594 = vcmp.eq.f32.partialorder %v884, %v2553
      %vm2595 = vcmp.eq.f32.partialorder %v883, %v2556
      %vm2596 = vcmp.eq.f32.partialorder %v884, %v2556
      %vm2597 = vcmp.eq.f32.partialorder %v883, %v2559
      %vm2598 = vcmp.eq.f32.partialorder %v884, %v2559
      %vm2599 = vcmp.eq.f32.partialorder %v883, %v2562
      %vm2600 = vcmp.eq.f32.partialorder %v884, %v2562
      %vm2601 = vcmp.eq.f32.partialorder %v883, %v2565
      %vm2602 = vcmp.eq.f32.partialorder %v884, %v2565
      %vm2603 = vcmp.eq.f32.partialorder %v883, %v2568
      %vm2604 = vcmp.eq.f32.partialorder %v884, %v2568
      %vm2605 = vcmp.eq.f32.partialorder %v883, %v2571
      %vm2606 = vcmp.eq.f32.partialorder %v884, %v2571
      %vm2607 = vcmp.eq.f32.partialorder %v883, %v2574
      %vm2608 = vcmp.eq.f32.partialorder %v884, %v2574
      %vm2609 = vcmp.eq.f32.partialorder %v883, %v2577
      %vm2610 = vcmp.eq.f32.partialorder %v884, %v2577
      %vm2611 = vcmp.eq.f32.partialorder %v883, %v2580
      %vm2612 = vcmp.eq.f32.partialorder %v884, %v2580
      %v2613 = vsel %vm2581, 1.0, %v2357
      %v2614 = vsel %vm2582, 1.0, %v2358
      %v2615 = vsel %vm2583, 1.0, %v2359
      %v2616 = vsel %vm2584, 1.0, %v2360
      %v2617 = vsel %vm2585, 1.0, %v2361
      %v2618 = vsel %vm2586, 1.0, %v2362
      %v2619 = vsel %vm2587, 1.0, %v2363
      %v2620 = vsel %vm2588, 1.0, %v2364
      %v2621 = vsel %vm2589, 1.0, %v2365
      %v2622 = vsel %vm2590, 1.0, %v2366
      %v2623 = vsel %vm2591, 1.0, %v2367
      %v2624 = vsel %vm2592, 1.0, %v2368
      %v2625 = vsel %vm2593, 1.0, %v2369
      %v2626 = vsel %vm2594, 1.0, %v2370
      %v2627 = vsel %vm2595, 1.0, %v2371
      %v2628 = vsel %vm2596, 1.0, %v2372
      %v2629 = vsel %vm2597, 1.0, %v2373
      %v2630 = vsel %vm2598, 1.0, %v2374
      %v2631 = vsel %vm2599, 1.0, %v2375
      %v2632 = vsel %vm2600, 1.0, %v2376
      %v2633 = vsel %vm2601, 1.0, %v2377
      %v2634 = vsel %vm2602, 1.0, %v2378
      %v2635 = vsel %vm2603, 1.0, %v2379
      %v2636 = vsel %vm2604, 1.0, %v2380
      %v2637 = vsel %vm2605, 1.0, %v2381
      %v2638 = vsel %vm2606, 1.0, %v2382
      %v2639 = vsel %vm2607, 1.0, %v2383
      %v2640 = vsel %vm2608, 1.0, %v2384
      %v2641 = vsel %vm2609, 1.0, %v2385
      %v2642 = vsel %vm2610, 1.0, %v2386
      %v2643 = vsel %vm2611, 1.0, %v2387
      %v2644 = vsel %vm2612, 1.0, %v2388
      %v2645 = vsel %vm2581, 3e+38, %v2389
      %v2646 = vsel %vm2582, 3e+38, %v2390
      %v2647 = vsel %vm2583, 3e+38, %v2391
      %v2648 = vsel %vm2584, 3e+38, %v2392
      %v2649 = vsel %vm2585, 3e+38, %v2393
      %v2650 = vsel %vm2586, 3e+38, %v2394
      %v2651 = vsel %vm2587, 3e+38, %v2395
      %v2652 = vsel %vm2588, 3e+38, %v2396
      %v2653 = vsel %vm2589, 3e+38, %v2397
      %v2654 = vsel %vm2590, 3e+38, %v2398
      %v2655 = vsel %vm2591, 3e+38, %v2399
      %v2656 = vsel %vm2592, 3e+38, %v2400
      %v2657 = vsel %vm2593, 3e+38, %v2401
      %v2658 = vsel %vm2594, 3e+38, %v2402
      %v2659 = vsel %vm2595, 3e+38, %v2403
      %v2660 = vsel %vm2596, 3e+38, %v2404
      %v2661 = vsel %vm2597, 3e+38, %v2405
      %v2662 = vsel %vm2598, 3e+38, %v2406
      %v2663 = vsel %vm2599, 3e+38, %v2407
      %v2664 = vsel %vm2600, 3e+38, %v2408
      %v2665 = vsel %vm2601, 3e+38, %v2409
      %v2666 = vsel %vm2602, 3e+38, %v2410
      %v2667 = vsel %vm2603, 3e+38, %v2411
      %v2668 = vsel %vm2604, 3e+38, %v2412
      %v2669 = vsel %vm2605, 3e+38, %v2413
      %v2670 = vsel %vm2606, 3e+38, %v2414
      %v2671 = vsel %vm2607, 3e+38, %v2415
      %v2672 = vsel %vm2608, 3e+38, %v2416
      %v2673 = vsel %vm2609, 3e+38, %v2417
      %v2674 = vsel %vm2610, 3e+38, %v2418
      %v2675 = vsel %vm2611, 3e+38, %v2419
      %v2676 = vsel %vm2612, 3e+38, %v2420
      %v2677 = vmin.f32 %v2645, %v2646
      %2678 = vmin.xlane.f32.xlu0 %v2677
      %v2679 = vpop.xlane.xlu0 %2678
      %v2680 = vmin.f32 %v2647, %v2648
      %2681 = vmin.xlane.f32.xlu0 %v2680
      %v2682 = vpop.xlane.xlu0 %2681
      %v2683 = vmin.f32 %v2649, %v2650
      %2684 = vmin.xlane.f32.xlu0 %v2683
      %v2685 = vpop.xlane.xlu0 %2684
      %v2686 = vmin.f32 %v2651, %v2652
      %2687 = vmin.xlane.f32.xlu0 %v2686
      %v2688 = vpop.xlane.xlu0 %2687
      %v2689 = vmin.f32 %v2653, %v2654
      %2690 = vmin.xlane.f32.xlu0 %v2689
      %v2691 = vpop.xlane.xlu0 %2690
      %v2692 = vmin.f32 %v2655, %v2656
      %2693 = vmin.xlane.f32.xlu0 %v2692
      %v2694 = vpop.xlane.xlu0 %2693
      %v2695 = vmin.f32 %v2657, %v2658
      %2696 = vmin.xlane.f32.xlu0 %v2695
      %v2697 = vpop.xlane.xlu0 %2696
      %v2698 = vmin.f32 %v2659, %v2660
      %2699 = vmin.xlane.f32.xlu0 %v2698
      %v2700 = vpop.xlane.xlu0 %2699
      %v2701 = vmin.f32 %v2661, %v2662
      %2702 = vmin.xlane.f32.xlu0 %v2701
      %v2703 = vpop.xlane.xlu0 %2702
      %v2704 = vmin.f32 %v2663, %v2664
      %2705 = vmin.xlane.f32.xlu0 %v2704
      %v2706 = vpop.xlane.xlu0 %2705
      %v2707 = vmin.f32 %v2665, %v2666
      %2708 = vmin.xlane.f32.xlu0 %v2707
      %v2709 = vpop.xlane.xlu0 %2708
      %v2710 = vmin.f32 %v2667, %v2668
      %2711 = vmin.xlane.f32.xlu0 %v2710
      %v2712 = vpop.xlane.xlu0 %2711
      %v2713 = vmin.f32 %v2669, %v2670
      %2714 = vmin.xlane.f32.xlu0 %v2713
      %v2715 = vpop.xlane.xlu0 %2714
      %v2716 = vmin.f32 %v2671, %v2672
      %2717 = vmin.xlane.f32.xlu0 %v2716
      %v2718 = vpop.xlane.xlu0 %2717
      %v2719 = vmin.f32 %v2673, %v2674
      %2720 = vmin.xlane.f32.xlu0 %v2719
      %v2721 = vpop.xlane.xlu0 %2720
      %v2722 = vmin.f32 %v2675, %v2676
      %2723 = vmin.xlane.f32.xlu0 %v2722
      %v2724 = vpop.xlane.xlu0 %2723
      %vm2725 = vcmp.le.f32.partialorder %v2645, %v2679
      %vm2726 = vcmp.le.f32.partialorder %v2646, %v2679
      %vm2727 = vcmp.le.f32.partialorder %v2647, %v2682
      %vm2728 = vcmp.le.f32.partialorder %v2648, %v2682
      %vm2729 = vcmp.le.f32.partialorder %v2649, %v2685
      %vm2730 = vcmp.le.f32.partialorder %v2650, %v2685
      %vm2731 = vcmp.le.f32.partialorder %v2651, %v2688
      %vm2732 = vcmp.le.f32.partialorder %v2652, %v2688
      %vm2733 = vcmp.le.f32.partialorder %v2653, %v2691
      %vm2734 = vcmp.le.f32.partialorder %v2654, %v2691
      %vm2735 = vcmp.le.f32.partialorder %v2655, %v2694
      %vm2736 = vcmp.le.f32.partialorder %v2656, %v2694
      %vm2737 = vcmp.le.f32.partialorder %v2657, %v2697
      %vm2738 = vcmp.le.f32.partialorder %v2658, %v2697
      %vm2739 = vcmp.le.f32.partialorder %v2659, %v2700
      %vm2740 = vcmp.le.f32.partialorder %v2660, %v2700
      %vm2741 = vcmp.le.f32.partialorder %v2661, %v2703
      %vm2742 = vcmp.le.f32.partialorder %v2662, %v2703
      %vm2743 = vcmp.le.f32.partialorder %v2663, %v2706
      %vm2744 = vcmp.le.f32.partialorder %v2664, %v2706
      %vm2745 = vcmp.le.f32.partialorder %v2665, %v2709
      %vm2746 = vcmp.le.f32.partialorder %v2666, %v2709
      %vm2747 = vcmp.le.f32.partialorder %v2667, %v2712
      %vm2748 = vcmp.le.f32.partialorder %v2668, %v2712
      %vm2749 = vcmp.le.f32.partialorder %v2669, %v2715
      %vm2750 = vcmp.le.f32.partialorder %v2670, %v2715
      %vm2751 = vcmp.le.f32.partialorder %v2671, %v2718
      %vm2752 = vcmp.le.f32.partialorder %v2672, %v2718
      %vm2753 = vcmp.le.f32.partialorder %v2673, %v2721
      %vm2754 = vcmp.le.f32.partialorder %v2674, %v2721
      %vm2755 = vcmp.le.f32.partialorder %v2675, %v2724
      %vm2756 = vcmp.le.f32.partialorder %v2676, %v2724
      %v2757 = vsel %vm2725, %v883, 3e+38
      %v2758 = vsel %vm2726, %v884, 3e+38
      %v2759 = vsel %vm2727, %v883, 3e+38
      %v2760 = vsel %vm2728, %v884, 3e+38
      %v2761 = vsel %vm2729, %v883, 3e+38
      %v2762 = vsel %vm2730, %v884, 3e+38
      %v2763 = vsel %vm2731, %v883, 3e+38
      %v2764 = vsel %vm2732, %v884, 3e+38
      %v2765 = vsel %vm2733, %v883, 3e+38
      %v2766 = vsel %vm2734, %v884, 3e+38
      %v2767 = vsel %vm2735, %v883, 3e+38
      %v2768 = vsel %vm2736, %v884, 3e+38
      %v2769 = vsel %vm2737, %v883, 3e+38
      %v2770 = vsel %vm2738, %v884, 3e+38
      %v2771 = vsel %vm2739, %v883, 3e+38
      %v2772 = vsel %vm2740, %v884, 3e+38
      %v2773 = vsel %vm2741, %v883, 3e+38
      %v2774 = vsel %vm2742, %v884, 3e+38
      %v2775 = vsel %vm2743, %v883, 3e+38
      %v2776 = vsel %vm2744, %v884, 3e+38
      %v2777 = vsel %vm2745, %v883, 3e+38
      %v2778 = vsel %vm2746, %v884, 3e+38
      %v2779 = vsel %vm2747, %v883, 3e+38
      %v2780 = vsel %vm2748, %v884, 3e+38
      %v2781 = vsel %vm2749, %v883, 3e+38
      %v2782 = vsel %vm2750, %v884, 3e+38
      %v2783 = vsel %vm2751, %v883, 3e+38
      %v2784 = vsel %vm2752, %v884, 3e+38
      %v2785 = vsel %vm2753, %v883, 3e+38
      %v2786 = vsel %vm2754, %v884, 3e+38
      %v2787 = vsel %vm2755, %v883, 3e+38
      %v2788 = vsel %vm2756, %v884, 3e+38
      %v2789 = vmin.f32 %v2757, %v2758
      %2790 = vmin.xlane.f32.xlu0 %v2789
      %v2791 = vpop.xlane.xlu0 %2790
      %v2792 = vmin.f32 %v2759, %v2760
      %2793 = vmin.xlane.f32.xlu0 %v2792
      %v2794 = vpop.xlane.xlu0 %2793
      %v2795 = vmin.f32 %v2761, %v2762
      %2796 = vmin.xlane.f32.xlu0 %v2795
      %v2797 = vpop.xlane.xlu0 %2796
      %v2798 = vmin.f32 %v2763, %v2764
      %2799 = vmin.xlane.f32.xlu0 %v2798
      %v2800 = vpop.xlane.xlu0 %2799
      %v2801 = vmin.f32 %v2765, %v2766
      %2802 = vmin.xlane.f32.xlu0 %v2801
      %v2803 = vpop.xlane.xlu0 %2802
      %v2804 = vmin.f32 %v2767, %v2768
      %2805 = vmin.xlane.f32.xlu0 %v2804
      %v2806 = vpop.xlane.xlu0 %2805
      %v2807 = vmin.f32 %v2769, %v2770
      %2808 = vmin.xlane.f32.xlu0 %v2807
      %v2809 = vpop.xlane.xlu0 %2808
      %v2810 = vmin.f32 %v2771, %v2772
      %2811 = vmin.xlane.f32.xlu0 %v2810
      %v2812 = vpop.xlane.xlu0 %2811
      %v2813 = vmin.f32 %v2773, %v2774
      %2814 = vmin.xlane.f32.xlu0 %v2813
      %v2815 = vpop.xlane.xlu0 %2814
      %v2816 = vmin.f32 %v2775, %v2776
      %2817 = vmin.xlane.f32.xlu0 %v2816
      %v2818 = vpop.xlane.xlu0 %2817
      %v2819 = vmin.f32 %v2777, %v2778
      %2820 = vmin.xlane.f32.xlu0 %v2819
      %v2821 = vpop.xlane.xlu0 %2820
      %v2822 = vmin.f32 %v2779, %v2780
      %2823 = vmin.xlane.f32.xlu0 %v2822
      %v2824 = vpop.xlane.xlu0 %2823
      %v2825 = vmin.f32 %v2781, %v2782
      %2826 = vmin.xlane.f32.xlu0 %v2825
      %v2827 = vpop.xlane.xlu0 %2826
      %v2828 = vmin.f32 %v2783, %v2784
      %2829 = vmin.xlane.f32.xlu0 %v2828
      %v2830 = vpop.xlane.xlu0 %2829
      %v2831 = vmin.f32 %v2785, %v2786
      %2832 = vmin.xlane.f32.xlu0 %v2831
      %v2833 = vpop.xlane.xlu0 %2832
      %v2834 = vmin.f32 %v2787, %v2788
      %2835 = vmin.xlane.f32.xlu0 %v2834
      %v2836 = vpop.xlane.xlu0 %2835
      %vm2837 = vcmp.eq.f32.partialorder %v883, %v2791
      %vm2838 = vcmp.eq.f32.partialorder %v884, %v2791
      %vm2839 = vcmp.eq.f32.partialorder %v883, %v2794
      %vm2840 = vcmp.eq.f32.partialorder %v884, %v2794
      %vm2841 = vcmp.eq.f32.partialorder %v883, %v2797
      %vm2842 = vcmp.eq.f32.partialorder %v884, %v2797
      %vm2843 = vcmp.eq.f32.partialorder %v883, %v2800
      %vm2844 = vcmp.eq.f32.partialorder %v884, %v2800
      %vm2845 = vcmp.eq.f32.partialorder %v883, %v2803
      %vm2846 = vcmp.eq.f32.partialorder %v884, %v2803
      %vm2847 = vcmp.eq.f32.partialorder %v883, %v2806
      %vm2848 = vcmp.eq.f32.partialorder %v884, %v2806
      %vm2849 = vcmp.eq.f32.partialorder %v883, %v2809
      %vm2850 = vcmp.eq.f32.partialorder %v884, %v2809
      %vm2851 = vcmp.eq.f32.partialorder %v883, %v2812
      %vm2852 = vcmp.eq.f32.partialorder %v884, %v2812
      %vm2853 = vcmp.eq.f32.partialorder %v883, %v2815
      %vm2854 = vcmp.eq.f32.partialorder %v884, %v2815
      %vm2855 = vcmp.eq.f32.partialorder %v883, %v2818
      %vm2856 = vcmp.eq.f32.partialorder %v884, %v2818
      %vm2857 = vcmp.eq.f32.partialorder %v883, %v2821
      %vm2858 = vcmp.eq.f32.partialorder %v884, %v2821
      %vm2859 = vcmp.eq.f32.partialorder %v883, %v2824
      %vm2860 = vcmp.eq.f32.partialorder %v884, %v2824
      %vm2861 = vcmp.eq.f32.partialorder %v883, %v2827
      %vm2862 = vcmp.eq.f32.partialorder %v884, %v2827
      %vm2863 = vcmp.eq.f32.partialorder %v883, %v2830
      %vm2864 = vcmp.eq.f32.partialorder %v884, %v2830
      %vm2865 = vcmp.eq.f32.partialorder %v883, %v2833
      %vm2866 = vcmp.eq.f32.partialorder %v884, %v2833
      %vm2867 = vcmp.eq.f32.partialorder %v883, %v2836
      %vm2868 = vcmp.eq.f32.partialorder %v884, %v2836
      %v2869 = vsel %vm2837, 1.0, %v2613
      %v2870 = vsel %vm2838, 1.0, %v2614
      %v2871 = vsel %vm2839, 1.0, %v2615
      %v2872 = vsel %vm2840, 1.0, %v2616
      %v2873 = vsel %vm2841, 1.0, %v2617
      %v2874 = vsel %vm2842, 1.0, %v2618
      %v2875 = vsel %vm2843, 1.0, %v2619
      %v2876 = vsel %vm2844, 1.0, %v2620
      %v2877 = vsel %vm2845, 1.0, %v2621
      %v2878 = vsel %vm2846, 1.0, %v2622
      %v2879 = vsel %vm2847, 1.0, %v2623
      %v2880 = vsel %vm2848, 1.0, %v2624
      %v2881 = vsel %vm2849, 1.0, %v2625
      %v2882 = vsel %vm2850, 1.0, %v2626
      %v2883 = vsel %vm2851, 1.0, %v2627
      %v2884 = vsel %vm2852, 1.0, %v2628
      %v2885 = vsel %vm2853, 1.0, %v2629
      %v2886 = vsel %vm2854, 1.0, %v2630
      %v2887 = vsel %vm2855, 1.0, %v2631
      %v2888 = vsel %vm2856, 1.0, %v2632
      %v2889 = vsel %vm2857, 1.0, %v2633
      %v2890 = vsel %vm2858, 1.0, %v2634
      %v2891 = vsel %vm2859, 1.0, %v2635
      %v2892 = vsel %vm2860, 1.0, %v2636
      %v2893 = vsel %vm2861, 1.0, %v2637
      %v2894 = vsel %vm2862, 1.0, %v2638
      %v2895 = vsel %vm2863, 1.0, %v2639
      %v2896 = vsel %vm2864, 1.0, %v2640
      %v2897 = vsel %vm2865, 1.0, %v2641
      %v2898 = vsel %vm2866, 1.0, %v2642
      %v2899 = vsel %vm2867, 1.0, %v2643
      %v2900 = vsel %vm2868, 1.0, %v2644
      %v2901 = vsel %vm2837, 3e+38, %v2645
      %v2902 = vsel %vm2838, 3e+38, %v2646
      %v2903 = vsel %vm2839, 3e+38, %v2647
      %v2904 = vsel %vm2840, 3e+38, %v2648
      %v2905 = vsel %vm2841, 3e+38, %v2649
      %v2906 = vsel %vm2842, 3e+38, %v2650
      %v2907 = vsel %vm2843, 3e+38, %v2651
      %v2908 = vsel %vm2844, 3e+38, %v2652
      %v2909 = vsel %vm2845, 3e+38, %v2653
      %v2910 = vsel %vm2846, 3e+38, %v2654
      %v2911 = vsel %vm2847, 3e+38, %v2655
      %v2912 = vsel %vm2848, 3e+38, %v2656
      %v2913 = vsel %vm2849, 3e+38, %v2657
      %v2914 = vsel %vm2850, 3e+38, %v2658
      %v2915 = vsel %vm2851, 3e+38, %v2659
      %v2916 = vsel %vm2852, 3e+38, %v2660
      %v2917 = vsel %vm2853, 3e+38, %v2661
      %v2918 = vsel %vm2854, 3e+38, %v2662
      %v2919 = vsel %vm2855, 3e+38, %v2663
      %v2920 = vsel %vm2856, 3e+38, %v2664
      %v2921 = vsel %vm2857, 3e+38, %v2665
      %v2922 = vsel %vm2858, 3e+38, %v2666
      %v2923 = vsel %vm2859, 3e+38, %v2667
      %v2924 = vsel %vm2860, 3e+38, %v2668
      %v2925 = vsel %vm2861, 3e+38, %v2669
      %v2926 = vsel %vm2862, 3e+38, %v2670
      %v2927 = vsel %vm2863, 3e+38, %v2671
      %v2928 = vsel %vm2864, 3e+38, %v2672
      %v2929 = vsel %vm2865, 3e+38, %v2673
      %v2930 = vsel %vm2866, 3e+38, %v2674
      %v2931 = vsel %vm2867, 3e+38, %v2675
      %v2932 = vsel %vm2868, 3e+38, %v2676
      %v2933 = vmin.f32 %v2901, %v2902
      %2934 = vmin.xlane.f32.xlu0 %v2933
      %v2935 = vpop.xlane.xlu0 %2934
      %v2936 = vmin.f32 %v2903, %v2904
      %2937 = vmin.xlane.f32.xlu0 %v2936
      %v2938 = vpop.xlane.xlu0 %2937
      %v2939 = vmin.f32 %v2905, %v2906
      %2940 = vmin.xlane.f32.xlu0 %v2939
      %v2941 = vpop.xlane.xlu0 %2940
      %v2942 = vmin.f32 %v2907, %v2908
      %2943 = vmin.xlane.f32.xlu0 %v2942
      %v2944 = vpop.xlane.xlu0 %2943
      %v2945 = vmin.f32 %v2909, %v2910
      %2946 = vmin.xlane.f32.xlu0 %v2945
      %v2947 = vpop.xlane.xlu0 %2946
      %v2948 = vmin.f32 %v2911, %v2912
      %2949 = vmin.xlane.f32.xlu0 %v2948
      %v2950 = vpop.xlane.xlu0 %2949
      %v2951 = vmin.f32 %v2913, %v2914
      %2952 = vmin.xlane.f32.xlu0 %v2951
      %v2953 = vpop.xlane.xlu0 %2952
      %v2954 = vmin.f32 %v2915, %v2916
      %2955 = vmin.xlane.f32.xlu0 %v2954
      %v2956 = vpop.xlane.xlu0 %2955
      %v2957 = vmin.f32 %v2917, %v2918
      %2958 = vmin.xlane.f32.xlu0 %v2957
      %v2959 = vpop.xlane.xlu0 %2958
      %v2960 = vmin.f32 %v2919, %v2920
      %2961 = vmin.xlane.f32.xlu0 %v2960
      %v2962 = vpop.xlane.xlu0 %2961
      %v2963 = vmin.f32 %v2921, %v2922
      %2964 = vmin.xlane.f32.xlu0 %v2963
      %v2965 = vpop.xlane.xlu0 %2964
      %v2966 = vmin.f32 %v2923, %v2924
      %2967 = vmin.xlane.f32.xlu0 %v2966
      %v2968 = vpop.xlane.xlu0 %2967
      %v2969 = vmin.f32 %v2925, %v2926
      %2970 = vmin.xlane.f32.xlu0 %v2969
      %v2971 = vpop.xlane.xlu0 %2970
      %v2972 = vmin.f32 %v2927, %v2928
      %2973 = vmin.xlane.f32.xlu0 %v2972
      %v2974 = vpop.xlane.xlu0 %2973
      %v2975 = vmin.f32 %v2929, %v2930
      %2976 = vmin.xlane.f32.xlu0 %v2975
      %v2977 = vpop.xlane.xlu0 %2976
      %v2978 = vmin.f32 %v2931, %v2932
      %2979 = vmin.xlane.f32.xlu0 %v2978
      %v2980 = vpop.xlane.xlu0 %2979
      %vm2981 = vcmp.le.f32.partialorder %v2901, %v2935
      %vm2982 = vcmp.le.f32.partialorder %v2902, %v2935
      %vm2983 = vcmp.le.f32.partialorder %v2903, %v2938
      %vm2984 = vcmp.le.f32.partialorder %v2904, %v2938
      %vm2985 = vcmp.le.f32.partialorder %v2905, %v2941
      %vm2986 = vcmp.le.f32.partialorder %v2906, %v2941
      %vm2987 = vcmp.le.f32.partialorder %v2907, %v2944
      %vm2988 = vcmp.le.f32.partialorder %v2908, %v2944
      %vm2989 = vcmp.le.f32.partialorder %v2909, %v2947
      %vm2990 = vcmp.le.f32.partialorder %v2910, %v2947
      %vm2991 = vcmp.le.f32.partialorder %v2911, %v2950
      %vm2992 = vcmp.le.f32.partialorder %v2912, %v2950
      %vm2993 = vcmp.le.f32.partialorder %v2913, %v2953
      %vm2994 = vcmp.le.f32.partialorder %v2914, %v2953
      %vm2995 = vcmp.le.f32.partialorder %v2915, %v2956
      %vm2996 = vcmp.le.f32.partialorder %v2916, %v2956
      %vm2997 = vcmp.le.f32.partialorder %v2917, %v2959
      %vm2998 = vcmp.le.f32.partialorder %v2918, %v2959
      %vm2999 = vcmp.le.f32.partialorder %v2919, %v2962
      %vm3000 = vcmp.le.f32.partialorder %v2920, %v2962
      %vm3001 = vcmp.le.f32.partialorder %v2921, %v2965
      %vm3002 = vcmp.le.f32.partialorder %v2922, %v2965
      %vm3003 = vcmp.le.f32.partialorder %v2923, %v2968
      %vm3004 = vcmp.le.f32.partialorder %v2924, %v2968
      %vm3005 = vcmp.le.f32.partialorder %v2925, %v2971
      %vm3006 = vcmp.le.f32.partialorder %v2926, %v2971
      %vm3007 = vcmp.le.f32.partialorder %v2927, %v2974
      %vm3008 = vcmp.le.f32.partialorder %v2928, %v2974
      %vm3009 = vcmp.le.f32.partialorder %v2929, %v2977
      %vm3010 = vcmp.le.f32.partialorder %v2930, %v2977
      %vm3011 = vcmp.le.f32.partialorder %v2931, %v2980
      %vm3012 = vcmp.le.f32.partialorder %v2932, %v2980
      %v3013 = vsel %vm2981, %v883, 3e+38
      %v3014 = vsel %vm2982, %v884, 3e+38
      %v3015 = vsel %vm2983, %v883, 3e+38
      %v3016 = vsel %vm2984, %v884, 3e+38
      %v3017 = vsel %vm2985, %v883, 3e+38
      %v3018 = vsel %vm2986, %v884, 3e+38
      %v3019 = vsel %vm2987, %v883, 3e+38
      %v3020 = vsel %vm2988, %v884, 3e+38
      %v3021 = vsel %vm2989, %v883, 3e+38
      %v3022 = vsel %vm2990, %v884, 3e+38
      %v3023 = vsel %vm2991, %v883, 3e+38
      %v3024 = vsel %vm2992, %v884, 3e+38
      %v3025 = vsel %vm2993, %v883, 3e+38
      %v3026 = vsel %vm2994, %v884, 3e+38
      %v3027 = vsel %vm2995, %v883, 3e+38
      %v3028 = vsel %vm2996, %v884, 3e+38
      %v3029 = vsel %vm2997, %v883, 3e+38
      %v3030 = vsel %vm2998, %v884, 3e+38
      %v3031 = vsel %vm2999, %v883, 3e+38
      %v3032 = vsel %vm3000, %v884, 3e+38
      %v3033 = vsel %vm3001, %v883, 3e+38
      %v3034 = vsel %vm3002, %v884, 3e+38
      %v3035 = vsel %vm3003, %v883, 3e+38
      %v3036 = vsel %vm3004, %v884, 3e+38
      %v3037 = vsel %vm3005, %v883, 3e+38
      %v3038 = vsel %vm3006, %v884, 3e+38
      %v3039 = vsel %vm3007, %v883, 3e+38
      %v3040 = vsel %vm3008, %v884, 3e+38
      %v3041 = vsel %vm3009, %v883, 3e+38
      %v3042 = vsel %vm3010, %v884, 3e+38
      %v3043 = vsel %vm3011, %v883, 3e+38
      %v3044 = vsel %vm3012, %v884, 3e+38
      %v3045 = vmin.f32 %v3013, %v3014
      %3046 = vmin.xlane.f32.xlu0 %v3045
      %v3047 = vpop.xlane.xlu0 %3046
      %v3048 = vmin.f32 %v3015, %v3016
      %3049 = vmin.xlane.f32.xlu0 %v3048
      %v3050 = vpop.xlane.xlu0 %3049
      %v3051 = vmin.f32 %v3017, %v3018
      %3052 = vmin.xlane.f32.xlu0 %v3051
      %v3053 = vpop.xlane.xlu0 %3052
      %v3054 = vmin.f32 %v3019, %v3020
      %3055 = vmin.xlane.f32.xlu0 %v3054
      %v3056 = vpop.xlane.xlu0 %3055
      %v3057 = vmin.f32 %v3021, %v3022
      %3058 = vmin.xlane.f32.xlu0 %v3057
      %v3059 = vpop.xlane.xlu0 %3058
      %v3060 = vmin.f32 %v3023, %v3024
      %3061 = vmin.xlane.f32.xlu0 %v3060
      %v3062 = vpop.xlane.xlu0 %3061
      %v3063 = vmin.f32 %v3025, %v3026
      %3064 = vmin.xlane.f32.xlu0 %v3063
      %v3065 = vpop.xlane.xlu0 %3064
      %v3066 = vmin.f32 %v3027, %v3028
      %3067 = vmin.xlane.f32.xlu0 %v3066
      %v3068 = vpop.xlane.xlu0 %3067
      %v3069 = vmin.f32 %v3029, %v3030
      %3070 = vmin.xlane.f32.xlu0 %v3069
      %v3071 = vpop.xlane.xlu0 %3070
      %v3072 = vmin.f32 %v3031, %v3032
      %3073 = vmin.xlane.f32.xlu0 %v3072
      %v3074 = vpop.xlane.xlu0 %3073
      %v3075 = vmin.f32 %v3033, %v3034
      %3076 = vmin.xlane.f32.xlu0 %v3075
      %v3077 = vpop.xlane.xlu0 %3076
      %v3078 = vmin.f32 %v3035, %v3036
      %3079 = vmin.xlane.f32.xlu0 %v3078
      %v3080 = vpop.xlane.xlu0 %3079
      %v3081 = vmin.f32 %v3037, %v3038
      %3082 = vmin.xlane.f32.xlu0 %v3081
      %v3083 = vpop.xlane.xlu0 %3082
      %v3084 = vmin.f32 %v3039, %v3040
      %3085 = vmin.xlane.f32.xlu0 %v3084
      %v3086 = vpop.xlane.xlu0 %3085
      %v3087 = vmin.f32 %v3041, %v3042
      %3088 = vmin.xlane.f32.xlu0 %v3087
      %v3089 = vpop.xlane.xlu0 %3088
      %v3090 = vmin.f32 %v3043, %v3044
      %3091 = vmin.xlane.f32.xlu0 %v3090
      %v3092 = vpop.xlane.xlu0 %3091
      %vm3093 = vcmp.eq.f32.partialorder %v883, %v3047
      %vm3094 = vcmp.eq.f32.partialorder %v884, %v3047
      %vm3095 = vcmp.eq.f32.partialorder %v883, %v3050
      %vm3096 = vcmp.eq.f32.partialorder %v884, %v3050
      %vm3097 = vcmp.eq.f32.partialorder %v883, %v3053
      %vm3098 = vcmp.eq.f32.partialorder %v884, %v3053
      %vm3099 = vcmp.eq.f32.partialorder %v883, %v3056
      %vm3100 = vcmp.eq.f32.partialorder %v884, %v3056
      %vm3101 = vcmp.eq.f32.partialorder %v883, %v3059
      %vm3102 = vcmp.eq.f32.partialorder %v884, %v3059
      %vm3103 = vcmp.eq.f32.partialorder %v883, %v3062
      %vm3104 = vcmp.eq.f32.partialorder %v884, %v3062
      %vm3105 = vcmp.eq.f32.partialorder %v883, %v3065
      %vm3106 = vcmp.eq.f32.partialorder %v884, %v3065
      %vm3107 = vcmp.eq.f32.partialorder %v883, %v3068
      %vm3108 = vcmp.eq.f32.partialorder %v884, %v3068
      %vm3109 = vcmp.eq.f32.partialorder %v883, %v3071
      %vm3110 = vcmp.eq.f32.partialorder %v884, %v3071
      %vm3111 = vcmp.eq.f32.partialorder %v883, %v3074
      %vm3112 = vcmp.eq.f32.partialorder %v884, %v3074
      %vm3113 = vcmp.eq.f32.partialorder %v883, %v3077
      %vm3114 = vcmp.eq.f32.partialorder %v884, %v3077
      %vm3115 = vcmp.eq.f32.partialorder %v883, %v3080
      %vm3116 = vcmp.eq.f32.partialorder %v884, %v3080
      %vm3117 = vcmp.eq.f32.partialorder %v883, %v3083
      %vm3118 = vcmp.eq.f32.partialorder %v884, %v3083
      %vm3119 = vcmp.eq.f32.partialorder %v883, %v3086
      %vm3120 = vcmp.eq.f32.partialorder %v884, %v3086
      %vm3121 = vcmp.eq.f32.partialorder %v883, %v3089
      %vm3122 = vcmp.eq.f32.partialorder %v884, %v3089
      %vm3123 = vcmp.eq.f32.partialorder %v883, %v3092
      %vm3124 = vcmp.eq.f32.partialorder %v884, %v3092
      %v3125 = vsel %vm3093, 1.0, %v2869
      %v3126 = vsel %vm3094, 1.0, %v2870
      %v3127 = vsel %vm3095, 1.0, %v2871
      %v3128 = vsel %vm3096, 1.0, %v2872
      %v3129 = vsel %vm3097, 1.0, %v2873
      %v3130 = vsel %vm3098, 1.0, %v2874
      %v3131 = vsel %vm3099, 1.0, %v2875
      %v3132 = vsel %vm3100, 1.0, %v2876
      %v3133 = vsel %vm3101, 1.0, %v2877
      %v3134 = vsel %vm3102, 1.0, %v2878
      %v3135 = vsel %vm3103, 1.0, %v2879
      %v3136 = vsel %vm3104, 1.0, %v2880
      %v3137 = vsel %vm3105, 1.0, %v2881
      %v3138 = vsel %vm3106, 1.0, %v2882
      %v3139 = vsel %vm3107, 1.0, %v2883
      %v3140 = vsel %vm3108, 1.0, %v2884
      %v3141 = vsel %vm3109, 1.0, %v2885
      %v3142 = vsel %vm3110, 1.0, %v2886
      %v3143 = vsel %vm3111, 1.0, %v2887
      %v3144 = vsel %vm3112, 1.0, %v2888
      %v3145 = vsel %vm3113, 1.0, %v2889
      %v3146 = vsel %vm3114, 1.0, %v2890
      %v3147 = vsel %vm3115, 1.0, %v2891
      %v3148 = vsel %vm3116, 1.0, %v2892
      %v3149 = vsel %vm3117, 1.0, %v2893
      %v3150 = vsel %vm3118, 1.0, %v2894
      %v3151 = vsel %vm3119, 1.0, %v2895
      %v3152 = vsel %vm3120, 1.0, %v2896
      %v3153 = vsel %vm3121, 1.0, %v2897
      %v3154 = vsel %vm3122, 1.0, %v2898
      %v3155 = vsel %vm3123, 1.0, %v2899
      %v3156 = vsel %vm3124, 1.0, %v2900
      %v3157 = vsel %vm3093, 3e+38, %v2901
      %v3158 = vsel %vm3094, 3e+38, %v2902
      %v3159 = vsel %vm3095, 3e+38, %v2903
      %v3160 = vsel %vm3096, 3e+38, %v2904
      %v3161 = vsel %vm3097, 3e+38, %v2905
      %v3162 = vsel %vm3098, 3e+38, %v2906
      %v3163 = vsel %vm3099, 3e+38, %v2907
      %v3164 = vsel %vm3100, 3e+38, %v2908
      %v3165 = vsel %vm3101, 3e+38, %v2909
      %v3166 = vsel %vm3102, 3e+38, %v2910
      %v3167 = vsel %vm3103, 3e+38, %v2911
      %v3168 = vsel %vm3104, 3e+38, %v2912
      %v3169 = vsel %vm3105, 3e+38, %v2913
      %v3170 = vsel %vm3106, 3e+38, %v2914
      %v3171 = vsel %vm3107, 3e+38, %v2915
      %v3172 = vsel %vm3108, 3e+38, %v2916
      %v3173 = vsel %vm3109, 3e+38, %v2917
      %v3174 = vsel %vm3110, 3e+38, %v2918
      %v3175 = vsel %vm3111, 3e+38, %v2919
      %v3176 = vsel %vm3112, 3e+38, %v2920
      %v3177 = vsel %vm3113, 3e+38, %v2921
      %v3178 = vsel %vm3114, 3e+38, %v2922
      %v3179 = vsel %vm3115, 3e+38, %v2923
      %v3180 = vsel %vm3116, 3e+38, %v2924
      %v3181 = vsel %vm3117, 3e+38, %v2925
      %v3182 = vsel %vm3118, 3e+38, %v2926
      %v3183 = vsel %vm3119, 3e+38, %v2927
      %v3184 = vsel %vm3120, 3e+38, %v2928
      %v3185 = vsel %vm3121, 3e+38, %v2929
      %v3186 = vsel %vm3122, 3e+38, %v2930
      %v3187 = vsel %vm3123, 3e+38, %v2931
      %v3188 = vsel %vm3124, 3e+38, %v2932
      %v3189 = vmin.f32 %v3157, %v3158
      %3190 = vmin.xlane.f32.xlu0 %v3189
      %v3191 = vpop.xlane.xlu0 %3190
      %v3192 = vmin.f32 %v3159, %v3160
      %3193 = vmin.xlane.f32.xlu0 %v3192
      %v3194 = vpop.xlane.xlu0 %3193
      %v3195 = vmin.f32 %v3161, %v3162
      %3196 = vmin.xlane.f32.xlu0 %v3195
      %v3197 = vpop.xlane.xlu0 %3196
      %v3198 = vmin.f32 %v3163, %v3164
      %3199 = vmin.xlane.f32.xlu0 %v3198
      %v3200 = vpop.xlane.xlu0 %3199
      %v3201 = vmin.f32 %v3165, %v3166
      %3202 = vmin.xlane.f32.xlu0 %v3201
      %v3203 = vpop.xlane.xlu0 %3202
      %v3204 = vmin.f32 %v3167, %v3168
      %3205 = vmin.xlane.f32.xlu0 %v3204
      %v3206 = vpop.xlane.xlu0 %3205
      %v3207 = vmin.f32 %v3169, %v3170
      %3208 = vmin.xlane.f32.xlu0 %v3207
      %v3209 = vpop.xlane.xlu0 %3208
      %v3210 = vmin.f32 %v3171, %v3172
      %3211 = vmin.xlane.f32.xlu0 %v3210
      %v3212 = vpop.xlane.xlu0 %3211
      %v3213 = vmin.f32 %v3173, %v3174
      %3214 = vmin.xlane.f32.xlu0 %v3213
      %v3215 = vpop.xlane.xlu0 %3214
      %v3216 = vmin.f32 %v3175, %v3176
      %3217 = vmin.xlane.f32.xlu0 %v3216
      %v3218 = vpop.xlane.xlu0 %3217
      %v3219 = vmin.f32 %v3177, %v3178
      %3220 = vmin.xlane.f32.xlu0 %v3219
      %v3221 = vpop.xlane.xlu0 %3220
      %v3222 = vmin.f32 %v3179, %v3180
      %3223 = vmin.xlane.f32.xlu0 %v3222
      %v3224 = vpop.xlane.xlu0 %3223
      %v3225 = vmin.f32 %v3181, %v3182
      %3226 = vmin.xlane.f32.xlu0 %v3225
      %v3227 = vpop.xlane.xlu0 %3226
      %v3228 = vmin.f32 %v3183, %v3184
      %3229 = vmin.xlane.f32.xlu0 %v3228
      %v3230 = vpop.xlane.xlu0 %3229
      %v3231 = vmin.f32 %v3185, %v3186
      %3232 = vmin.xlane.f32.xlu0 %v3231
      %v3233 = vpop.xlane.xlu0 %3232
      %v3234 = vmin.f32 %v3187, %v3188
      %3235 = vmin.xlane.f32.xlu0 %v3234
      %v3236 = vpop.xlane.xlu0 %3235
      %vm3237 = vcmp.le.f32.partialorder %v3157, %v3191
      %vm3238 = vcmp.le.f32.partialorder %v3158, %v3191
      %vm3239 = vcmp.le.f32.partialorder %v3159, %v3194
      %vm3240 = vcmp.le.f32.partialorder %v3160, %v3194
      %vm3241 = vcmp.le.f32.partialorder %v3161, %v3197
      %vm3242 = vcmp.le.f32.partialorder %v3162, %v3197
      %vm3243 = vcmp.le.f32.partialorder %v3163, %v3200
      %vm3244 = vcmp.le.f32.partialorder %v3164, %v3200
      %vm3245 = vcmp.le.f32.partialorder %v3165, %v3203
      %vm3246 = vcmp.le.f32.partialorder %v3166, %v3203
      %vm3247 = vcmp.le.f32.partialorder %v3167, %v3206
      %vm3248 = vcmp.le.f32.partialorder %v3168, %v3206
      %vm3249 = vcmp.le.f32.partialorder %v3169, %v3209
      %vm3250 = vcmp.le.f32.partialorder %v3170, %v3209
      %vm3251 = vcmp.le.f32.partialorder %v3171, %v3212
      %vm3252 = vcmp.le.f32.partialorder %v3172, %v3212
      %vm3253 = vcmp.le.f32.partialorder %v3173, %v3215
      %vm3254 = vcmp.le.f32.partialorder %v3174, %v3215
      %vm3255 = vcmp.le.f32.partialorder %v3175, %v3218
      %vm3256 = vcmp.le.f32.partialorder %v3176, %v3218
      %vm3257 = vcmp.le.f32.partialorder %v3177, %v3221
      %vm3258 = vcmp.le.f32.partialorder %v3178, %v3221
      %vm3259 = vcmp.le.f32.partialorder %v3179, %v3224
      %vm3260 = vcmp.le.f32.partialorder %v3180, %v3224
      %vm3261 = vcmp.le.f32.partialorder %v3181, %v3227
      %vm3262 = vcmp.le.f32.partialorder %v3182, %v3227
      %vm3263 = vcmp.le.f32.partialorder %v3183, %v3230
      %vm3264 = vcmp.le.f32.partialorder %v3184, %v3230
      %vm3265 = vcmp.le.f32.partialorder %v3185, %v3233
      %vm3266 = vcmp.le.f32.partialorder %v3186, %v3233
      %vm3267 = vcmp.le.f32.partialorder %v3187, %v3236
      %vm3268 = vcmp.le.f32.partialorder %v3188, %v3236
      %v3269 = vsel %vm3237, %v883, 3e+38
      %v3270 = vsel %vm3238, %v884, 3e+38
      %v3271 = vsel %vm3239, %v883, 3e+38
      %v3272 = vsel %vm3240, %v884, 3e+38
      %v3273 = vsel %vm3241, %v883, 3e+38
      %v3274 = vsel %vm3242, %v884, 3e+38
      %v3275 = vsel %vm3243, %v883, 3e+38
      %v3276 = vsel %vm3244, %v884, 3e+38
      %v3277 = vsel %vm3245, %v883, 3e+38
      %v3278 = vsel %vm3246, %v884, 3e+38
      %v3279 = vsel %vm3247, %v883, 3e+38
      %v3280 = vsel %vm3248, %v884, 3e+38
      %v3281 = vsel %vm3249, %v883, 3e+38
      %v3282 = vsel %vm3250, %v884, 3e+38
      %v3283 = vsel %vm3251, %v883, 3e+38
      %v3284 = vsel %vm3252, %v884, 3e+38
      %v3285 = vsel %vm3253, %v883, 3e+38
      %v3286 = vsel %vm3254, %v884, 3e+38
      %v3287 = vsel %vm3255, %v883, 3e+38
      %v3288 = vsel %vm3256, %v884, 3e+38
      %v3289 = vsel %vm3257, %v883, 3e+38
      %v3290 = vsel %vm3258, %v884, 3e+38
      %v3291 = vsel %vm3259, %v883, 3e+38
      %v3292 = vsel %vm3260, %v884, 3e+38
      %v3293 = vsel %vm3261, %v883, 3e+38
      %v3294 = vsel %vm3262, %v884, 3e+38
      %v3295 = vsel %vm3263, %v883, 3e+38
      %v3296 = vsel %vm3264, %v884, 3e+38
      %v3297 = vsel %vm3265, %v883, 3e+38
      %v3298 = vsel %vm3266, %v884, 3e+38
      %v3299 = vsel %vm3267, %v883, 3e+38
      %v3300 = vsel %vm3268, %v884, 3e+38
      %v3301 = vmin.f32 %v3269, %v3270
      %3302 = vmin.xlane.f32.xlu0 %v3301
      %v3303 = vpop.xlane.xlu0 %3302
      %v3304 = vmin.f32 %v3271, %v3272
      %3305 = vmin.xlane.f32.xlu0 %v3304
      %v3306 = vpop.xlane.xlu0 %3305
      %v3307 = vmin.f32 %v3273, %v3274
      %3308 = vmin.xlane.f32.xlu0 %v3307
      %v3309 = vpop.xlane.xlu0 %3308
      %v3310 = vmin.f32 %v3275, %v3276
      %3311 = vmin.xlane.f32.xlu0 %v3310
      %v3312 = vpop.xlane.xlu0 %3311
      %v3313 = vmin.f32 %v3277, %v3278
      %3314 = vmin.xlane.f32.xlu0 %v3313
      %v3315 = vpop.xlane.xlu0 %3314
      %v3316 = vmin.f32 %v3279, %v3280
      %3317 = vmin.xlane.f32.xlu0 %v3316
      %v3318 = vpop.xlane.xlu0 %3317
      %v3319 = vmin.f32 %v3281, %v3282
      %3320 = vmin.xlane.f32.xlu0 %v3319
      %v3321 = vpop.xlane.xlu0 %3320
      %v3322 = vmin.f32 %v3283, %v3284
      %3323 = vmin.xlane.f32.xlu0 %v3322
      %v3324 = vpop.xlane.xlu0 %3323
      %v3325 = vmin.f32 %v3285, %v3286
      %3326 = vmin.xlane.f32.xlu0 %v3325
      %v3327 = vpop.xlane.xlu0 %3326
      %v3328 = vmin.f32 %v3287, %v3288
      %3329 = vmin.xlane.f32.xlu0 %v3328
      %v3330 = vpop.xlane.xlu0 %3329
      %v3331 = vmin.f32 %v3289, %v3290
      %3332 = vmin.xlane.f32.xlu0 %v3331
      %v3333 = vpop.xlane.xlu0 %3332
      %v3334 = vmin.f32 %v3291, %v3292
      %3335 = vmin.xlane.f32.xlu0 %v3334
      %v3336 = vpop.xlane.xlu0 %3335
      %v3337 = vmin.f32 %v3293, %v3294
      %3338 = vmin.xlane.f32.xlu0 %v3337
      %v3339 = vpop.xlane.xlu0 %3338
      %v3340 = vmin.f32 %v3295, %v3296
      %3341 = vmin.xlane.f32.xlu0 %v3340
      %v3342 = vpop.xlane.xlu0 %3341
      %v3343 = vmin.f32 %v3297, %v3298
      %3344 = vmin.xlane.f32.xlu0 %v3343
      %v3345 = vpop.xlane.xlu0 %3344
      %v3346 = vmin.f32 %v3299, %v3300
      %3347 = vmin.xlane.f32.xlu0 %v3346
      %v3348 = vpop.xlane.xlu0 %3347
      %vm3349 = vcmp.eq.f32.partialorder %v883, %v3303
      %vm3350 = vcmp.eq.f32.partialorder %v884, %v3303
      %vm3351 = vcmp.eq.f32.partialorder %v883, %v3306
      %vm3352 = vcmp.eq.f32.partialorder %v884, %v3306
      %vm3353 = vcmp.eq.f32.partialorder %v883, %v3309
      %vm3354 = vcmp.eq.f32.partialorder %v884, %v3309
      %vm3355 = vcmp.eq.f32.partialorder %v883, %v3312
      %vm3356 = vcmp.eq.f32.partialorder %v884, %v3312
      %vm3357 = vcmp.eq.f32.partialorder %v883, %v3315
      %vm3358 = vcmp.eq.f32.partialorder %v884, %v3315
      %vm3359 = vcmp.eq.f32.partialorder %v883, %v3318
      %vm3360 = vcmp.eq.f32.partialorder %v884, %v3318
      %vm3361 = vcmp.eq.f32.partialorder %v883, %v3321
      %vm3362 = vcmp.eq.f32.partialorder %v884, %v3321
      %vm3363 = vcmp.eq.f32.partialorder %v883, %v3324
      %vm3364 = vcmp.eq.f32.partialorder %v884, %v3324
      %vm3365 = vcmp.eq.f32.partialorder %v883, %v3327
      %vm3366 = vcmp.eq.f32.partialorder %v884, %v3327
      %vm3367 = vcmp.eq.f32.partialorder %v883, %v3330
      %vm3368 = vcmp.eq.f32.partialorder %v884, %v3330
      %vm3369 = vcmp.eq.f32.partialorder %v883, %v3333
      %vm3370 = vcmp.eq.f32.partialorder %v884, %v3333
      %vm3371 = vcmp.eq.f32.partialorder %v883, %v3336
      %vm3372 = vcmp.eq.f32.partialorder %v884, %v3336
      %vm3373 = vcmp.eq.f32.partialorder %v883, %v3339
      %vm3374 = vcmp.eq.f32.partialorder %v884, %v3339
      %vm3375 = vcmp.eq.f32.partialorder %v883, %v3342
      %vm3376 = vcmp.eq.f32.partialorder %v884, %v3342
      %vm3377 = vcmp.eq.f32.partialorder %v883, %v3345
      %vm3378 = vcmp.eq.f32.partialorder %v884, %v3345
      %vm3379 = vcmp.eq.f32.partialorder %v883, %v3348
      %vm3380 = vcmp.eq.f32.partialorder %v884, %v3348
      %v3381 = vsel %vm3349, 1.0, %v3125
      %v3382 = vsel %vm3350, 1.0, %v3126
      %v3383 = vsel %vm3351, 1.0, %v3127
      %v3384 = vsel %vm3352, 1.0, %v3128
      %v3385 = vsel %vm3353, 1.0, %v3129
      %v3386 = vsel %vm3354, 1.0, %v3130
      %v3387 = vsel %vm3355, 1.0, %v3131
      %v3388 = vsel %vm3356, 1.0, %v3132
      %v3389 = vsel %vm3357, 1.0, %v3133
      %v3390 = vsel %vm3358, 1.0, %v3134
      %v3391 = vsel %vm3359, 1.0, %v3135
      %v3392 = vsel %vm3360, 1.0, %v3136
      %v3393 = vsel %vm3361, 1.0, %v3137
      %v3394 = vsel %vm3362, 1.0, %v3138
      %v3395 = vsel %vm3363, 1.0, %v3139
      %v3396 = vsel %vm3364, 1.0, %v3140
      %v3397 = vsel %vm3365, 1.0, %v3141
      %v3398 = vsel %vm3366, 1.0, %v3142
      %v3399 = vsel %vm3367, 1.0, %v3143
      %v3400 = vsel %vm3368, 1.0, %v3144
      %v3401 = vsel %vm3369, 1.0, %v3145
      %v3402 = vsel %vm3370, 1.0, %v3146
      %v3403 = vsel %vm3371, 1.0, %v3147
      %v3404 = vsel %vm3372, 1.0, %v3148
      %v3405 = vsel %vm3373, 1.0, %v3149
      %v3406 = vsel %vm3374, 1.0, %v3150
      %v3407 = vsel %vm3375, 1.0, %v3151
      %v3408 = vsel %vm3376, 1.0, %v3152
      %v3409 = vsel %vm3377, 1.0, %v3153
      %v3410 = vsel %vm3378, 1.0, %v3154
      %v3411 = vsel %vm3379, 1.0, %v3155
      %v3412 = vsel %vm3380, 1.0, %v3156
      %v3413 = vld [vmem:[%s333] ss:$4 sm:$0x3]
      %v3415 = vperm.slane %v3413, 0
      %v3416 = vperm.slane %v3413, 1
      %3420 = vset.pattern.permute.xlu0 0
      %3421 = vperm.xlu0 %3420, %v380
      %v3422 = vpop.permute.xlu0 %3421
      %3425 = vset.pattern.permute.xlu0 0
      %3426 = vperm.xlu0 %3425, %v381
      %v3427 = vpop.permute.xlu0 %3426
      %3430 = vset.pattern.permute.xlu0 0
      %3431 = vperm.xlu0 %3430, %v382
      %v3432 = vpop.permute.xlu0 %3431
      %3435 = vset.pattern.permute.xlu0 0
      %3436 = vperm.xlu0 %3435, %v383
      %v3437 = vpop.permute.xlu0 %3436
      %3440 = vset.pattern.permute.xlu0 0
      %3441 = vperm.xlu0 %3440, %v384
      %v3442 = vpop.permute.xlu0 %3441
      %3445 = vset.pattern.permute.xlu0 0
      %3446 = vperm.xlu0 %3445, %v385
      %v3447 = vpop.permute.xlu0 %3446
      %3450 = vset.pattern.permute.xlu0 0
      %3451 = vperm.xlu0 %3450, %v386
      %v3452 = vpop.permute.xlu0 %3451
      %3455 = vset.pattern.permute.xlu0 0
      %3456 = vperm.xlu0 %3455, %v387
      %v3457 = vpop.permute.xlu0 %3456
      %3460 = vset.pattern.permute.xlu0 0
      %3461 = vperm.xlu0 %3460, %v388
      %v3462 = vpop.permute.xlu0 %3461
      %3465 = vset.pattern.permute.xlu0 0
      %3466 = vperm.xlu0 %3465, %v389
      %v3467 = vpop.permute.xlu0 %3466
      %3470 = vset.pattern.permute.xlu0 0
      %3471 = vperm.xlu0 %3470, %v390
      %v3472 = vpop.permute.xlu0 %3471
      %3475 = vset.pattern.permute.xlu0 0
      %3476 = vperm.xlu0 %3475, %v391
      %v3477 = vpop.permute.xlu0 %3476
      %3480 = vset.pattern.permute.xlu0 0
      %3481 = vperm.xlu0 %3480, %v392
      %v3482 = vpop.permute.xlu0 %3481
      %3485 = vset.pattern.permute.xlu0 0
      %3486 = vperm.xlu0 %3485, %v393
      %v3487 = vpop.permute.xlu0 %3486
      %3490 = vset.pattern.permute.xlu0 0
      %3491 = vperm.xlu0 %3490, %v394
      %v3492 = vpop.permute.xlu0 %3491
      %3495 = vset.pattern.permute.xlu0 0
      %3496 = vperm.xlu0 %3495, %v395
      %v3497 = vpop.permute.xlu0 %3496
      %v3499 = vsub.f32 %v3415, %v3422
      %v3500 = vsub.f32 %v3416, %v3422
      %v3501 = vsub.f32 %v3415, %v3427
      %v3502 = vsub.f32 %v3416, %v3427
      %v3503 = vsub.f32 %v3415, %v3432
      %v3504 = vsub.f32 %v3416, %v3432
      %v3505 = vsub.f32 %v3415, %v3437
      %v3506 = vsub.f32 %v3416, %v3437
      %v3507 = vsub.f32 %v3415, %v3442
      %v3508 = vsub.f32 %v3416, %v3442
      %v3509 = vsub.f32 %v3415, %v3447
      %v3510 = vsub.f32 %v3416, %v3447
      %v3511 = vsub.f32 %v3415, %v3452
      %v3512 = vsub.f32 %v3416, %v3452
      %v3513 = vsub.f32 %v3415, %v3457
      %v3514 = vsub.f32 %v3416, %v3457
      %v3515 = vsub.f32 %v3415, %v3462
      %v3516 = vsub.f32 %v3416, %v3462
      %v3517 = vsub.f32 %v3415, %v3467
      %v3518 = vsub.f32 %v3416, %v3467
      %v3519 = vsub.f32 %v3415, %v3472
      %v3520 = vsub.f32 %v3416, %v3472
      %v3521 = vsub.f32 %v3415, %v3477
      %v3522 = vsub.f32 %v3416, %v3477
      %v3523 = vsub.f32 %v3415, %v3482
      %v3524 = vsub.f32 %v3416, %v3482
      %v3525 = vsub.f32 %v3415, %v3487
      %v3526 = vsub.f32 %v3416, %v3487
      %v3527 = vsub.f32 %v3415, %v3492
      %v3528 = vsub.f32 %v3416, %v3492
      %v3529 = vsub.f32 %v3415, %v3497
      %v3530 = vsub.f32 %v3416, %v3497
      %s3531 = scalar_lea.vmem %s333, 1
      %v3532 = vld [vmem:[%s3531] ss:$4 sm:$0x3]
      %v3534 = vperm.slane %v3532, 0
      %v3535 = vperm.slane %v3532, 1
      %3538 = vset.pattern.permute.xlu0 1
      %3539 = vperm.xlu0 %3538, %v380
      %v3540 = vpop.permute.xlu0 %3539
      %3542 = vset.pattern.permute.xlu0 1
      %3543 = vperm.xlu0 %3542, %v381
      %v3544 = vpop.permute.xlu0 %3543
      %3546 = vset.pattern.permute.xlu0 1
      %3547 = vperm.xlu0 %3546, %v382
      %v3548 = vpop.permute.xlu0 %3547
      %3550 = vset.pattern.permute.xlu0 1
      %3551 = vperm.xlu0 %3550, %v383
      %v3552 = vpop.permute.xlu0 %3551
      %3554 = vset.pattern.permute.xlu0 1
      %3555 = vperm.xlu0 %3554, %v384
      %v3556 = vpop.permute.xlu0 %3555
      %3558 = vset.pattern.permute.xlu0 1
      %3559 = vperm.xlu0 %3558, %v385
      %v3560 = vpop.permute.xlu0 %3559
      %3562 = vset.pattern.permute.xlu0 1
      %3563 = vperm.xlu0 %3562, %v386
      %v3564 = vpop.permute.xlu0 %3563
      %3566 = vset.pattern.permute.xlu0 1
      %3567 = vperm.xlu0 %3566, %v387
      %v3568 = vpop.permute.xlu0 %3567
      %3570 = vset.pattern.permute.xlu0 1
      %3571 = vperm.xlu0 %3570, %v388
      %v3572 = vpop.permute.xlu0 %3571
      %3574 = vset.pattern.permute.xlu0 1
      %3575 = vperm.xlu0 %3574, %v389
      %v3576 = vpop.permute.xlu0 %3575
      %3578 = vset.pattern.permute.xlu0 1
      %3579 = vperm.xlu0 %3578, %v390
      %v3580 = vpop.permute.xlu0 %3579
      %3582 = vset.pattern.permute.xlu0 1
      %3583 = vperm.xlu0 %3582, %v391
      %v3584 = vpop.permute.xlu0 %3583
      %3586 = vset.pattern.permute.xlu0 1
      %3587 = vperm.xlu0 %3586, %v392
      %v3588 = vpop.permute.xlu0 %3587
      %3590 = vset.pattern.permute.xlu0 1
      %3591 = vperm.xlu0 %3590, %v393
      %v3592 = vpop.permute.xlu0 %3591
      %3594 = vset.pattern.permute.xlu0 1
      %3595 = vperm.xlu0 %3594, %v394
      %v3596 = vpop.permute.xlu0 %3595
      %3598 = vset.pattern.permute.xlu0 1
      %3599 = vperm.xlu0 %3598, %v395
      %v3600 = vpop.permute.xlu0 %3599
      %v3602 = vsub.f32 %v3534, %v3540
      %v3603 = vsub.f32 %v3535, %v3540
      %v3604 = vsub.f32 %v3534, %v3544
      %v3605 = vsub.f32 %v3535, %v3544
      %v3606 = vsub.f32 %v3534, %v3548
      %v3607 = vsub.f32 %v3535, %v3548
      %v3608 = vsub.f32 %v3534, %v3552
      %v3609 = vsub.f32 %v3535, %v3552
      %v3610 = vsub.f32 %v3534, %v3556
      %v3611 = vsub.f32 %v3535, %v3556
      %v3612 = vsub.f32 %v3534, %v3560
      %v3613 = vsub.f32 %v3535, %v3560
      %v3614 = vsub.f32 %v3534, %v3564
      %v3615 = vsub.f32 %v3535, %v3564
      %v3616 = vsub.f32 %v3534, %v3568
      %v3617 = vsub.f32 %v3535, %v3568
      %v3618 = vsub.f32 %v3534, %v3572
      %v3619 = vsub.f32 %v3535, %v3572
      %v3620 = vsub.f32 %v3534, %v3576
      %v3621 = vsub.f32 %v3535, %v3576
      %v3622 = vsub.f32 %v3534, %v3580
      %v3623 = vsub.f32 %v3535, %v3580
      %v3624 = vsub.f32 %v3534, %v3584
      %v3625 = vsub.f32 %v3535, %v3584
      %v3626 = vsub.f32 %v3534, %v3588
      %v3627 = vsub.f32 %v3535, %v3588
      %v3628 = vsub.f32 %v3534, %v3592
      %v3629 = vsub.f32 %v3535, %v3592
      %v3630 = vsub.f32 %v3534, %v3596
      %v3631 = vsub.f32 %v3535, %v3596
      %v3632 = vsub.f32 %v3534, %v3600
      %v3633 = vsub.f32 %v3535, %v3600
      %s3634 = scalar_lea.vmem %s333, 2
      %v3635 = vld [vmem:[%s3634] ss:$4 sm:$0x3]
      %v3637 = vperm.slane %v3635, 0
      %v3638 = vperm.slane %v3635, 1
      %3641 = vset.pattern.permute.xlu0 2
      %3642 = vperm.xlu0 %3641, %v380
      %v3643 = vpop.permute.xlu0 %3642
      %3645 = vset.pattern.permute.xlu0 2
      %3646 = vperm.xlu0 %3645, %v381
      %v3647 = vpop.permute.xlu0 %3646
      %3649 = vset.pattern.permute.xlu0 2
      %3650 = vperm.xlu0 %3649, %v382
      %v3651 = vpop.permute.xlu0 %3650
      %3653 = vset.pattern.permute.xlu0 2
      %3654 = vperm.xlu0 %3653, %v383
      %v3655 = vpop.permute.xlu0 %3654
      %3657 = vset.pattern.permute.xlu0 2
      %3658 = vperm.xlu0 %3657, %v384
      %v3659 = vpop.permute.xlu0 %3658
      %3661 = vset.pattern.permute.xlu0 2
      %3662 = vperm.xlu0 %3661, %v385
      %v3663 = vpop.permute.xlu0 %3662
      %3665 = vset.pattern.permute.xlu0 2
      %3666 = vperm.xlu0 %3665, %v386
      %v3667 = vpop.permute.xlu0 %3666
      %3669 = vset.pattern.permute.xlu0 2
      %3670 = vperm.xlu0 %3669, %v387
      %v3671 = vpop.permute.xlu0 %3670
      %3673 = vset.pattern.permute.xlu0 2
      %3674 = vperm.xlu0 %3673, %v388
      %v3675 = vpop.permute.xlu0 %3674
      %3677 = vset.pattern.permute.xlu0 2
      %3678 = vperm.xlu0 %3677, %v389
      %v3679 = vpop.permute.xlu0 %3678
      %3681 = vset.pattern.permute.xlu0 2
      %3682 = vperm.xlu0 %3681, %v390
      %v3683 = vpop.permute.xlu0 %3682
      %3685 = vset.pattern.permute.xlu0 2
      %3686 = vperm.xlu0 %3685, %v391
      %v3687 = vpop.permute.xlu0 %3686
      %3689 = vset.pattern.permute.xlu0 2
      %3690 = vperm.xlu0 %3689, %v392
      %v3691 = vpop.permute.xlu0 %3690
      %3693 = vset.pattern.permute.xlu0 2
      %3694 = vperm.xlu0 %3693, %v393
      %v3695 = vpop.permute.xlu0 %3694
      %3697 = vset.pattern.permute.xlu0 2
      %3698 = vperm.xlu0 %3697, %v394
      %v3699 = vpop.permute.xlu0 %3698
      %3701 = vset.pattern.permute.xlu0 2
      %3702 = vperm.xlu0 %3701, %v395
      %v3703 = vpop.permute.xlu0 %3702
      %v3705 = vsub.f32 %v3637, %v3643
      %v3706 = vsub.f32 %v3638, %v3643
      %v3707 = vsub.f32 %v3637, %v3647
      %v3708 = vsub.f32 %v3638, %v3647
      %v3709 = vsub.f32 %v3637, %v3651
      %v3710 = vsub.f32 %v3638, %v3651
      %v3711 = vsub.f32 %v3637, %v3655
      %v3712 = vsub.f32 %v3638, %v3655
      %v3713 = vsub.f32 %v3637, %v3659
      %v3714 = vsub.f32 %v3638, %v3659
      %v3715 = vsub.f32 %v3637, %v3663
      %v3716 = vsub.f32 %v3638, %v3663
      %v3717 = vsub.f32 %v3637, %v3667
      %v3718 = vsub.f32 %v3638, %v3667
      %v3719 = vsub.f32 %v3637, %v3671
      %v3720 = vsub.f32 %v3638, %v3671
      %v3721 = vsub.f32 %v3637, %v3675
      %v3722 = vsub.f32 %v3638, %v3675
      %v3723 = vsub.f32 %v3637, %v3679
      %v3724 = vsub.f32 %v3638, %v3679
      %v3725 = vsub.f32 %v3637, %v3683
      %v3726 = vsub.f32 %v3638, %v3683
      %v3727 = vsub.f32 %v3637, %v3687
      %v3728 = vsub.f32 %v3638, %v3687
      %v3729 = vsub.f32 %v3637, %v3691
      %v3730 = vsub.f32 %v3638, %v3691
      %v3731 = vsub.f32 %v3637, %v3695
      %v3732 = vsub.f32 %v3638, %v3695
      %v3733 = vsub.f32 %v3637, %v3699
      %v3734 = vsub.f32 %v3638, %v3699
      %v3735 = vsub.f32 %v3637, %v3703
      %v3736 = vsub.f32 %v3638, %v3703
      %v3737 = vmul.f32 %v3381, %v482
      %v3738 = vmul.f32 %v3382, %v483
      %v3739 = vmul.f32 %v3383, %v484
      %v3740 = vmul.f32 %v3384, %v485
      %v3741 = vmul.f32 %v3385, %v486
      %v3742 = vmul.f32 %v3386, %v487
      %v3743 = vmul.f32 %v3387, %v488
      %v3744 = vmul.f32 %v3388, %v489
      %v3745 = vmul.f32 %v3389, %v490
      %v3746 = vmul.f32 %v3390, %v491
      %v3747 = vmul.f32 %v3391, %v492
      %v3748 = vmul.f32 %v3392, %v493
      %v3749 = vmul.f32 %v3393, %v494
      %v3750 = vmul.f32 %v3394, %v495
      %v3751 = vmul.f32 %v3395, %v496
      %v3752 = vmul.f32 %v3396, %v497
      %v3753 = vmul.f32 %v3397, %v498
      %v3754 = vmul.f32 %v3398, %v499
      %v3755 = vmul.f32 %v3399, %v500
      %v3756 = vmul.f32 %v3400, %v501
      %v3757 = vmul.f32 %v3401, %v502
      %v3758 = vmul.f32 %v3402, %v503
      %v3759 = vmul.f32 %v3403, %v504
      %v3760 = vmul.f32 %v3404, %v505
      %v3761 = vmul.f32 %v3405, %v506
      %v3762 = vmul.f32 %v3406, %v507
      %v3763 = vmul.f32 %v3407, %v508
      %v3764 = vmul.f32 %v3408, %v509
      %v3765 = vmul.f32 %v3409, %v510
      %v3766 = vmul.f32 %v3410, %v511
      %v3767 = vmul.f32 %v3411, %v512
      %v3768 = vmul.f32 %v3412, %v513
      %v3769 = vmul.f32 %v3381, %v585
      %v3770 = vmul.f32 %v3382, %v586
      %v3771 = vmul.f32 %v3383, %v587
      %v3772 = vmul.f32 %v3384, %v588
      %v3773 = vmul.f32 %v3385, %v589
      %v3774 = vmul.f32 %v3386, %v590
      %v3775 = vmul.f32 %v3387, %v591
      %v3776 = vmul.f32 %v3388, %v592
      %v3777 = vmul.f32 %v3389, %v593
      %v3778 = vmul.f32 %v3390, %v594
      %v3779 = vmul.f32 %v3391, %v595
      %v3780 = vmul.f32 %v3392, %v596
      %v3781 = vmul.f32 %v3393, %v597
      %v3782 = vmul.f32 %v3394, %v598
      %v3783 = vmul.f32 %v3395, %v599
      %v3784 = vmul.f32 %v3396, %v600
      %v3785 = vmul.f32 %v3397, %v601
      %v3786 = vmul.f32 %v3398, %v602
      %v3787 = vmul.f32 %v3399, %v603
      %v3788 = vmul.f32 %v3400, %v604
      %v3789 = vmul.f32 %v3401, %v605
      %v3790 = vmul.f32 %v3402, %v606
      %v3791 = vmul.f32 %v3403, %v607
      %v3792 = vmul.f32 %v3404, %v608
      %v3793 = vmul.f32 %v3405, %v609
      %v3794 = vmul.f32 %v3406, %v610
      %v3795 = vmul.f32 %v3407, %v611
      %v3796 = vmul.f32 %v3408, %v612
      %v3797 = vmul.f32 %v3409, %v613
      %v3798 = vmul.f32 %v3410, %v614
      %v3799 = vmul.f32 %v3411, %v615
      %v3800 = vmul.f32 %v3412, %v616
      %v3801 = vmul.f32 %v3381, %v688
      %v3802 = vmul.f32 %v3382, %v689
      %v3803 = vmul.f32 %v3383, %v690
      %v3804 = vmul.f32 %v3384, %v691
      %v3805 = vmul.f32 %v3385, %v692
      %v3806 = vmul.f32 %v3386, %v693
      %v3807 = vmul.f32 %v3387, %v694
      %v3808 = vmul.f32 %v3388, %v695
      %v3809 = vmul.f32 %v3389, %v696
      %v3810 = vmul.f32 %v3390, %v697
      %v3811 = vmul.f32 %v3391, %v698
      %v3812 = vmul.f32 %v3392, %v699
      %v3813 = vmul.f32 %v3393, %v700
      %v3814 = vmul.f32 %v3394, %v701
      %v3815 = vmul.f32 %v3395, %v702
      %v3816 = vmul.f32 %v3396, %v703
      %v3817 = vmul.f32 %v3397, %v704
      %v3818 = vmul.f32 %v3398, %v705
      %v3819 = vmul.f32 %v3399, %v706
      %v3820 = vmul.f32 %v3400, %v707
      %v3821 = vmul.f32 %v3401, %v708
      %v3822 = vmul.f32 %v3402, %v709
      %v3823 = vmul.f32 %v3403, %v710
      %v3824 = vmul.f32 %v3404, %v711
      %v3825 = vmul.f32 %v3405, %v712
      %v3826 = vmul.f32 %v3406, %v713
      %v3827 = vmul.f32 %v3407, %v714
      %v3828 = vmul.f32 %v3408, %v715
      %v3829 = vmul.f32 %v3409, %v716
      %v3830 = vmul.f32 %v3410, %v717
      %v3831 = vmul.f32 %v3411, %v718
      %v3832 = vmul.f32 %v3412, %v719
      %v3833 = vadd.f32 %v3737, %v3738
      %3834 = vadd.xlane.f32.xlu0 %v3833
      %v3835 = vpop.xlane.xlu0 %3834
      %v3836 = vadd.f32 %v3739, %v3740
      %3837 = vadd.xlane.f32.xlu0 %v3836
      %v3838 = vpop.xlane.xlu0 %3837
      %v3839 = vadd.f32 %v3741, %v3742
      %3840 = vadd.xlane.f32.xlu0 %v3839
      %v3841 = vpop.xlane.xlu0 %3840
      %v3842 = vadd.f32 %v3743, %v3744
      %3843 = vadd.xlane.f32.xlu0 %v3842
      %v3844 = vpop.xlane.xlu0 %3843
      %v3845 = vadd.f32 %v3745, %v3746
      %3846 = vadd.xlane.f32.xlu0 %v3845
      %v3847 = vpop.xlane.xlu0 %3846
      %v3848 = vadd.f32 %v3747, %v3748
      %3849 = vadd.xlane.f32.xlu0 %v3848
      %v3850 = vpop.xlane.xlu0 %3849
      %v3851 = vadd.f32 %v3749, %v3750
      %3852 = vadd.xlane.f32.xlu0 %v3851
      %v3853 = vpop.xlane.xlu0 %3852
      %v3854 = vadd.f32 %v3751, %v3752
      %3855 = vadd.xlane.f32.xlu0 %v3854
      %v3856 = vpop.xlane.xlu0 %3855
      %v3857 = vadd.f32 %v3753, %v3754
      %3858 = vadd.xlane.f32.xlu0 %v3857
      %v3859 = vpop.xlane.xlu0 %3858
      %v3860 = vadd.f32 %v3755, %v3756
      %3861 = vadd.xlane.f32.xlu0 %v3860
      %v3862 = vpop.xlane.xlu0 %3861
      %v3863 = vadd.f32 %v3757, %v3758
      %3864 = vadd.xlane.f32.xlu0 %v3863
      %v3865 = vpop.xlane.xlu0 %3864
      %v3866 = vadd.f32 %v3759, %v3760
      %3867 = vadd.xlane.f32.xlu0 %v3866
      %v3868 = vpop.xlane.xlu0 %3867
      %v3869 = vadd.f32 %v3761, %v3762
      %3870 = vadd.xlane.f32.xlu0 %v3869
      %v3871 = vpop.xlane.xlu0 %3870
      %v3872 = vadd.f32 %v3763, %v3764
      %3873 = vadd.xlane.f32.xlu0 %v3872
      %v3874 = vpop.xlane.xlu0 %3873
      %v3875 = vadd.f32 %v3765, %v3766
      %3876 = vadd.xlane.f32.xlu0 %v3875
      %v3877 = vpop.xlane.xlu0 %3876
      %v3878 = vadd.f32 %v3767, %v3768
      %3879 = vadd.xlane.f32.xlu0 %v3878
      %v3880 = vpop.xlane.xlu0 %3879
      %v3881 = vadd.f32 %v3769, %v3770
      %3882 = vadd.xlane.f32.xlu0 %v3881
      %v3883 = vpop.xlane.xlu0 %3882
      %v3884 = vadd.f32 %v3771, %v3772
      %3885 = vadd.xlane.f32.xlu0 %v3884
      %v3886 = vpop.xlane.xlu0 %3885
      %v3887 = vadd.f32 %v3773, %v3774
      %3888 = vadd.xlane.f32.xlu0 %v3887
      %v3889 = vpop.xlane.xlu0 %3888
      %v3890 = vadd.f32 %v3775, %v3776
      %3891 = vadd.xlane.f32.xlu0 %v3890
      %v3892 = vpop.xlane.xlu0 %3891
      %v3893 = vadd.f32 %v3777, %v3778
      %3894 = vadd.xlane.f32.xlu0 %v3893
      %v3895 = vpop.xlane.xlu0 %3894
      %v3896 = vadd.f32 %v3779, %v3780
      %3897 = vadd.xlane.f32.xlu0 %v3896
      %v3898 = vpop.xlane.xlu0 %3897
      %v3899 = vadd.f32 %v3781, %v3782
      %3900 = vadd.xlane.f32.xlu0 %v3899
      %v3901 = vpop.xlane.xlu0 %3900
      %v3902 = vadd.f32 %v3783, %v3784
      %3903 = vadd.xlane.f32.xlu0 %v3902
      %v3904 = vpop.xlane.xlu0 %3903
      %v3905 = vadd.f32 %v3785, %v3786
      %3906 = vadd.xlane.f32.xlu0 %v3905
      %v3907 = vpop.xlane.xlu0 %3906
      %v3908 = vadd.f32 %v3787, %v3788
      %3909 = vadd.xlane.f32.xlu0 %v3908
      %v3910 = vpop.xlane.xlu0 %3909
      %v3911 = vadd.f32 %v3789, %v3790
      %3912 = vadd.xlane.f32.xlu0 %v3911
      %v3913 = vpop.xlane.xlu0 %3912
      %v3914 = vadd.f32 %v3791, %v3792
      %3915 = vadd.xlane.f32.xlu0 %v3914
      %v3916 = vpop.xlane.xlu0 %3915
      %v3917 = vadd.f32 %v3793, %v3794
      %3918 = vadd.xlane.f32.xlu0 %v3917
      %v3919 = vpop.xlane.xlu0 %3918
      %v3920 = vadd.f32 %v3795, %v3796
      %3921 = vadd.xlane.f32.xlu0 %v3920
      %v3922 = vpop.xlane.xlu0 %3921
      %v3923 = vadd.f32 %v3797, %v3798
      %3924 = vadd.xlane.f32.xlu0 %v3923
      %v3925 = vpop.xlane.xlu0 %3924
      %v3926 = vadd.f32 %v3799, %v3800
      %3927 = vadd.xlane.f32.xlu0 %v3926
      %v3928 = vpop.xlane.xlu0 %3927
      %v3929 = vadd.f32 %v3801, %v3802
      %3930 = vadd.xlane.f32.xlu0 %v3929
      %v3931 = vpop.xlane.xlu0 %3930
      %v3932 = vadd.f32 %v3803, %v3804
      %3933 = vadd.xlane.f32.xlu0 %v3932
      %v3934 = vpop.xlane.xlu0 %3933
      %v3935 = vadd.f32 %v3805, %v3806
      %3936 = vadd.xlane.f32.xlu0 %v3935
      %v3937 = vpop.xlane.xlu0 %3936
      %v3938 = vadd.f32 %v3807, %v3808
      %3939 = vadd.xlane.f32.xlu0 %v3938
      %v3940 = vpop.xlane.xlu0 %3939
      %v3941 = vadd.f32 %v3809, %v3810
      %3942 = vadd.xlane.f32.xlu0 %v3941
      %v3943 = vpop.xlane.xlu0 %3942
      %v3944 = vadd.f32 %v3811, %v3812
      %3945 = vadd.xlane.f32.xlu0 %v3944
      %v3946 = vpop.xlane.xlu0 %3945
      %v3947 = vadd.f32 %v3813, %v3814
      %3948 = vadd.xlane.f32.xlu0 %v3947
      %v3949 = vpop.xlane.xlu0 %3948
      %v3950 = vadd.f32 %v3815, %v3816
      %3951 = vadd.xlane.f32.xlu0 %v3950
      %v3952 = vpop.xlane.xlu0 %3951
      %v3953 = vadd.f32 %v3817, %v3818
      %3954 = vadd.xlane.f32.xlu0 %v3953
      %v3955 = vpop.xlane.xlu0 %3954
      %v3956 = vadd.f32 %v3819, %v3820
      %3957 = vadd.xlane.f32.xlu0 %v3956
      %v3958 = vpop.xlane.xlu0 %3957
      %v3959 = vadd.f32 %v3821, %v3822
      %3960 = vadd.xlane.f32.xlu0 %v3959
      %v3961 = vpop.xlane.xlu0 %3960
      %v3962 = vadd.f32 %v3823, %v3824
      %3963 = vadd.xlane.f32.xlu0 %v3962
      %v3964 = vpop.xlane.xlu0 %3963
      %v3965 = vadd.f32 %v3825, %v3826
      %3966 = vadd.xlane.f32.xlu0 %v3965
      %v3967 = vpop.xlane.xlu0 %3966
      %v3968 = vadd.f32 %v3827, %v3828
      %3969 = vadd.xlane.f32.xlu0 %v3968
      %v3970 = vpop.xlane.xlu0 %3969
      %v3971 = vadd.f32 %v3829, %v3830
      %3972 = vadd.xlane.f32.xlu0 %v3971
      %v3973 = vpop.xlane.xlu0 %3972
      %v3974 = vadd.f32 %v3831, %v3832
      %3975 = vadd.xlane.f32.xlu0 %v3974
      %v3976 = vpop.xlane.xlu0 %3975
      %v3977 = vmul.f32 %v3737, %v482
      %v3978 = vmul.f32 %v3738, %v483
      %v3979 = vmul.f32 %v3739, %v484
      %v3980 = vmul.f32 %v3740, %v485
      %v3981 = vmul.f32 %v3741, %v486
      %v3982 = vmul.f32 %v3742, %v487
      %v3983 = vmul.f32 %v3743, %v488
      %v3984 = vmul.f32 %v3744, %v489
      %v3985 = vmul.f32 %v3745, %v490
      %v3986 = vmul.f32 %v3746, %v491
      %v3987 = vmul.f32 %v3747, %v492
      %v3988 = vmul.f32 %v3748, %v493
      %v3989 = vmul.f32 %v3749, %v494
      %v3990 = vmul.f32 %v3750, %v495
      %v3991 = vmul.f32 %v3751, %v496
      %v3992 = vmul.f32 %v3752, %v497
      %v3993 = vmul.f32 %v3753, %v498
      %v3994 = vmul.f32 %v3754, %v499
      %v3995 = vmul.f32 %v3755, %v500
      %v3996 = vmul.f32 %v3756, %v501
      %v3997 = vmul.f32 %v3757, %v502
      %v3998 = vmul.f32 %v3758, %v503
      %v3999 = vmul.f32 %v3759, %v504
      %v4000 = vmul.f32 %v3760, %v505
      %v4001 = vmul.f32 %v3761, %v506
      %v4002 = vmul.f32 %v3762, %v507
      %v4003 = vmul.f32 %v3763, %v508
      %v4004 = vmul.f32 %v3764, %v509
      %v4005 = vmul.f32 %v3765, %v510
      %v4006 = vmul.f32 %v3766, %v511
      %v4007 = vmul.f32 %v3767, %v512
      %v4008 = vmul.f32 %v3768, %v513
      %v4009 = vadd.f32 %v3977, %v3978
      %4010 = vadd.xlane.f32.xlu0 %v4009
      %v4011 = vpop.xlane.xlu0 %4010
      %v4012 = vadd.f32 %v3979, %v3980
      %4013 = vadd.xlane.f32.xlu0 %v4012
      %v4014 = vpop.xlane.xlu0 %4013
      %v4015 = vadd.f32 %v3981, %v3982
      %4016 = vadd.xlane.f32.xlu0 %v4015
      %v4017 = vpop.xlane.xlu0 %4016
      %v4018 = vadd.f32 %v3983, %v3984
      %4019 = vadd.xlane.f32.xlu0 %v4018
      %v4020 = vpop.xlane.xlu0 %4019
      %v4021 = vadd.f32 %v3985, %v3986
      %4022 = vadd.xlane.f32.xlu0 %v4021
      %v4023 = vpop.xlane.xlu0 %4022
      %v4024 = vadd.f32 %v3987, %v3988
      %4025 = vadd.xlane.f32.xlu0 %v4024
      %v4026 = vpop.xlane.xlu0 %4025
      %v4027 = vadd.f32 %v3989, %v3990
      %4028 = vadd.xlane.f32.xlu0 %v4027
      %v4029 = vpop.xlane.xlu0 %4028
      %v4030 = vadd.f32 %v3991, %v3992
      %4031 = vadd.xlane.f32.xlu0 %v4030
      %v4032 = vpop.xlane.xlu0 %4031
      %v4033 = vadd.f32 %v3993, %v3994
      %4034 = vadd.xlane.f32.xlu0 %v4033
      %v4035 = vpop.xlane.xlu0 %4034
      %v4036 = vadd.f32 %v3995, %v3996
      %4037 = vadd.xlane.f32.xlu0 %v4036
      %v4038 = vpop.xlane.xlu0 %4037
      %v4039 = vadd.f32 %v3997, %v3998
      %4040 = vadd.xlane.f32.xlu0 %v4039
      %v4041 = vpop.xlane.xlu0 %4040
      %v4042 = vadd.f32 %v3999, %v4000
      %4043 = vadd.xlane.f32.xlu0 %v4042
      %v4044 = vpop.xlane.xlu0 %4043
      %v4045 = vadd.f32 %v4001, %v4002
      %4046 = vadd.xlane.f32.xlu0 %v4045
      %v4047 = vpop.xlane.xlu0 %4046
      %v4048 = vadd.f32 %v4003, %v4004
      %4049 = vadd.xlane.f32.xlu0 %v4048
      %v4050 = vpop.xlane.xlu0 %4049
      %v4051 = vadd.f32 %v4005, %v4006
      %4052 = vadd.xlane.f32.xlu0 %v4051
      %v4053 = vpop.xlane.xlu0 %4052
      %v4054 = vadd.f32 %v4007, %v4008
      %4055 = vadd.xlane.f32.xlu0 %v4054
      %v4056 = vpop.xlane.xlu0 %4055
      %v4057 = vmul.f32 %v3737, %v585
      %v4058 = vmul.f32 %v3738, %v586
      %v4059 = vmul.f32 %v3739, %v587
      %v4060 = vmul.f32 %v3740, %v588
      %v4061 = vmul.f32 %v3741, %v589
      %v4062 = vmul.f32 %v3742, %v590
      %v4063 = vmul.f32 %v3743, %v591
      %v4064 = vmul.f32 %v3744, %v592
      %v4065 = vmul.f32 %v3745, %v593
      %v4066 = vmul.f32 %v3746, %v594
      %v4067 = vmul.f32 %v3747, %v595
      %v4068 = vmul.f32 %v3748, %v596
      %v4069 = vmul.f32 %v3749, %v597
      %v4070 = vmul.f32 %v3750, %v598
      %v4071 = vmul.f32 %v3751, %v599
      %v4072 = vmul.f32 %v3752, %v600
      %v4073 = vmul.f32 %v3753, %v601
      %v4074 = vmul.f32 %v3754, %v602
      %v4075 = vmul.f32 %v3755, %v603
      %v4076 = vmul.f32 %v3756, %v604
      %v4077 = vmul.f32 %v3757, %v605
      %v4078 = vmul.f32 %v3758, %v606
      %v4079 = vmul.f32 %v3759, %v607
      %v4080 = vmul.f32 %v3760, %v608
      %v4081 = vmul.f32 %v3761, %v609
      %v4082 = vmul.f32 %v3762, %v610
      %v4083 = vmul.f32 %v3763, %v611
      %v4084 = vmul.f32 %v3764, %v612
      %v4085 = vmul.f32 %v3765, %v613
      %v4086 = vmul.f32 %v3766, %v614
      %v4087 = vmul.f32 %v3767, %v615
      %v4088 = vmul.f32 %v3768, %v616
      %v4089 = vadd.f32 %v4057, %v4058
      %4090 = vadd.xlane.f32.xlu0 %v4089
      %v4091 = vpop.xlane.xlu0 %4090
      %v4092 = vadd.f32 %v4059, %v4060
      %4093 = vadd.xlane.f32.xlu0 %v4092
      %v4094 = vpop.xlane.xlu0 %4093
      %v4095 = vadd.f32 %v4061, %v4062
      %4096 = vadd.xlane.f32.xlu0 %v4095
      %v4097 = vpop.xlane.xlu0 %4096
      %v4098 = vadd.f32 %v4063, %v4064
      %4099 = vadd.xlane.f32.xlu0 %v4098
      %v4100 = vpop.xlane.xlu0 %4099
      %v4101 = vadd.f32 %v4065, %v4066
      %4102 = vadd.xlane.f32.xlu0 %v4101
      %v4103 = vpop.xlane.xlu0 %4102
      %v4104 = vadd.f32 %v4067, %v4068
      %4105 = vadd.xlane.f32.xlu0 %v4104
      %v4106 = vpop.xlane.xlu0 %4105
      %v4107 = vadd.f32 %v4069, %v4070
      %4108 = vadd.xlane.f32.xlu0 %v4107
      %v4109 = vpop.xlane.xlu0 %4108
      %v4110 = vadd.f32 %v4071, %v4072
      %4111 = vadd.xlane.f32.xlu0 %v4110
      %v4112 = vpop.xlane.xlu0 %4111
      %v4113 = vadd.f32 %v4073, %v4074
      %4114 = vadd.xlane.f32.xlu0 %v4113
      %v4115 = vpop.xlane.xlu0 %4114
      %v4116 = vadd.f32 %v4075, %v4076
      %4117 = vadd.xlane.f32.xlu0 %v4116
      %v4118 = vpop.xlane.xlu0 %4117
      %v4119 = vadd.f32 %v4077, %v4078
      %4120 = vadd.xlane.f32.xlu0 %v4119
      %v4121 = vpop.xlane.xlu0 %4120
      %v4122 = vadd.f32 %v4079, %v4080
      %4123 = vadd.xlane.f32.xlu0 %v4122
      %v4124 = vpop.xlane.xlu0 %4123
      %v4125 = vadd.f32 %v4081, %v4082
      %4126 = vadd.xlane.f32.xlu0 %v4125
      %v4127 = vpop.xlane.xlu0 %4126
      %v4128 = vadd.f32 %v4083, %v4084
      %4129 = vadd.xlane.f32.xlu0 %v4128
      %v4130 = vpop.xlane.xlu0 %4129
      %v4131 = vadd.f32 %v4085, %v4086
      %4132 = vadd.xlane.f32.xlu0 %v4131
      %v4133 = vpop.xlane.xlu0 %4132
      %v4134 = vadd.f32 %v4087, %v4088
      %4135 = vadd.xlane.f32.xlu0 %v4134
      %v4136 = vpop.xlane.xlu0 %4135
      %v4137 = vmul.f32 %v3737, %v688
      %v4138 = vmul.f32 %v3738, %v689
      %v4139 = vmul.f32 %v3739, %v690
      %v4140 = vmul.f32 %v3740, %v691
      %v4141 = vmul.f32 %v3741, %v692
      %v4142 = vmul.f32 %v3742, %v693
      %v4143 = vmul.f32 %v3743, %v694
      %v4144 = vmul.f32 %v3744, %v695
      %v4145 = vmul.f32 %v3745, %v696
      %v4146 = vmul.f32 %v3746, %v697
      %v4147 = vmul.f32 %v3747, %v698
      %v4148 = vmul.f32 %v3748, %v699
      %v4149 = vmul.f32 %v3749, %v700
      %v4150 = vmul.f32 %v3750, %v701
      %v4151 = vmul.f32 %v3751, %v702
      %v4152 = vmul.f32 %v3752, %v703
      %v4153 = vmul.f32 %v3753, %v704
      %v4154 = vmul.f32 %v3754, %v705
      %v4155 = vmul.f32 %v3755, %v706
      %v4156 = vmul.f32 %v3756, %v707
      %v4157 = vmul.f32 %v3757, %v708
      %v4158 = vmul.f32 %v3758, %v709
      %v4159 = vmul.f32 %v3759, %v710
      %v4160 = vmul.f32 %v3760, %v711
      %v4161 = vmul.f32 %v3761, %v712
      %v4162 = vmul.f32 %v3762, %v713
      %v4163 = vmul.f32 %v3763, %v714
      %v4164 = vmul.f32 %v3764, %v715
      %v4165 = vmul.f32 %v3765, %v716
      %v4166 = vmul.f32 %v3766, %v717
      %v4167 = vmul.f32 %v3767, %v718
      %v4168 = vmul.f32 %v3768, %v719
      %v4169 = vadd.f32 %v4137, %v4138
      %4170 = vadd.xlane.f32.xlu0 %v4169
      %v4171 = vpop.xlane.xlu0 %4170
      %v4172 = vadd.f32 %v4139, %v4140
      %4173 = vadd.xlane.f32.xlu0 %v4172
      %v4174 = vpop.xlane.xlu0 %4173
      %v4175 = vadd.f32 %v4141, %v4142
      %4176 = vadd.xlane.f32.xlu0 %v4175
      %v4177 = vpop.xlane.xlu0 %4176
      %v4178 = vadd.f32 %v4143, %v4144
      %4179 = vadd.xlane.f32.xlu0 %v4178
      %v4180 = vpop.xlane.xlu0 %4179
      %v4181 = vadd.f32 %v4145, %v4146
      %4182 = vadd.xlane.f32.xlu0 %v4181
      %v4183 = vpop.xlane.xlu0 %4182
      %v4184 = vadd.f32 %v4147, %v4148
      %4185 = vadd.xlane.f32.xlu0 %v4184
      %v4186 = vpop.xlane.xlu0 %4185
      %v4187 = vadd.f32 %v4149, %v4150
      %4188 = vadd.xlane.f32.xlu0 %v4187
      %v4189 = vpop.xlane.xlu0 %4188
      %v4190 = vadd.f32 %v4151, %v4152
      %4191 = vadd.xlane.f32.xlu0 %v4190
      %v4192 = vpop.xlane.xlu0 %4191
      %v4193 = vadd.f32 %v4153, %v4154
      %4194 = vadd.xlane.f32.xlu0 %v4193
      %v4195 = vpop.xlane.xlu0 %4194
      %v4196 = vadd.f32 %v4155, %v4156
      %4197 = vadd.xlane.f32.xlu0 %v4196
      %v4198 = vpop.xlane.xlu0 %4197
      %v4199 = vadd.f32 %v4157, %v4158
      %4200 = vadd.xlane.f32.xlu0 %v4199
      %v4201 = vpop.xlane.xlu0 %4200
      %v4202 = vadd.f32 %v4159, %v4160
      %4203 = vadd.xlane.f32.xlu0 %v4202
      %v4204 = vpop.xlane.xlu0 %4203
      %v4205 = vadd.f32 %v4161, %v4162
      %4206 = vadd.xlane.f32.xlu0 %v4205
      %v4207 = vpop.xlane.xlu0 %4206
      %v4208 = vadd.f32 %v4163, %v4164
      %4209 = vadd.xlane.f32.xlu0 %v4208
      %v4210 = vpop.xlane.xlu0 %4209
      %v4211 = vadd.f32 %v4165, %v4166
      %4212 = vadd.xlane.f32.xlu0 %v4211
      %v4213 = vpop.xlane.xlu0 %4212
      %v4214 = vadd.f32 %v4167, %v4168
      %4215 = vadd.xlane.f32.xlu0 %v4214
      %v4216 = vpop.xlane.xlu0 %4215
      %v4217 = vmul.f32 %v3769, %v585
      %v4218 = vmul.f32 %v3770, %v586
      %v4219 = vmul.f32 %v3771, %v587
      %v4220 = vmul.f32 %v3772, %v588
      %v4221 = vmul.f32 %v3773, %v589
      %v4222 = vmul.f32 %v3774, %v590
      %v4223 = vmul.f32 %v3775, %v591
      %v4224 = vmul.f32 %v3776, %v592
      %v4225 = vmul.f32 %v3777, %v593
      %v4226 = vmul.f32 %v3778, %v594
      %v4227 = vmul.f32 %v3779, %v595
      %v4228 = vmul.f32 %v3780, %v596
      %v4229 = vmul.f32 %v3781, %v597
      %v4230 = vmul.f32 %v3782, %v598
      %v4231 = vmul.f32 %v3783, %v599
      %v4232 = vmul.f32 %v3784, %v600
      %v4233 = vmul.f32 %v3785, %v601
      %v4234 = vmul.f32 %v3786, %v602
      %v4235 = vmul.f32 %v3787, %v603
      %v4236 = vmul.f32 %v3788, %v604
      %v4237 = vmul.f32 %v3789, %v605
      %v4238 = vmul.f32 %v3790, %v606
      %v4239 = vmul.f32 %v3791, %v607
      %v4240 = vmul.f32 %v3792, %v608
      %v4241 = vmul.f32 %v3793, %v609
      %v4242 = vmul.f32 %v3794, %v610
      %v4243 = vmul.f32 %v3795, %v611
      %v4244 = vmul.f32 %v3796, %v612
      %v4245 = vmul.f32 %v3797, %v613
      %v4246 = vmul.f32 %v3798, %v614
      %v4247 = vmul.f32 %v3799, %v615
      %v4248 = vmul.f32 %v3800, %v616
      %v4249 = vadd.f32 %v4217, %v4218
      %4250 = vadd.xlane.f32.xlu0 %v4249
      %v4251 = vpop.xlane.xlu0 %4250
      %v4252 = vadd.f32 %v4219, %v4220
      %4253 = vadd.xlane.f32.xlu0 %v4252
      %v4254 = vpop.xlane.xlu0 %4253
      %v4255 = vadd.f32 %v4221, %v4222
      %4256 = vadd.xlane.f32.xlu0 %v4255
      %v4257 = vpop.xlane.xlu0 %4256
      %v4258 = vadd.f32 %v4223, %v4224
      %4259 = vadd.xlane.f32.xlu0 %v4258
      %v4260 = vpop.xlane.xlu0 %4259
      %v4261 = vadd.f32 %v4225, %v4226
      %4262 = vadd.xlane.f32.xlu0 %v4261
      %v4263 = vpop.xlane.xlu0 %4262
      %v4264 = vadd.f32 %v4227, %v4228
      %4265 = vadd.xlane.f32.xlu0 %v4264
      %v4266 = vpop.xlane.xlu0 %4265
      %v4267 = vadd.f32 %v4229, %v4230
      %4268 = vadd.xlane.f32.xlu0 %v4267
      %v4269 = vpop.xlane.xlu0 %4268
      %v4270 = vadd.f32 %v4231, %v4232
      %4271 = vadd.xlane.f32.xlu0 %v4270
      %v4272 = vpop.xlane.xlu0 %4271
      %v4273 = vadd.f32 %v4233, %v4234
      %4274 = vadd.xlane.f32.xlu0 %v4273
      %v4275 = vpop.xlane.xlu0 %4274
      %v4276 = vadd.f32 %v4235, %v4236
      %4277 = vadd.xlane.f32.xlu0 %v4276
      %v4278 = vpop.xlane.xlu0 %4277
      %v4279 = vadd.f32 %v4237, %v4238
      %4280 = vadd.xlane.f32.xlu0 %v4279
      %v4281 = vpop.xlane.xlu0 %4280
      %v4282 = vadd.f32 %v4239, %v4240
      %4283 = vadd.xlane.f32.xlu0 %v4282
      %v4284 = vpop.xlane.xlu0 %4283
      %v4285 = vadd.f32 %v4241, %v4242
      %4286 = vadd.xlane.f32.xlu0 %v4285
      %v4287 = vpop.xlane.xlu0 %4286
      %v4288 = vadd.f32 %v4243, %v4244
      %4289 = vadd.xlane.f32.xlu0 %v4288
      %v4290 = vpop.xlane.xlu0 %4289
      %v4291 = vadd.f32 %v4245, %v4246
      %4292 = vadd.xlane.f32.xlu0 %v4291
      %v4293 = vpop.xlane.xlu0 %4292
      %v4294 = vadd.f32 %v4247, %v4248
      %4295 = vadd.xlane.f32.xlu0 %v4294
      %v4296 = vpop.xlane.xlu0 %4295
      %v4297 = vmul.f32 %v3769, %v688
      %v4298 = vmul.f32 %v3770, %v689
      %v4299 = vmul.f32 %v3771, %v690
      %v4300 = vmul.f32 %v3772, %v691
      %v4301 = vmul.f32 %v3773, %v692
      %v4302 = vmul.f32 %v3774, %v693
      %v4303 = vmul.f32 %v3775, %v694
      %v4304 = vmul.f32 %v3776, %v695
      %v4305 = vmul.f32 %v3777, %v696
      %v4306 = vmul.f32 %v3778, %v697
      %v4307 = vmul.f32 %v3779, %v698
      %v4308 = vmul.f32 %v3780, %v699
      %v4309 = vmul.f32 %v3781, %v700
      %v4310 = vmul.f32 %v3782, %v701
      %v4311 = vmul.f32 %v3783, %v702
      %v4312 = vmul.f32 %v3784, %v703
      %v4313 = vmul.f32 %v3785, %v704
      %v4314 = vmul.f32 %v3786, %v705
      %v4315 = vmul.f32 %v3787, %v706
      %v4316 = vmul.f32 %v3788, %v707
      %v4317 = vmul.f32 %v3789, %v708
      %v4318 = vmul.f32 %v3790, %v709
      %v4319 = vmul.f32 %v3791, %v710
      %v4320 = vmul.f32 %v3792, %v711
      %v4321 = vmul.f32 %v3793, %v712
      %v4322 = vmul.f32 %v3794, %v713
      %v4323 = vmul.f32 %v3795, %v714
      %v4324 = vmul.f32 %v3796, %v715
      %v4325 = vmul.f32 %v3797, %v716
      %v4326 = vmul.f32 %v3798, %v717
      %v4327 = vmul.f32 %v3799, %v718
      %v4328 = vmul.f32 %v3800, %v719
      %v4329 = vadd.f32 %v4297, %v4298
      %4330 = vadd.xlane.f32.xlu0 %v4329
      %v4331 = vpop.xlane.xlu0 %4330
      %v4332 = vadd.f32 %v4299, %v4300
      %4333 = vadd.xlane.f32.xlu0 %v4332
      %v4334 = vpop.xlane.xlu0 %4333
      %v4335 = vadd.f32 %v4301, %v4302
      %4336 = vadd.xlane.f32.xlu0 %v4335
      %v4337 = vpop.xlane.xlu0 %4336
      %v4338 = vadd.f32 %v4303, %v4304
      %4339 = vadd.xlane.f32.xlu0 %v4338
      %v4340 = vpop.xlane.xlu0 %4339
      %v4341 = vadd.f32 %v4305, %v4306
      %4342 = vadd.xlane.f32.xlu0 %v4341
      %v4343 = vpop.xlane.xlu0 %4342
      %v4344 = vadd.f32 %v4307, %v4308
      %4345 = vadd.xlane.f32.xlu0 %v4344
      %v4346 = vpop.xlane.xlu0 %4345
      %v4347 = vadd.f32 %v4309, %v4310
      %4348 = vadd.xlane.f32.xlu0 %v4347
      %v4349 = vpop.xlane.xlu0 %4348
      %v4350 = vadd.f32 %v4311, %v4312
      %4351 = vadd.xlane.f32.xlu0 %v4350
      %v4352 = vpop.xlane.xlu0 %4351
      %v4353 = vadd.f32 %v4313, %v4314
      %4354 = vadd.xlane.f32.xlu0 %v4353
      %v4355 = vpop.xlane.xlu0 %4354
      %v4356 = vadd.f32 %v4315, %v4316
      %4357 = vadd.xlane.f32.xlu0 %v4356
      %v4358 = vpop.xlane.xlu0 %4357
      %v4359 = vadd.f32 %v4317, %v4318
      %4360 = vadd.xlane.f32.xlu0 %v4359
      %v4361 = vpop.xlane.xlu0 %4360
      %v4362 = vadd.f32 %v4319, %v4320
      %4363 = vadd.xlane.f32.xlu0 %v4362
      %v4364 = vpop.xlane.xlu0 %4363
      %v4365 = vadd.f32 %v4321, %v4322
      %4366 = vadd.xlane.f32.xlu0 %v4365
      %v4367 = vpop.xlane.xlu0 %4366
      %v4368 = vadd.f32 %v4323, %v4324
      %4369 = vadd.xlane.f32.xlu0 %v4368
      %v4370 = vpop.xlane.xlu0 %4369
      %v4371 = vadd.f32 %v4325, %v4326
      %4372 = vadd.xlane.f32.xlu0 %v4371
      %v4373 = vpop.xlane.xlu0 %4372
      %v4374 = vadd.f32 %v4327, %v4328
      %4375 = vadd.xlane.f32.xlu0 %v4374
      %v4376 = vpop.xlane.xlu0 %4375
      %v4377 = vmul.f32 %v3801, %v688
      %v4378 = vmul.f32 %v3802, %v689
      %v4379 = vmul.f32 %v3803, %v690
      %v4380 = vmul.f32 %v3804, %v691
      %v4381 = vmul.f32 %v3805, %v692
      %v4382 = vmul.f32 %v3806, %v693
      %v4383 = vmul.f32 %v3807, %v694
      %v4384 = vmul.f32 %v3808, %v695
      %v4385 = vmul.f32 %v3809, %v696
      %v4386 = vmul.f32 %v3810, %v697
      %v4387 = vmul.f32 %v3811, %v698
      %v4388 = vmul.f32 %v3812, %v699
      %v4389 = vmul.f32 %v3813, %v700
      %v4390 = vmul.f32 %v3814, %v701
      %v4391 = vmul.f32 %v3815, %v702
      %v4392 = vmul.f32 %v3816, %v703
      %v4393 = vmul.f32 %v3817, %v704
      %v4394 = vmul.f32 %v3818, %v705
      %v4395 = vmul.f32 %v3819, %v706
      %v4396 = vmul.f32 %v3820, %v707
      %v4397 = vmul.f32 %v3821, %v708
      %v4398 = vmul.f32 %v3822, %v709
      %v4399 = vmul.f32 %v3823, %v710
      %v4400 = vmul.f32 %v3824, %v711
      %v4401 = vmul.f32 %v3825, %v712
      %v4402 = vmul.f32 %v3826, %v713
      %v4403 = vmul.f32 %v3827, %v714
      %v4404 = vmul.f32 %v3828, %v715
      %v4405 = vmul.f32 %v3829, %v716
      %v4406 = vmul.f32 %v3830, %v717
      %v4407 = vmul.f32 %v3831, %v718
      %v4408 = vmul.f32 %v3832, %v719
      %v4409 = vadd.f32 %v4377, %v4378
      %4410 = vadd.xlane.f32.xlu0 %v4409
      %v4411 = vpop.xlane.xlu0 %4410
      %v4412 = vadd.f32 %v4379, %v4380
      %4413 = vadd.xlane.f32.xlu0 %v4412
      %v4414 = vpop.xlane.xlu0 %4413
      %v4415 = vadd.f32 %v4381, %v4382
      %4416 = vadd.xlane.f32.xlu0 %v4415
      %v4417 = vpop.xlane.xlu0 %4416
      %v4418 = vadd.f32 %v4383, %v4384
      %4419 = vadd.xlane.f32.xlu0 %v4418
      %v4420 = vpop.xlane.xlu0 %4419
      %v4421 = vadd.f32 %v4385, %v4386
      %4422 = vadd.xlane.f32.xlu0 %v4421
      %v4423 = vpop.xlane.xlu0 %4422
      %v4424 = vadd.f32 %v4387, %v4388
      %4425 = vadd.xlane.f32.xlu0 %v4424
      %v4426 = vpop.xlane.xlu0 %4425
      %v4427 = vadd.f32 %v4389, %v4390
      %4428 = vadd.xlane.f32.xlu0 %v4427
      %v4429 = vpop.xlane.xlu0 %4428
      %v4430 = vadd.f32 %v4391, %v4392
      %4431 = vadd.xlane.f32.xlu0 %v4430
      %v4432 = vpop.xlane.xlu0 %4431
      %v4433 = vadd.f32 %v4393, %v4394
      %4434 = vadd.xlane.f32.xlu0 %v4433
      %v4435 = vpop.xlane.xlu0 %4434
      %v4436 = vadd.f32 %v4395, %v4396
      %4437 = vadd.xlane.f32.xlu0 %v4436
      %v4438 = vpop.xlane.xlu0 %4437
      %v4439 = vadd.f32 %v4397, %v4398
      %4440 = vadd.xlane.f32.xlu0 %v4439
      %v4441 = vpop.xlane.xlu0 %4440
      %v4442 = vadd.f32 %v4399, %v4400
      %4443 = vadd.xlane.f32.xlu0 %v4442
      %v4444 = vpop.xlane.xlu0 %4443
      %v4445 = vadd.f32 %v4401, %v4402
      %4446 = vadd.xlane.f32.xlu0 %v4445
      %v4447 = vpop.xlane.xlu0 %4446
      %v4448 = vadd.f32 %v4403, %v4404
      %4449 = vadd.xlane.f32.xlu0 %v4448
      %v4450 = vpop.xlane.xlu0 %4449
      %v4451 = vadd.f32 %v4405, %v4406
      %4452 = vadd.xlane.f32.xlu0 %v4451
      %v4453 = vpop.xlane.xlu0 %4452
      %v4454 = vadd.f32 %v4407, %v4408
      %4455 = vadd.xlane.f32.xlu0 %v4454
      %v4456 = vpop.xlane.xlu0 %4455
      %vm4457 = vcmp.eq.s32.totalorder %v881, 0
      %v4458 = vsel %vm4457, %v3835, 0.0
      %v4459 = vsel %vm4457, %v3838, 0.0
      %v4460 = vsel %vm4457, %v3841, 0.0
      %v4461 = vsel %vm4457, %v3844, 0.0
      %v4462 = vsel %vm4457, %v3847, 0.0
      %v4463 = vsel %vm4457, %v3850, 0.0
      %v4464 = vsel %vm4457, %v3853, 0.0
      %v4465 = vsel %vm4457, %v3856, 0.0
      %v4466 = vsel %vm4457, %v3859, 0.0
      %v4467 = vsel %vm4457, %v3862, 0.0
      %v4468 = vsel %vm4457, %v3865, 0.0
      %v4469 = vsel %vm4457, %v3868, 0.0
      %v4470 = vsel %vm4457, %v3871, 0.0
      %v4471 = vsel %vm4457, %v3874, 0.0
      %v4472 = vsel %vm4457, %v3877, 0.0
      %v4473 = vsel %vm4457, %v3880, 0.0
      %vm4474 = vcmp.eq.s32.totalorder %v881, 1
      %v4475 = vsel %vm4474, %v3883, %v4458
      %v4476 = vsel %vm4474, %v3886, %v4459
      %v4477 = vsel %vm4474, %v3889, %v4460
      %v4478 = vsel %vm4474, %v3892, %v4461
      %v4479 = vsel %vm4474, %v3895, %v4462
      %v4480 = vsel %vm4474, %v3898, %v4463
      %v4481 = vsel %vm4474, %v3901, %v4464
      %v4482 = vsel %vm4474, %v3904, %v4465
      %v4483 = vsel %vm4474, %v3907, %v4466
      %v4484 = vsel %vm4474, %v3910, %v4467
      %v4485 = vsel %vm4474, %v3913, %v4468
      %v4486 = vsel %vm4474, %v3916, %v4469
      %v4487 = vsel %vm4474, %v3919, %v4470
      %v4488 = vsel %vm4474, %v3922, %v4471
      %v4489 = vsel %vm4474, %v3925, %v4472
      %v4490 = vsel %vm4474, %v3928, %v4473
      %vm4491 = vcmp.eq.s32.totalorder %v881, 2
      %v4492 = vsel %vm4491, %v3931, %v4475
      %v4493 = vsel %vm4491, %v3934, %v4476
      %v4494 = vsel %vm4491, %v3937, %v4477
      %v4495 = vsel %vm4491, %v3940, %v4478
      %v4496 = vsel %vm4491, %v3943, %v4479
      %v4497 = vsel %vm4491, %v3946, %v4480
      %v4498 = vsel %vm4491, %v3949, %v4481
      %v4499 = vsel %vm4491, %v3952, %v4482
      %v4500 = vsel %vm4491, %v3955, %v4483
      %v4501 = vsel %vm4491, %v3958, %v4484
      %v4502 = vsel %vm4491, %v3961, %v4485
      %v4503 = vsel %vm4491, %v3964, %v4486
      %v4504 = vsel %vm4491, %v3967, %v4487
      %v4505 = vsel %vm4491, %v3970, %v4488
      %v4506 = vsel %vm4491, %v3973, %v4489
      %v4507 = vsel %vm4491, %v3976, %v4490
      %vm4508 = vcmp.eq.s32.totalorder %v881, 3
      %v4509 = vsel %vm4508, %v4011, %v4492
      %v4510 = vsel %vm4508, %v4014, %v4493
      %v4511 = vsel %vm4508, %v4017, %v4494
      %v4512 = vsel %vm4508, %v4020, %v4495
      %v4513 = vsel %vm4508, %v4023, %v4496
      %v4514 = vsel %vm4508, %v4026, %v4497
      %v4515 = vsel %vm4508, %v4029, %v4498
      %v4516 = vsel %vm4508, %v4032, %v4499
      %v4517 = vsel %vm4508, %v4035, %v4500
      %v4518 = vsel %vm4508, %v4038, %v4501
      %v4519 = vsel %vm4508, %v4041, %v4502
      %v4520 = vsel %vm4508, %v4044, %v4503
      %v4521 = vsel %vm4508, %v4047, %v4504
      %v4522 = vsel %vm4508, %v4050, %v4505
      %v4523 = vsel %vm4508, %v4053, %v4506
      %v4524 = vsel %vm4508, %v4056, %v4507
      %vm4525 = vcmp.eq.s32.totalorder %v881, 4
      %v4526 = vsel %vm4525, %v4091, %v4509
      %v4527 = vsel %vm4525, %v4094, %v4510
      %v4528 = vsel %vm4525, %v4097, %v4511
      %v4529 = vsel %vm4525, %v4100, %v4512
      %v4530 = vsel %vm4525, %v4103, %v4513
      %v4531 = vsel %vm4525, %v4106, %v4514
      %v4532 = vsel %vm4525, %v4109, %v4515
      %v4533 = vsel %vm4525, %v4112, %v4516
      %v4534 = vsel %vm4525, %v4115, %v4517
      %v4535 = vsel %vm4525, %v4118, %v4518
      %v4536 = vsel %vm4525, %v4121, %v4519
      %v4537 = vsel %vm4525, %v4124, %v4520
      %v4538 = vsel %vm4525, %v4127, %v4521
      %v4539 = vsel %vm4525, %v4130, %v4522
      %v4540 = vsel %vm4525, %v4133, %v4523
      %v4541 = vsel %vm4525, %v4136, %v4524
      %vm4542 = vcmp.eq.s32.totalorder %v881, 5
      %v4543 = vsel %vm4542, %v4171, %v4526
      %v4544 = vsel %vm4542, %v4174, %v4527
      %v4545 = vsel %vm4542, %v4177, %v4528
      %v4546 = vsel %vm4542, %v4180, %v4529
      %v4547 = vsel %vm4542, %v4183, %v4530
      %v4548 = vsel %vm4542, %v4186, %v4531
      %v4549 = vsel %vm4542, %v4189, %v4532
      %v4550 = vsel %vm4542, %v4192, %v4533
      %v4551 = vsel %vm4542, %v4195, %v4534
      %v4552 = vsel %vm4542, %v4198, %v4535
      %v4553 = vsel %vm4542, %v4201, %v4536
      %v4554 = vsel %vm4542, %v4204, %v4537
      %v4555 = vsel %vm4542, %v4207, %v4538
      %v4556 = vsel %vm4542, %v4210, %v4539
      %v4557 = vsel %vm4542, %v4213, %v4540
      %v4558 = vsel %vm4542, %v4216, %v4541
      %vm4559 = vcmp.eq.s32.totalorder %v881, 6
      %v4560 = vsel %vm4559, %v4251, %v4543
      %v4561 = vsel %vm4559, %v4254, %v4544
      %v4562 = vsel %vm4559, %v4257, %v4545
      %v4563 = vsel %vm4559, %v4260, %v4546
      %v4564 = vsel %vm4559, %v4263, %v4547
      %v4565 = vsel %vm4559, %v4266, %v4548
      %v4566 = vsel %vm4559, %v4269, %v4549
      %v4567 = vsel %vm4559, %v4272, %v4550
      %v4568 = vsel %vm4559, %v4275, %v4551
      %v4569 = vsel %vm4559, %v4278, %v4552
      %v4570 = vsel %vm4559, %v4281, %v4553
      %v4571 = vsel %vm4559, %v4284, %v4554
      %v4572 = vsel %vm4559, %v4287, %v4555
      %v4573 = vsel %vm4559, %v4290, %v4556
      %v4574 = vsel %vm4559, %v4293, %v4557
      %v4575 = vsel %vm4559, %v4296, %v4558
      %vm4576 = vcmp.eq.s32.totalorder %v881, 7
      %v4577 = vsel %vm4576, %v4331, %v4560
      %v4578 = vsel %vm4576, %v4334, %v4561
      %v4579 = vsel %vm4576, %v4337, %v4562
      %v4580 = vsel %vm4576, %v4340, %v4563
      %v4581 = vsel %vm4576, %v4343, %v4564
      %v4582 = vsel %vm4576, %v4346, %v4565
      %v4583 = vsel %vm4576, %v4349, %v4566
      %v4584 = vsel %vm4576, %v4352, %v4567
      %v4585 = vsel %vm4576, %v4355, %v4568
      %v4586 = vsel %vm4576, %v4358, %v4569
      %v4587 = vsel %vm4576, %v4361, %v4570
      %v4588 = vsel %vm4576, %v4364, %v4571
      %v4589 = vsel %vm4576, %v4367, %v4572
      %v4590 = vsel %vm4576, %v4370, %v4573
      %v4591 = vsel %vm4576, %v4373, %v4574
      %v4592 = vsel %vm4576, %v4376, %v4575
      %vm4593 = vcmp.eq.s32.totalorder %v881, 8
      %v4594 = vsel %vm4593, %v4411, %v4577
      %v4595 = vsel %vm4593, %v4414, %v4578
      %v4596 = vsel %vm4593, %v4417, %v4579
      %v4597 = vsel %vm4593, %v4420, %v4580
      %v4598 = vsel %vm4593, %v4423, %v4581
      %v4599 = vsel %vm4593, %v4426, %v4582
      %v4600 = vsel %vm4593, %v4429, %v4583
      %v4601 = vsel %vm4593, %v4432, %v4584
      %v4602 = vsel %vm4593, %v4435, %v4585
      %v4603 = vsel %vm4593, %v4438, %v4586
      %v4604 = vsel %vm4593, %v4441, %v4587
      %v4605 = vsel %vm4593, %v4444, %v4588
      %v4606 = vsel %vm4593, %v4447, %v4589
      %v4607 = vsel %vm4593, %v4450, %v4590
      %v4608 = vsel %vm4593, %v4453, %v4591
      %v4609 = vsel %vm4593, %v4456, %v4592
      %vm4610 = vcmask 130048
      %4611 = vst.msk [vmem:[%s352] sm:$0xff] %vm4610, %v4594
      %4612 = vst.msk [vmem:[%s352 + $0x8] sm:$0xff] %vm4610, %v4595
      %4613 = vst.msk [vmem:[%s352 + $0x10] sm:$0xff] %vm4610, %v4596
      %4614 = vst.msk [vmem:[%s352 + $0x18] sm:$0xff] %vm4610, %v4597
      %4615 = vst.msk [vmem:[%s352 + $0x20] sm:$0xff] %vm4610, %v4598
      %4616 = vst.msk [vmem:[%s352 + $0x28] sm:$0xff] %vm4610, %v4599
      %4617 = vst.msk [vmem:[%s352 + $0x30] sm:$0xff] %vm4610, %v4600
      %4618 = vst.msk [vmem:[%s352 + $0x38] sm:$0xff] %vm4610, %v4601
      %4619 = vst.msk [vmem:[%s352 + $0x40] sm:$0xff] %vm4610, %v4602
      %4620 = vst.msk [vmem:[%s352 + $0x48] sm:$0xff] %vm4610, %v4603
      %4621 = vst.msk [vmem:[%s352 + $0x50] sm:$0xff] %vm4610, %v4604
      %4622 = vst.msk [vmem:[%s352 + $0x58] sm:$0xff] %vm4610, %v4605
      %4623 = vst.msk [vmem:[%s352 + $0x60] sm:$0xff] %vm4610, %v4606
      %4624 = vst.msk [vmem:[%s352 + $0x68] sm:$0xff] %vm4610, %v4607
      %4625 = vst.msk [vmem:[%s352 + $0x70] sm:$0xff] %vm4610, %v4608
      %4626 = vst.msk [vmem:[%s352 + $0x78] sm:$0xff] %vm4610, %v4609
      %v4627 = vmul.f32 %v3381, %v3499
      %v4628 = vmul.f32 %v3382, %v3500
      %v4629 = vmul.f32 %v3383, %v3501
      %v4630 = vmul.f32 %v3384, %v3502
      %v4631 = vmul.f32 %v3385, %v3503
      %v4632 = vmul.f32 %v3386, %v3504
      %v4633 = vmul.f32 %v3387, %v3505
      %v4634 = vmul.f32 %v3388, %v3506
      %v4635 = vmul.f32 %v3389, %v3507
      %v4636 = vmul.f32 %v3390, %v3508
      %v4637 = vmul.f32 %v3391, %v3509
      %v4638 = vmul.f32 %v3392, %v3510
      %v4639 = vmul.f32 %v3393, %v3511
      %v4640 = vmul.f32 %v3394, %v3512
      %v4641 = vmul.f32 %v3395, %v3513
      %v4642 = vmul.f32 %v3396, %v3514
      %v4643 = vmul.f32 %v3397, %v3515
      %v4644 = vmul.f32 %v3398, %v3516
      %v4645 = vmul.f32 %v3399, %v3517
      %v4646 = vmul.f32 %v3400, %v3518
      %v4647 = vmul.f32 %v3401, %v3519
      %v4648 = vmul.f32 %v3402, %v3520
      %v4649 = vmul.f32 %v3403, %v3521
      %v4650 = vmul.f32 %v3404, %v3522
      %v4651 = vmul.f32 %v3405, %v3523
      %v4652 = vmul.f32 %v3406, %v3524
      %v4653 = vmul.f32 %v3407, %v3525
      %v4654 = vmul.f32 %v3408, %v3526
      %v4655 = vmul.f32 %v3409, %v3527
      %v4656 = vmul.f32 %v3410, %v3528
      %v4657 = vmul.f32 %v3411, %v3529
      %v4658 = vmul.f32 %v3412, %v3530
      %v4659 = vmul.f32 %v3381, %v3602
      %v4660 = vmul.f32 %v3382, %v3603
      %v4661 = vmul.f32 %v3383, %v3604
      %v4662 = vmul.f32 %v3384, %v3605
      %v4663 = vmul.f32 %v3385, %v3606
      %v4664 = vmul.f32 %v3386, %v3607
      %v4665 = vmul.f32 %v3387, %v3608
      %v4666 = vmul.f32 %v3388, %v3609
      %v4667 = vmul.f32 %v3389, %v3610
      %v4668 = vmul.f32 %v3390, %v3611
      %v4669 = vmul.f32 %v3391, %v3612
      %v4670 = vmul.f32 %v3392, %v3613
      %v4671 = vmul.f32 %v3393, %v3614
      %v4672 = vmul.f32 %v3394, %v3615
      %v4673 = vmul.f32 %v3395, %v3616
      %v4674 = vmul.f32 %v3396, %v3617
      %v4675 = vmul.f32 %v3397, %v3618
      %v4676 = vmul.f32 %v3398, %v3619
      %v4677 = vmul.f32 %v3399, %v3620
      %v4678 = vmul.f32 %v3400, %v3621
      %v4679 = vmul.f32 %v3401, %v3622
      %v4680 = vmul.f32 %v3402, %v3623
      %v4681 = vmul.f32 %v3403, %v3624
      %v4682 = vmul.f32 %v3404, %v3625
      %v4683 = vmul.f32 %v3405, %v3626
      %v4684 = vmul.f32 %v3406, %v3627
      %v4685 = vmul.f32 %v3407, %v3628
      %v4686 = vmul.f32 %v3408, %v3629
      %v4687 = vmul.f32 %v3409, %v3630
      %v4688 = vmul.f32 %v3410, %v3631
      %v4689 = vmul.f32 %v3411, %v3632
      %v4690 = vmul.f32 %v3412, %v3633
      %v4691 = vmul.f32 %v3381, %v3705
      %v4692 = vmul.f32 %v3382, %v3706
      %v4693 = vmul.f32 %v3383, %v3707
      %v4694 = vmul.f32 %v3384, %v3708
      %v4695 = vmul.f32 %v3385, %v3709
      %v4696 = vmul.f32 %v3386, %v3710
      %v4697 = vmul.f32 %v3387, %v3711
      %v4698 = vmul.f32 %v3388, %v3712
      %v4699 = vmul.f32 %v3389, %v3713
      %v4700 = vmul.f32 %v3390, %v3714
      %v4701 = vmul.f32 %v3391, %v3715
      %v4702 = vmul.f32 %v3392, %v3716
      %v4703 = vmul.f32 %v3393, %v3717
      %v4704 = vmul.f32 %v3394, %v3718
      %v4705 = vmul.f32 %v3395, %v3719
      %v4706 = vmul.f32 %v3396, %v3720
      %v4707 = vmul.f32 %v3397, %v3721
      %v4708 = vmul.f32 %v3398, %v3722
      %v4709 = vmul.f32 %v3399, %v3723
      %v4710 = vmul.f32 %v3400, %v3724
      %v4711 = vmul.f32 %v3401, %v3725
      %v4712 = vmul.f32 %v3402, %v3726
      %v4713 = vmul.f32 %v3403, %v3727
      %v4714 = vmul.f32 %v3404, %v3728
      %v4715 = vmul.f32 %v3405, %v3729
      %v4716 = vmul.f32 %v3406, %v3730
      %v4717 = vmul.f32 %v3407, %v3731
      %v4718 = vmul.f32 %v3408, %v3732
      %v4719 = vmul.f32 %v3409, %v3733
      %v4720 = vmul.f32 %v3410, %v3734
      %v4721 = vmul.f32 %v3411, %v3735
      %v4722 = vmul.f32 %v3412, %v3736
      %v4723 = vadd.f32 %v4627, %v4628
      %4724 = vadd.xlane.f32.xlu0 %v4723
      %v4725 = vpop.xlane.xlu0 %4724
      %v4726 = vadd.f32 %v4629, %v4630
      %4727 = vadd.xlane.f32.xlu0 %v4726
      %v4728 = vpop.xlane.xlu0 %4727
      %v4729 = vadd.f32 %v4631, %v4632
      %4730 = vadd.xlane.f32.xlu0 %v4729
      %v4731 = vpop.xlane.xlu0 %4730
      %v4732 = vadd.f32 %v4633, %v4634
      %4733 = vadd.xlane.f32.xlu0 %v4732
      %v4734 = vpop.xlane.xlu0 %4733
      %v4735 = vadd.f32 %v4635, %v4636
      %4736 = vadd.xlane.f32.xlu0 %v4735
      %v4737 = vpop.xlane.xlu0 %4736
      %v4738 = vadd.f32 %v4637, %v4638
      %4739 = vadd.xlane.f32.xlu0 %v4738
      %v4740 = vpop.xlane.xlu0 %4739
      %v4741 = vadd.f32 %v4639, %v4640
      %4742 = vadd.xlane.f32.xlu0 %v4741
      %v4743 = vpop.xlane.xlu0 %4742
      %v4744 = vadd.f32 %v4641, %v4642
      %4745 = vadd.xlane.f32.xlu0 %v4744
      %v4746 = vpop.xlane.xlu0 %4745
      %v4747 = vadd.f32 %v4643, %v4644
      %4748 = vadd.xlane.f32.xlu0 %v4747
      %v4749 = vpop.xlane.xlu0 %4748
      %v4750 = vadd.f32 %v4645, %v4646
      %4751 = vadd.xlane.f32.xlu0 %v4750
      %v4752 = vpop.xlane.xlu0 %4751
      %v4753 = vadd.f32 %v4647, %v4648
      %4754 = vadd.xlane.f32.xlu0 %v4753
      %v4755 = vpop.xlane.xlu0 %4754
      %v4756 = vadd.f32 %v4649, %v4650
      %4757 = vadd.xlane.f32.xlu0 %v4756
      %v4758 = vpop.xlane.xlu0 %4757
      %v4759 = vadd.f32 %v4651, %v4652
      %4760 = vadd.xlane.f32.xlu0 %v4759
      %v4761 = vpop.xlane.xlu0 %4760
      %v4762 = vadd.f32 %v4653, %v4654
      %4763 = vadd.xlane.f32.xlu0 %v4762
      %v4764 = vpop.xlane.xlu0 %4763
      %v4765 = vadd.f32 %v4655, %v4656
      %4766 = vadd.xlane.f32.xlu0 %v4765
      %v4767 = vpop.xlane.xlu0 %4766
      %v4768 = vadd.f32 %v4657, %v4658
      %4769 = vadd.xlane.f32.xlu0 %v4768
      %v4770 = vpop.xlane.xlu0 %4769
      %v4771 = vadd.f32 %v4659, %v4660
      %4772 = vadd.xlane.f32.xlu0 %v4771
      %v4773 = vpop.xlane.xlu0 %4772
      %v4774 = vadd.f32 %v4661, %v4662
      %4775 = vadd.xlane.f32.xlu0 %v4774
      %v4776 = vpop.xlane.xlu0 %4775
      %v4777 = vadd.f32 %v4663, %v4664
      %4778 = vadd.xlane.f32.xlu0 %v4777
      %v4779 = vpop.xlane.xlu0 %4778
      %v4780 = vadd.f32 %v4665, %v4666
      %4781 = vadd.xlane.f32.xlu0 %v4780
      %v4782 = vpop.xlane.xlu0 %4781
      %v4783 = vadd.f32 %v4667, %v4668
      %4784 = vadd.xlane.f32.xlu0 %v4783
      %v4785 = vpop.xlane.xlu0 %4784
      %v4786 = vadd.f32 %v4669, %v4670
      %4787 = vadd.xlane.f32.xlu0 %v4786
      %v4788 = vpop.xlane.xlu0 %4787
      %v4789 = vadd.f32 %v4671, %v4672
      %4790 = vadd.xlane.f32.xlu0 %v4789
      %v4791 = vpop.xlane.xlu0 %4790
      %v4792 = vadd.f32 %v4673, %v4674
      %4793 = vadd.xlane.f32.xlu0 %v4792
      %v4794 = vpop.xlane.xlu0 %4793
      %v4795 = vadd.f32 %v4675, %v4676
      %4796 = vadd.xlane.f32.xlu0 %v4795
      %v4797 = vpop.xlane.xlu0 %4796
      %v4798 = vadd.f32 %v4677, %v4678
      %4799 = vadd.xlane.f32.xlu0 %v4798
      %v4800 = vpop.xlane.xlu0 %4799
      %v4801 = vadd.f32 %v4679, %v4680
      %4802 = vadd.xlane.f32.xlu0 %v4801
      %v4803 = vpop.xlane.xlu0 %4802
      %v4804 = vadd.f32 %v4681, %v4682
      %4805 = vadd.xlane.f32.xlu0 %v4804
      %v4806 = vpop.xlane.xlu0 %4805
      %v4807 = vadd.f32 %v4683, %v4684
      %4808 = vadd.xlane.f32.xlu0 %v4807
      %v4809 = vpop.xlane.xlu0 %4808
      %v4810 = vadd.f32 %v4685, %v4686
      %4811 = vadd.xlane.f32.xlu0 %v4810
      %v4812 = vpop.xlane.xlu0 %4811
      %v4813 = vadd.f32 %v4687, %v4688
      %4814 = vadd.xlane.f32.xlu0 %v4813
      %v4815 = vpop.xlane.xlu0 %4814
      %v4816 = vadd.f32 %v4689, %v4690
      %4817 = vadd.xlane.f32.xlu0 %v4816
      %v4818 = vpop.xlane.xlu0 %4817
      %v4819 = vadd.f32 %v4691, %v4692
      %4820 = vadd.xlane.f32.xlu0 %v4819
      %v4821 = vpop.xlane.xlu0 %4820
      %v4822 = vadd.f32 %v4693, %v4694
      %4823 = vadd.xlane.f32.xlu0 %v4822
      %v4824 = vpop.xlane.xlu0 %4823
      %v4825 = vadd.f32 %v4695, %v4696
      %4826 = vadd.xlane.f32.xlu0 %v4825
      %v4827 = vpop.xlane.xlu0 %4826
      %v4828 = vadd.f32 %v4697, %v4698
      %4829 = vadd.xlane.f32.xlu0 %v4828
      %v4830 = vpop.xlane.xlu0 %4829
      %v4831 = vadd.f32 %v4699, %v4700
      %4832 = vadd.xlane.f32.xlu0 %v4831
      %v4833 = vpop.xlane.xlu0 %4832
      %v4834 = vadd.f32 %v4701, %v4702
      %4835 = vadd.xlane.f32.xlu0 %v4834
      %v4836 = vpop.xlane.xlu0 %4835
      %v4837 = vadd.f32 %v4703, %v4704
      %4838 = vadd.xlane.f32.xlu0 %v4837
      %v4839 = vpop.xlane.xlu0 %4838
      %v4840 = vadd.f32 %v4705, %v4706
      %4841 = vadd.xlane.f32.xlu0 %v4840
      %v4842 = vpop.xlane.xlu0 %4841
      %v4843 = vadd.f32 %v4707, %v4708
      %4844 = vadd.xlane.f32.xlu0 %v4843
      %v4845 = vpop.xlane.xlu0 %4844
      %v4846 = vadd.f32 %v4709, %v4710
      %4847 = vadd.xlane.f32.xlu0 %v4846
      %v4848 = vpop.xlane.xlu0 %4847
      %v4849 = vadd.f32 %v4711, %v4712
      %4850 = vadd.xlane.f32.xlu0 %v4849
      %v4851 = vpop.xlane.xlu0 %4850
      %v4852 = vadd.f32 %v4713, %v4714
      %4853 = vadd.xlane.f32.xlu0 %v4852
      %v4854 = vpop.xlane.xlu0 %4853
      %v4855 = vadd.f32 %v4715, %v4716
      %4856 = vadd.xlane.f32.xlu0 %v4855
      %v4857 = vpop.xlane.xlu0 %4856
      %v4858 = vadd.f32 %v4717, %v4718
      %4859 = vadd.xlane.f32.xlu0 %v4858
      %v4860 = vpop.xlane.xlu0 %4859
      %v4861 = vadd.f32 %v4719, %v4720
      %4862 = vadd.xlane.f32.xlu0 %v4861
      %v4863 = vpop.xlane.xlu0 %4862
      %v4864 = vadd.f32 %v4721, %v4722
      %4865 = vadd.xlane.f32.xlu0 %v4864
      %v4866 = vpop.xlane.xlu0 %4865
      %v4867 = vmul.f32 %v4627, %v3499
      %v4868 = vmul.f32 %v4628, %v3500
      %v4869 = vmul.f32 %v4629, %v3501
      %v4870 = vmul.f32 %v4630, %v3502
      %v4871 = vmul.f32 %v4631, %v3503
      %v4872 = vmul.f32 %v4632, %v3504
      %v4873 = vmul.f32 %v4633, %v3505
      %v4874 = vmul.f32 %v4634, %v3506
      %v4875 = vmul.f32 %v4635, %v3507
      %v4876 = vmul.f32 %v4636, %v3508
      %v4877 = vmul.f32 %v4637, %v3509
      %v4878 = vmul.f32 %v4638, %v3510
      %v4879 = vmul.f32 %v4639, %v3511
      %v4880 = vmul.f32 %v4640, %v3512
      %v4881 = vmul.f32 %v4641, %v3513
      %v4882 = vmul.f32 %v4642, %v3514
      %v4883 = vmul.f32 %v4643, %v3515
      %v4884 = vmul.f32 %v4644, %v3516
      %v4885 = vmul.f32 %v4645, %v3517
      %v4886 = vmul.f32 %v4646, %v3518
      %v4887 = vmul.f32 %v4647, %v3519
      %v4888 = vmul.f32 %v4648, %v3520
      %v4889 = vmul.f32 %v4649, %v3521
      %v4890 = vmul.f32 %v4650, %v3522
      %v4891 = vmul.f32 %v4651, %v3523
      %v4892 = vmul.f32 %v4652, %v3524
      %v4893 = vmul.f32 %v4653, %v3525
      %v4894 = vmul.f32 %v4654, %v3526
      %v4895 = vmul.f32 %v4655, %v3527
      %v4896 = vmul.f32 %v4656, %v3528
      %v4897 = vmul.f32 %v4657, %v3529
      %v4898 = vmul.f32 %v4658, %v3530
      %v4899 = vadd.f32 %v4867, %v4868
      %4900 = vadd.xlane.f32.xlu0 %v4899
      %v4901 = vpop.xlane.xlu0 %4900
      %v4902 = vadd.f32 %v4869, %v4870
      %4903 = vadd.xlane.f32.xlu0 %v4902
      %v4904 = vpop.xlane.xlu0 %4903
      %v4905 = vadd.f32 %v4871, %v4872
      %4906 = vadd.xlane.f32.xlu0 %v4905
      %v4907 = vpop.xlane.xlu0 %4906
      %v4908 = vadd.f32 %v4873, %v4874
      %4909 = vadd.xlane.f32.xlu0 %v4908
      %v4910 = vpop.xlane.xlu0 %4909
      %v4911 = vadd.f32 %v4875, %v4876
      %4912 = vadd.xlane.f32.xlu0 %v4911
      %v4913 = vpop.xlane.xlu0 %4912
      %v4914 = vadd.f32 %v4877, %v4878
      %4915 = vadd.xlane.f32.xlu0 %v4914
      %v4916 = vpop.xlane.xlu0 %4915
      %v4917 = vadd.f32 %v4879, %v4880
      %4918 = vadd.xlane.f32.xlu0 %v4917
      %v4919 = vpop.xlane.xlu0 %4918
      %v4920 = vadd.f32 %v4881, %v4882
      %4921 = vadd.xlane.f32.xlu0 %v4920
      %v4922 = vpop.xlane.xlu0 %4921
      %v4923 = vadd.f32 %v4883, %v4884
      %4924 = vadd.xlane.f32.xlu0 %v4923
      %v4925 = vpop.xlane.xlu0 %4924
      %v4926 = vadd.f32 %v4885, %v4886
      %4927 = vadd.xlane.f32.xlu0 %v4926
      %v4928 = vpop.xlane.xlu0 %4927
      %v4929 = vadd.f32 %v4887, %v4888
      %4930 = vadd.xlane.f32.xlu0 %v4929
      %v4931 = vpop.xlane.xlu0 %4930
      %v4932 = vadd.f32 %v4889, %v4890
      %4933 = vadd.xlane.f32.xlu0 %v4932
      %v4934 = vpop.xlane.xlu0 %4933
      %v4935 = vadd.f32 %v4891, %v4892
      %4936 = vadd.xlane.f32.xlu0 %v4935
      %v4937 = vpop.xlane.xlu0 %4936
      %v4938 = vadd.f32 %v4893, %v4894
      %4939 = vadd.xlane.f32.xlu0 %v4938
      %v4940 = vpop.xlane.xlu0 %4939
      %v4941 = vadd.f32 %v4895, %v4896
      %4942 = vadd.xlane.f32.xlu0 %v4941
      %v4943 = vpop.xlane.xlu0 %4942
      %v4944 = vadd.f32 %v4897, %v4898
      %4945 = vadd.xlane.f32.xlu0 %v4944
      %v4946 = vpop.xlane.xlu0 %4945
      %v4947 = vmul.f32 %v4627, %v3602
      %v4948 = vmul.f32 %v4628, %v3603
      %v4949 = vmul.f32 %v4629, %v3604
      %v4950 = vmul.f32 %v4630, %v3605
      %v4951 = vmul.f32 %v4631, %v3606
      %v4952 = vmul.f32 %v4632, %v3607
      %v4953 = vmul.f32 %v4633, %v3608
      %v4954 = vmul.f32 %v4634, %v3609
      %v4955 = vmul.f32 %v4635, %v3610
      %v4956 = vmul.f32 %v4636, %v3611
      %v4957 = vmul.f32 %v4637, %v3612
      %v4958 = vmul.f32 %v4638, %v3613
      %v4959 = vmul.f32 %v4639, %v3614
      %v4960 = vmul.f32 %v4640, %v3615
      %v4961 = vmul.f32 %v4641, %v3616
      %v4962 = vmul.f32 %v4642, %v3617
      %v4963 = vmul.f32 %v4643, %v3618
      %v4964 = vmul.f32 %v4644, %v3619
      %v4965 = vmul.f32 %v4645, %v3620
      %v4966 = vmul.f32 %v4646, %v3621
      %v4967 = vmul.f32 %v4647, %v3622
      %v4968 = vmul.f32 %v4648, %v3623
      %v4969 = vmul.f32 %v4649, %v3624
      %v4970 = vmul.f32 %v4650, %v3625
      %v4971 = vmul.f32 %v4651, %v3626
      %v4972 = vmul.f32 %v4652, %v3627
      %v4973 = vmul.f32 %v4653, %v3628
      %v4974 = vmul.f32 %v4654, %v3629
      %v4975 = vmul.f32 %v4655, %v3630
      %v4976 = vmul.f32 %v4656, %v3631
      %v4977 = vmul.f32 %v4657, %v3632
      %v4978 = vmul.f32 %v4658, %v3633
      %v4979 = vadd.f32 %v4947, %v4948
      %4980 = vadd.xlane.f32.xlu0 %v4979
      %v4981 = vpop.xlane.xlu0 %4980
      %v4982 = vadd.f32 %v4949, %v4950
      %4983 = vadd.xlane.f32.xlu0 %v4982
      %v4984 = vpop.xlane.xlu0 %4983
      %v4985 = vadd.f32 %v4951, %v4952
      %4986 = vadd.xlane.f32.xlu0 %v4985
      %v4987 = vpop.xlane.xlu0 %4986
      %v4988 = vadd.f32 %v4953, %v4954
      %4989 = vadd.xlane.f32.xlu0 %v4988
      %v4990 = vpop.xlane.xlu0 %4989
      %v4991 = vadd.f32 %v4955, %v4956
      %4992 = vadd.xlane.f32.xlu0 %v4991
      %v4993 = vpop.xlane.xlu0 %4992
      %v4994 = vadd.f32 %v4957, %v4958
      %4995 = vadd.xlane.f32.xlu0 %v4994
      %v4996 = vpop.xlane.xlu0 %4995
      %v4997 = vadd.f32 %v4959, %v4960
      %4998 = vadd.xlane.f32.xlu0 %v4997
      %v4999 = vpop.xlane.xlu0 %4998
      %v5000 = vadd.f32 %v4961, %v4962
      %5001 = vadd.xlane.f32.xlu0 %v5000
      %v5002 = vpop.xlane.xlu0 %5001
      %v5003 = vadd.f32 %v4963, %v4964
      %5004 = vadd.xlane.f32.xlu0 %v5003
      %v5005 = vpop.xlane.xlu0 %5004
      %v5006 = vadd.f32 %v4965, %v4966
      %5007 = vadd.xlane.f32.xlu0 %v5006
      %v5008 = vpop.xlane.xlu0 %5007
      %v5009 = vadd.f32 %v4967, %v4968
      %5010 = vadd.xlane.f32.xlu0 %v5009
      %v5011 = vpop.xlane.xlu0 %5010
      %v5012 = vadd.f32 %v4969, %v4970
      %5013 = vadd.xlane.f32.xlu0 %v5012
      %v5014 = vpop.xlane.xlu0 %5013
      %v5015 = vadd.f32 %v4971, %v4972
      %5016 = vadd.xlane.f32.xlu0 %v5015
      %v5017 = vpop.xlane.xlu0 %5016
      %v5018 = vadd.f32 %v4973, %v4974
      %5019 = vadd.xlane.f32.xlu0 %v5018
      %v5020 = vpop.xlane.xlu0 %5019
      %v5021 = vadd.f32 %v4975, %v4976
      %5022 = vadd.xlane.f32.xlu0 %v5021
      %v5023 = vpop.xlane.xlu0 %5022
      %v5024 = vadd.f32 %v4977, %v4978
      %5025 = vadd.xlane.f32.xlu0 %v5024
      %v5026 = vpop.xlane.xlu0 %5025
      %v5027 = vmul.f32 %v4627, %v3705
      %v5028 = vmul.f32 %v4628, %v3706
      %v5029 = vmul.f32 %v4629, %v3707
      %v5030 = vmul.f32 %v4630, %v3708
      %v5031 = vmul.f32 %v4631, %v3709
      %v5032 = vmul.f32 %v4632, %v3710
      %v5033 = vmul.f32 %v4633, %v3711
      %v5034 = vmul.f32 %v4634, %v3712
      %v5035 = vmul.f32 %v4635, %v3713
      %v5036 = vmul.f32 %v4636, %v3714
      %v5037 = vmul.f32 %v4637, %v3715
      %v5038 = vmul.f32 %v4638, %v3716
      %v5039 = vmul.f32 %v4639, %v3717
      %v5040 = vmul.f32 %v4640, %v3718
      %v5041 = vmul.f32 %v4641, %v3719
      %v5042 = vmul.f32 %v4642, %v3720
      %v5043 = vmul.f32 %v4643, %v3721
      %v5044 = vmul.f32 %v4644, %v3722
      %v5045 = vmul.f32 %v4645, %v3723
      %v5046 = vmul.f32 %v4646, %v3724
      %v5047 = vmul.f32 %v4647, %v3725
      %v5048 = vmul.f32 %v4648, %v3726
      %v5049 = vmul.f32 %v4649, %v3727
      %v5050 = vmul.f32 %v4650, %v3728
      %v5051 = vmul.f32 %v4651, %v3729
      %v5052 = vmul.f32 %v4652, %v3730
      %v5053 = vmul.f32 %v4653, %v3731
      %v5054 = vmul.f32 %v4654, %v3732
      %v5055 = vmul.f32 %v4655, %v3733
      %v5056 = vmul.f32 %v4656, %v3734
      %v5057 = vmul.f32 %v4657, %v3735
      %v5058 = vmul.f32 %v4658, %v3736
      %v5059 = vadd.f32 %v5027, %v5028
      %5060 = vadd.xlane.f32.xlu0 %v5059
      %v5061 = vpop.xlane.xlu0 %5060
      %v5062 = vadd.f32 %v5029, %v5030
      %5063 = vadd.xlane.f32.xlu0 %v5062
      %v5064 = vpop.xlane.xlu0 %5063
      %v5065 = vadd.f32 %v5031, %v5032
      %5066 = vadd.xlane.f32.xlu0 %v5065
      %v5067 = vpop.xlane.xlu0 %5066
      %v5068 = vadd.f32 %v5033, %v5034
      %5069 = vadd.xlane.f32.xlu0 %v5068
      %v5070 = vpop.xlane.xlu0 %5069
      %v5071 = vadd.f32 %v5035, %v5036
      %5072 = vadd.xlane.f32.xlu0 %v5071
      %v5073 = vpop.xlane.xlu0 %5072
      %v5074 = vadd.f32 %v5037, %v5038
      %5075 = vadd.xlane.f32.xlu0 %v5074
      %v5076 = vpop.xlane.xlu0 %5075
      %v5077 = vadd.f32 %v5039, %v5040
      %5078 = vadd.xlane.f32.xlu0 %v5077
      %v5079 = vpop.xlane.xlu0 %5078
      %v5080 = vadd.f32 %v5041, %v5042
      %5081 = vadd.xlane.f32.xlu0 %v5080
      %v5082 = vpop.xlane.xlu0 %5081
      %v5083 = vadd.f32 %v5043, %v5044
      %5084 = vadd.xlane.f32.xlu0 %v5083
      %v5085 = vpop.xlane.xlu0 %5084
      %v5086 = vadd.f32 %v5045, %v5046
      %5087 = vadd.xlane.f32.xlu0 %v5086
      %v5088 = vpop.xlane.xlu0 %5087
      %v5089 = vadd.f32 %v5047, %v5048
      %5090 = vadd.xlane.f32.xlu0 %v5089
      %v5091 = vpop.xlane.xlu0 %5090
      %v5092 = vadd.f32 %v5049, %v5050
      %5093 = vadd.xlane.f32.xlu0 %v5092
      %v5094 = vpop.xlane.xlu0 %5093
      %v5095 = vadd.f32 %v5051, %v5052
      %5096 = vadd.xlane.f32.xlu0 %v5095
      %v5097 = vpop.xlane.xlu0 %5096
      %v5098 = vadd.f32 %v5053, %v5054
      %5099 = vadd.xlane.f32.xlu0 %v5098
      %v5100 = vpop.xlane.xlu0 %5099
      %v5101 = vadd.f32 %v5055, %v5056
      %5102 = vadd.xlane.f32.xlu0 %v5101
      %v5103 = vpop.xlane.xlu0 %5102
      %v5104 = vadd.f32 %v5057, %v5058
      %5105 = vadd.xlane.f32.xlu0 %v5104
      %v5106 = vpop.xlane.xlu0 %5105
      %v5107 = vmul.f32 %v4659, %v3602
      %v5108 = vmul.f32 %v4660, %v3603
      %v5109 = vmul.f32 %v4661, %v3604
      %v5110 = vmul.f32 %v4662, %v3605
      %v5111 = vmul.f32 %v4663, %v3606
      %v5112 = vmul.f32 %v4664, %v3607
      %v5113 = vmul.f32 %v4665, %v3608
      %v5114 = vmul.f32 %v4666, %v3609
      %v5115 = vmul.f32 %v4667, %v3610
      %v5116 = vmul.f32 %v4668, %v3611
      %v5117 = vmul.f32 %v4669, %v3612
      %v5118 = vmul.f32 %v4670, %v3613
      %v5119 = vmul.f32 %v4671, %v3614
      %v5120 = vmul.f32 %v4672, %v3615
      %v5121 = vmul.f32 %v4673, %v3616
      %v5122 = vmul.f32 %v4674, %v3617
      %v5123 = vmul.f32 %v4675, %v3618
      %v5124 = vmul.f32 %v4676, %v3619
      %v5125 = vmul.f32 %v4677, %v3620
      %v5126 = vmul.f32 %v4678, %v3621
      %v5127 = vmul.f32 %v4679, %v3622
      %v5128 = vmul.f32 %v4680, %v3623
      %v5129 = vmul.f32 %v4681, %v3624
      %v5130 = vmul.f32 %v4682, %v3625
      %v5131 = vmul.f32 %v4683, %v3626
      %v5132 = vmul.f32 %v4684, %v3627
      %v5133 = vmul.f32 %v4685, %v3628
      %v5134 = vmul.f32 %v4686, %v3629
      %v5135 = vmul.f32 %v4687, %v3630
      %v5136 = vmul.f32 %v4688, %v3631
      %v5137 = vmul.f32 %v4689, %v3632
      %v5138 = vmul.f32 %v4690, %v3633
      %v5139 = vadd.f32 %v5107, %v5108
      %5140 = vadd.xlane.f32.xlu0 %v5139
      %v5141 = vpop.xlane.xlu0 %5140
      %v5142 = vadd.f32 %v5109, %v5110
      %5143 = vadd.xlane.f32.xlu0 %v5142
      %v5144 = vpop.xlane.xlu0 %5143
      %v5145 = vadd.f32 %v5111, %v5112
      %5146 = vadd.xlane.f32.xlu0 %v5145
      %v5147 = vpop.xlane.xlu0 %5146
      %v5148 = vadd.f32 %v5113, %v5114
      %5149 = vadd.xlane.f32.xlu0 %v5148
      %v5150 = vpop.xlane.xlu0 %5149
      %v5151 = vadd.f32 %v5115, %v5116
      %5152 = vadd.xlane.f32.xlu0 %v5151
      %v5153 = vpop.xlane.xlu0 %5152
      %v5154 = vadd.f32 %v5117, %v5118
      %5155 = vadd.xlane.f32.xlu0 %v5154
      %v5156 = vpop.xlane.xlu0 %5155
      %v5157 = vadd.f32 %v5119, %v5120
      %5158 = vadd.xlane.f32.xlu0 %v5157
      %v5159 = vpop.xlane.xlu0 %5158
      %v5160 = vadd.f32 %v5121, %v5122
      %5161 = vadd.xlane.f32.xlu0 %v5160
      %v5162 = vpop.xlane.xlu0 %5161
      %v5163 = vadd.f32 %v5123, %v5124
      %5164 = vadd.xlane.f32.xlu0 %v5163
      %v5165 = vpop.xlane.xlu0 %5164
      %v5166 = vadd.f32 %v5125, %v5126
      %5167 = vadd.xlane.f32.xlu0 %v5166
      %v5168 = vpop.xlane.xlu0 %5167
      %v5169 = vadd.f32 %v5127, %v5128
      %5170 = vadd.xlane.f32.xlu0 %v5169
      %v5171 = vpop.xlane.xlu0 %5170
      %v5172 = vadd.f32 %v5129, %v5130
      %5173 = vadd.xlane.f32.xlu0 %v5172
      %v5174 = vpop.xlane.xlu0 %5173
      %v5175 = vadd.f32 %v5131, %v5132
      %5176 = vadd.xlane.f32.xlu0 %v5175
      %v5177 = vpop.xlane.xlu0 %5176
      %v5178 = vadd.f32 %v5133, %v5134
      %5179 = vadd.xlane.f32.xlu0 %v5178
      %v5180 = vpop.xlane.xlu0 %5179
      %v5181 = vadd.f32 %v5135, %v5136
      %5182 = vadd.xlane.f32.xlu0 %v5181
      %v5183 = vpop.xlane.xlu0 %5182
      %v5184 = vadd.f32 %v5137, %v5138
      %5185 = vadd.xlane.f32.xlu0 %v5184
      %v5186 = vpop.xlane.xlu0 %5185
      %v5187 = vmul.f32 %v4659, %v3705
      %v5188 = vmul.f32 %v4660, %v3706
      %v5189 = vmul.f32 %v4661, %v3707
      %v5190 = vmul.f32 %v4662, %v3708
      %v5191 = vmul.f32 %v4663, %v3709
      %v5192 = vmul.f32 %v4664, %v3710
      %v5193 = vmul.f32 %v4665, %v3711
      %v5194 = vmul.f32 %v4666, %v3712
      %v5195 = vmul.f32 %v4667, %v3713
      %v5196 = vmul.f32 %v4668, %v3714
      %v5197 = vmul.f32 %v4669, %v3715
      %v5198 = vmul.f32 %v4670, %v3716
      %v5199 = vmul.f32 %v4671, %v3717
      %v5200 = vmul.f32 %v4672, %v3718
      %v5201 = vmul.f32 %v4673, %v3719
      %v5202 = vmul.f32 %v4674, %v3720
      %v5203 = vmul.f32 %v4675, %v3721
      %v5204 = vmul.f32 %v4676, %v3722
      %v5205 = vmul.f32 %v4677, %v3723
      %v5206 = vmul.f32 %v4678, %v3724
      %v5207 = vmul.f32 %v4679, %v3725
      %v5208 = vmul.f32 %v4680, %v3726
      %v5209 = vmul.f32 %v4681, %v3727
      %v5210 = vmul.f32 %v4682, %v3728
      %v5211 = vmul.f32 %v4683, %v3729
      %v5212 = vmul.f32 %v4684, %v3730
      %v5213 = vmul.f32 %v4685, %v3731
      %v5214 = vmul.f32 %v4686, %v3732
      %v5215 = vmul.f32 %v4687, %v3733
      %v5216 = vmul.f32 %v4688, %v3734
      %v5217 = vmul.f32 %v4689, %v3735
      %v5218 = vmul.f32 %v4690, %v3736
      %v5219 = vadd.f32 %v5187, %v5188
      %5220 = vadd.xlane.f32.xlu0 %v5219
      %v5221 = vpop.xlane.xlu0 %5220
      %v5222 = vadd.f32 %v5189, %v5190
      %5223 = vadd.xlane.f32.xlu0 %v5222
      %v5224 = vpop.xlane.xlu0 %5223
      %v5225 = vadd.f32 %v5191, %v5192
      %5226 = vadd.xlane.f32.xlu0 %v5225
      %v5227 = vpop.xlane.xlu0 %5226
      %v5228 = vadd.f32 %v5193, %v5194
      %5229 = vadd.xlane.f32.xlu0 %v5228
      %v5230 = vpop.xlane.xlu0 %5229
      %v5231 = vadd.f32 %v5195, %v5196
      %5232 = vadd.xlane.f32.xlu0 %v5231
      %v5233 = vpop.xlane.xlu0 %5232
      %v5234 = vadd.f32 %v5197, %v5198
      %5235 = vadd.xlane.f32.xlu0 %v5234
      %v5236 = vpop.xlane.xlu0 %5235
      %v5237 = vadd.f32 %v5199, %v5200
      %5238 = vadd.xlane.f32.xlu0 %v5237
      %v5239 = vpop.xlane.xlu0 %5238
      %v5240 = vadd.f32 %v5201, %v5202
      %5241 = vadd.xlane.f32.xlu0 %v5240
      %v5242 = vpop.xlane.xlu0 %5241
      %v5243 = vadd.f32 %v5203, %v5204
      %5244 = vadd.xlane.f32.xlu0 %v5243
      %v5245 = vpop.xlane.xlu0 %5244
      %v5246 = vadd.f32 %v5205, %v5206
      %5247 = vadd.xlane.f32.xlu0 %v5246
      %v5248 = vpop.xlane.xlu0 %5247
      %v5249 = vadd.f32 %v5207, %v5208
      %5250 = vadd.xlane.f32.xlu0 %v5249
      %v5251 = vpop.xlane.xlu0 %5250
      %v5252 = vadd.f32 %v5209, %v5210
      %5253 = vadd.xlane.f32.xlu0 %v5252
      %v5254 = vpop.xlane.xlu0 %5253
      %v5255 = vadd.f32 %v5211, %v5212
      %5256 = vadd.xlane.f32.xlu0 %v5255
      %v5257 = vpop.xlane.xlu0 %5256
      %v5258 = vadd.f32 %v5213, %v5214
      %5259 = vadd.xlane.f32.xlu0 %v5258
      %v5260 = vpop.xlane.xlu0 %5259
      %v5261 = vadd.f32 %v5215, %v5216
      %5262 = vadd.xlane.f32.xlu0 %v5261
      %v5263 = vpop.xlane.xlu0 %5262
      %v5264 = vadd.f32 %v5217, %v5218
      %5265 = vadd.xlane.f32.xlu0 %v5264
      %v5266 = vpop.xlane.xlu0 %5265
      %v5267 = vmul.f32 %v4691, %v3705
      %v5268 = vmul.f32 %v4692, %v3706
      %v5269 = vmul.f32 %v4693, %v3707
      %v5270 = vmul.f32 %v4694, %v3708
      %v5271 = vmul.f32 %v4695, %v3709
      %v5272 = vmul.f32 %v4696, %v3710
      %v5273 = vmul.f32 %v4697, %v3711
      %v5274 = vmul.f32 %v4698, %v3712
      %v5275 = vmul.f32 %v4699, %v3713
      %v5276 = vmul.f32 %v4700, %v3714
      %v5277 = vmul.f32 %v4701, %v3715
      %v5278 = vmul.f32 %v4702, %v3716
      %v5279 = vmul.f32 %v4703, %v3717
      %v5280 = vmul.f32 %v4704, %v3718
      %v5281 = vmul.f32 %v4705, %v3719
      %v5282 = vmul.f32 %v4706, %v3720
      %v5283 = vmul.f32 %v4707, %v3721
      %v5284 = vmul.f32 %v4708, %v3722
      %v5285 = vmul.f32 %v4709, %v3723
      %v5286 = vmul.f32 %v4710, %v3724
      %v5287 = vmul.f32 %v4711, %v3725
      %v5288 = vmul.f32 %v4712, %v3726
      %v5289 = vmul.f32 %v4713, %v3727
      %v5290 = vmul.f32 %v4714, %v3728
      %v5291 = vmul.f32 %v4715, %v3729
      %v5292 = vmul.f32 %v4716, %v3730
      %v5293 = vmul.f32 %v4717, %v3731
      %v5294 = vmul.f32 %v4718, %v3732
      %v5295 = vmul.f32 %v4719, %v3733
      %v5296 = vmul.f32 %v4720, %v3734
      %v5297 = vmul.f32 %v4721, %v3735
      %v5298 = vmul.f32 %v4722, %v3736
      %v5299 = vadd.f32 %v5267, %v5268
      %5300 = vadd.xlane.f32.xlu0 %v5299
      %v5301 = vpop.xlane.xlu0 %5300
      %v5302 = vadd.f32 %v5269, %v5270
      %5303 = vadd.xlane.f32.xlu0 %v5302
      %v5304 = vpop.xlane.xlu0 %5303
      %v5305 = vadd.f32 %v5271, %v5272
      %5306 = vadd.xlane.f32.xlu0 %v5305
      %v5307 = vpop.xlane.xlu0 %5306
      %v5308 = vadd.f32 %v5273, %v5274
      %5309 = vadd.xlane.f32.xlu0 %v5308
      %v5310 = vpop.xlane.xlu0 %5309
      %v5311 = vadd.f32 %v5275, %v5276
      %5312 = vadd.xlane.f32.xlu0 %v5311
      %v5313 = vpop.xlane.xlu0 %5312
      %v5314 = vadd.f32 %v5277, %v5278
      %5315 = vadd.xlane.f32.xlu0 %v5314
      %v5316 = vpop.xlane.xlu0 %5315
      %v5317 = vadd.f32 %v5279, %v5280
      %5318 = vadd.xlane.f32.xlu0 %v5317
      %v5319 = vpop.xlane.xlu0 %5318
      %v5320 = vadd.f32 %v5281, %v5282
      %5321 = vadd.xlane.f32.xlu0 %v5320
      %v5322 = vpop.xlane.xlu0 %5321
      %v5323 = vadd.f32 %v5283, %v5284
      %5324 = vadd.xlane.f32.xlu0 %v5323
      %v5325 = vpop.xlane.xlu0 %5324
      %v5326 = vadd.f32 %v5285, %v5286
      %5327 = vadd.xlane.f32.xlu0 %v5326
      %v5328 = vpop.xlane.xlu0 %5327
      %v5329 = vadd.f32 %v5287, %v5288
      %5330 = vadd.xlane.f32.xlu0 %v5329
      %v5331 = vpop.xlane.xlu0 %5330
      %v5332 = vadd.f32 %v5289, %v5290
      %5333 = vadd.xlane.f32.xlu0 %v5332
      %v5334 = vpop.xlane.xlu0 %5333
      %v5335 = vadd.f32 %v5291, %v5292
      %5336 = vadd.xlane.f32.xlu0 %v5335
      %v5337 = vpop.xlane.xlu0 %5336
      %v5338 = vadd.f32 %v5293, %v5294
      %5339 = vadd.xlane.f32.xlu0 %v5338
      %v5340 = vpop.xlane.xlu0 %5339
      %v5341 = vadd.f32 %v5295, %v5296
      %5342 = vadd.xlane.f32.xlu0 %v5341
      %v5343 = vpop.xlane.xlu0 %5342
      %v5344 = vadd.f32 %v5297, %v5298
      %5345 = vadd.xlane.f32.xlu0 %v5344
      %v5346 = vpop.xlane.xlu0 %5345
      %v5347 = vsel %vm4457, %v4725, 0.0
      %v5348 = vsel %vm4457, %v4728, 0.0
      %v5349 = vsel %vm4457, %v4731, 0.0
      %v5350 = vsel %vm4457, %v4734, 0.0
      %v5351 = vsel %vm4457, %v4737, 0.0
      %v5352 = vsel %vm4457, %v4740, 0.0
      %v5353 = vsel %vm4457, %v4743, 0.0
      %v5354 = vsel %vm4457, %v4746, 0.0
      %v5355 = vsel %vm4457, %v4749, 0.0
      %v5356 = vsel %vm4457, %v4752, 0.0
      %v5357 = vsel %vm4457, %v4755, 0.0
      %v5358 = vsel %vm4457, %v4758, 0.0
      %v5359 = vsel %vm4457, %v4761, 0.0
      %v5360 = vsel %vm4457, %v4764, 0.0
      %v5361 = vsel %vm4457, %v4767, 0.0
      %v5362 = vsel %vm4457, %v4770, 0.0
      %v5363 = vsel %vm4474, %v4773, %v5347
      %v5364 = vsel %vm4474, %v4776, %v5348
      %v5365 = vsel %vm4474, %v4779, %v5349
      %v5366 = vsel %vm4474, %v4782, %v5350
      %v5367 = vsel %vm4474, %v4785, %v5351
      %v5368 = vsel %vm4474, %v4788, %v5352
      %v5369 = vsel %vm4474, %v4791, %v5353
      %v5370 = vsel %vm4474, %v4794, %v5354
      %v5371 = vsel %vm4474, %v4797, %v5355
      %v5372 = vsel %vm4474, %v4800, %v5356
      %v5373 = vsel %vm4474, %v4803, %v5357
      %v5374 = vsel %vm4474, %v4806, %v5358
      %v5375 = vsel %vm4474, %v4809, %v5359
      %v5376 = vsel %vm4474, %v4812, %v5360
      %v5377 = vsel %vm4474, %v4815, %v5361
      %v5378 = vsel %vm4474, %v4818, %v5362
      %v5379 = vsel %vm4491, %v4821, %v5363
      %v5380 = vsel %vm4491, %v4824, %v5364
      %v5381 = vsel %vm4491, %v4827, %v5365
      %v5382 = vsel %vm4491, %v4830, %v5366
      %v5383 = vsel %vm4491, %v4833, %v5367
      %v5384 = vsel %vm4491, %v4836, %v5368
      %v5385 = vsel %vm4491, %v4839, %v5369
      %v5386 = vsel %vm4491, %v4842, %v5370
      %v5387 = vsel %vm4491, %v4845, %v5371
      %v5388 = vsel %vm4491, %v4848, %v5372
      %v5389 = vsel %vm4491, %v4851, %v5373
      %v5390 = vsel %vm4491, %v4854, %v5374
      %v5391 = vsel %vm4491, %v4857, %v5375
      %v5392 = vsel %vm4491, %v4860, %v5376
      %v5393 = vsel %vm4491, %v4863, %v5377
      %v5394 = vsel %vm4491, %v4866, %v5378
      %v5395 = vsel %vm4508, %v4901, %v5379
      %v5396 = vsel %vm4508, %v4904, %v5380
      %v5397 = vsel %vm4508, %v4907, %v5381
      %v5398 = vsel %vm4508, %v4910, %v5382
      %v5399 = vsel %vm4508, %v4913, %v5383
      %v5400 = vsel %vm4508, %v4916, %v5384
      %v5401 = vsel %vm4508, %v4919, %v5385
      %v5402 = vsel %vm4508, %v4922, %v5386
      %v5403 = vsel %vm4508, %v4925, %v5387
      %v5404 = vsel %vm4508, %v4928, %v5388
      %v5405 = vsel %vm4508, %v4931, %v5389
      %v5406 = vsel %vm4508, %v4934, %v5390
      %v5407 = vsel %vm4508, %v4937, %v5391
      %v5408 = vsel %vm4508, %v4940, %v5392
      %v5409 = vsel %vm4508, %v4943, %v5393
      %v5410 = vsel %vm4508, %v4946, %v5394
      %v5411 = vsel %vm4525, %v4981, %v5395
      %v5412 = vsel %vm4525, %v4984, %v5396
      %v5413 = vsel %vm4525, %v4987, %v5397
      %v5414 = vsel %vm4525, %v4990, %v5398
      %v5415 = vsel %vm4525, %v4993, %v5399
      %v5416 = vsel %vm4525, %v4996, %v5400
      %v5417 = vsel %vm4525, %v4999, %v5401
      %v5418 = vsel %vm4525, %v5002, %v5402
      %v5419 = vsel %vm4525, %v5005, %v5403
      %v5420 = vsel %vm4525, %v5008, %v5404
      %v5421 = vsel %vm4525, %v5011, %v5405
      %v5422 = vsel %vm4525, %v5014, %v5406
      %v5423 = vsel %vm4525, %v5017, %v5407
      %v5424 = vsel %vm4525, %v5020, %v5408
      %v5425 = vsel %vm4525, %v5023, %v5409
      %v5426 = vsel %vm4525, %v5026, %v5410
      %v5427 = vsel %vm4542, %v5061, %v5411
      %v5428 = vsel %vm4542, %v5064, %v5412
      %v5429 = vsel %vm4542, %v5067, %v5413
      %v5430 = vsel %vm4542, %v5070, %v5414
      %v5431 = vsel %vm4542, %v5073, %v5415
      %v5432 = vsel %vm4542, %v5076, %v5416
      %v5433 = vsel %vm4542, %v5079, %v5417
      %v5434 = vsel %vm4542, %v5082, %v5418
      %v5435 = vsel %vm4542, %v5085, %v5419
      %v5436 = vsel %vm4542, %v5088, %v5420
      %v5437 = vsel %vm4542, %v5091, %v5421
      %v5438 = vsel %vm4542, %v5094, %v5422
      %v5439 = vsel %vm4542, %v5097, %v5423
      %v5440 = vsel %vm4542, %v5100, %v5424
      %v5441 = vsel %vm4542, %v5103, %v5425
      %v5442 = vsel %vm4542, %v5106, %v5426
      %v5443 = vsel %vm4559, %v5141, %v5427
      %v5444 = vsel %vm4559, %v5144, %v5428
      %v5445 = vsel %vm4559, %v5147, %v5429
      %v5446 = vsel %vm4559, %v5150, %v5430
      %v5447 = vsel %vm4559, %v5153, %v5431
      %v5448 = vsel %vm4559, %v5156, %v5432
      %v5449 = vsel %vm4559, %v5159, %v5433
      %v5450 = vsel %vm4559, %v5162, %v5434
      %v5451 = vsel %vm4559, %v5165, %v5435
      %v5452 = vsel %vm4559, %v5168, %v5436
      %v5453 = vsel %vm4559, %v5171, %v5437
      %v5454 = vsel %vm4559, %v5174, %v5438
      %v5455 = vsel %vm4559, %v5177, %v5439
      %v5456 = vsel %vm4559, %v5180, %v5440
      %v5457 = vsel %vm4559, %v5183, %v5441
      %v5458 = vsel %vm4559, %v5186, %v5442
      %v5459 = vsel %vm4576, %v5221, %v5443
      %v5460 = vsel %vm4576, %v5224, %v5444
      %v5461 = vsel %vm4576, %v5227, %v5445
      %v5462 = vsel %vm4576, %v5230, %v5446
      %v5463 = vsel %vm4576, %v5233, %v5447
      %v5464 = vsel %vm4576, %v5236, %v5448
      %v5465 = vsel %vm4576, %v5239, %v5449
      %v5466 = vsel %vm4576, %v5242, %v5450
      %v5467 = vsel %vm4576, %v5245, %v5451
      %v5468 = vsel %vm4576, %v5248, %v5452
      %v5469 = vsel %vm4576, %v5251, %v5453
      %v5470 = vsel %vm4576, %v5254, %v5454
      %v5471 = vsel %vm4576, %v5257, %v5455
      %v5472 = vsel %vm4576, %v5260, %v5456
      %v5473 = vsel %vm4576, %v5263, %v5457
      %v5474 = vsel %vm4576, %v5266, %v5458
      %v5475 = vsel %vm4593, %v5301, %v5459
      %v5476 = vsel %vm4593, %v5304, %v5460
      %v5477 = vsel %vm4593, %v5307, %v5461
      %v5478 = vsel %vm4593, %v5310, %v5462
      %v5479 = vsel %vm4593, %v5313, %v5463
      %v5480 = vsel %vm4593, %v5316, %v5464
      %v5481 = vsel %vm4593, %v5319, %v5465
      %v5482 = vsel %vm4593, %v5322, %v5466
      %v5483 = vsel %vm4593, %v5325, %v5467
      %v5484 = vsel %vm4593, %v5328, %v5468
      %v5485 = vsel %vm4593, %v5331, %v5469
      %v5486 = vsel %vm4593, %v5334, %v5470
      %v5487 = vsel %vm4593, %v5337, %v5471
      %v5488 = vsel %vm4593, %v5340, %v5472
      %v5489 = vsel %vm4593, %v5343, %v5473
      %v5490 = vsel %vm4593, %v5346, %v5474
      %5491 = vst.msk [vmem:[%s362] sm:$0xff] %vm4610, %v5475
      %5492 = vst.msk [vmem:[%s362 + $0x8] sm:$0xff] %vm4610, %v5476
      %5493 = vst.msk [vmem:[%s362 + $0x10] sm:$0xff] %vm4610, %v5477
      %5494 = vst.msk [vmem:[%s362 + $0x18] sm:$0xff] %vm4610, %v5478
      %5495 = vst.msk [vmem:[%s362 + $0x20] sm:$0xff] %vm4610, %v5479
      %5496 = vst.msk [vmem:[%s362 + $0x28] sm:$0xff] %vm4610, %v5480
      %5497 = vst.msk [vmem:[%s362 + $0x30] sm:$0xff] %vm4610, %v5481
      %5498 = vst.msk [vmem:[%s362 + $0x38] sm:$0xff] %vm4610, %v5482
      %5499 = vst.msk [vmem:[%s362 + $0x40] sm:$0xff] %vm4610, %v5483
      %5500 = vst.msk [vmem:[%s362 + $0x48] sm:$0xff] %vm4610, %v5484
      %5501 = vst.msk [vmem:[%s362 + $0x50] sm:$0xff] %vm4610, %v5485
      %5502 = vst.msk [vmem:[%s362 + $0x58] sm:$0xff] %vm4610, %v5486
      %5503 = vst.msk [vmem:[%s362 + $0x60] sm:$0xff] %vm4610, %v5487
      %5504 = vst.msk [vmem:[%s362 + $0x68] sm:$0xff] %vm4610, %v5488
      %5505 = vst.msk [vmem:[%s362 + $0x70] sm:$0xff] %vm4610, %v5489
      %5506 = vst.msk [vmem:[%s362 + $0x78] sm:$0xff] %vm4610, %v5490
      %s5507 = smul.u32 16, %s22
      %p5508 = scmp.lt.s32.totalorder %s21, 1
      %s5509 = scalar_select %p5508, %s21, 1
      %p5510 = scmp.lt.s32.totalorder %s5507, 31
      %s5511 = scalar_select %p5510, %s5507, 31
      %s5512 = smul.addr %s5509, 32
      %s5513 = sadd.s32 %s5511, %s5512
      %s5514 = smul.addr %s5513, 8
      %s5515 = scalar_lea.vmem %s4, %s5514
      %s5516 = smul.u32 16, %s22
      %p5517 = scmp.lt.s32.totalorder %s21, 1
      %s5518 = scalar_select %p5517, %s21, 1
      %p5519 = scmp.lt.s32.totalorder %s5516, 31
      %s5520 = scalar_select %p5519, %s5516, 31
      %s5521 = smul.addr %s5518, 32
      %s5522 = sadd.s32 %s5520, %s5521
      %s5523 = smul.addr %s5522, 8
      %s5524 = scalar_lea.vmem %s5, %s5523
      // Predicated region
      $region37: #{normal_loss.2} parent=35 // pred_check
        %p5525 = pneg %p157
      $region38: #{normal_loss.2} parent=35 // pred_check_branch
        %5527 = sbr.rel (%p5525) target = $region40
      $region39: #{normal_loss.2} parent=35 // pred_region
        %s5528 = smul.u32 16, %s22
      $region40: #{normal_loss.2} parent=35 // pred_fallthru
        _
      // Predicated region
      $region41: #{normal_loss.2} parent=35 // pred_check
        %p5529 = pneg %p185
      $region42: #{normal_loss.2} parent=35 // pred_check_branch
        %5531 = sbr.rel (%p5529) target = $region44
      $region43: #{normal_loss.2} parent=35 // pred_region
        %s5532 = smul.u32 16, %s22
      $region44: #{normal_loss.2} parent=35 // pred_fallthru
        _
    $region36: #{normal_loss.2} parent=5 // pred_fallthru
      _
    %p5533 = scmp.le.s32.totalorder 2, %s12
    // Predicated region
    $region45: #{normal_loss.2} parent=5 // pred_check
      %p5534 = pneg %p5533
    $region46: #{normal_loss.2} parent=5 // pred_check_branch
      %5536 = sbr.rel (%p5534) target = $region48
    $region47: #{normal_loss.2} parent=5 // pred_region
      %s5537 = ssub.s32 %s12, 2
      // Predicated region
      $region49: #{normal_loss.2} parent=47 // pred_check
        %p5538 = pneg %p163
      $region50: #{normal_loss.2} parent=47 // pred_check_branch
        %5540 = sbr.rel (%p5538) target = $region52
      $region51: #{normal_loss.2} parent=47 // pred_region
        %s5541 = smul.u32 16, %s24
        %p5542 = scmp.lt.s32.totalorder %s23, 1
        %s5543 = scalar_select %p5542, %s23, 1
        %p5544 = scmp.lt.s32.totalorder %s5541, 31
        %s5545 = scalar_select %p5544, %s5541, 31
        %s5546 = smul.addr %s5543, 32
        %s5547 = sadd.s32 %s5545, %s5546
        %s5548 = smul.addr %s5547, 8
        %s5549 = scalar_lea.vmem %s4, %s5548
      $region52: #{normal_loss.2} parent=47 // pred_fallthru
        _
      // Predicated region
      $region53: #{normal_loss.2} parent=47 // pred_check
        %p5550 = pneg %p191
      $region54: #{normal_loss.2} parent=47 // pred_check_branch
        %5552 = sbr.rel (%p5550) target = $region56
      $region55: #{normal_loss.2} parent=47 // pred_region
        %s5553 = smul.u32 16, %s24
        %p5554 = scmp.lt.s32.totalorder %s23, 1
        %s5555 = scalar_select %p5554, %s23, 1
        %p5556 = scmp.lt.s32.totalorder %s5553, 31
        %s5557 = scalar_select %p5556, %s5553, 31
        %s5558 = smul.addr %s5555, 32
        %s5559 = sadd.s32 %s5557, %s5558
        %s5560 = smul.addr %s5559, 8
        %s5561 = scalar_lea.vmem %s5, %s5560
      $region56: #{normal_loss.2} parent=47 // pred_fallthru
        _
    $region48: #{normal_loss.2} parent=5 // pred_fallthru
      _
  $region6: #{normal_loss.2} parent=0 // loop_footer
    %s16 = sadd.s32 1, %s12
  $region7: #{normal_loss.2} parent=0 // loop_footer_branch
    %11 = sbr.rel target = $region3
  $region8: #{normal_loss.2} parent=0 // loop_exit
    _

</llo_original>
